<compile_context>
chip_gen: v5e
topology: v5e:2x2
jax: 0.10.0
libtpu: 0.0.40
codegen_flags: <defaults>
</compile_context>

<pallas_src>
import math
from functools import partial

import jax
import jax.numpy as jnp
from jax.experimental import pallas as pl
from jax.experimental.pallas import tpu as pltpu


# ----------------------------------------------------------------------------
# Fused Pallas kernel
# ----------------------------------------------------------------------------

def _fused_kernel(p1_ref, team_ref, ball_ref,
                  w1_ref, b1_ref, w2_ref, b2_ref, wfc1_ref, bfc1_ref,
                  wt_ref, bt_ref,
                  wih0_ref, whh0_ref, bl0_ref, wcat1_ref, bl1_ref,
                  wd_ref, bd_ref,
                  o_ref, xpad_ref,
                  *, bp, hid, seq, ph, pw, c1, c2):
    """Whole EncoderDecoderModel forward in one kernel.

    p1_ref   : (4*ph*pw*bp, 9*Cin)  conv1 im2col, grouped by 2x2-pool position,
               rows (i, j, b) inside each group.
    xpad_ref : ((ph+2)*(pw+2)*bp, c1) f32 VMEM scratch -- zero-padded conv1
               feature map, rows (p, q, b) spatial-major.
    """
    f32, bf16 = jnp.float32, jnp.bfloat16
    m1 = ph * pw * bp            # rows of the pooled conv1 feature map
    pwp = pw + 2                 # padded width

    def mm(a, w):                # bf16 MXU operands, f32 accumulation
        return jnp.dot(a.astype(bf16), w, preferred_element_type=f32)

    def sigmoid(x):              # EUP tanh path; avoids a VPU divide
        return 0.5 * (jnp.tanh(0.5 * x) + 1.0)

    # ---- conv1 (+folded BN) + ReLU + 2x2 maxpool (max of 4 row blocks) -------
    z1 = jnp.maximum(mm(p1_ref[...], w1_ref[...]) + b1_ref[...], 0.0)     # (4*m1, c1)
    pooled1 = jnp.maximum(jnp.maximum(z1[0 * m1:1 * m1], z1[1 * m1:2 * m1]),
                          jnp.maximum(z1[2 * m1:3 * m1], z1[3 * m1:4 * m1]))  # (m1, c1)

    # ---- stage the pooled map into a zero-padded VMEM scratch ----------------
    xpad_ref[...] = jnp.zeros_like(xpad_ref)
    for i in range(ph):                          # all offsets sublane-tile aligned
        dst = ((i + 1) * pwp + 1) * bp
        xpad_ref[dst:dst + pw * bp, :] = pooled1[i * pw * bp:(i + 1) * pw * bp, :]

    # ---- conv2 (+folded BN): 9 shifted accumulating matmuls + ReLU -----------
    w2 = w2_ref[...]
    acc2 = jnp.zeros((m1, c2), f32)
    for kh in range(3):
        for kw in range(3):
            rows = [xpad_ref[((i + kh) * pwp + kw) * bp:
                             ((i + kh) * pwp + kw) * bp + pw * bp, :]
                    for i in range(ph)]
            xs = jnp.concatenate(rows, axis=0)                   # (m1, c1), rows (i, j, b)
            blk = (kh * 3 + kw) * c1
            acc2 = acc2 + mm(xs, w2[blk:blk + c1, :])
    z2 = jnp.maximum(acc2 + b2_ref[...], 0.0)                    # (m1, c2)

    # ---- 2x2 maxpool, flatten via lane-concat, fc1 as ONE K=qh*qw*c2 matmul --
    qh, qw = ph // 2, pw // 2
    blocks = []
    for io in range(qh):
        for jo in range(qw):
            r00 = (2 * io * pw + 2 * jo) * bp
            r01 = (2 * io * pw + 2 * jo + 1) * bp
            r10 = ((2 * io + 1) * pw + 2 * jo) * bp
            r11 = ((2 * io + 1) * pw + 2 * jo + 1) * bp
            blocks.append(jnp.maximum(
                jnp.maximum(z2[r00:r00 + bp], z2[r01:r01 + bp]),
                jnp.maximum(z2[r10:r10 + bp], z2[r11:r11 + bp])))
    x_fc = jnp.concatenate(blocks, axis=-1)                      # (bp, qh*qw*c2)
    player_h = jnp.maximum(mm(x_fc, wfc1_ref[...]) + bfc1_ref[...], 0.0)

    # ---- TeamEncoder: Linear(+folded BN) + ReLU (Dropout = id) ---------------
    team_h = jnp.maximum(mm(team_ref[...], wt_ref[...]) + bt_ref[...], 0.0)

    # ---- BallEncoder: 2-layer LSTM, PyTorch gate order (i|f|g|o), h0=c0=0 ----
    # Layer-0 input projection hoisted out of the sequential chain:
    zx0 = mm(ball_ref[...], wih0_ref[...]) + bl0_ref[...]        # (seq*bp, 4*hid)
    whh0 = whh0_ref[...]
    wcat1 = wcat1_ref[...]                                        # [Wih1 | Whh1] stacked
    bl1 = bl1_ref[...]

    def gates(zg, c):
        sg = 0.5 * (jnp.tanh(0.5 * zg) + 1.0)   # full-vreg sigmoid precursor (i|f|.|o)
        tg = jnp.tanh(zg)                        # full-vreg tanh (g)
        i_g = sg[:, 0 * hid:1 * hid]
        f_g = sg[:, 1 * hid:2 * hid]
        g_g = tg[:, 2 * hid:3 * hid]
        o_g = sg[:, 3 * hid:4 * hid]
        c_new = f_g * c + i_g * g_g
        return o_g * jnp.tanh(c_new), c_new

    zeros = jnp.zeros((bp, hid), f32)
    hA = cA = hB = cB = zeros
    for t in range(seq):                         # fully unrolled; 2 matmuls / step
        hA, cA = gates(zx0[t * bp:(t + 1) * bp, :] + mm(hA, whh0), cA)
        hB, cB = gates(mm(jnp.concatenate([hA, hB], axis=-1), wcat1) + bl1, cB)
    ball_h = hB                                  # final hidden of last layer (Dropout = id)

    # ---- Decoder: one matmul on the lane-concat of the three encoders --------
    comb = jnp.concatenate([team_h, player_h, ball_h], axis=-1)  # (bp, 3*hid)
    o_ref[...] = sigmoid(mm(comb, wd_ref[...]) + bd_ref[...])


# ----------------------------------------------------------------------------
# Wrapper helpers (XLA input prep on the raw player tensor only)
# ----------------------------------------------------------------------------

def _full_spec(a):
    return pl.BlockSpec(a.shape, lambda i, _nd=a.ndim: (0,) * _nd)


def _im2col_3x3(x):
    """(B, H, W, C) -> (B, H, W, 9*C), padding=1, patch order (kh, kw, c)."""
    B, H, W, C = x.shape
    xp = jnp.pad(x, ((0, 0), (1, 1), (1, 1), (0, 0)))
    cols = [xp[:, kh:kh + H, kw:kw + W, :] for kh in range(3) for kw in range(3)]
    return jnp.concatenate(cols, axis=-1)


def _pool_groups_smajor(patches):
    """Split into the 4 positions of each 2x2 pool window, stacked along rows.
    Row order inside each group is (i, j, b) (spatial-major, batch innermost)."""
    B, H, W, K = patches.shape
    ho, wo = H // 2, W // 2
    gs = []
    for di in range(2):
        for dj in range(2):
            g = patches[:, di::2, dj::2, :]            # (B, ho, wo, K)
            g = jnp.transpose(g, (1, 2, 0, 3))          # (ho, wo, B, K)
            gs.append(g.reshape(ho * wo * B, K))
    return jnp.concatenate(gs, axis=0)                  # (4*ho*wo*B, K)


# ----------------------------------------------------------------------------
# Parameters (deterministic, synthetic; eval-mode BatchNorm folded in)
# ----------------------------------------------------------------------------

def _xavier_uniform(key, shape, fan_in, fan_out):
    bound = math.sqrt(6.0 / (fan_in + fan_out))
    return jax.random.uniform(key, shape, jnp.float32, -bound, bound)


def _kaiming_uniform_relu(key, shape, fan_in):
    bound = math.sqrt(6.0 / fan_in)
    return jax.random.uniform(key, shape, jnp.float32, -bound, bound)


def _fold_bn_eval(w, b, eps=1e-5):
    """Fold eval-mode BatchNorm (fresh stats: mean=0, var=1, gamma=1, beta=0)
    into the preceding linear/conv weights: w' = w*scale, b' = b*scale + shift."""
    c = w.shape[-1]
    gamma = jnp.ones((c,), jnp.float32)
    beta = jnp.zeros((c,), jnp.float32)
    mean = jnp.zeros((c,), jnp.float32)
    var = jnp.ones((c,), jnp.float32)
    scale = gamma / jnp.sqrt(var + eps)
    shift = beta - mean * scale
    return w * scale[None, :], (b * scale + shift)[None, :]


def init_params(key, cfg):
    assert cfg["num_layers"] == 2, "kernel implements the 2-layer LSTM of the spec"
    H = cfg["hidden"]
    bf16 = jnp.bfloat16
    ks = jax.random.split(key, 8)
    p = {}

    # TeamEncoder: Linear -> BN1d(eval) folded
    wt = _xavier_uniform(ks[0], (cfg["team_in"], H), cfg["team_in"], H)
    wt, bt = _fold_bn_eval(wt, jnp.zeros((H,), jnp.float32))
    p["wt"], p["bt"] = wt.astype(bf16), bt

    # PlayerEncoder convs (HWIO weights reshaped to (9*Cin, Cout)), BN folded
    cin = cfg["player_c"]
    w1 = _kaiming_uniform_relu(ks[1], (3, 3, cin, 32), cin * 9).reshape(9 * cin, 32)
    w1, b1 = _fold_bn_eval(w1, jnp.zeros((32,), jnp.float32))
    p["w1"], p["b1"] = w1.astype(bf16), b1
    w2 = _kaiming_uniform_relu(ks[2], (3, 3, 32, 64), 32 * 9).reshape(9 * 32, 64)
    w2, b2 = _fold_bn_eval(w2, jnp.zeros((64,), jnp.float32))
    p["w2"], p["b2"] = w2.astype(bf16), b2

    # fc1: PyTorch CHW-flatten order rearranged to (spatial, channel) order, flat
    qh, qw = cfg["player_h"] // 4, cfg["player_w"] // 4
    flat = qh * qw * 64
    wfc1_chw = _xavier_uniform(ks[3], (flat, H), flat, H)
    p["wfc1"] = (wfc1_chw.reshape(64, qh * qw, H)
                 .transpose(1, 0, 2).reshape(flat, H).astype(bf16))
    p["bfc1"] = jnp.zeros((1, H), jnp.float32)

    # BallEncoder: 2-layer LSTM, gates fused along the last dim in order (i|f|g|o)
    k40, k41 = jax.random.split(ks[4])
    wih0 = _xavier_uniform(k40, (cfg["ball_in"], 4 * H), cfg["ball_in"], 4 * H)
    whh0 = _xavier_uniform(k41, (H, 4 * H), H, 4 * H)
    p["wih0"], p["whh0"] = wih0.astype(bf16), whh0.astype(bf16)
    p["bl0"] = jnp.zeros((1, 4 * H), jnp.float32)            # b_ih + b_hh (spec zero-inits)
    k50, k51 = jax.random.split(ks[5])
    wih1 = _xavier_uniform(k50, (H, 4 * H), H, 4 * H)
    whh1 = _xavier_uniform(k51, (H, 4 * H), H, 4 * H)
    p["wcat1"] = jnp.concatenate([wih1, whh1], axis=0).astype(bf16)   # (2H, 4H) fused
    p["bl1"] = jnp.zeros((1, 4 * H), jnp.float32)

    # Decoder: Linear(3H -> num_classes), columns zero-padded to 128 (lane-dense)
    nc, ncp = cfg["num_classes"], 128
    wd = _xavier_uniform(ks[6], (3 * H, nc), 3 * H, nc)
    p["wd"] = jnp.pad(wd, ((0, 0), (0, ncp - nc))).astype(bf16)
    p["bd"] = jnp.zeros((1, ncp), jnp.float32)
    return p


# ----------------------------------------------------------------------------
# EncoderDecoderModel forward (inference)
# ----------------------------------------------------------------------------

def encoder_decoder_forward(params, team, player, ball, *, num_classes):
    f32, bf16 = jnp.float32, jnp.bfloat16
    team = team.astype(f32)
    player = player.astype(f32)
    ball = ball.astype(f32)

    B = team.shape[0]
    BP = ((B + 7) // 8) * 8                        # pad batch to the 8-sublane granule
    pad = BP - B

    team_p = jnp.pad(team, ((0, pad), (0, 0)))
    if player.ndim == 3:
        player = player[:, None]
    player_p = jnp.pad(player, ((0, pad), (0, 0), (0, 0), (0, 0)))
    if ball.ndim == 2:
        ball = ball[:, None, :]
    ball_p = jnp.pad(ball, ((0, pad), (0, 0), (0, 0)))
    seq = ball_p.shape[1]
    ball_flat = jnp.transpose(ball_p, (1, 0, 2)).reshape(seq * BP, ball_p.shape[2]).astype(bf16)

    # conv1 im2col + 2x2-pool-window grouping on the RAW input (only XLA glue left)
    x = jnp.transpose(player_p, (0, 2, 3, 1))      # NCHW -> NHWC
    H0, W0 = x.shape[1], x.shape[2]
    p1 = _pool_groups_smajor(_im2col_3x3(x)).astype(bf16)   # (4*ph*pw*BP, 9*Cin)

    hid = params["wt"].shape[1]
    ph, pw = H0 // 2, W0 // 2
    c1 = params["w1"].shape[1]
    c2 = params["w2"].shape[1]
    ncp = params["wd"].shape[1]

    args = (p1, team_p, ball_flat,
            params["w1"], params["b1"], params["w2"], params["b2"],
            params["wfc1"], params["bfc1"],
            params["wt"], params["bt"],
            params["wih0"], params["whh0"], params["bl0"],
            params["wcat1"], params["bl1"],
            params["wd"], params["bd"])

    out = pl.pallas_call(
        partial(_fused_kernel, bp=BP, hid=hid, seq=seq, ph=ph, pw=pw, c1=c1, c2=c2),
        out_shape=jax.ShapeDtypeStruct((BP, ncp), f32),
        grid=(1,),
        in_specs=[_full_spec(a) for a in args],
        out_specs=pl.BlockSpec((BP, ncp), lambda i: (0, 0)),
        scratch_shapes=[pltpu.VMEM(((ph + 2) * (pw + 2) * BP, c1), jnp.float32)],
        compiler_params=pltpu.CompilerParams(dimension_semantics=("arbitrary",)),
    )(*args)

    return out[:B, :num_classes]


# ----------------------------------------------------------------------------

if __name__ == "__main__":
    cfg = dict(team_in=16, player_c=4, player_h=16, player_w=16,
               ball_in=8, hidden=32, num_layers=2, num_classes=5,
               seq=8, batch=2)

    key = jax.random.PRNGKey(0)
    kp, kt, kpl, kb = jax.random.split(key, 4)
    params = init_params(kp, cfg)

    team = jax.random.normal(kt, (cfg["batch"], cfg["team_in"]), jnp.float32)
    player = jax.random.normal(
        kpl, (cfg["batch"], cfg["player_c"], cfg["player_h"], cfg["player_w"]),
        jnp.float32)
    ball = jax.random.normal(kb, (cfg["batch"], cfg["seq"], cfg["ball_in"]),
                             jnp.float32)

    fwd = jax.jit(partial(encoder_decoder_forward,
                          num_classes=cfg["num_classes"]))
    out = jax.block_until_ready(fwd(params, team, player, ball))
    assert out.shape == (cfg["batch"], cfg["num_classes"])
    assert bool(jnp.all(jnp.isfinite(out)))
    assert bool(jnp.all((out >= 0.0) & (out <= 1.0)))
    print("KERNEL_OK")
</pallas_src>

<mosaic_0001>
module attributes {stable_mosaic.version = 11 : i64} {
  func.func @_fused_kernel(%arg0: i32, %arg1: memref<2048x36xbf16, #tpu.memory_space<vmem>>, %arg2: memref<8x16xf32, #tpu.memory_space<vmem>>, %arg3: memref<64x8xbf16, #tpu.memory_space<vmem>>, %arg4: memref<36x32xbf16, #tpu.memory_space<vmem>>, %arg5: memref<1x32xf32, #tpu.memory_space<vmem>>, %arg6: memref<288x64xbf16, #tpu.memory_space<vmem>>, %arg7: memref<1x64xf32, #tpu.memory_space<vmem>>, %arg8: memref<1024x32xbf16, #tpu.memory_space<vmem>>, %arg9: memref<1x32xf32, #tpu.memory_space<vmem>>, %arg10: memref<16x32xbf16, #tpu.memory_space<vmem>>, %arg11: memref<1x32xf32, #tpu.memory_space<vmem>>, %arg12: memref<8x128xbf16, #tpu.memory_space<vmem>>, %arg13: memref<32x128xbf16, #tpu.memory_space<vmem>>, %arg14: memref<1x128xf32, #tpu.memory_space<vmem>>, %arg15: memref<64x128xbf16, #tpu.memory_space<vmem>>, %arg16: memref<1x128xf32, #tpu.memory_space<vmem>>, %arg17: memref<96x128xbf16, #tpu.memory_space<vmem>>, %arg18: memref<1x128xf32, #tpu.memory_space<vmem>>, %arg19: memref<8x128xf32, #tpu.memory_space<vmem>>, %arg20: memref<800x32xf32, #tpu.memory_space<vmem>>) attributes {dimension_semantics = [#tpu.dimension_semantics<arbitrary>], iteration_bounds = array<i64: 1>, scalar_prefetch = 0 : i64, scratch_operands = 1 : i64, tpu.core_type = #tpu.core_type<tc>, window_params = [{pipeline_mode = #tpu.pipeline_mode<synchronous>, transform_indices = @transform_0, window_bounds = array<i64: 2048, 36>}, {pipeline_mode = #tpu.pipeline_mode<synchronous>, transform_indices = @transform_1, window_bounds = array<i64: 8, 16>}, {pipeline_mode = #tpu.pipeline_mode<synchronous>, transform_indices = @transform_2, window_bounds = array<i64: 64, 8>}, {pipeline_mode = #tpu.pipeline_mode<synchronous>, transform_indices = @transform_3, window_bounds = array<i64: 36, 32>}, {pipeline_mode = #tpu.pipeline_mode<synchronous>, transform_indices = @transform_4, window_bounds = array<i64: 1, 32>}, {pipeline_mode = #tpu.pipeline_mode<synchronous>, transform_indices = @transform_5, window_bounds = array<i64: 288, 64>}, {pipeline_mode = #tpu.pipeline_mode<synchronous>, transform_indices = @transform_6, window_bounds = array<i64: 1, 64>}, {pipeline_mode = #tpu.pipeline_mode<synchronous>, transform_indices = @transform_7, window_bounds = array<i64: 1024, 32>}, {pipeline_mode = #tpu.pipeline_mode<synchronous>, transform_indices = @transform_8, window_bounds = array<i64: 1, 32>}, {pipeline_mode = #tpu.pipeline_mode<synchronous>, transform_indices = @transform_9, window_bounds = array<i64: 16, 32>}, {pipeline_mode = #tpu.pipeline_mode<synchronous>, transform_indices = @transform_10, window_bounds = array<i64: 1, 32>}, {pipeline_mode = #tpu.pipeline_mode<synchronous>, transform_indices = @transform_11, window_bounds = array<i64: 8, 128>}, {pipeline_mode = #tpu.pipeline_mode<synchronous>, transform_indices = @transform_12, window_bounds = array<i64: 32, 128>}, {pipeline_mode = #tpu.pipeline_mode<synchronous>, transform_indices = @transform_13, window_bounds = array<i64: 1, 128>}, {pipeline_mode = #tpu.pipeline_mode<synchronous>, transform_indices = @transform_14, window_bounds = array<i64: 64, 128>}, {pipeline_mode = #tpu.pipeline_mode<synchronous>, transform_indices = @transform_15, window_bounds = array<i64: 1, 128>}, {pipeline_mode = #tpu.pipeline_mode<synchronous>, transform_indices = @transform_16, window_bounds = array<i64: 96, 128>}, {pipeline_mode = #tpu.pipeline_mode<synchronous>, transform_indices = @transform_17, window_bounds = array<i64: 1, 128>}, {pipeline_mode = #tpu.pipeline_mode<synchronous>, transform_indices = @transform_18, window_bounds = array<i64: 8, 128>}]} {
    %c0 = arith.constant 0 : index
    %c0_0 = arith.constant 0 : index
    %0 = vector.load %arg1[%c0, %c0_0] : memref<2048x36xbf16, #tpu.memory_space<vmem>>, vector<2048x36xbf16>
    %c0_1 = arith.constant 0 : index
    %c0_2 = arith.constant 0 : index
    %1 = vector.load %arg4[%c0_1, %c0_2] : memref<36x32xbf16, #tpu.memory_space<vmem>>, vector<36x32xbf16>
    %cst = arith.constant dense<0.000000e+00> : vector<2048x32xf32>
    %2 = tpu.matmul %0, %1, %cst {dimension_numbers = #tpu.dot_dimension_numbers<[1], [0], [0], [1], [0, 0, 1, 1], [], []>} : vector<2048x36xbf16>, vector<36x32xbf16>, vector<2048x32xf32> -> vector<2048x32xf32>
    %c0_3 = arith.constant 0 : index
    %c0_4 = arith.constant 0 : index
    %3 = vector.load %arg5[%c0_3, %c0_4] : memref<1x32xf32, #tpu.memory_space<vmem>>, vector<1x32xf32>
    %4 = vector.broadcast %3 : vector<1x32xf32> to vector<2048x32xf32>
    %5 = arith.addf %2, %4 : vector<2048x32xf32>
    %cst_5 = arith.constant 0.000000e+00 : f32
    %6 = vector.broadcast %cst_5 : f32 to vector<2048x32xf32>
    %7 = arith.maximumf %5, %6 : vector<2048x32xf32>
    %8 = vector.extract_strided_slice %7 {offsets = [0, 0], sizes = [512, 32], strides = [1, 1]} : vector<2048x32xf32> to vector<512x32xf32>
    %9 = vector.extract_strided_slice %7 {offsets = [512, 0], sizes = [512, 32], strides = [1, 1]} : vector<2048x32xf32> to vector<512x32xf32>
    %10 = arith.maximumf %8, %9 : vector<512x32xf32>
    %11 = vector.extract_strided_slice %7 {offsets = [1024, 0], sizes = [512, 32], strides = [1, 1]} : vector<2048x32xf32> to vector<512x32xf32>
    %12 = vector.extract_strided_slice %7 {offsets = [1536, 0], sizes = [512, 32], strides = [1, 1]} : vector<2048x32xf32> to vector<512x32xf32>
    %13 = arith.maximumf %11, %12 : vector<512x32xf32>
    %14 = arith.maximumf %10, %13 : vector<512x32xf32>
    %cst_6 = arith.constant 0.000000e+00 : f32
    %15 = vector.broadcast %cst_6 : f32 to vector<800x32xf32>
    %c0_7 = arith.constant 0 : index
    %c0_8 = arith.constant 0 : index
    %16 = vector.load %arg20[%c0_7, %c0_8] : memref<800x32xf32, #tpu.memory_space<vmem>>, vector<800x32xf32>
    tpu.vector_store %arg20[%c0_7, %c0_8], %15 {strides = array<i32>} : memref<800x32xf32, #tpu.memory_space<vmem>>, vector<800x32xf32>,
    %17 = vector.extract_strided_slice %14 {offsets = [0, 0], sizes = [64, 32], strides = [1, 1]} : vector<512x32xf32> to vector<64x32xf32>
    %c88 = arith.constant 88 : index
    %c0_9 = arith.constant 0 : index
    %18 = vector.load %arg20[%c88, %c0_9] : memref<800x32xf32, #tpu.memory_space<vmem>>, vector<64x32xf32>
    tpu.vector_store %arg20[%c88, %c0_9], %17 {strides = array<i32>} : memref<800x32xf32, #tpu.memory_space<vmem>>, vector<64x32xf32>,
    %19 = vector.extract_strided_slice %14 {offsets = [64, 0], sizes = [64, 32], strides = [1, 1]} : vector<512x32xf32> to vector<64x32xf32>
    %c168 = arith.constant 168 : index
    %c0_10 = arith.constant 0 : index
    %20 = vector.load %arg20[%c168, %c0_10] : memref<800x32xf32, #tpu.memory_space<vmem>>, vector<64x32xf32>
    tpu.vector_store %arg20[%c168, %c0_10], %19 {strides = array<i32>} : memref<800x32xf32, #tpu.memory_space<vmem>>, vector<64x32xf32>,
    %21 = vector.extract_strided_slice %14 {offsets = [128, 0], sizes = [64, 32], strides = [1, 1]} : vector<512x32xf32> to vector<64x32xf32>
    %c248 = arith.constant 248 : index
    %c0_11 = arith.constant 0 : index
    %22 = vector.load %arg20[%c248, %c0_11] : memref<800x32xf32, #tpu.memory_space<vmem>>, vector<64x32xf32>
    tpu.vector_store %arg20[%c248, %c0_11], %21 {strides = array<i32>} : memref<800x32xf32, #tpu.memory_space<vmem>>, vector<64x32xf32>,
    %23 = vector.extract_strided_slice %14 {offsets = [192, 0], sizes = [64, 32], strides = [1, 1]} : vector<512x32xf32> to vector<64x32xf32>
    %c328 = arith.constant 328 : index
    %c0_12 = arith.constant 0 : index
    %24 = vector.load %arg20[%c328, %c0_12] : memref<800x32xf32, #tpu.memory_space<vmem>>, vector<64x32xf32>
    tpu.vector_store %arg20[%c328, %c0_12], %23 {strides = array<i32>} : memref<800x32xf32, #tpu.memory_space<vmem>>, vector<64x32xf32>,
    %25 = vector.extract_strided_slice %14 {offsets = [256, 0], sizes = [64, 32], strides = [1, 1]} : vector<512x32xf32> to vector<64x32xf32>
    %c408 = arith.constant 408 : index
    %c0_13 = arith.constant 0 : index
    %26 = vector.load %arg20[%c408, %c0_13] : memref<800x32xf32, #tpu.memory_space<vmem>>, vector<64x32xf32>
    tpu.vector_store %arg20[%c408, %c0_13], %25 {strides = array<i32>} : memref<800x32xf32, #tpu.memory_space<vmem>>, vector<64x32xf32>,
    %27 = vector.extract_strided_slice %14 {offsets = [320, 0], sizes = [64, 32], strides = [1, 1]} : vector<512x32xf32> to vector<64x32xf32>
    %c488 = arith.constant 488 : index
    %c0_14 = arith.constant 0 : index
    %28 = vector.load %arg20[%c488, %c0_14] : memref<800x32xf32, #tpu.memory_space<vmem>>, vector<64x32xf32>
    tpu.vector_store %arg20[%c488, %c0_14], %27 {strides = array<i32>} : memref<800x32xf32, #tpu.memory_space<vmem>>, vector<64x32xf32>,
    %29 = vector.extract_strided_slice %14 {offsets = [384, 0], sizes = [64, 32], strides = [1, 1]} : vector<512x32xf32> to vector<64x32xf32>
    %c568 = arith.constant 568 : index
    %c0_15 = arith.constant 0 : index
    %30 = vector.load %arg20[%c568, %c0_15] : memref<800x32xf32, #tpu.memory_space<vmem>>, vector<64x32xf32>
    tpu.vector_store %arg20[%c568, %c0_15], %29 {strides = array<i32>} : memref<800x32xf32, #tpu.memory_space<vmem>>, vector<64x32xf32>,
    %31 = vector.extract_strided_slice %14 {offsets = [448, 0], sizes = [64, 32], strides = [1, 1]} : vector<512x32xf32> to vector<64x32xf32>
    %c648 = arith.constant 648 : index
    %c0_16 = arith.constant 0 : index
    %32 = vector.load %arg20[%c648, %c0_16] : memref<800x32xf32, #tpu.memory_space<vmem>>, vector<64x32xf32>
    tpu.vector_store %arg20[%c648, %c0_16], %31 {strides = array<i32>} : memref<800x32xf32, #tpu.memory_space<vmem>>, vector<64x32xf32>,
    %c0_17 = arith.constant 0 : index
    %c0_18 = arith.constant 0 : index
    %33 = vector.load %arg6[%c0_17, %c0_18] : memref<288x64xbf16, #tpu.memory_space<vmem>>, vector<288x64xbf16>
    %cst_19 = arith.constant 0.000000e+00 : f32
    %34 = vector.broadcast %cst_19 : f32 to vector<512x64xf32>
    %c0_20 = arith.constant 0 : index
    %c0_21 = arith.constant 0 : index
    %35 = vector.load %arg20[%c0_20, %c0_21] : memref<800x32xf32, #tpu.memory_space<vmem>>, vector<64x32xf32>
    %c80 = arith.constant 80 : index
    %c0_22 = arith.constant 0 : index
    %36 = vector.load %arg20[%c80, %c0_22] : memref<800x32xf32, #tpu.memory_space<vmem>>, vector<64x32xf32>
    %c160 = arith.constant 160 : index
    %c0_23 = arith.constant 0 : index
    %37 = vector.load %arg20[%c160, %c0_23] : memref<800x32xf32, #tpu.memory_space<vmem>>, vector<64x32xf32>
    %c240 = arith.constant 240 : index
    %c0_24 = arith.constant 0 : index
    %38 = vector.load %arg20[%c240, %c0_24] : memref<800x32xf32, #tpu.memory_space<vmem>>, vector<64x32xf32>
    %c320 = arith.constant 320 : index
    %c0_25 = arith.constant 0 : index
    %39 = vector.load %arg20[%c320, %c0_25] : memref<800x32xf32, #tpu.memory_space<vmem>>, vector<64x32xf32>
    %c400 = arith.constant 400 : index
    %c0_26 = arith.constant 0 : index
    %40 = vector.load %arg20[%c400, %c0_26] : memref<800x32xf32, #tpu.memory_space<vmem>>, vector<64x32xf32>
    %c480 = arith.constant 480 : index
    %c0_27 = arith.constant 0 : index
    %41 = vector.load %arg20[%c480, %c0_27] : memref<800x32xf32, #tpu.memory_space<vmem>>, vector<64x32xf32>
    %c560 = arith.constant 560 : index
    %c0_28 = arith.constant 0 : index
    %42 = vector.load %arg20[%c560, %c0_28] : memref<800x32xf32, #tpu.memory_space<vmem>>, vector<64x32xf32>
    %43 = tpu.concatenate %35, %36, %37, %38, %39, %40, %41, %42 in 0 : vector<64x32xf32>, vector<64x32xf32>, vector<64x32xf32>, vector<64x32xf32>, vector<64x32xf32>, vector<64x32xf32>, vector<64x32xf32>, vector<64x32xf32> -> vector<512x32xf32>
    %44 = vector.extract_strided_slice %33 {offsets = [0, 0], sizes = [32, 64], strides = [1, 1]} : vector<288x64xbf16> to vector<32x64xbf16>
    %45 = arith.truncf %43 : vector<512x32xf32> to vector<512x32xbf16>
    %cst_29 = arith.constant dense<0.000000e+00> : vector<512x64xf32>
    %46 = tpu.matmul %45, %44, %cst_29 {dimension_numbers = #tpu.dot_dimension_numbers<[1], [0], [0], [1], [0, 0, 1, 1], [], []>} : vector<512x32xbf16>, vector<32x64xbf16>, vector<512x64xf32> -> vector<512x64xf32>
    %47 = arith.addf %34, %46 : vector<512x64xf32>
    %c8 = arith.constant 8 : index
    %c0_30 = arith.constant 0 : index
    %48 = vector.load %arg20[%c8, %c0_30] : memref<800x32xf32, #tpu.memory_space<vmem>>, vector<64x32xf32>
    %c88_31 = arith.constant 88 : index
    %c0_32 = arith.constant 0 : index
    %49 = vector.load %arg20[%c88_31, %c0_32] : memref<800x32xf32, #tpu.memory_space<vmem>>, vector<64x32xf32>
    %c168_33 = arith.constant 168 : index
    %c0_34 = arith.constant 0 : index
    %50 = vector.load %arg20[%c168_33, %c0_34] : memref<800x32xf32, #tpu.memory_space<vmem>>, vector<64x32xf32>
    %c248_35 = arith.constant 248 : index
    %c0_36 = arith.constant 0 : index
    %51 = vector.load %arg20[%c248_35, %c0_36] : memref<800x32xf32, #tpu.memory_space<vmem>>, vector<64x32xf32>
    %c328_37 = arith.constant 328 : index
    %c0_38 = arith.constant 0 : index
    %52 = vector.load %arg20[%c328_37, %c0_38] : memref<800x32xf32, #tpu.memory_space<vmem>>, vector<64x32xf32>
    %c408_39 = arith.constant 408 : index
    %c0_40 = arith.constant 0 : index
    %53 = vector.load %arg20[%c408_39, %c0_40] : memref<800x32xf32, #tpu.memory_space<vmem>>, vector<64x32xf32>
    %c488_41 = arith.constant 488 : index
    %c0_42 = arith.constant 0 : index
    %54 = vector.load %arg20[%c488_41, %c0_42] : memref<800x32xf32, #tpu.memory_space<vmem>>, vector<64x32xf32>
    %c568_43 = arith.constant 568 : index
    %c0_44 = arith.constant 0 : index
    %55 = vector.load %arg20[%c568_43, %c0_44] : memref<800x32xf32, #tpu.memory_space<vmem>>, vector<64x32xf32>
    %56 = tpu.concatenate %48, %49, %50, %51, %52, %53, %54, %55 in 0 : vector<64x32xf32>, vector<64x32xf32>, vector<64x32xf32>, vector<64x32xf32>, vector<64x32xf32>, vector<64x32xf32>, vector<64x32xf32>, vector<64x32xf32> -> vector<512x32xf32>
    %57 = vector.extract_strided_slice %33 {offsets = [32, 0], sizes = [32, 64], strides = [1, 1]} : vector<288x64xbf16> to vector<32x64xbf16>
    %58 = arith.truncf %56 : vector<512x32xf32> to vector<512x32xbf16>
    %cst_45 = arith.constant dense<0.000000e+00> : vector<512x64xf32>
    %59 = tpu.matmul %58, %57, %cst_45 {dimension_numbers = #tpu.dot_dimension_numbers<[1], [0], [0], [1], [0, 0, 1, 1], [], []>} : vector<512x32xbf16>, vector<32x64xbf16>, vector<512x64xf32> -> vector<512x64xf32>
    %60 = arith.addf %47, %59 : vector<512x64xf32>
    %c16 = arith.constant 16 : index
    %c0_46 = arith.constant 0 : index
    %61 = vector.load %arg20[%c16, %c0_46] : memref<800x32xf32, #tpu.memory_space<vmem>>, vector<64x32xf32>
    %c96 = arith.constant 96 : index
    %c0_47 = arith.constant 0 : index
    %62 = vector.load %arg20[%c96, %c0_47] : memref<800x32xf32, #tpu.memory_space<vmem>>, vector<64x32xf32>
    %c176 = arith.constant 176 : index
    %c0_48 = arith.constant 0 : index
    %63 = vector.load %arg20[%c176, %c0_48] : memref<800x32xf32, #tpu.memory_space<vmem>>, vector<64x32xf32>
    %c256 = arith.constant 256 : index
    %c0_49 = arith.constant 0 : index
    %64 = vector.load %arg20[%c256, %c0_49] : memref<800x32xf32, #tpu.memory_space<vmem>>, vector<64x32xf32>
    %c336 = arith.constant 336 : index
    %c0_50 = arith.constant 0 : index
    %65 = vector.load %arg20[%c336, %c0_50] : memref<800x32xf32, #tpu.memory_space<vmem>>, vector<64x32xf32>
    %c416 = arith.constant 416 : index
    %c0_51 = arith.constant 0 : index
    %66 = vector.load %arg20[%c416, %c0_51] : memref<800x32xf32, #tpu.memory_space<vmem>>, vector<64x32xf32>
    %c496 = arith.constant 496 : index
    %c0_52 = arith.constant 0 : index
    %67 = vector.load %arg20[%c496, %c0_52] : memref<800x32xf32, #tpu.memory_space<vmem>>, vector<64x32xf32>
    %c576 = arith.constant 576 : index
    %c0_53 = arith.constant 0 : index
    %68 = vector.load %arg20[%c576, %c0_53] : memref<800x32xf32, #tpu.memory_space<vmem>>, vector<64x32xf32>
    %69 = tpu.concatenate %61, %62, %63, %64, %65, %66, %67, %68 in 0 : vector<64x32xf32>, vector<64x32xf32>, vector<64x32xf32>, vector<64x32xf32>, vector<64x32xf32>, vector<64x32xf32>, vector<64x32xf32>, vector<64x32xf32> -> vector<512x32xf32>
    %70 = vector.extract_strided_slice %33 {offsets = [64, 0], sizes = [32, 64], strides = [1, 1]} : vector<288x64xbf16> to vector<32x64xbf16>
    %71 = arith.truncf %69 : vector<512x32xf32> to vector<512x32xbf16>
    %cst_54 = arith.constant dense<0.000000e+00> : vector<512x64xf32>
    %72 = tpu.matmul %71, %70, %cst_54 {dimension_numbers = #tpu.dot_dimension_numbers<[1], [0], [0], [1], [0, 0, 1, 1], [], []>} : vector<512x32xbf16>, vector<32x64xbf16>, vector<512x64xf32> -> vector<512x64xf32>
    %73 = arith.addf %60, %72 : vector<512x64xf32>
    %c80_55 = arith.constant 80 : index
    %c0_56 = arith.constant 0 : index
    %74 = vector.load %arg20[%c80_55, %c0_56] : memref<800x32xf32, #tpu.memory_space<vmem>>, vector<64x32xf32>
    %c160_57 = arith.constant 160 : index
    %c0_58 = arith.constant 0 : index
    %75 = vector.load %arg20[%c160_57, %c0_58] : memref<800x32xf32, #tpu.memory_space<vmem>>, vector<64x32xf32>
    %c240_59 = arith.constant 240 : index
    %c0_60 = arith.constant 0 : index
    %76 = vector.load %arg20[%c240_59, %c0_60] : memref<800x32xf32, #tpu.memory_space<vmem>>, vector<64x32xf32>
    %c320_61 = arith.constant 320 : index
    %c0_62 = arith.constant 0 : index
    %77 = vector.load %arg20[%c320_61, %c0_62] : memref<800x32xf32, #tpu.memory_space<vmem>>, vector<64x32xf32>
    %c400_63 = arith.constant 400 : index
    %c0_64 = arith.constant 0 : index
    %78 = vector.load %arg20[%c400_63, %c0_64] : memref<800x32xf32, #tpu.memory_space<vmem>>, vector<64x32xf32>
    %c480_65 = arith.constant 480 : index
    %c0_66 = arith.constant 0 : index
    %79 = vector.load %arg20[%c480_65, %c0_66] : memref<800x32xf32, #tpu.memory_space<vmem>>, vector<64x32xf32>
    %c560_67 = arith.constant 560 : index
    %c0_68 = arith.constant 0 : index
    %80 = vector.load %arg20[%c560_67, %c0_68] : memref<800x32xf32, #tpu.memory_space<vmem>>, vector<64x32xf32>
    %c640 = arith.constant 640 : index
    %c0_69 = arith.constant 0 : index
    %81 = vector.load %arg20[%c640, %c0_69] : memref<800x32xf32, #tpu.memory_space<vmem>>, vector<64x32xf32>
    %82 = tpu.concatenate %74, %75, %76, %77, %78, %79, %80, %81 in 0 : vector<64x32xf32>, vector<64x32xf32>, vector<64x32xf32>, vector<64x32xf32>, vector<64x32xf32>, vector<64x32xf32>, vector<64x32xf32>, vector<64x32xf32> -> vector<512x32xf32>
    %83 = vector.extract_strided_slice %33 {offsets = [96, 0], sizes = [32, 64], strides = [1, 1]} : vector<288x64xbf16> to vector<32x64xbf16>
    %84 = arith.truncf %82 : vector<512x32xf32> to vector<512x32xbf16>
    %cst_70 = arith.constant dense<0.000000e+00> : vector<512x64xf32>
    %85 = tpu.matmul %84, %83, %cst_70 {dimension_numbers = #tpu.dot_dimension_numbers<[1], [0], [0], [1], [0, 0, 1, 1], [], []>} : vector<512x32xbf16>, vector<32x64xbf16>, vector<512x64xf32> -> vector<512x64xf32>
    %86 = arith.addf %73, %85 : vector<512x64xf32>
    %c88_71 = arith.constant 88 : index
    %c0_72 = arith.constant 0 : index
    %87 = vector.load %arg20[%c88_71, %c0_72] : memref<800x32xf32, #tpu.memory_space<vmem>>, vector<64x32xf32>
    %c168_73 = arith.constant 168 : index
    %c0_74 = arith.constant 0 : index
    %88 = vector.load %arg20[%c168_73, %c0_74] : memref<800x32xf32, #tpu.memory_space<vmem>>, vector<64x32xf32>
    %c248_75 = arith.constant 248 : index
    %c0_76 = arith.constant 0 : index
    %89 = vector.load %arg20[%c248_75, %c0_76] : memref<800x32xf32, #tpu.memory_space<vmem>>, vector<64x32xf32>
    %c328_77 = arith.constant 328 : index
    %c0_78 = arith.constant 0 : index
    %90 = vector.load %arg20[%c328_77, %c0_78] : memref<800x32xf32, #tpu.memory_space<vmem>>, vector<64x32xf32>
    %c408_79 = arith.constant 408 : index
    %c0_80 = arith.constant 0 : index
    %91 = vector.load %arg20[%c408_79, %c0_80] : memref<800x32xf32, #tpu.memory_space<vmem>>, vector<64x32xf32>
    %c488_81 = arith.constant 488 : index
    %c0_82 = arith.constant 0 : index
    %92 = vector.load %arg20[%c488_81, %c0_82] : memref<800x32xf32, #tpu.memory_space<vmem>>, vector<64x32xf32>
    %c568_83 = arith.constant 568 : index
    %c0_84 = arith.constant 0 : index
    %93 = vector.load %arg20[%c568_83, %c0_84] : memref<800x32xf32, #tpu.memory_space<vmem>>, vector<64x32xf32>
    %c648_85 = arith.constant 648 : index
    %c0_86 = arith.constant 0 : index
    %94 = vector.load %arg20[%c648_85, %c0_86] : memref<800x32xf32, #tpu.memory_space<vmem>>, vector<64x32xf32>
    %95 = tpu.concatenate %87, %88, %89, %90, %91, %92, %93, %94 in 0 : vector<64x32xf32>, vector<64x32xf32>, vector<64x32xf32>, vector<64x32xf32>, vector<64x32xf32>, vector<64x32xf32>, vector<64x32xf32>, vector<64x32xf32> -> vector<512x32xf32>
    %96 = vector.extract_strided_slice %33 {offsets = [128, 0], sizes = [32, 64], strides = [1, 1]} : vector<288x64xbf16> to vector<32x64xbf16>
    %97 = arith.truncf %95 : vector<512x32xf32> to vector<512x32xbf16>
    %cst_87 = arith.constant dense<0.000000e+00> : vector<512x64xf32>
    %98 = tpu.matmul %97, %96, %cst_87 {dimension_numbers = #tpu.dot_dimension_numbers<[1], [0], [0], [1], [0, 0, 1, 1], [], []>} : vector<512x32xbf16>, vector<32x64xbf16>, vector<512x64xf32> -> vector<512x64xf32>
    %99 = arith.addf %86, %98 : vector<512x64xf32>
    %c96_88 = arith.constant 96 : index
    %c0_89 = arith.constant 0 : index
    %100 = vector.load %arg20[%c96_88, %c0_89] : memref<800x32xf32, #tpu.memory_space<vmem>>, vector<64x32xf32>
    %c176_90 = arith.constant 176 : index
    %c0_91 = arith.constant 0 : index
    %101 = vector.load %arg20[%c176_90, %c0_91] : memref<800x32xf32, #tpu.memory_space<vmem>>, vector<64x32xf32>
    %c256_92 = arith.constant 256 : index
    %c0_93 = arith.constant 0 : index
    %102 = vector.load %arg20[%c256_92, %c0_93] : memref<800x32xf32, #tpu.memory_space<vmem>>, vector<64x32xf32>
    %c336_94 = arith.constant 336 : index
    %c0_95 = arith.constant 0 : index
    %103 = vector.load %arg20[%c336_94, %c0_95] : memref<800x32xf32, #tpu.memory_space<vmem>>, vector<64x32xf32>
    %c416_96 = arith.constant 416 : index
    %c0_97 = arith.constant 0 : index
    %104 = vector.load %arg20[%c416_96, %c0_97] : memref<800x32xf32, #tpu.memory_space<vmem>>, vector<64x32xf32>
    %c496_98 = arith.constant 496 : index
    %c0_99 = arith.constant 0 : index
    %105 = vector.load %arg20[%c496_98, %c0_99] : memref<800x32xf32, #tpu.memory_space<vmem>>, vector<64x32xf32>
    %c576_100 = arith.constant 576 : index
    %c0_101 = arith.constant 0 : index
    %106 = vector.load %arg20[%c576_100, %c0_101] : memref<800x32xf32, #tpu.memory_space<vmem>>, vector<64x32xf32>
    %c656 = arith.constant 656 : index
    %c0_102 = arith.constant 0 : index
    %107 = vector.load %arg20[%c656, %c0_102] : memref<800x32xf32, #tpu.memory_space<vmem>>, vector<64x32xf32>
    %108 = tpu.concatenate %100, %101, %102, %103, %104, %105, %106, %107 in 0 : vector<64x32xf32>, vector<64x32xf32>, vector<64x32xf32>, vector<64x32xf32>, vector<64x32xf32>, vector<64x32xf32>, vector<64x32xf32>, vector<64x32xf32> -> vector<512x32xf32>
    %109 = vector.extract_strided_slice %33 {offsets = [160, 0], sizes = [32, 64], strides = [1, 1]} : vector<288x64xbf16> to vector<32x64xbf16>
    %110 = arith.truncf %108 : vector<512x32xf32> to vector<512x32xbf16>
    %cst_103 = arith.constant dense<0.000000e+00> : vector<512x64xf32>
    %111 = tpu.matmul %110, %109, %cst_103 {dimension_numbers = #tpu.dot_dimension_numbers<[1], [0], [0], [1], [0, 0, 1, 1], [], []>} : vector<512x32xbf16>, vector<32x64xbf16>, vector<512x64xf32> -> vector<512x64xf32>
    %112 = arith.addf %99, %111 : vector<512x64xf32>
    %c160_104 = arith.constant 160 : index
    %c0_105 = arith.constant 0 : index
    %113 = vector.load %arg20[%c160_104, %c0_105] : memref<800x32xf32, #tpu.memory_space<vmem>>, vector<64x32xf32>
    %c240_106 = arith.constant 240 : index
    %c0_107 = arith.constant 0 : index
    %114 = vector.load %arg20[%c240_106, %c0_107] : memref<800x32xf32, #tpu.memory_space<vmem>>, vector<64x32xf32>
    %c320_108 = arith.constant 320 : index
    %c0_109 = arith.constant 0 : index
    %115 = vector.load %arg20[%c320_108, %c0_109] : memref<800x32xf32, #tpu.memory_space<vmem>>, vector<64x32xf32>
    %c400_110 = arith.constant 400 : index
    %c0_111 = arith.constant 0 : index
    %116 = vector.load %arg20[%c400_110, %c0_111] : memref<800x32xf32, #tpu.memory_space<vmem>>, vector<64x32xf32>
    %c480_112 = arith.constant 480 : index
    %c0_113 = arith.constant 0 : index
    %117 = vector.load %arg20[%c480_112, %c0_113] : memref<800x32xf32, #tpu.memory_space<vmem>>, vector<64x32xf32>
    %c560_114 = arith.constant 560 : index
    %c0_115 = arith.constant 0 : index
    %118 = vector.load %arg20[%c560_114, %c0_115] : memref<800x32xf32, #tpu.memory_space<vmem>>, vector<64x32xf32>
    %c640_116 = arith.constant 640 : index
    %c0_117 = arith.constant 0 : index
    %119 = vector.load %arg20[%c640_116, %c0_117] : memref<800x32xf32, #tpu.memory_space<vmem>>, vector<64x32xf32>
    %c720 = arith.constant 720 : index
    %c0_118 = arith.constant 0 : index
    %120 = vector.load %arg20[%c720, %c0_118] : memref<800x32xf32, #tpu.memory_space<vmem>>, vector<64x32xf32>
    %121 = tpu.concatenate %113, %114, %115, %116, %117, %118, %119, %120 in 0 : vector<64x32xf32>, vector<64x32xf32>, vector<64x32xf32>, vector<64x32xf32>, vector<64x32xf32>, vector<64x32xf32>, vector<64x32xf32>, vector<64x32xf32> -> vector<512x32xf32>
    %122 = vector.extract_strided_slice %33 {offsets = [192, 0], sizes = [32, 64], strides = [1, 1]} : vector<288x64xbf16> to vector<32x64xbf16>
    %123 = arith.truncf %121 : vector<512x32xf32> to vector<512x32xbf16>
    %cst_119 = arith.constant dense<0.000000e+00> : vector<512x64xf32>
    %124 = tpu.matmul %123, %122, %cst_119 {dimension_numbers = #tpu.dot_dimension_numbers<[1], [0], [0], [1], [0, 0, 1, 1], [], []>} : vector<512x32xbf16>, vector<32x64xbf16>, vector<512x64xf32> -> vector<512x64xf32>
    %125 = arith.addf %112, %124 : vector<512x64xf32>
    %c168_120 = arith.constant 168 : index
    %c0_121 = arith.constant 0 : index
    %126 = vector.load %arg20[%c168_120, %c0_121] : memref<800x32xf32, #tpu.memory_space<vmem>>, vector<64x32xf32>
    %c248_122 = arith.constant 248 : index
    %c0_123 = arith.constant 0 : index
    %127 = vector.load %arg20[%c248_122, %c0_123] : memref<800x32xf32, #tpu.memory_space<vmem>>, vector<64x32xf32>
    %c328_124 = arith.constant 328 : index
    %c0_125 = arith.constant 0 : index
    %128 = vector.load %arg20[%c328_124, %c0_125] : memref<800x32xf32, #tpu.memory_space<vmem>>, vector<64x32xf32>
    %c408_126 = arith.constant 408 : index
    %c0_127 = arith.constant 0 : index
    %129 = vector.load %arg20[%c408_126, %c0_127] : memref<800x32xf32, #tpu.memory_space<vmem>>, vector<64x32xf32>
    %c488_128 = arith.constant 488 : index
    %c0_129 = arith.constant 0 : index
    %130 = vector.load %arg20[%c488_128, %c0_129] : memref<800x32xf32, #tpu.memory_space<vmem>>, vector<64x32xf32>
    %c568_130 = arith.constant 568 : index
    %c0_131 = arith.constant 0 : index
    %131 = vector.load %arg20[%c568_130, %c0_131] : memref<800x32xf32, #tpu.memory_space<vmem>>, vector<64x32xf32>
    %c648_132 = arith.constant 648 : index
    %c0_133 = arith.constant 0 : index
    %132 = vector.load %arg20[%c648_132, %c0_133] : memref<800x32xf32, #tpu.memory_space<vmem>>, vector<64x32xf32>
    %c728 = arith.constant 728 : index
    %c0_134 = arith.constant 0 : index
    %133 = vector.load %arg20[%c728, %c0_134] : memref<800x32xf32, #tpu.memory_space<vmem>>, vector<64x32xf32>
    %134 = tpu.concatenate %126, %127, %128, %129, %130, %131, %132, %133 in 0 : vector<64x32xf32>, vector<64x32xf32>, vector<64x32xf32>, vector<64x32xf32>, vector<64x32xf32>, vector<64x32xf32>, vector<64x32xf32>, vector<64x32xf32> -> vector<512x32xf32>
    %135 = vector.extract_strided_slice %33 {offsets = [224, 0], sizes = [32, 64], strides = [1, 1]} : vector<288x64xbf16> to vector<32x64xbf16>
    %136 = arith.truncf %134 : vector<512x32xf32> to vector<512x32xbf16>
    %cst_135 = arith.constant dense<0.000000e+00> : vector<512x64xf32>
    %137 = tpu.matmul %136, %135, %cst_135 {dimension_numbers = #tpu.dot_dimension_numbers<[1], [0], [0], [1], [0, 0, 1, 1], [], []>} : vector<512x32xbf16>, vector<32x64xbf16>, vector<512x64xf32> -> vector<512x64xf32>
    %138 = arith.addf %125, %137 : vector<512x64xf32>
    %c176_136 = arith.constant 176 : index
    %c0_137 = arith.constant 0 : index
    %139 = vector.load %arg20[%c176_136, %c0_137] : memref<800x32xf32, #tpu.memory_space<vmem>>, vector<64x32xf32>
    %c256_138 = arith.constant 256 : index
    %c0_139 = arith.constant 0 : index
    %140 = vector.load %arg20[%c256_138, %c0_139] : memref<800x32xf32, #tpu.memory_space<vmem>>, vector<64x32xf32>
    %c336_140 = arith.constant 336 : index
    %c0_141 = arith.constant 0 : index
    %141 = vector.load %arg20[%c336_140, %c0_141] : memref<800x32xf32, #tpu.memory_space<vmem>>, vector<64x32xf32>
    %c416_142 = arith.constant 416 : index
    %c0_143 = arith.constant 0 : index
    %142 = vector.load %arg20[%c416_142, %c0_143] : memref<800x32xf32, #tpu.memory_space<vmem>>, vector<64x32xf32>
    %c496_144 = arith.constant 496 : index
    %c0_145 = arith.constant 0 : index
    %143 = vector.load %arg20[%c496_144, %c0_145] : memref<800x32xf32, #tpu.memory_space<vmem>>, vector<64x32xf32>
    %c576_146 = arith.constant 576 : index
    %c0_147 = arith.constant 0 : index
    %144 = vector.load %arg20[%c576_146, %c0_147] : memref<800x32xf32, #tpu.memory_space<vmem>>, vector<64x32xf32>
    %c656_148 = arith.constant 656 : index
    %c0_149 = arith.constant 0 : index
    %145 = vector.load %arg20[%c656_148, %c0_149] : memref<800x32xf32, #tpu.memory_space<vmem>>, vector<64x32xf32>
    %c736 = arith.constant 736 : index
    %c0_150 = arith.constant 0 : index
    %146 = vector.load %arg20[%c736, %c0_150] : memref<800x32xf32, #tpu.memory_space<vmem>>, vector<64x32xf32>
    %147 = tpu.concatenate %139, %140, %141, %142, %143, %144, %145, %146 in 0 : vector<64x32xf32>, vector<64x32xf32>, vector<64x32xf32>, vector<64x32xf32>, vector<64x32xf32>, vector<64x32xf32>, vector<64x32xf32>, vector<64x32xf32> -> vector<512x32xf32>
    %148 = vector.extract_strided_slice %33 {offsets = [256, 0], sizes = [32, 64], strides = [1, 1]} : vector<288x64xbf16> to vector<32x64xbf16>
    %149 = arith.truncf %147 : vector<512x32xf32> to vector<512x32xbf16>
    %cst_151 = arith.constant dense<0.000000e+00> : vector<512x64xf32>
    %150 = tpu.matmul %149, %148, %cst_151 {dimension_numbers = #tpu.dot_dimension_numbers<[1], [0], [0], [1], [0, 0, 1, 1], [], []>} : vector<512x32xbf16>, vector<32x64xbf16>, vector<512x64xf32> -> vector<512x64xf32>
    %151 = arith.addf %138, %150 : vector<512x64xf32>
    %c0_152 = arith.constant 0 : index
    %c0_153 = arith.constant 0 : index
    %152 = vector.load %arg7[%c0_152, %c0_153] : memref<1x64xf32, #tpu.memory_space<vmem>>, vector<1x64xf32>
    %153 = vector.broadcast %152 : vector<1x64xf32> to vector<512x64xf32>
    %154 = arith.addf %151, %153 : vector<512x64xf32>
    %cst_154 = arith.constant 0.000000e+00 : f32
    %155 = vector.broadcast %cst_154 : f32 to vector<512x64xf32>
    %156 = arith.maximumf %154, %155 : vector<512x64xf32>
    %157 = vector.extract_strided_slice %156 {offsets = [0, 0], sizes = [8, 64], strides = [1, 1]} : vector<512x64xf32> to vector<8x64xf32>
    %158 = vector.extract_strided_slice %156 {offsets = [8, 0], sizes = [8, 64], strides = [1, 1]} : vector<512x64xf32> to vector<8x64xf32>
    %159 = arith.maximumf %157, %158 : vector<8x64xf32>
    %160 = vector.extract_strided_slice %156 {offsets = [64, 0], sizes = [8, 64], strides = [1, 1]} : vector<512x64xf32> to vector<8x64xf32>
    %161 = vector.extract_strided_slice %156 {offsets = [72, 0], sizes = [8, 64], strides = [1, 1]} : vector<512x64xf32> to vector<8x64xf32>
    %162 = arith.maximumf %160, %161 : vector<8x64xf32>
    %163 = arith.maximumf %159, %162 : vector<8x64xf32>
    %164 = vector.extract_strided_slice %156 {offsets = [16, 0], sizes = [8, 64], strides = [1, 1]} : vector<512x64xf32> to vector<8x64xf32>
    %165 = vector.extract_strided_slice %156 {offsets = [24, 0], sizes = [8, 64], strides = [1, 1]} : vector<512x64xf32> to vector<8x64xf32>
    %166 = arith.maximumf %164, %165 : vector<8x64xf32>
    %167 = vector.extract_strided_slice %156 {offsets = [80, 0], sizes = [8, 64], strides = [1, 1]} : vector<512x64xf32> to vector<8x64xf32>
    %168 = vector.extract_strided_slice %156 {offsets = [88, 0], sizes = [8, 64], strides = [1, 1]} : vector<512x64xf32> to vector<8x64xf32>
    %169 = arith.maximumf %167, %168 : vector<8x64xf32>
    %170 = arith.maximumf %166, %169 : vector<8x64xf32>
    %171 = vector.extract_strided_slice %156 {offsets = [32, 0], sizes = [8, 64], strides = [1, 1]} : vector<512x64xf32> to vector<8x64xf32>
    %172 = vector.extract_strided_slice %156 {offsets = [40, 0], sizes = [8, 64], strides = [1, 1]} : vector<512x64xf32> to vector<8x64xf32>
    %173 = arith.maximumf %171, %172 : vector<8x64xf32>
    %174 = vector.extract_strided_slice %156 {offsets = [96, 0], sizes = [8, 64], strides = [1, 1]} : vector<512x64xf32> to vector<8x64xf32>
    %175 = vector.extract_strided_slice %156 {offsets = [104, 0], sizes = [8, 64], strides = [1, 1]} : vector<512x64xf32> to vector<8x64xf32>
    %176 = arith.maximumf %174, %175 : vector<8x64xf32>
    %177 = arith.maximumf %173, %176 : vector<8x64xf32>
    %178 = vector.extract_strided_slice %156 {offsets = [48, 0], sizes = [8, 64], strides = [1, 1]} : vector<512x64xf32> to vector<8x64xf32>
    %179 = vector.extract_strided_slice %156 {offsets = [56, 0], sizes = [8, 64], strides = [1, 1]} : vector<512x64xf32> to vector<8x64xf32>
    %180 = arith.maximumf %178, %179 : vector<8x64xf32>
    %181 = vector.extract_strided_slice %156 {offsets = [112, 0], sizes = [8, 64], strides = [1, 1]} : vector<512x64xf32> to vector<8x64xf32>
    %182 = vector.extract_strided_slice %156 {offsets = [120, 0], sizes = [8, 64], strides = [1, 1]} : vector<512x64xf32> to vector<8x64xf32>
    %183 = arith.maximumf %181, %182 : vector<8x64xf32>
    %184 = arith.maximumf %180, %183 : vector<8x64xf32>
    %185 = vector.extract_strided_slice %156 {offsets = [128, 0], sizes = [8, 64], strides = [1, 1]} : vector<512x64xf32> to vector<8x64xf32>
    %186 = vector.extract_strided_slice %156 {offsets = [136, 0], sizes = [8, 64], strides = [1, 1]} : vector<512x64xf32> to vector<8x64xf32>
    %187 = arith.maximumf %185, %186 : vector<8x64xf32>
    %188 = vector.extract_strided_slice %156 {offsets = [192, 0], sizes = [8, 64], strides = [1, 1]} : vector<512x64xf32> to vector<8x64xf32>
    %189 = vector.extract_strided_slice %156 {offsets = [200, 0], sizes = [8, 64], strides = [1, 1]} : vector<512x64xf32> to vector<8x64xf32>
    %190 = arith.maximumf %188, %189 : vector<8x64xf32>
    %191 = arith.maximumf %187, %190 : vector<8x64xf32>
    %192 = vector.extract_strided_slice %156 {offsets = [144, 0], sizes = [8, 64], strides = [1, 1]} : vector<512x64xf32> to vector<8x64xf32>
    %193 = vector.extract_strided_slice %156 {offsets = [152, 0], sizes = [8, 64], strides = [1, 1]} : vector<512x64xf32> to vector<8x64xf32>
    %194 = arith.maximumf %192, %193 : vector<8x64xf32>
    %195 = vector.extract_strided_slice %156 {offsets = [208, 0], sizes = [8, 64], strides = [1, 1]} : vector<512x64xf32> to vector<8x64xf32>
    %196 = vector.extract_strided_slice %156 {offsets = [216, 0], sizes = [8, 64], strides = [1, 1]} : vector<512x64xf32> to vector<8x64xf32>
    %197 = arith.maximumf %195, %196 : vector<8x64xf32>
    %198 = arith.maximumf %194, %197 : vector<8x64xf32>
    %199 = vector.extract_strided_slice %156 {offsets = [160, 0], sizes = [8, 64], strides = [1, 1]} : vector<512x64xf32> to vector<8x64xf32>
    %200 = vector.extract_strided_slice %156 {offsets = [168, 0], sizes = [8, 64], strides = [1, 1]} : vector<512x64xf32> to vector<8x64xf32>
    %201 = arith.maximumf %199, %200 : vector<8x64xf32>
    %202 = vector.extract_strided_slice %156 {offsets = [224, 0], sizes = [8, 64], strides = [1, 1]} : vector<512x64xf32> to vector<8x64xf32>
    %203 = vector.extract_strided_slice %156 {offsets = [232, 0], sizes = [8, 64], strides = [1, 1]} : vector<512x64xf32> to vector<8x64xf32>
    %204 = arith.maximumf %202, %203 : vector<8x64xf32>
    %205 = arith.maximumf %201, %204 : vector<8x64xf32>
    %206 = vector.extract_strided_slice %156 {offsets = [176, 0], sizes = [8, 64], strides = [1, 1]} : vector<512x64xf32> to vector<8x64xf32>
    %207 = vector.extract_strided_slice %156 {offsets = [184, 0], sizes = [8, 64], strides = [1, 1]} : vector<512x64xf32> to vector<8x64xf32>
    %208 = arith.maximumf %206, %207 : vector<8x64xf32>
    %209 = vector.extract_strided_slice %156 {offsets = [240, 0], sizes = [8, 64], strides = [1, 1]} : vector<512x64xf32> to vector<8x64xf32>
    %210 = vector.extract_strided_slice %156 {offsets = [248, 0], sizes = [8, 64], strides = [1, 1]} : vector<512x64xf32> to vector<8x64xf32>
    %211 = arith.maximumf %209, %210 : vector<8x64xf32>
    %212 = arith.maximumf %208, %211 : vector<8x64xf32>
    %213 = vector.extract_strided_slice %156 {offsets = [256, 0], sizes = [8, 64], strides = [1, 1]} : vector<512x64xf32> to vector<8x64xf32>
    %214 = vector.extract_strided_slice %156 {offsets = [264, 0], sizes = [8, 64], strides = [1, 1]} : vector<512x64xf32> to vector<8x64xf32>
    %215 = arith.maximumf %213, %214 : vector<8x64xf32>
    %216 = vector.extract_strided_slice %156 {offsets = [320, 0], sizes = [8, 64], strides = [1, 1]} : vector<512x64xf32> to vector<8x64xf32>
    %217 = vector.extract_strided_slice %156 {offsets = [328, 0], sizes = [8, 64], strides = [1, 1]} : vector<512x64xf32> to vector<8x64xf32>
    %218 = arith.maximumf %216, %217 : vector<8x64xf32>
    %219 = arith.maximumf %215, %218 : vector<8x64xf32>
    %220 = vector.extract_strided_slice %156 {offsets = [272, 0], sizes = [8, 64], strides = [1, 1]} : vector<512x64xf32> to vector<8x64xf32>
    %221 = vector.extract_strided_slice %156 {offsets = [280, 0], sizes = [8, 64], strides = [1, 1]} : vector<512x64xf32> to vector<8x64xf32>
    %222 = arith.maximumf %220, %221 : vector<8x64xf32>
    %223 = vector.extract_strided_slice %156 {offsets = [336, 0], sizes = [8, 64], strides = [1, 1]} : vector<512x64xf32> to vector<8x64xf32>
    %224 = vector.extract_strided_slice %156 {offsets = [344, 0], sizes = [8, 64], strides = [1, 1]} : vector<512x64xf32> to vector<8x64xf32>
    %225 = arith.maximumf %223, %224 : vector<8x64xf32>
    %226 = arith.maximumf %222, %225 : vector<8x64xf32>
    %227 = vector.extract_strided_slice %156 {offsets = [288, 0], sizes = [8, 64], strides = [1, 1]} : vector<512x64xf32> to vector<8x64xf32>
    %228 = vector.extract_strided_slice %156 {offsets = [296, 0], sizes = [8, 64], strides = [1, 1]} : vector<512x64xf32> to vector<8x64xf32>
    %229 = arith.maximumf %227, %228 : vector<8x64xf32>
    %230 = vector.extract_strided_slice %156 {offsets = [352, 0], sizes = [8, 64], strides = [1, 1]} : vector<512x64xf32> to vector<8x64xf32>
    %231 = vector.extract_strided_slice %156 {offsets = [360, 0], sizes = [8, 64], strides = [1, 1]} : vector<512x64xf32> to vector<8x64xf32>
    %232 = arith.maximumf %230, %231 : vector<8x64xf32>
    %233 = arith.maximumf %229, %232 : vector<8x64xf32>
    %234 = vector.extract_strided_slice %156 {offsets = [304, 0], sizes = [8, 64], strides = [1, 1]} : vector<512x64xf32> to vector<8x64xf32>
    %235 = vector.extract_strided_slice %156 {offsets = [312, 0], sizes = [8, 64], strides = [1, 1]} : vector<512x64xf32> to vector<8x64xf32>
    %236 = arith.maximumf %234, %235 : vector<8x64xf32>
    %237 = vector.extract_strided_slice %156 {offsets = [368, 0], sizes = [8, 64], strides = [1, 1]} : vector<512x64xf32> to vector<8x64xf32>
    %238 = vector.extract_strided_slice %156 {offsets = [376, 0], sizes = [8, 64], strides = [1, 1]} : vector<512x64xf32> to vector<8x64xf32>
    %239 = arith.maximumf %237, %238 : vector<8x64xf32>
    %240 = arith.maximumf %236, %239 : vector<8x64xf32>
    %241 = vector.extract_strided_slice %156 {offsets = [384, 0], sizes = [8, 64], strides = [1, 1]} : vector<512x64xf32> to vector<8x64xf32>
    %242 = vector.extract_strided_slice %156 {offsets = [392, 0], sizes = [8, 64], strides = [1, 1]} : vector<512x64xf32> to vector<8x64xf32>
    %243 = arith.maximumf %241, %242 : vector<8x64xf32>
    %244 = vector.extract_strided_slice %156 {offsets = [448, 0], sizes = [8, 64], strides = [1, 1]} : vector<512x64xf32> to vector<8x64xf32>
    %245 = vector.extract_strided_slice %156 {offsets = [456, 0], sizes = [8, 64], strides = [1, 1]} : vector<512x64xf32> to vector<8x64xf32>
    %246 = arith.maximumf %244, %245 : vector<8x64xf32>
    %247 = arith.maximumf %243, %246 : vector<8x64xf32>
    %248 = vector.extract_strided_slice %156 {offsets = [400, 0], sizes = [8, 64], strides = [1, 1]} : vector<512x64xf32> to vector<8x64xf32>
    %249 = vector.extract_strided_slice %156 {offsets = [408, 0], sizes = [8, 64], strides = [1, 1]} : vector<512x64xf32> to vector<8x64xf32>
    %250 = arith.maximumf %248, %249 : vector<8x64xf32>
    %251 = vector.extract_strided_slice %156 {offsets = [464, 0], sizes = [8, 64], strides = [1, 1]} : vector<512x64xf32> to vector<8x64xf32>
    %252 = vector.extract_strided_slice %156 {offsets = [472, 0], sizes = [8, 64], strides = [1, 1]} : vector<512x64xf32> to vector<8x64xf32>
    %253 = arith.maximumf %251, %252 : vector<8x64xf32>
    %254 = arith.maximumf %250, %253 : vector<8x64xf32>
    %255 = vector.extract_strided_slice %156 {offsets = [416, 0], sizes = [8, 64], strides = [1, 1]} : vector<512x64xf32> to vector<8x64xf32>
    %256 = vector.extract_strided_slice %156 {offsets = [424, 0], sizes = [8, 64], strides = [1, 1]} : vector<512x64xf32> to vector<8x64xf32>
    %257 = arith.maximumf %255, %256 : vector<8x64xf32>
    %258 = vector.extract_strided_slice %156 {offsets = [480, 0], sizes = [8, 64], strides = [1, 1]} : vector<512x64xf32> to vector<8x64xf32>
    %259 = vector.extract_strided_slice %156 {offsets = [488, 0], sizes = [8, 64], strides = [1, 1]} : vector<512x64xf32> to vector<8x64xf32>
    %260 = arith.maximumf %258, %259 : vector<8x64xf32>
    %261 = arith.maximumf %257, %260 : vector<8x64xf32>
    %262 = vector.extract_strided_slice %156 {offsets = [432, 0], sizes = [8, 64], strides = [1, 1]} : vector<512x64xf32> to vector<8x64xf32>
    %263 = vector.extract_strided_slice %156 {offsets = [440, 0], sizes = [8, 64], strides = [1, 1]} : vector<512x64xf32> to vector<8x64xf32>
    %264 = arith.maximumf %262, %263 : vector<8x64xf32>
    %265 = vector.extract_strided_slice %156 {offsets = [496, 0], sizes = [8, 64], strides = [1, 1]} : vector<512x64xf32> to vector<8x64xf32>
    %266 = vector.extract_strided_slice %156 {offsets = [504, 0], sizes = [8, 64], strides = [1, 1]} : vector<512x64xf32> to vector<8x64xf32>
    %267 = arith.maximumf %265, %266 : vector<8x64xf32>
    %268 = arith.maximumf %264, %267 : vector<8x64xf32>
    %269 = tpu.concatenate %163, %170, %177, %184, %191, %198, %205, %212, %219, %226, %233, %240, %247, %254, %261, %268 in 1 : vector<8x64xf32>, vector<8x64xf32>, vector<8x64xf32>, vector<8x64xf32>, vector<8x64xf32>, vector<8x64xf32>, vector<8x64xf32>, vector<8x64xf32>, vector<8x64xf32>, vector<8x64xf32>, vector<8x64xf32>, vector<8x64xf32>, vector<8x64xf32>, vector<8x64xf32>, vector<8x64xf32>, vector<8x64xf32> -> vector<8x1024xf32>
    %c0_155 = arith.constant 0 : index
    %c0_156 = arith.constant 0 : index
    %270 = vector.load %arg8[%c0_155, %c0_156] : memref<1024x32xbf16, #tpu.memory_space<vmem>>, vector<1024x32xbf16>
    %271 = arith.truncf %269 : vector<8x1024xf32> to vector<8x1024xbf16>
    %cst_157 = arith.constant dense<0.000000e+00> : vector<8x32xf32>
    %272 = tpu.matmul %271, %270, %cst_157 {dimension_numbers = #tpu.dot_dimension_numbers<[1], [0], [0], [1], [0, 0, 1, 1], [], []>} : vector<8x1024xbf16>, vector<1024x32xbf16>, vector<8x32xf32> -> vector<8x32xf32>
    %c0_158 = arith.constant 0 : index
    %c0_159 = arith.constant 0 : index
    %273 = vector.load %arg9[%c0_158, %c0_159] : memref<1x32xf32, #tpu.memory_space<vmem>>, vector<1x32xf32>
    %274 = vector.broadcast %273 : vector<1x32xf32> to vector<8x32xf32>
    %275 = arith.addf %272, %274 : vector<8x32xf32>
    %cst_160 = arith.constant 0.000000e+00 : f32
    %276 = vector.broadcast %cst_160 : f32 to vector<8x32xf32>
    %277 = arith.maximumf %275, %276 : vector<8x32xf32>
    %c0_161 = arith.constant 0 : index
    %c0_162 = arith.constant 0 : index
    %278 = vector.load %arg2[%c0_161, %c0_162] : memref<8x16xf32, #tpu.memory_space<vmem>>, vector<8x16xf32>
    %c0_163 = arith.constant 0 : index
    %c0_164 = arith.constant 0 : index
    %279 = vector.load %arg10[%c0_163, %c0_164] : memref<16x32xbf16, #tpu.memory_space<vmem>>, vector<16x32xbf16>
    %280 = arith.truncf %278 : vector<8x16xf32> to vector<8x16xbf16>
    %cst_165 = arith.constant dense<0.000000e+00> : vector<8x32xf32>
    %281 = tpu.matmul %280, %279, %cst_165 {dimension_numbers = #tpu.dot_dimension_numbers<[1], [0], [0], [1], [0, 0, 1, 1], [], []>} : vector<8x16xbf16>, vector<16x32xbf16>, vector<8x32xf32> -> vector<8x32xf32>
    %c0_166 = arith.constant 0 : index
    %c0_167 = arith.constant 0 : index
    %282 = vector.load %arg11[%c0_166, %c0_167] : memref<1x32xf32, #tpu.memory_space<vmem>>, vector<1x32xf32>
    %283 = vector.broadcast %282 : vector<1x32xf32> to vector<8x32xf32>
    %284 = arith.addf %281, %283 : vector<8x32xf32>
    %cst_168 = arith.constant 0.000000e+00 : f32
    %285 = vector.broadcast %cst_168 : f32 to vector<8x32xf32>
    %286 = arith.maximumf %284, %285 : vector<8x32xf32>
    %c0_169 = arith.constant 0 : index
    %c0_170 = arith.constant 0 : index
    %287 = vector.load %arg3[%c0_169, %c0_170] : memref<64x8xbf16, #tpu.memory_space<vmem>>, vector<64x8xbf16>
    %c0_171 = arith.constant 0 : index
    %c0_172 = arith.constant 0 : index
    %288 = vector.load %arg12[%c0_171, %c0_172] : memref<8x128xbf16, #tpu.memory_space<vmem>>, vector<8x128xbf16>
    %cst_173 = arith.constant dense<0.000000e+00> : vector<64x128xf32>
    %289 = tpu.matmul %287, %288, %cst_173 {dimension_numbers = #tpu.dot_dimension_numbers<[1], [0], [0], [1], [0, 0, 1, 1], [], []>} : vector<64x8xbf16>, vector<8x128xbf16>, vector<64x128xf32> -> vector<64x128xf32>
    %c0_174 = arith.constant 0 : index
    %c0_175 = arith.constant 0 : index
    %290 = vector.load %arg14[%c0_174, %c0_175] : memref<1x128xf32, #tpu.memory_space<vmem>>, vector<1x128xf32>
    %291 = vector.broadcast %290 : vector<1x128xf32> to vector<64x128xf32>
    %292 = arith.addf %289, %291 : vector<64x128xf32>
    %c0_176 = arith.constant 0 : index
    %c0_177 = arith.constant 0 : index
    %293 = vector.load %arg13[%c0_176, %c0_177] : memref<32x128xbf16, #tpu.memory_space<vmem>>, vector<32x128xbf16>
    %c0_178 = arith.constant 0 : index
    %c0_179 = arith.constant 0 : index
    %294 = vector.load %arg15[%c0_178, %c0_179] : memref<64x128xbf16, #tpu.memory_space<vmem>>, vector<64x128xbf16>
    %c0_180 = arith.constant 0 : index
    %c0_181 = arith.constant 0 : index
    %295 = vector.load %arg16[%c0_180, %c0_181] : memref<1x128xf32, #tpu.memory_space<vmem>>, vector<1x128xf32>
    %cst_182 = arith.constant 0.000000e+00 : f32
    %296 = vector.broadcast %cst_182 : f32 to vector<8x32xf32>
    %297 = vector.extract_strided_slice %292 {offsets = [0, 0], sizes = [8, 128], strides = [1, 1]} : vector<64x128xf32> to vector<8x128xf32>
    %298 = arith.truncf %296 : vector<8x32xf32> to vector<8x32xbf16>
    %cst_183 = arith.constant dense<0.000000e+00> : vector<8x128xf32>
    %299 = tpu.matmul %298, %293, %cst_183 {dimension_numbers = #tpu.dot_dimension_numbers<[1], [0], [0], [1], [0, 0, 1, 1], [], []>} : vector<8x32xbf16>, vector<32x128xbf16>, vector<8x128xf32> -> vector<8x128xf32>
    %300 = arith.addf %297, %299 : vector<8x128xf32>
    %cst_184 = arith.constant 5.000000e-01 : f32
    %301 = vector.broadcast %cst_184 : f32 to vector<8x128xf32>
    %302 = arith.mulf %301, %300 : vector<8x128xf32>
    %303 = math.tanh %302 : vector<8x128xf32>
    %cst_185 = arith.constant 1.000000e+00 : f32
    %304 = vector.broadcast %cst_185 : f32 to vector<8x128xf32>
    %305 = arith.addf %303, %304 : vector<8x128xf32>
    %cst_186 = arith.constant 5.000000e-01 : f32
    %306 = vector.broadcast %cst_186 : f32 to vector<8x128xf32>
    %307 = arith.mulf %306, %305 : vector<8x128xf32>
    %308 = math.tanh %300 : vector<8x128xf32>
    %309 = vector.extract_strided_slice %307 {offsets = [0, 0], sizes = [8, 32], strides = [1, 1]} : vector<8x128xf32> to vector<8x32xf32>
    %310 = vector.extract_strided_slice %307 {offsets = [0, 32], sizes = [8, 32], strides = [1, 1]} : vector<8x128xf32> to vector<8x32xf32>
    %311 = vector.extract_strided_slice %308 {offsets = [0, 64], sizes = [8, 32], strides = [1, 1]} : vector<8x128xf32> to vector<8x32xf32>
    %312 = vector.extract_strided_slice %307 {offsets = [0, 96], sizes = [8, 32], strides = [1, 1]} : vector<8x128xf32> to vector<8x32xf32>
    %313 = arith.mulf %310, %296 : vector<8x32xf32>
    %314 = arith.mulf %309, %311 : vector<8x32xf32>
    %315 = arith.addf %313, %314 : vector<8x32xf32>
    %316 = math.tanh %315 : vector<8x32xf32>
    %317 = arith.mulf %312, %316 : vector<8x32xf32>
    %318 = tpu.concatenate %317, %296 in 1 : vector<8x32xf32>, vector<8x32xf32> -> vector<8x64xf32>
    %319 = arith.truncf %318 : vector<8x64xf32> to vector<8x64xbf16>
    %cst_187 = arith.constant dense<0.000000e+00> : vector<8x128xf32>
    %320 = tpu.matmul %319, %294, %cst_187 {dimension_numbers = #tpu.dot_dimension_numbers<[1], [0], [0], [1], [0, 0, 1, 1], [], []>} : vector<8x64xbf16>, vector<64x128xbf16>, vector<8x128xf32> -> vector<8x128xf32>
    %321 = vector.broadcast %295 : vector<1x128xf32> to vector<8x128xf32>
    %322 = arith.addf %320, %321 : vector<8x128xf32>
    %cst_188 = arith.constant 5.000000e-01 : f32
    %323 = vector.broadcast %cst_188 : f32 to vector<8x128xf32>
    %324 = arith.mulf %323, %322 : vector<8x128xf32>
    %325 = math.tanh %324 : vector<8x128xf32>
    %cst_189 = arith.constant 1.000000e+00 : f32
    %326 = vector.broadcast %cst_189 : f32 to vector<8x128xf32>
    %327 = arith.addf %325, %326 : vector<8x128xf32>
    %cst_190 = arith.constant 5.000000e-01 : f32
    %328 = vector.broadcast %cst_190 : f32 to vector<8x128xf32>
    %329 = arith.mulf %328, %327 : vector<8x128xf32>
    %330 = math.tanh %322 : vector<8x128xf32>
    %331 = vector.extract_strided_slice %329 {offsets = [0, 0], sizes = [8, 32], strides = [1, 1]} : vector<8x128xf32> to vector<8x32xf32>
    %332 = vector.extract_strided_slice %329 {offsets = [0, 32], sizes = [8, 32], strides = [1, 1]} : vector<8x128xf32> to vector<8x32xf32>
    %333 = vector.extract_strided_slice %330 {offsets = [0, 64], sizes = [8, 32], strides = [1, 1]} : vector<8x128xf32> to vector<8x32xf32>
    %334 = vector.extract_strided_slice %329 {offsets = [0, 96], sizes = [8, 32], strides = [1, 1]} : vector<8x128xf32> to vector<8x32xf32>
    %335 = arith.mulf %332, %296 : vector<8x32xf32>
    %336 = arith.mulf %331, %333 : vector<8x32xf32>
    %337 = arith.addf %335, %336 : vector<8x32xf32>
    %338 = math.tanh %337 : vector<8x32xf32>
    %339 = arith.mulf %334, %338 : vector<8x32xf32>
    %340 = vector.extract_strided_slice %292 {offsets = [8, 0], sizes = [8, 128], strides = [1, 1]} : vector<64x128xf32> to vector<8x128xf32>
    %341 = arith.truncf %317 : vector<8x32xf32> to vector<8x32xbf16>
    %cst_191 = arith.constant dense<0.000000e+00> : vector<8x128xf32>
    %342 = tpu.matmul %341, %293, %cst_191 {dimension_numbers = #tpu.dot_dimension_numbers<[1], [0], [0], [1], [0, 0, 1, 1], [], []>} : vector<8x32xbf16>, vector<32x128xbf16>, vector<8x128xf32> -> vector<8x128xf32>
    %343 = arith.addf %340, %342 : vector<8x128xf32>
    %cst_192 = arith.constant 5.000000e-01 : f32
    %344 = vector.broadcast %cst_192 : f32 to vector<8x128xf32>
    %345 = arith.mulf %344, %343 : vector<8x128xf32>
    %346 = math.tanh %345 : vector<8x128xf32>
    %cst_193 = arith.constant 1.000000e+00 : f32
    %347 = vector.broadcast %cst_193 : f32 to vector<8x128xf32>
    %348 = arith.addf %346, %347 : vector<8x128xf32>
    %cst_194 = arith.constant 5.000000e-01 : f32
    %349 = vector.broadcast %cst_194 : f32 to vector<8x128xf32>
    %350 = arith.mulf %349, %348 : vector<8x128xf32>
    %351 = math.tanh %343 : vector<8x128xf32>
    %352 = vector.extract_strided_slice %350 {offsets = [0, 0], sizes = [8, 32], strides = [1, 1]} : vector<8x128xf32> to vector<8x32xf32>
    %353 = vector.extract_strided_slice %350 {offsets = [0, 32], sizes = [8, 32], strides = [1, 1]} : vector<8x128xf32> to vector<8x32xf32>
    %354 = vector.extract_strided_slice %351 {offsets = [0, 64], sizes = [8, 32], strides = [1, 1]} : vector<8x128xf32> to vector<8x32xf32>
    %355 = vector.extract_strided_slice %350 {offsets = [0, 96], sizes = [8, 32], strides = [1, 1]} : vector<8x128xf32> to vector<8x32xf32>
    %356 = arith.mulf %353, %315 : vector<8x32xf32>
    %357 = arith.mulf %352, %354 : vector<8x32xf32>
    %358 = arith.addf %356, %357 : vector<8x32xf32>
    %359 = math.tanh %358 : vector<8x32xf32>
    %360 = arith.mulf %355, %359 : vector<8x32xf32>
    %361 = tpu.concatenate %360, %339 in 1 : vector<8x32xf32>, vector<8x32xf32> -> vector<8x64xf32>
    %362 = arith.truncf %361 : vector<8x64xf32> to vector<8x64xbf16>
    %cst_195 = arith.constant dense<0.000000e+00> : vector<8x128xf32>
    %363 = tpu.matmul %362, %294, %cst_195 {dimension_numbers = #tpu.dot_dimension_numbers<[1], [0], [0], [1], [0, 0, 1, 1], [], []>} : vector<8x64xbf16>, vector<64x128xbf16>, vector<8x128xf32> -> vector<8x128xf32>
    %364 = vector.broadcast %295 : vector<1x128xf32> to vector<8x128xf32>
    %365 = arith.addf %363, %364 : vector<8x128xf32>
    %cst_196 = arith.constant 5.000000e-01 : f32
    %366 = vector.broadcast %cst_196 : f32 to vector<8x128xf32>
    %367 = arith.mulf %366, %365 : vector<8x128xf32>
    %368 = math.tanh %367 : vector<8x128xf32>
    %cst_197 = arith.constant 1.000000e+00 : f32
    %369 = vector.broadcast %cst_197 : f32 to vector<8x128xf32>
    %370 = arith.addf %368, %369 : vector<8x128xf32>
    %cst_198 = arith.constant 5.000000e-01 : f32
    %371 = vector.broadcast %cst_198 : f32 to vector<8x128xf32>
    %372 = arith.mulf %371, %370 : vector<8x128xf32>
    %373 = math.tanh %365 : vector<8x128xf32>
    %374 = vector.extract_strided_slice %372 {offsets = [0, 0], sizes = [8, 32], strides = [1, 1]} : vector<8x128xf32> to vector<8x32xf32>
    %375 = vector.extract_strided_slice %372 {offsets = [0, 32], sizes = [8, 32], strides = [1, 1]} : vector<8x128xf32> to vector<8x32xf32>
    %376 = vector.extract_strided_slice %373 {offsets = [0, 64], sizes = [8, 32], strides = [1, 1]} : vector<8x128xf32> to vector<8x32xf32>
    %377 = vector.extract_strided_slice %372 {offsets = [0, 96], sizes = [8, 32], strides = [1, 1]} : vector<8x128xf32> to vector<8x32xf32>
    %378 = arith.mulf %375, %337 : vector<8x32xf32>
    %379 = arith.mulf %374, %376 : vector<8x32xf32>
    %380 = arith.addf %378, %379 : vector<8x32xf32>
    %381 = math.tanh %380 : vector<8x32xf32>
    %382 = arith.mulf %377, %381 : vector<8x32xf32>
    %383 = vector.extract_strided_slice %292 {offsets = [16, 0], sizes = [8, 128], strides = [1, 1]} : vector<64x128xf32> to vector<8x128xf32>
    %384 = arith.truncf %360 : vector<8x32xf32> to vector<8x32xbf16>
    %cst_199 = arith.constant dense<0.000000e+00> : vector<8x128xf32>
    %385 = tpu.matmul %384, %293, %cst_199 {dimension_numbers = #tpu.dot_dimension_numbers<[1], [0], [0], [1], [0, 0, 1, 1], [], []>} : vector<8x32xbf16>, vector<32x128xbf16>, vector<8x128xf32> -> vector<8x128xf32>
    %386 = arith.addf %383, %385 : vector<8x128xf32>
    %cst_200 = arith.constant 5.000000e-01 : f32
    %387 = vector.broadcast %cst_200 : f32 to vector<8x128xf32>
    %388 = arith.mulf %387, %386 : vector<8x128xf32>
    %389 = math.tanh %388 : vector<8x128xf32>
    %cst_201 = arith.constant 1.000000e+00 : f32
    %390 = vector.broadcast %cst_201 : f32 to vector<8x128xf32>
    %391 = arith.addf %389, %390 : vector<8x128xf32>
    %cst_202 = arith.constant 5.000000e-01 : f32
    %392 = vector.broadcast %cst_202 : f32 to vector<8x128xf32>
    %393 = arith.mulf %392, %391 : vector<8x128xf32>
    %394 = math.tanh %386 : vector<8x128xf32>
    %395 = vector.extract_strided_slice %393 {offsets = [0, 0], sizes = [8, 32], strides = [1, 1]} : vector<8x128xf32> to vector<8x32xf32>
    %396 = vector.extract_strided_slice %393 {offsets = [0, 32], sizes = [8, 32], strides = [1, 1]} : vector<8x128xf32> to vector<8x32xf32>
    %397 = vector.extract_strided_slice %394 {offsets = [0, 64], sizes = [8, 32], strides = [1, 1]} : vector<8x128xf32> to vector<8x32xf32>
    %398 = vector.extract_strided_slice %393 {offsets = [0, 96], sizes = [8, 32], strides = [1, 1]} : vector<8x128xf32> to vector<8x32xf32>
    %399 = arith.mulf %396, %358 : vector<8x32xf32>
    %400 = arith.mulf %395, %397 : vector<8x32xf32>
    %401 = arith.addf %399, %400 : vector<8x32xf32>
    %402 = math.tanh %401 : vector<8x32xf32>
    %403 = arith.mulf %398, %402 : vector<8x32xf32>
    %404 = tpu.concatenate %403, %382 in 1 : vector<8x32xf32>, vector<8x32xf32> -> vector<8x64xf32>
    %405 = arith.truncf %404 : vector<8x64xf32> to vector<8x64xbf16>
    %cst_203 = arith.constant dense<0.000000e+00> : vector<8x128xf32>
    %406 = tpu.matmul %405, %294, %cst_203 {dimension_numbers = #tpu.dot_dimension_numbers<[1], [0], [0], [1], [0, 0, 1, 1], [], []>} : vector<8x64xbf16>, vector<64x128xbf16>, vector<8x128xf32> -> vector<8x128xf32>
    %407 = vector.broadcast %295 : vector<1x128xf32> to vector<8x128xf32>
    %408 = arith.addf %406, %407 : vector<8x128xf32>
    %cst_204 = arith.constant 5.000000e-01 : f32
    %409 = vector.broadcast %cst_204 : f32 to vector<8x128xf32>
    %410 = arith.mulf %409, %408 : vector<8x128xf32>
    %411 = math.tanh %410 : vector<8x128xf32>
    %cst_205 = arith.constant 1.000000e+00 : f32
    %412 = vector.broadcast %cst_205 : f32 to vector<8x128xf32>
    %413 = arith.addf %411, %412 : vector<8x128xf32>
    %cst_206 = arith.constant 5.000000e-01 : f32
    %414 = vector.broadcast %cst_206 : f32 to vector<8x128xf32>
    %415 = arith.mulf %414, %413 : vector<8x128xf32>
    %416 = math.tanh %408 : vector<8x128xf32>
    %417 = vector.extract_strided_slice %415 {offsets = [0, 0], sizes = [8, 32], strides = [1, 1]} : vector<8x128xf32> to vector<8x32xf32>
    %418 = vector.extract_strided_slice %415 {offsets = [0, 32], sizes = [8, 32], strides = [1, 1]} : vector<8x128xf32> to vector<8x32xf32>
    %419 = vector.extract_strided_slice %416 {offsets = [0, 64], sizes = [8, 32], strides = [1, 1]} : vector<8x128xf32> to vector<8x32xf32>
    %420 = vector.extract_strided_slice %415 {offsets = [0, 96], sizes = [8, 32], strides = [1, 1]} : vector<8x128xf32> to vector<8x32xf32>
    %421 = arith.mulf %418, %380 : vector<8x32xf32>
    %422 = arith.mulf %417, %419 : vector<8x32xf32>
    %423 = arith.addf %421, %422 : vector<8x32xf32>
    %424 = math.tanh %423 : vector<8x32xf32>
    %425 = arith.mulf %420, %424 : vector<8x32xf32>
    %426 = vector.extract_strided_slice %292 {offsets = [24, 0], sizes = [8, 128], strides = [1, 1]} : vector<64x128xf32> to vector<8x128xf32>
    %427 = arith.truncf %403 : vector<8x32xf32> to vector<8x32xbf16>
    %cst_207 = arith.constant dense<0.000000e+00> : vector<8x128xf32>
    %428 = tpu.matmul %427, %293, %cst_207 {dimension_numbers = #tpu.dot_dimension_numbers<[1], [0], [0], [1], [0, 0, 1, 1], [], []>} : vector<8x32xbf16>, vector<32x128xbf16>, vector<8x128xf32> -> vector<8x128xf32>
    %429 = arith.addf %426, %428 : vector<8x128xf32>
    %cst_208 = arith.constant 5.000000e-01 : f32
    %430 = vector.broadcast %cst_208 : f32 to vector<8x128xf32>
    %431 = arith.mulf %430, %429 : vector<8x128xf32>
    %432 = math.tanh %431 : vector<8x128xf32>
    %cst_209 = arith.constant 1.000000e+00 : f32
    %433 = vector.broadcast %cst_209 : f32 to vector<8x128xf32>
    %434 = arith.addf %432, %433 : vector<8x128xf32>
    %cst_210 = arith.constant 5.000000e-01 : f32
    %435 = vector.broadcast %cst_210 : f32 to vector<8x128xf32>
    %436 = arith.mulf %435, %434 : vector<8x128xf32>
    %437 = math.tanh %429 : vector<8x128xf32>
    %438 = vector.extract_strided_slice %436 {offsets = [0, 0], sizes = [8, 32], strides = [1, 1]} : vector<8x128xf32> to vector<8x32xf32>
    %439 = vector.extract_strided_slice %436 {offsets = [0, 32], sizes = [8, 32], strides = [1, 1]} : vector<8x128xf32> to vector<8x32xf32>
    %440 = vector.extract_strided_slice %437 {offsets = [0, 64], sizes = [8, 32], strides = [1, 1]} : vector<8x128xf32> to vector<8x32xf32>
    %441 = vector.extract_strided_slice %436 {offsets = [0, 96], sizes = [8, 32], strides = [1, 1]} : vector<8x128xf32> to vector<8x32xf32>
    %442 = arith.mulf %439, %401 : vector<8x32xf32>
    %443 = arith.mulf %438, %440 : vector<8x32xf32>
    %444 = arith.addf %442, %443 : vector<8x32xf32>
    %445 = math.tanh %444 : vector<8x32xf32>
    %446 = arith.mulf %441, %445 : vector<8x32xf32>
    %447 = tpu.concatenate %446, %425 in 1 : vector<8x32xf32>, vector<8x32xf32> -> vector<8x64xf32>
    %448 = arith.truncf %447 : vector<8x64xf32> to vector<8x64xbf16>
    %cst_211 = arith.constant dense<0.000000e+00> : vector<8x128xf32>
    %449 = tpu.matmul %448, %294, %cst_211 {dimension_numbers = #tpu.dot_dimension_numbers<[1], [0], [0], [1], [0, 0, 1, 1], [], []>} : vector<8x64xbf16>, vector<64x128xbf16>, vector<8x128xf32> -> vector<8x128xf32>
    %450 = vector.broadcast %295 : vector<1x128xf32> to vector<8x128xf32>
    %451 = arith.addf %449, %450 : vector<8x128xf32>
    %cst_212 = arith.constant 5.000000e-01 : f32
    %452 = vector.broadcast %cst_212 : f32 to vector<8x128xf32>
    %453 = arith.mulf %452, %451 : vector<8x128xf32>
    %454 = math.tanh %453 : vector<8x128xf32>
    %cst_213 = arith.constant 1.000000e+00 : f32
    %455 = vector.broadcast %cst_213 : f32 to vector<8x128xf32>
    %456 = arith.addf %454, %455 : vector<8x128xf32>
    %cst_214 = arith.constant 5.000000e-01 : f32
    %457 = vector.broadcast %cst_214 : f32 to vector<8x128xf32>
    %458 = arith.mulf %457, %456 : vector<8x128xf32>
    %459 = math.tanh %451 : vector<8x128xf32>
    %460 = vector.extract_strided_slice %458 {offsets = [0, 0], sizes = [8, 32], strides = [1, 1]} : vector<8x128xf32> to vector<8x32xf32>
    %461 = vector.extract_strided_slice %458 {offsets = [0, 32], sizes = [8, 32], strides = [1, 1]} : vector<8x128xf32> to vector<8x32xf32>
    %462 = vector.extract_strided_slice %459 {offsets = [0, 64], sizes = [8, 32], strides = [1, 1]} : vector<8x128xf32> to vector<8x32xf32>
    %463 = vector.extract_strided_slice %458 {offsets = [0, 96], sizes = [8, 32], strides = [1, 1]} : vector<8x128xf32> to vector<8x32xf32>
    %464 = arith.mulf %461, %423 : vector<8x32xf32>
    %465 = arith.mulf %460, %462 : vector<8x32xf32>
    %466 = arith.addf %464, %465 : vector<8x32xf32>
    %467 = math.tanh %466 : vector<8x32xf32>
    %468 = arith.mulf %463, %467 : vector<8x32xf32>
    %469 = vector.extract_strided_slice %292 {offsets = [32, 0], sizes = [8, 128], strides = [1, 1]} : vector<64x128xf32> to vector<8x128xf32>
    %470 = arith.truncf %446 : vector<8x32xf32> to vector<8x32xbf16>
    %cst_215 = arith.constant dense<0.000000e+00> : vector<8x128xf32>
    %471 = tpu.matmul %470, %293, %cst_215 {dimension_numbers = #tpu.dot_dimension_numbers<[1], [0], [0], [1], [0, 0, 1, 1], [], []>} : vector<8x32xbf16>, vector<32x128xbf16>, vector<8x128xf32> -> vector<8x128xf32>
    %472 = arith.addf %469, %471 : vector<8x128xf32>
    %cst_216 = arith.constant 5.000000e-01 : f32
    %473 = vector.broadcast %cst_216 : f32 to vector<8x128xf32>
    %474 = arith.mulf %473, %472 : vector<8x128xf32>
    %475 = math.tanh %474 : vector<8x128xf32>
    %cst_217 = arith.constant 1.000000e+00 : f32
    %476 = vector.broadcast %cst_217 : f32 to vector<8x128xf32>
    %477 = arith.addf %475, %476 : vector<8x128xf32>
    %cst_218 = arith.constant 5.000000e-01 : f32
    %478 = vector.broadcast %cst_218 : f32 to vector<8x128xf32>
    %479 = arith.mulf %478, %477 : vector<8x128xf32>
    %480 = math.tanh %472 : vector<8x128xf32>
    %481 = vector.extract_strided_slice %479 {offsets = [0, 0], sizes = [8, 32], strides = [1, 1]} : vector<8x128xf32> to vector<8x32xf32>
    %482 = vector.extract_strided_slice %479 {offsets = [0, 32], sizes = [8, 32], strides = [1, 1]} : vector<8x128xf32> to vector<8x32xf32>
    %483 = vector.extract_strided_slice %480 {offsets = [0, 64], sizes = [8, 32], strides = [1, 1]} : vector<8x128xf32> to vector<8x32xf32>
    %484 = vector.extract_strided_slice %479 {offsets = [0, 96], sizes = [8, 32], strides = [1, 1]} : vector<8x128xf32> to vector<8x32xf32>
    %485 = arith.mulf %482, %444 : vector<8x32xf32>
    %486 = arith.mulf %481, %483 : vector<8x32xf32>
    %487 = arith.addf %485, %486 : vector<8x32xf32>
    %488 = math.tanh %487 : vector<8x32xf32>
    %489 = arith.mulf %484, %488 : vector<8x32xf32>
    %490 = tpu.concatenate %489, %468 in 1 : vector<8x32xf32>, vector<8x32xf32> -> vector<8x64xf32>
    %491 = arith.truncf %490 : vector<8x64xf32> to vector<8x64xbf16>
    %cst_219 = arith.constant dense<0.000000e+00> : vector<8x128xf32>
    %492 = tpu.matmul %491, %294, %cst_219 {dimension_numbers = #tpu.dot_dimension_numbers<[1], [0], [0], [1], [0, 0, 1, 1], [], []>} : vector<8x64xbf16>, vector<64x128xbf16>, vector<8x128xf32> -> vector<8x128xf32>
    %493 = vector.broadcast %295 : vector<1x128xf32> to vector<8x128xf32>
    %494 = arith.addf %492, %493 : vector<8x128xf32>
    %cst_220 = arith.constant 5.000000e-01 : f32
    %495 = vector.broadcast %cst_220 : f32 to vector<8x128xf32>
    %496 = arith.mulf %495, %494 : vector<8x128xf32>
    %497 = math.tanh %496 : vector<8x128xf32>
    %cst_221 = arith.constant 1.000000e+00 : f32
    %498 = vector.broadcast %cst_221 : f32 to vector<8x128xf32>
    %499 = arith.addf %497, %498 : vector<8x128xf32>
    %cst_222 = arith.constant 5.000000e-01 : f32
    %500 = vector.broadcast %cst_222 : f32 to vector<8x128xf32>
    %501 = arith.mulf %500, %499 : vector<8x128xf32>
    %502 = math.tanh %494 : vector<8x128xf32>
    %503 = vector.extract_strided_slice %501 {offsets = [0, 0], sizes = [8, 32], strides = [1, 1]} : vector<8x128xf32> to vector<8x32xf32>
    %504 = vector.extract_strided_slice %501 {offsets = [0, 32], sizes = [8, 32], strides = [1, 1]} : vector<8x128xf32> to vector<8x32xf32>
    %505 = vector.extract_strided_slice %502 {offsets = [0, 64], sizes = [8, 32], strides = [1, 1]} : vector<8x128xf32> to vector<8x32xf32>
    %506 = vector.extract_strided_slice %501 {offsets = [0, 96], sizes = [8, 32], strides = [1, 1]} : vector<8x128xf32> to vector<8x32xf32>
    %507 = arith.mulf %504, %466 : vector<8x32xf32>
    %508 = arith.mulf %503, %505 : vector<8x32xf32>
    %509 = arith.addf %507, %508 : vector<8x32xf32>
    %510 = math.tanh %509 : vector<8x32xf32>
    %511 = arith.mulf %506, %510 : vector<8x32xf32>
    %512 = vector.extract_strided_slice %292 {offsets = [40, 0], sizes = [8, 128], strides = [1, 1]} : vector<64x128xf32> to vector<8x128xf32>
    %513 = arith.truncf %489 : vector<8x32xf32> to vector<8x32xbf16>
    %cst_223 = arith.constant dense<0.000000e+00> : vector<8x128xf32>
    %514 = tpu.matmul %513, %293, %cst_223 {dimension_numbers = #tpu.dot_dimension_numbers<[1], [0], [0], [1], [0, 0, 1, 1], [], []>} : vector<8x32xbf16>, vector<32x128xbf16>, vector<8x128xf32> -> vector<8x128xf32>
    %515 = arith.addf %512, %514 : vector<8x128xf32>
    %cst_224 = arith.constant 5.000000e-01 : f32
    %516 = vector.broadcast %cst_224 : f32 to vector<8x128xf32>
    %517 = arith.mulf %516, %515 : vector<8x128xf32>
    %518 = math.tanh %517 : vector<8x128xf32>
    %cst_225 = arith.constant 1.000000e+00 : f32
    %519 = vector.broadcast %cst_225 : f32 to vector<8x128xf32>
    %520 = arith.addf %518, %519 : vector<8x128xf32>
    %cst_226 = arith.constant 5.000000e-01 : f32
    %521 = vector.broadcast %cst_226 : f32 to vector<8x128xf32>
    %522 = arith.mulf %521, %520 : vector<8x128xf32>
    %523 = math.tanh %515 : vector<8x128xf32>
    %524 = vector.extract_strided_slice %522 {offsets = [0, 0], sizes = [8, 32], strides = [1, 1]} : vector<8x128xf32> to vector<8x32xf32>
    %525 = vector.extract_strided_slice %522 {offsets = [0, 32], sizes = [8, 32], strides = [1, 1]} : vector<8x128xf32> to vector<8x32xf32>
    %526 = vector.extract_strided_slice %523 {offsets = [0, 64], sizes = [8, 32], strides = [1, 1]} : vector<8x128xf32> to vector<8x32xf32>
    %527 = vector.extract_strided_slice %522 {offsets = [0, 96], sizes = [8, 32], strides = [1, 1]} : vector<8x128xf32> to vector<8x32xf32>
    %528 = arith.mulf %525, %487 : vector<8x32xf32>
    %529 = arith.mulf %524, %526 : vector<8x32xf32>
    %530 = arith.addf %528, %529 : vector<8x32xf32>
    %531 = math.tanh %530 : vector<8x32xf32>
    %532 = arith.mulf %527, %531 : vector<8x32xf32>
    %533 = tpu.concatenate %532, %511 in 1 : vector<8x32xf32>, vector<8x32xf32> -> vector<8x64xf32>
    %534 = arith.truncf %533 : vector<8x64xf32> to vector<8x64xbf16>
    %cst_227 = arith.constant dense<0.000000e+00> : vector<8x128xf32>
    %535 = tpu.matmul %534, %294, %cst_227 {dimension_numbers = #tpu.dot_dimension_numbers<[1], [0], [0], [1], [0, 0, 1, 1], [], []>} : vector<8x64xbf16>, vector<64x128xbf16>, vector<8x128xf32> -> vector<8x128xf32>
    %536 = vector.broadcast %295 : vector<1x128xf32> to vector<8x128xf32>
    %537 = arith.addf %535, %536 : vector<8x128xf32>
    %cst_228 = arith.constant 5.000000e-01 : f32
    %538 = vector.broadcast %cst_228 : f32 to vector<8x128xf32>
    %539 = arith.mulf %538, %537 : vector<8x128xf32>
    %540 = math.tanh %539 : vector<8x128xf32>
    %cst_229 = arith.constant 1.000000e+00 : f32
    %541 = vector.broadcast %cst_229 : f32 to vector<8x128xf32>
    %542 = arith.addf %540, %541 : vector<8x128xf32>
    %cst_230 = arith.constant 5.000000e-01 : f32
    %543 = vector.broadcast %cst_230 : f32 to vector<8x128xf32>
    %544 = arith.mulf %543, %542 : vector<8x128xf32>
    %545 = math.tanh %537 : vector<8x128xf32>
    %546 = vector.extract_strided_slice %544 {offsets = [0, 0], sizes = [8, 32], strides = [1, 1]} : vector<8x128xf32> to vector<8x32xf32>
    %547 = vector.extract_strided_slice %544 {offsets = [0, 32], sizes = [8, 32], strides = [1, 1]} : vector<8x128xf32> to vector<8x32xf32>
    %548 = vector.extract_strided_slice %545 {offsets = [0, 64], sizes = [8, 32], strides = [1, 1]} : vector<8x128xf32> to vector<8x32xf32>
    %549 = vector.extract_strided_slice %544 {offsets = [0, 96], sizes = [8, 32], strides = [1, 1]} : vector<8x128xf32> to vector<8x32xf32>
    %550 = arith.mulf %547, %509 : vector<8x32xf32>
    %551 = arith.mulf %546, %548 : vector<8x32xf32>
    %552 = arith.addf %550, %551 : vector<8x32xf32>
    %553 = math.tanh %552 : vector<8x32xf32>
    %554 = arith.mulf %549, %553 : vector<8x32xf32>
    %555 = vector.extract_strided_slice %292 {offsets = [48, 0], sizes = [8, 128], strides = [1, 1]} : vector<64x128xf32> to vector<8x128xf32>
    %556 = arith.truncf %532 : vector<8x32xf32> to vector<8x32xbf16>
    %cst_231 = arith.constant dense<0.000000e+00> : vector<8x128xf32>
    %557 = tpu.matmul %556, %293, %cst_231 {dimension_numbers = #tpu.dot_dimension_numbers<[1], [0], [0], [1], [0, 0, 1, 1], [], []>} : vector<8x32xbf16>, vector<32x128xbf16>, vector<8x128xf32> -> vector<8x128xf32>
    %558 = arith.addf %555, %557 : vector<8x128xf32>
    %cst_232 = arith.constant 5.000000e-01 : f32
    %559 = vector.broadcast %cst_232 : f32 to vector<8x128xf32>
    %560 = arith.mulf %559, %558 : vector<8x128xf32>
    %561 = math.tanh %560 : vector<8x128xf32>
    %cst_233 = arith.constant 1.000000e+00 : f32
    %562 = vector.broadcast %cst_233 : f32 to vector<8x128xf32>
    %563 = arith.addf %561, %562 : vector<8x128xf32>
    %cst_234 = arith.constant 5.000000e-01 : f32
    %564 = vector.broadcast %cst_234 : f32 to vector<8x128xf32>
    %565 = arith.mulf %564, %563 : vector<8x128xf32>
    %566 = math.tanh %558 : vector<8x128xf32>
    %567 = vector.extract_strided_slice %565 {offsets = [0, 0], sizes = [8, 32], strides = [1, 1]} : vector<8x128xf32> to vector<8x32xf32>
    %568 = vector.extract_strided_slice %565 {offsets = [0, 32], sizes = [8, 32], strides = [1, 1]} : vector<8x128xf32> to vector<8x32xf32>
    %569 = vector.extract_strided_slice %566 {offsets = [0, 64], sizes = [8, 32], strides = [1, 1]} : vector<8x128xf32> to vector<8x32xf32>
    %570 = vector.extract_strided_slice %565 {offsets = [0, 96], sizes = [8, 32], strides = [1, 1]} : vector<8x128xf32> to vector<8x32xf32>
    %571 = arith.mulf %568, %530 : vector<8x32xf32>
    %572 = arith.mulf %567, %569 : vector<8x32xf32>
    %573 = arith.addf %571, %572 : vector<8x32xf32>
    %574 = math.tanh %573 : vector<8x32xf32>
    %575 = arith.mulf %570, %574 : vector<8x32xf32>
    %576 = tpu.concatenate %575, %554 in 1 : vector<8x32xf32>, vector<8x32xf32> -> vector<8x64xf32>
    %577 = arith.truncf %576 : vector<8x64xf32> to vector<8x64xbf16>
    %cst_235 = arith.constant dense<0.000000e+00> : vector<8x128xf32>
    %578 = tpu.matmul %577, %294, %cst_235 {dimension_numbers = #tpu.dot_dimension_numbers<[1], [0], [0], [1], [0, 0, 1, 1], [], []>} : vector<8x64xbf16>, vector<64x128xbf16>, vector<8x128xf32> -> vector<8x128xf32>
    %579 = vector.broadcast %295 : vector<1x128xf32> to vector<8x128xf32>
    %580 = arith.addf %578, %579 : vector<8x128xf32>
    %cst_236 = arith.constant 5.000000e-01 : f32
    %581 = vector.broadcast %cst_236 : f32 to vector<8x128xf32>
    %582 = arith.mulf %581, %580 : vector<8x128xf32>
    %583 = math.tanh %582 : vector<8x128xf32>
    %cst_237 = arith.constant 1.000000e+00 : f32
    %584 = vector.broadcast %cst_237 : f32 to vector<8x128xf32>
    %585 = arith.addf %583, %584 : vector<8x128xf32>
    %cst_238 = arith.constant 5.000000e-01 : f32
    %586 = vector.broadcast %cst_238 : f32 to vector<8x128xf32>
    %587 = arith.mulf %586, %585 : vector<8x128xf32>
    %588 = math.tanh %580 : vector<8x128xf32>
    %589 = vector.extract_strided_slice %587 {offsets = [0, 0], sizes = [8, 32], strides = [1, 1]} : vector<8x128xf32> to vector<8x32xf32>
    %590 = vector.extract_strided_slice %587 {offsets = [0, 32], sizes = [8, 32], strides = [1, 1]} : vector<8x128xf32> to vector<8x32xf32>
    %591 = vector.extract_strided_slice %588 {offsets = [0, 64], sizes = [8, 32], strides = [1, 1]} : vector<8x128xf32> to vector<8x32xf32>
    %592 = vector.extract_strided_slice %587 {offsets = [0, 96], sizes = [8, 32], strides = [1, 1]} : vector<8x128xf32> to vector<8x32xf32>
    %593 = arith.mulf %590, %552 : vector<8x32xf32>
    %594 = arith.mulf %589, %591 : vector<8x32xf32>
    %595 = arith.addf %593, %594 : vector<8x32xf32>
    %596 = math.tanh %595 : vector<8x32xf32>
    %597 = arith.mulf %592, %596 : vector<8x32xf32>
    %598 = vector.extract_strided_slice %292 {offsets = [56, 0], sizes = [8, 128], strides = [1, 1]} : vector<64x128xf32> to vector<8x128xf32>
    %599 = arith.truncf %575 : vector<8x32xf32> to vector<8x32xbf16>
    %cst_239 = arith.constant dense<0.000000e+00> : vector<8x128xf32>
    %600 = tpu.matmul %599, %293, %cst_239 {dimension_numbers = #tpu.dot_dimension_numbers<[1], [0], [0], [1], [0, 0, 1, 1], [], []>} : vector<8x32xbf16>, vector<32x128xbf16>, vector<8x128xf32> -> vector<8x128xf32>
    %601 = arith.addf %598, %600 : vector<8x128xf32>
    %cst_240 = arith.constant 5.000000e-01 : f32
    %602 = vector.broadcast %cst_240 : f32 to vector<8x128xf32>
    %603 = arith.mulf %602, %601 : vector<8x128xf32>
    %604 = math.tanh %603 : vector<8x128xf32>
    %cst_241 = arith.constant 1.000000e+00 : f32
    %605 = vector.broadcast %cst_241 : f32 to vector<8x128xf32>
    %606 = arith.addf %604, %605 : vector<8x128xf32>
    %cst_242 = arith.constant 5.000000e-01 : f32
    %607 = vector.broadcast %cst_242 : f32 to vector<8x128xf32>
    %608 = arith.mulf %607, %606 : vector<8x128xf32>
    %609 = math.tanh %601 : vector<8x128xf32>
    %610 = vector.extract_strided_slice %608 {offsets = [0, 0], sizes = [8, 32], strides = [1, 1]} : vector<8x128xf32> to vector<8x32xf32>
    %611 = vector.extract_strided_slice %608 {offsets = [0, 32], sizes = [8, 32], strides = [1, 1]} : vector<8x128xf32> to vector<8x32xf32>
    %612 = vector.extract_strided_slice %609 {offsets = [0, 64], sizes = [8, 32], strides = [1, 1]} : vector<8x128xf32> to vector<8x32xf32>
    %613 = vector.extract_strided_slice %608 {offsets = [0, 96], sizes = [8, 32], strides = [1, 1]} : vector<8x128xf32> to vector<8x32xf32>
    %614 = arith.mulf %611, %573 : vector<8x32xf32>
    %615 = arith.mulf %610, %612 : vector<8x32xf32>
    %616 = arith.addf %614, %615 : vector<8x32xf32>
    %617 = math.tanh %616 : vector<8x32xf32>
    %618 = arith.mulf %613, %617 : vector<8x32xf32>
    %619 = tpu.concatenate %618, %597 in 1 : vector<8x32xf32>, vector<8x32xf32> -> vector<8x64xf32>
    %620 = arith.truncf %619 : vector<8x64xf32> to vector<8x64xbf16>
    %cst_243 = arith.constant dense<0.000000e+00> : vector<8x128xf32>
    %621 = tpu.matmul %620, %294, %cst_243 {dimension_numbers = #tpu.dot_dimension_numbers<[1], [0], [0], [1], [0, 0, 1, 1], [], []>} : vector<8x64xbf16>, vector<64x128xbf16>, vector<8x128xf32> -> vector<8x128xf32>
    %622 = vector.broadcast %295 : vector<1x128xf32> to vector<8x128xf32>
    %623 = arith.addf %621, %622 : vector<8x128xf32>
    %cst_244 = arith.constant 5.000000e-01 : f32
    %624 = vector.broadcast %cst_244 : f32 to vector<8x128xf32>
    %625 = arith.mulf %624, %623 : vector<8x128xf32>
    %626 = math.tanh %625 : vector<8x128xf32>
    %cst_245 = arith.constant 1.000000e+00 : f32
    %627 = vector.broadcast %cst_245 : f32 to vector<8x128xf32>
    %628 = arith.addf %626, %627 : vector<8x128xf32>
    %cst_246 = arith.constant 5.000000e-01 : f32
    %629 = vector.broadcast %cst_246 : f32 to vector<8x128xf32>
    %630 = arith.mulf %629, %628 : vector<8x128xf32>
    %631 = math.tanh %623 : vector<8x128xf32>
    %632 = vector.extract_strided_slice %630 {offsets = [0, 0], sizes = [8, 32], strides = [1, 1]} : vector<8x128xf32> to vector<8x32xf32>
    %633 = vector.extract_strided_slice %630 {offsets = [0, 32], sizes = [8, 32], strides = [1, 1]} : vector<8x128xf32> to vector<8x32xf32>
    %634 = vector.extract_strided_slice %631 {offsets = [0, 64], sizes = [8, 32], strides = [1, 1]} : vector<8x128xf32> to vector<8x32xf32>
    %635 = vector.extract_strided_slice %630 {offsets = [0, 96], sizes = [8, 32], strides = [1, 1]} : vector<8x128xf32> to vector<8x32xf32>
    %636 = arith.mulf %633, %595 : vector<8x32xf32>
    %637 = arith.mulf %632, %634 : vector<8x32xf32>
    %638 = arith.addf %636, %637 : vector<8x32xf32>
    %639 = math.tanh %638 : vector<8x32xf32>
    %640 = arith.mulf %635, %639 : vector<8x32xf32>
    %641 = tpu.concatenate %286, %277, %640 in 1 : vector<8x32xf32>, vector<8x32xf32>, vector<8x32xf32> -> vector<8x96xf32>
    %c0_247 = arith.constant 0 : index
    %c0_248 = arith.constant 0 : index
    %642 = vector.load %arg17[%c0_247, %c0_248] : memref<96x128xbf16, #tpu.memory_space<vmem>>, vector<96x128xbf16>
    %643 = arith.truncf %641 : vector<8x96xf32> to vector<8x96xbf16>
    %cst_249 = arith.constant dense<0.000000e+00> : vector<8x128xf32>
    %644 = tpu.matmul %643, %642, %cst_249 {dimension_numbers = #tpu.dot_dimension_numbers<[1], [0], [0], [1], [0, 0, 1, 1], [], []>} : vector<8x96xbf16>, vector<96x128xbf16>, vector<8x128xf32> -> vector<8x128xf32>
    %c0_250 = arith.constant 0 : index
    %c0_251 = arith.constant 0 : index
    %645 = vector.load %arg18[%c0_250, %c0_251] : memref<1x128xf32, #tpu.memory_space<vmem>>, vector<1x128xf32>
    %646 = vector.broadcast %645 : vector<1x128xf32> to vector<8x128xf32>
    %647 = arith.addf %644, %646 : vector<8x128xf32>
    %cst_252 = arith.constant 5.000000e-01 : f32
    %648 = vector.broadcast %cst_252 : f32 to vector<8x128xf32>
    %649 = arith.mulf %648, %647 : vector<8x128xf32>
    %650 = math.tanh %649 : vector<8x128xf32>
    %cst_253 = arith.constant 1.000000e+00 : f32
    %651 = vector.broadcast %cst_253 : f32 to vector<8x128xf32>
    %652 = arith.addf %650, %651 : vector<8x128xf32>
    %cst_254 = arith.constant 5.000000e-01 : f32
    %653 = vector.broadcast %cst_254 : f32 to vector<8x128xf32>
    %654 = arith.mulf %653, %652 : vector<8x128xf32>
    %c0_255 = arith.constant 0 : index
    %c0_256 = arith.constant 0 : index
    %655 = vector.load %arg19[%c0_255, %c0_256] : memref<8x128xf32, #tpu.memory_space<vmem>>, vector<8x128xf32>
    tpu.vector_store %arg19[%c0_255, %c0_256], %654 {strides = array<i32>} : memref<8x128xf32, #tpu.memory_space<vmem>>, vector<8x128xf32>,
    return
  }
  func.func @transform_0(%arg0: i32) -> (i32, i32) {
    %c0_i32 = arith.constant 0 : i32
    %c0_i32_0 = arith.constant 0 : i32
    %c0_i32_1 = arith.constant 0 : i32
    return %c0_i32, %c0_i32_0 : i32, i32
  }
  func.func @transform_1(%arg0: i32) -> (i32, i32) {
    %c0_i32 = arith.constant 0 : i32
    %c0_i32_0 = arith.constant 0 : i32
    %c0_i32_1 = arith.constant 0 : i32
    return %c0_i32, %c0_i32_0 : i32, i32
  }
  func.func @transform_2(%arg0: i32) -> (i32, i32) {
    %c0_i32 = arith.constant 0 : i32
    %c0_i32_0 = arith.constant 0 : i32
    %c0_i32_1 = arith.constant 0 : i32
    return %c0_i32, %c0_i32_0 : i32, i32
  }
  func.func @transform_3(%arg0: i32) -> (i32, i32) {
    %c0_i32 = arith.constant 0 : i32
    %c0_i32_0 = arith.constant 0 : i32
    %c0_i32_1 = arith.constant 0 : i32
    return %c0_i32, %c0_i32_0 : i32, i32
  }
  func.func @transform_4(%arg0: i32) -> (i32, i32) {
    %c0_i32 = arith.constant 0 : i32
    %c0_i32_0 = arith.constant 0 : i32
    %c0_i32_1 = arith.constant 0 : i32
    return %c0_i32, %c0_i32_0 : i32, i32
  }
  func.func @transform_5(%arg0: i32) -> (i32, i32) {
    %c0_i32 = arith.constant 0 : i32
    %c0_i32_0 = arith.constant 0 : i32
    %c0_i32_1 = arith.constant 0 : i32
    return %c0_i32, %c0_i32_0 : i32, i32
  }
  func.func @transform_6(%arg0: i32) -> (i32, i32) {
    %c0_i32 = arith.constant 0 : i32
    %c0_i32_0 = arith.constant 0 : i32
    %c0_i32_1 = arith.constant 0 : i32
    return %c0_i32, %c0_i32_0 : i32, i32
  }
  func.func @transform_7(%arg0: i32) -> (i32, i32) {
    %c0_i32 = arith.constant 0 : i32
    %c0_i32_0 = arith.constant 0 : i32
    %c0_i32_1 = arith.constant 0 : i32
    return %c0_i32, %c0_i32_0 : i32, i32
  }
  func.func @transform_8(%arg0: i32) -> (i32, i32) {
    %c0_i32 = arith.constant 0 : i32
    %c0_i32_0 = arith.constant 0 : i32
    %c0_i32_1 = arith.constant 0 : i32
    return %c0_i32, %c0_i32_0 : i32, i32
  }
  func.func @transform_9(%arg0: i32) -> (i32, i32) {
    %c0_i32 = arith.constant 0 : i32
    %c0_i32_0 = arith.constant 0 : i32
    %c0_i32_1 = arith.constant 0 : i32
    return %c0_i32, %c0_i32_0 : i32, i32
  }
  func.func @transform_10(%arg0: i32) -> (i32, i32) {
    %c0_i32 = arith.constant 0 : i32
    %c0_i32_0 = arith.constant 0 : i32
    %c0_i32_1 = arith.constant 0 : i32
    return %c0_i32, %c0_i32_0 : i32, i32
  }
  func.func @transform_11(%arg0: i32) -> (i32, i32) {
    %c0_i32 = arith.constant 0 : i32
    %c0_i32_0 = arith.constant 0 : i32
    %c0_i32_1 = arith.constant 0 : i32
    return %c0_i32, %c0_i32_0 : i32, i32
  }
  func.func @transform_12(%arg0: i32) -> (i32, i32) {
    %c0_i32 = arith.constant 0 : i32
    %c0_i32_0 = arith.constant 0 : i32
    %c0_i32_1 = arith.constant 0 : i32
    return %c0_i32, %c0_i32_0 : i32, i32
  }
  func.func @transform_13(%arg0: i32) -> (i32, i32) {
    %c0_i32 = arith.constant 0 : i32
    %c0_i32_0 = arith.constant 0 : i32
    %c0_i32_1 = arith.constant 0 : i32
    return %c0_i32, %c0_i32_0 : i32, i32
  }
  func.func @transform_14(%arg0: i32) -> (i32, i32) {
    %c0_i32 = arith.constant 0 : i32
    %c0_i32_0 = arith.constant 0 : i32
    %c0_i32_1 = arith.constant 0 : i32
    return %c0_i32, %c0_i32_0 : i32, i32
  }
  func.func @transform_15(%arg0: i32) -> (i32, i32) {
    %c0_i32 = arith.constant 0 : i32
    %c0_i32_0 = arith.constant 0 : i32
    %c0_i32_1 = arith.constant 0 : i32
    return %c0_i32, %c0_i32_0 : i32, i32
  }
  func.func @transform_16(%arg0: i32) -> (i32, i32) {
    %c0_i32 = arith.constant 0 : i32
    %c0_i32_0 = arith.constant 0 : i32
    %c0_i32_1 = arith.constant 0 : i32
    return %c0_i32, %c0_i32_0 : i32, i32
  }
  func.func @transform_17(%arg0: i32) -> (i32, i32) {
    %c0_i32 = arith.constant 0 : i32
    %c0_i32_0 = arith.constant 0 : i32
    %c0_i32_1 = arith.constant 0 : i32
    return %c0_i32, %c0_i32_0 : i32, i32
  }
  func.func @transform_18(%arg0: i32) -> (i32, i32) {
    %c0_i32 = arith.constant 0 : i32
    %c0_i32_0 = arith.constant 0 : i32
    %c0_i32_1 = arith.constant 0 : i32
    return %c0_i32, %c0_i32_0 : i32, i32
  }
}

</mosaic_0001>

<llo_original>
// kernel: encoder_decoder_forward.1
$region0: #{encoder_decoder_forward.1}
  #allocation0 [shape = 'u32[]', space=smem, size = 0x4, offset = 0x4, fixed_abs, tag = 'smem constant byte address 0x4 - core index']
  #allocation1 [shape = 'u32[72,128]{1,0:T(1,128)}', space=vmem, size = 0x9000, scoped, tag = 'internal scratch']
  #allocation2 [shape = 'f32[800,32]{1,0:T(8,128)}', space=vmem, size = 0x64000, scoped, tag = 'scratch operand']
  %s0 = inlined_call_operand.vmem [shape: bf16[2048,36], index: 0, kind: input, shape index: {}]
  %s1 = inlined_call_operand.vmem [shape: f32[8,16], index: 1, kind: input, shape index: {}]
  %s2 = inlined_call_operand.vmem [shape: bf16[64,8], index: 2, kind: input, shape index: {}]
  %s3 = inlined_call_operand.vmem [shape: bf16[36,32], index: 3, kind: input, shape index: {}]
  %s4 = inlined_call_operand.vmem [shape: f32[1,32], index: 4, kind: input, shape index: {}]
  %s5 = inlined_call_operand.vmem [shape: bf16[288,64], index: 5, kind: input, shape index: {}]
  %s6 = inlined_call_operand.vmem [shape: f32[1,64], index: 6, kind: input, shape index: {}]
  %s7 = inlined_call_operand.vmem [shape: bf16[1024,32], index: 7, kind: input, shape index: {}]
  %s8 = inlined_call_operand.vmem [shape: f32[1,32], index: 8, kind: input, shape index: {}]
  %s9 = inlined_call_operand.vmem [shape: bf16[16,32], index: 9, kind: input, shape index: {}]
  %s10 = inlined_call_operand.vmem [shape: f32[1,32], index: 10, kind: input, shape index: {}]
  %s11 = inlined_call_operand.vmem [shape: bf16[8,128], index: 11, kind: input, shape index: {}]
  %s12 = inlined_call_operand.vmem [shape: bf16[32,128], index: 12, kind: input, shape index: {}]
  %s13 = inlined_call_operand.vmem [shape: f32[1,128], index: 13, kind: input, shape index: {}]
  %s14 = inlined_call_operand.vmem [shape: bf16[64,128], index: 14, kind: input, shape index: {}]
  %s15 = inlined_call_operand.vmem [shape: f32[1,128], index: 15, kind: input, shape index: {}]
  %s16 = inlined_call_operand.vmem [shape: bf16[96,128], index: 16, kind: input, shape index: {}]
  %s17 = inlined_call_operand.vmem [shape: f32[1,128], index: 17, kind: input, shape index: {}]
  %s18 = inlined_call_operand.vmem [shape: f32[8,128], index: 18, kind: output, shape index: {}]
  %s19 = sld [smem:[#allocation0]]
  $region82: #{encoder_decoder_forward.1} parent=0
    _
  %s21 = ssub.s32 1, %s19
  %s22 = scalar_select 0, %s21, %s19
  // Predicated region
  $region2: #{encoder_decoder_forward.1} parent=0 // pred_check
    _
  $region3: #{encoder_decoder_forward.1} parent=0 // pred_check_branch
    %24 = sbr.rel (0) target = $region5
  $region4: #{encoder_decoder_forward.1} parent=0 // pred_region
    _
  $region5: #{encoder_decoder_forward.1} parent=0 // pred_fallthru
    _
  // Predicated region
  $region6: #{encoder_decoder_forward.1} parent=0 // pred_check
    _
  $region7: #{encoder_decoder_forward.1} parent=0 // pred_check_branch
    %26 = sbr.rel (0) target = $region9
  $region8: #{encoder_decoder_forward.1} parent=0 // pred_region
    _
  $region9: #{encoder_decoder_forward.1} parent=0 // pred_fallthru
    _
  // Predicated region
  $region10: #{encoder_decoder_forward.1} parent=0 // pred_check
    _
  $region11: #{encoder_decoder_forward.1} parent=0 // pred_check_branch
    %28 = sbr.rel (0) target = $region13
  $region12: #{encoder_decoder_forward.1} parent=0 // pred_region
    _
  $region13: #{encoder_decoder_forward.1} parent=0 // pred_fallthru
    _
  // Predicated region
  $region14: #{encoder_decoder_forward.1} parent=0 // pred_check
    _
  $region15: #{encoder_decoder_forward.1} parent=0 // pred_check_branch
    %30 = sbr.rel (0) target = $region17
  $region16: #{encoder_decoder_forward.1} parent=0 // pred_region
    _
  $region17: #{encoder_decoder_forward.1} parent=0 // pred_fallthru
    _
  // Predicated region
  $region18: #{encoder_decoder_forward.1} parent=0 // pred_check
    _
  $region19: #{encoder_decoder_forward.1} parent=0 // pred_check_branch
    %32 = sbr.rel (0) target = $region21
  $region20: #{encoder_decoder_forward.1} parent=0 // pred_region
    _
  $region21: #{encoder_decoder_forward.1} parent=0 // pred_fallthru
    _
  // Predicated region
  $region22: #{encoder_decoder_forward.1} parent=0 // pred_check
    _
  $region23: #{encoder_decoder_forward.1} parent=0 // pred_check_branch
    %34 = sbr.rel (0) target = $region25
  $region24: #{encoder_decoder_forward.1} parent=0 // pred_region
    _
  $region25: #{encoder_decoder_forward.1} parent=0 // pred_fallthru
    _
  // Predicated region
  $region26: #{encoder_decoder_forward.1} parent=0 // pred_check
    _
  $region27: #{encoder_decoder_forward.1} parent=0 // pred_check_branch
    %36 = sbr.rel (0) target = $region29
  $region28: #{encoder_decoder_forward.1} parent=0 // pred_region
    _
  $region29: #{encoder_decoder_forward.1} parent=0 // pred_fallthru
    _
  // Predicated region
  $region30: #{encoder_decoder_forward.1} parent=0 // pred_check
    _
  $region31: #{encoder_decoder_forward.1} parent=0 // pred_check_branch
    %38 = sbr.rel (0) target = $region33
  $region32: #{encoder_decoder_forward.1} parent=0 // pred_region
    _
  $region33: #{encoder_decoder_forward.1} parent=0 // pred_fallthru
    _
  // Predicated region
  $region34: #{encoder_decoder_forward.1} parent=0 // pred_check
    _
  $region35: #{encoder_decoder_forward.1} parent=0 // pred_check_branch
    %40 = sbr.rel (0) target = $region37
  $region36: #{encoder_decoder_forward.1} parent=0 // pred_region
    _
  $region37: #{encoder_decoder_forward.1} parent=0 // pred_fallthru
    _
  // Predicated region
  $region38: #{encoder_decoder_forward.1} parent=0 // pred_check
    _
  $region39: #{encoder_decoder_forward.1} parent=0 // pred_check_branch
    %42 = sbr.rel (0) target = $region41
  $region40: #{encoder_decoder_forward.1} parent=0 // pred_region
    _
  $region41: #{encoder_decoder_forward.1} parent=0 // pred_fallthru
    _
  // Predicated region
  $region42: #{encoder_decoder_forward.1} parent=0 // pred_check
    _
  $region43: #{encoder_decoder_forward.1} parent=0 // pred_check_branch
    %44 = sbr.rel (0) target = $region45
  $region44: #{encoder_decoder_forward.1} parent=0 // pred_region
    _
  $region45: #{encoder_decoder_forward.1} parent=0 // pred_fallthru
    _
  // Predicated region
  $region46: #{encoder_decoder_forward.1} parent=0 // pred_check
    _
  $region47: #{encoder_decoder_forward.1} parent=0 // pred_check_branch
    %46 = sbr.rel (0) target = $region49
  $region48: #{encoder_decoder_forward.1} parent=0 // pred_region
    _
  $region49: #{encoder_decoder_forward.1} parent=0 // pred_fallthru
    _
  // Predicated region
  $region50: #{encoder_decoder_forward.1} parent=0 // pred_check
    _
  $region51: #{encoder_decoder_forward.1} parent=0 // pred_check_branch
    %48 = sbr.rel (0) target = $region53
  $region52: #{encoder_decoder_forward.1} parent=0 // pred_region
    _
  $region53: #{encoder_decoder_forward.1} parent=0 // pred_fallthru
    _
  // Predicated region
  $region54: #{encoder_decoder_forward.1} parent=0 // pred_check
    _
  $region55: #{encoder_decoder_forward.1} parent=0 // pred_check_branch
    %50 = sbr.rel (0) target = $region57
  $region56: #{encoder_decoder_forward.1} parent=0 // pred_region
    _
  $region57: #{encoder_decoder_forward.1} parent=0 // pred_fallthru
    _
  // Predicated region
  $region58: #{encoder_decoder_forward.1} parent=0 // pred_check
    _
  $region59: #{encoder_decoder_forward.1} parent=0 // pred_check_branch
    %52 = sbr.rel (0) target = $region61
  $region60: #{encoder_decoder_forward.1} parent=0 // pred_region
    _
  $region61: #{encoder_decoder_forward.1} parent=0 // pred_fallthru
    _
  // Predicated region
  $region62: #{encoder_decoder_forward.1} parent=0 // pred_check
    _
  $region63: #{encoder_decoder_forward.1} parent=0 // pred_check_branch
    %54 = sbr.rel (0) target = $region65
  $region64: #{encoder_decoder_forward.1} parent=0 // pred_region
    _
  $region65: #{encoder_decoder_forward.1} parent=0 // pred_fallthru
    _
  // Predicated region
  $region66: #{encoder_decoder_forward.1} parent=0 // pred_check
    _
  $region67: #{encoder_decoder_forward.1} parent=0 // pred_check_branch
    %56 = sbr.rel (0) target = $region69
  $region68: #{encoder_decoder_forward.1} parent=0 // pred_region
    _
  $region69: #{encoder_decoder_forward.1} parent=0 // pred_fallthru
    _
  // Predicated region
  $region70: #{encoder_decoder_forward.1} parent=0 // pred_check
    _
  $region71: #{encoder_decoder_forward.1} parent=0 // pred_check_branch
    %58 = sbr.rel (0) target = $region73
  $region72: #{encoder_decoder_forward.1} parent=0 // pred_region
    _
  $region73: #{encoder_decoder_forward.1} parent=0 // pred_fallthru
    _
  %v60 = vld [vmem:[%s0] sm:$0xf]
  %v61 = vld [vmem:[%s0 + $0x4] sm:$0xf]
  %v62 = vld [vmem:[%s0 + $0x8] sm:$0xf]
  %v63 = vld [vmem:[%s0 + $0xc] sm:$0xf]
  %v64 = vld [vmem:[%s0 + $0x10] sm:$0xf]
  %v65 = vld [vmem:[%s0 + $0x14] sm:$0xf]
  %v66 = vld [vmem:[%s0 + $0x18] sm:$0xf]
  %v67 = vld [vmem:[%s0 + $0x1c] sm:$0xf]
  %v68 = vld [vmem:[%s0 + $0x20] sm:$0xf]
  %v69 = vld [vmem:[%s0 + $0x24] sm:$0xf]
  %v70 = vld [vmem:[%s0 + $0x28] sm:$0xf]
  %v71 = vld [vmem:[%s0 + $0x2c] sm:$0xf]
  %v72 = vld [vmem:[%s0 + $0x30] sm:$0xf]
  %v73 = vld [vmem:[%s0 + $0x34] sm:$0xf]
  %v74 = vld [vmem:[%s0 + $0x38] sm:$0xf]
  %v75 = vld [vmem:[%s0 + $0x3c] sm:$0xf]
  %v76 = vld [vmem:[%s0 + $0x40] sm:$0xf]
  %v77 = vld [vmem:[%s0 + $0x44] sm:$0xf]
  %v78 = vld [vmem:[%s0 + $0x48] sm:$0xf]
  %v79 = vld [vmem:[%s0 + $0x4c] sm:$0xf]
  %v80 = vld [vmem:[%s0 + $0x50] sm:$0xf]
  %v81 = vld [vmem:[%s0 + $0x54] sm:$0xf]
  %v82 = vld [vmem:[%s0 + $0x58] sm:$0xf]
  %v83 = vld [vmem:[%s0 + $0x5c] sm:$0xf]
  %v84 = vld [vmem:[%s0 + $0x60] sm:$0xf]
  %v85 = vld [vmem:[%s0 + $0x64] sm:$0xf]
  %v86 = vld [vmem:[%s0 + $0x68] sm:$0xf]
  %v87 = vld [vmem:[%s0 + $0x6c] sm:$0xf]
  %v88 = vld [vmem:[%s0 + $0x70] sm:$0xf]
  %v89 = vld [vmem:[%s0 + $0x74] sm:$0xf]
  %v90 = vld [vmem:[%s0 + $0x78] sm:$0xf]
  %v91 = vld [vmem:[%s0 + $0x7c] sm:$0xf]
  %v92 = vld [vmem:[%s0 + $0x80] sm:$0xf]
  %v93 = vld [vmem:[%s0 + $0x84] sm:$0xf]
  %v94 = vld [vmem:[%s0 + $0x88] sm:$0xf]
  %v95 = vld [vmem:[%s0 + $0x8c] sm:$0xf]
  %v96 = vld [vmem:[%s0 + $0x90] sm:$0xf]
  %v97 = vld [vmem:[%s0 + $0x94] sm:$0xf]
  %v98 = vld [vmem:[%s0 + $0x98] sm:$0xf]
  %v99 = vld [vmem:[%s0 + $0x9c] sm:$0xf]
  %v100 = vld [vmem:[%s0 + $0xa0] sm:$0xf]
  %v101 = vld [vmem:[%s0 + $0xa4] sm:$0xf]
  %v102 = vld [vmem:[%s0 + $0xa8] sm:$0xf]
  %v103 = vld [vmem:[%s0 + $0xac] sm:$0xf]
  %v104 = vld [vmem:[%s0 + $0xb0] sm:$0xf]
  %v105 = vld [vmem:[%s0 + $0xb4] sm:$0xf]
  %v106 = vld [vmem:[%s0 + $0xb8] sm:$0xf]
  %v107 = vld [vmem:[%s0 + $0xbc] sm:$0xf]
  %v108 = vld [vmem:[%s0 + $0xc0] sm:$0xf]
  %v109 = vld [vmem:[%s0 + $0xc4] sm:$0xf]
  %v110 = vld [vmem:[%s0 + $0xc8] sm:$0xf]
  %v111 = vld [vmem:[%s0 + $0xcc] sm:$0xf]
  %v112 = vld [vmem:[%s0 + $0xd0] sm:$0xf]
  %v113 = vld [vmem:[%s0 + $0xd4] sm:$0xf]
  %v114 = vld [vmem:[%s0 + $0xd8] sm:$0xf]
  %v115 = vld [vmem:[%s0 + $0xdc] sm:$0xf]
  %v116 = vld [vmem:[%s0 + $0xe0] sm:$0xf]
  %v117 = vld [vmem:[%s0 + $0xe4] sm:$0xf]
  %v118 = vld [vmem:[%s0 + $0xe8] sm:$0xf]
  %v119 = vld [vmem:[%s0 + $0xec] sm:$0xf]
  %v120 = vld [vmem:[%s0 + $0xf0] sm:$0xf]
  %v121 = vld [vmem:[%s0 + $0xf4] sm:$0xf]
  %v122 = vld [vmem:[%s0 + $0xf8] sm:$0xf]
  %v123 = vld [vmem:[%s0 + $0xfc] sm:$0xf]
  %v124 = vld [vmem:[%s0 + $0x100] sm:$0xf]
  %v125 = vld [vmem:[%s0 + $0x104] sm:$0xf]
  %v126 = vld [vmem:[%s0 + $0x108] sm:$0xf]
  %v127 = vld [vmem:[%s0 + $0x10c] sm:$0xf]
  %v128 = vld [vmem:[%s0 + $0x110] sm:$0xf]
  %v129 = vld [vmem:[%s0 + $0x114] sm:$0xf]
  %v130 = vld [vmem:[%s0 + $0x118] sm:$0xf]
  %v131 = vld [vmem:[%s0 + $0x11c] sm:$0xf]
  %v132 = vld [vmem:[%s0 + $0x120] sm:$0xf]
  %v133 = vld [vmem:[%s0 + $0x124] sm:$0xf]
  %v134 = vld [vmem:[%s0 + $0x128] sm:$0xf]
  %v135 = vld [vmem:[%s0 + $0x12c] sm:$0xf]
  %v136 = vld [vmem:[%s0 + $0x130] sm:$0xf]
  %v137 = vld [vmem:[%s0 + $0x134] sm:$0xf]
  %v138 = vld [vmem:[%s0 + $0x138] sm:$0xf]
  %v139 = vld [vmem:[%s0 + $0x13c] sm:$0xf]
  %v140 = vld [vmem:[%s0 + $0x140] sm:$0xf]
  %v141 = vld [vmem:[%s0 + $0x144] sm:$0xf]
  %v142 = vld [vmem:[%s0 + $0x148] sm:$0xf]
  %v143 = vld [vmem:[%s0 + $0x14c] sm:$0xf]
  %v144 = vld [vmem:[%s0 + $0x150] sm:$0xf]
  %v145 = vld [vmem:[%s0 + $0x154] sm:$0xf]
  %v146 = vld [vmem:[%s0 + $0x158] sm:$0xf]
  %v147 = vld [vmem:[%s0 + $0x15c] sm:$0xf]
  %v148 = vld [vmem:[%s0 + $0x160] sm:$0xf]
  %v149 = vld [vmem:[%s0 + $0x164] sm:$0xf]
  %v150 = vld [vmem:[%s0 + $0x168] sm:$0xf]
  %v151 = vld [vmem:[%s0 + $0x16c] sm:$0xf]
  %v152 = vld [vmem:[%s0 + $0x170] sm:$0xf]
  %v153 = vld [vmem:[%s0 + $0x174] sm:$0xf]
  %v154 = vld [vmem:[%s0 + $0x178] sm:$0xf]
  %v155 = vld [vmem:[%s0 + $0x17c] sm:$0xf]
  %v156 = vld [vmem:[%s0 + $0x180] sm:$0xf]
  %v157 = vld [vmem:[%s0 + $0x184] sm:$0xf]
  %v158 = vld [vmem:[%s0 + $0x188] sm:$0xf]
  %v159 = vld [vmem:[%s0 + $0x18c] sm:$0xf]
  %v160 = vld [vmem:[%s0 + $0x190] sm:$0xf]
  %v161 = vld [vmem:[%s0 + $0x194] sm:$0xf]
  %v162 = vld [vmem:[%s0 + $0x198] sm:$0xf]
  %v163 = vld [vmem:[%s0 + $0x19c] sm:$0xf]
  %v164 = vld [vmem:[%s0 + $0x1a0] sm:$0xf]
  %v165 = vld [vmem:[%s0 + $0x1a4] sm:$0xf]
  %v166 = vld [vmem:[%s0 + $0x1a8] sm:$0xf]
  %v167 = vld [vmem:[%s0 + $0x1ac] sm:$0xf]
  %v168 = vld [vmem:[%s0 + $0x1b0] sm:$0xf]
  %v169 = vld [vmem:[%s0 + $0x1b4] sm:$0xf]
  %v170 = vld [vmem:[%s0 + $0x1b8] sm:$0xf]
  %v171 = vld [vmem:[%s0 + $0x1bc] sm:$0xf]
  %v172 = vld [vmem:[%s0 + $0x1c0] sm:$0xf]
  %v173 = vld [vmem:[%s0 + $0x1c4] sm:$0xf]
  %v174 = vld [vmem:[%s0 + $0x1c8] sm:$0xf]
  %v175 = vld [vmem:[%s0 + $0x1cc] sm:$0xf]
  %v176 = vld [vmem:[%s0 + $0x1d0] sm:$0xf]
  %v177 = vld [vmem:[%s0 + $0x1d4] sm:$0xf]
  %v178 = vld [vmem:[%s0 + $0x1d8] sm:$0xf]
  %v179 = vld [vmem:[%s0 + $0x1dc] sm:$0xf]
  %v180 = vld [vmem:[%s0 + $0x1e0] sm:$0xf]
  %v181 = vld [vmem:[%s0 + $0x1e4] sm:$0xf]
  %v182 = vld [vmem:[%s0 + $0x1e8] sm:$0xf]
  %v183 = vld [vmem:[%s0 + $0x1ec] sm:$0xf]
  %v184 = vld [vmem:[%s0 + $0x1f0] sm:$0xf]
  %v185 = vld [vmem:[%s0 + $0x1f4] sm:$0xf]
  %v186 = vld [vmem:[%s0 + $0x1f8] sm:$0xf]
  %v187 = vld [vmem:[%s0 + $0x1fc] sm:$0xf]
  %v188 = vld [vmem:[%s0 + $0x200] sm:$0xf]
  %v189 = vld [vmem:[%s0 + $0x204] sm:$0xf]
  %v190 = vld [vmem:[%s0 + $0x208] sm:$0xf]
  %v191 = vld [vmem:[%s0 + $0x20c] sm:$0xf]
  %v192 = vld [vmem:[%s0 + $0x210] sm:$0xf]
  %v193 = vld [vmem:[%s0 + $0x214] sm:$0xf]
  %v194 = vld [vmem:[%s0 + $0x218] sm:$0xf]
  %v195 = vld [vmem:[%s0 + $0x21c] sm:$0xf]
  %v196 = vld [vmem:[%s0 + $0x220] sm:$0xf]
  %v197 = vld [vmem:[%s0 + $0x224] sm:$0xf]
  %v198 = vld [vmem:[%s0 + $0x228] sm:$0xf]
  %v199 = vld [vmem:[%s0 + $0x22c] sm:$0xf]
  %v200 = vld [vmem:[%s0 + $0x230] sm:$0xf]
  %v201 = vld [vmem:[%s0 + $0x234] sm:$0xf]
  %v202 = vld [vmem:[%s0 + $0x238] sm:$0xf]
  %v203 = vld [vmem:[%s0 + $0x23c] sm:$0xf]
  %v204 = vld [vmem:[%s0 + $0x240] sm:$0xf]
  %v205 = vld [vmem:[%s0 + $0x244] sm:$0xf]
  %v206 = vld [vmem:[%s0 + $0x248] sm:$0xf]
  %v207 = vld [vmem:[%s0 + $0x24c] sm:$0xf]
  %v208 = vld [vmem:[%s0 + $0x250] sm:$0xf]
  %v209 = vld [vmem:[%s0 + $0x254] sm:$0xf]
  %v210 = vld [vmem:[%s0 + $0x258] sm:$0xf]
  %v211 = vld [vmem:[%s0 + $0x25c] sm:$0xf]
  %v212 = vld [vmem:[%s0 + $0x260] sm:$0xf]
  %v213 = vld [vmem:[%s0 + $0x264] sm:$0xf]
  %v214 = vld [vmem:[%s0 + $0x268] sm:$0xf]
  %v215 = vld [vmem:[%s0 + $0x26c] sm:$0xf]
  %v216 = vld [vmem:[%s0 + $0x270] sm:$0xf]
  %v217 = vld [vmem:[%s0 + $0x274] sm:$0xf]
  %v218 = vld [vmem:[%s0 + $0x278] sm:$0xf]
  %v219 = vld [vmem:[%s0 + $0x27c] sm:$0xf]
  %v220 = vld [vmem:[%s0 + $0x280] sm:$0xf]
  %v221 = vld [vmem:[%s0 + $0x284] sm:$0xf]
  %v222 = vld [vmem:[%s0 + $0x288] sm:$0xf]
  %v223 = vld [vmem:[%s0 + $0x28c] sm:$0xf]
  %v224 = vld [vmem:[%s0 + $0x290] sm:$0xf]
  %v225 = vld [vmem:[%s0 + $0x294] sm:$0xf]
  %v226 = vld [vmem:[%s0 + $0x298] sm:$0xf]
  %v227 = vld [vmem:[%s0 + $0x29c] sm:$0xf]
  %v228 = vld [vmem:[%s0 + $0x2a0] sm:$0xf]
  %v229 = vld [vmem:[%s0 + $0x2a4] sm:$0xf]
  %v230 = vld [vmem:[%s0 + $0x2a8] sm:$0xf]
  %v231 = vld [vmem:[%s0 + $0x2ac] sm:$0xf]
  %v232 = vld [vmem:[%s0 + $0x2b0] sm:$0xf]
  %v233 = vld [vmem:[%s0 + $0x2b4] sm:$0xf]
  %v234 = vld [vmem:[%s0 + $0x2b8] sm:$0xf]
  %v235 = vld [vmem:[%s0 + $0x2bc] sm:$0xf]
  %v236 = vld [vmem:[%s0 + $0x2c0] sm:$0xf]
  %v237 = vld [vmem:[%s0 + $0x2c4] sm:$0xf]
  %v238 = vld [vmem:[%s0 + $0x2c8] sm:$0xf]
  %v239 = vld [vmem:[%s0 + $0x2cc] sm:$0xf]
  %v240 = vld [vmem:[%s0 + $0x2d0] sm:$0xf]
  %v241 = vld [vmem:[%s0 + $0x2d4] sm:$0xf]
  %v242 = vld [vmem:[%s0 + $0x2d8] sm:$0xf]
  %v243 = vld [vmem:[%s0 + $0x2dc] sm:$0xf]
  %v244 = vld [vmem:[%s0 + $0x2e0] sm:$0xf]
  %v245 = vld [vmem:[%s0 + $0x2e4] sm:$0xf]
  %v246 = vld [vmem:[%s0 + $0x2e8] sm:$0xf]
  %v247 = vld [vmem:[%s0 + $0x2ec] sm:$0xf]
  %v248 = vld [vmem:[%s0 + $0x2f0] sm:$0xf]
  %v249 = vld [vmem:[%s0 + $0x2f4] sm:$0xf]
  %v250 = vld [vmem:[%s0 + $0x2f8] sm:$0xf]
  %v251 = vld [vmem:[%s0 + $0x2fc] sm:$0xf]
  %v252 = vld [vmem:[%s0 + $0x300] sm:$0xf]
  %v253 = vld [vmem:[%s0 + $0x304] sm:$0xf]
  %v254 = vld [vmem:[%s0 + $0x308] sm:$0xf]
  %v255 = vld [vmem:[%s0 + $0x30c] sm:$0xf]
  %v256 = vld [vmem:[%s0 + $0x310] sm:$0xf]
  %v257 = vld [vmem:[%s0 + $0x314] sm:$0xf]
  %v258 = vld [vmem:[%s0 + $0x318] sm:$0xf]
  %v259 = vld [vmem:[%s0 + $0x31c] sm:$0xf]
  %v260 = vld [vmem:[%s0 + $0x320] sm:$0xf]
  %v261 = vld [vmem:[%s0 + $0x324] sm:$0xf]
  %v262 = vld [vmem:[%s0 + $0x328] sm:$0xf]
  %v263 = vld [vmem:[%s0 + $0x32c] sm:$0xf]
  %v264 = vld [vmem:[%s0 + $0x330] sm:$0xf]
  %v265 = vld [vmem:[%s0 + $0x334] sm:$0xf]
  %v266 = vld [vmem:[%s0 + $0x338] sm:$0xf]
  %v267 = vld [vmem:[%s0 + $0x33c] sm:$0xf]
  %v268 = vld [vmem:[%s0 + $0x340] sm:$0xf]
  %v269 = vld [vmem:[%s0 + $0x344] sm:$0xf]
  %v270 = vld [vmem:[%s0 + $0x348] sm:$0xf]
  %v271 = vld [vmem:[%s0 + $0x34c] sm:$0xf]
  %v272 = vld [vmem:[%s0 + $0x350] sm:$0xf]
  %v273 = vld [vmem:[%s0 + $0x354] sm:$0xf]
  %v274 = vld [vmem:[%s0 + $0x358] sm:$0xf]
  %v275 = vld [vmem:[%s0 + $0x35c] sm:$0xf]
  %v276 = vld [vmem:[%s0 + $0x360] sm:$0xf]
  %v277 = vld [vmem:[%s0 + $0x364] sm:$0xf]
  %v278 = vld [vmem:[%s0 + $0x368] sm:$0xf]
  %v279 = vld [vmem:[%s0 + $0x36c] sm:$0xf]
  %v280 = vld [vmem:[%s0 + $0x370] sm:$0xf]
  %v281 = vld [vmem:[%s0 + $0x374] sm:$0xf]
  %v282 = vld [vmem:[%s0 + $0x378] sm:$0xf]
  %v283 = vld [vmem:[%s0 + $0x37c] sm:$0xf]
  %v284 = vld [vmem:[%s0 + $0x380] sm:$0xf]
  %v285 = vld [vmem:[%s0 + $0x384] sm:$0xf]
  %v286 = vld [vmem:[%s0 + $0x388] sm:$0xf]
  %v287 = vld [vmem:[%s0 + $0x38c] sm:$0xf]
  %v288 = vld [vmem:[%s0 + $0x390] sm:$0xf]
  %v289 = vld [vmem:[%s0 + $0x394] sm:$0xf]
  %v290 = vld [vmem:[%s0 + $0x398] sm:$0xf]
  %v291 = vld [vmem:[%s0 + $0x39c] sm:$0xf]
  %v292 = vld [vmem:[%s0 + $0x3a0] sm:$0xf]
  %v293 = vld [vmem:[%s0 + $0x3a4] sm:$0xf]
  %v294 = vld [vmem:[%s0 + $0x3a8] sm:$0xf]
  %v295 = vld [vmem:[%s0 + $0x3ac] sm:$0xf]
  %v296 = vld [vmem:[%s0 + $0x3b0] sm:$0xf]
  %v297 = vld [vmem:[%s0 + $0x3b4] sm:$0xf]
  %v298 = vld [vmem:[%s0 + $0x3b8] sm:$0xf]
  %v299 = vld [vmem:[%s0 + $0x3bc] sm:$0xf]
  %v300 = vld [vmem:[%s0 + $0x3c0] sm:$0xf]
  %v301 = vld [vmem:[%s0 + $0x3c4] sm:$0xf]
  %v302 = vld [vmem:[%s0 + $0x3c8] sm:$0xf]
  %v303 = vld [vmem:[%s0 + $0x3cc] sm:$0xf]
  %v304 = vld [vmem:[%s0 + $0x3d0] sm:$0xf]
  %v305 = vld [vmem:[%s0 + $0x3d4] sm:$0xf]
  %v306 = vld [vmem:[%s0 + $0x3d8] sm:$0xf]
  %v307 = vld [vmem:[%s0 + $0x3dc] sm:$0xf]
  %v308 = vld [vmem:[%s0 + $0x3e0] sm:$0xf]
  %v309 = vld [vmem:[%s0 + $0x3e4] sm:$0xf]
  %v310 = vld [vmem:[%s0 + $0x3e8] sm:$0xf]
  %v311 = vld [vmem:[%s0 + $0x3ec] sm:$0xf]
  %v312 = vld [vmem:[%s0 + $0x3f0] sm:$0xf]
  %v313 = vld [vmem:[%s0 + $0x3f4] sm:$0xf]
  %v314 = vld [vmem:[%s0 + $0x3f8] sm:$0xf]
  %v315 = vld [vmem:[%s0 + $0x3fc] sm:$0xf]
  %v316 = vld [vmem:[%s3] sm:$0xf]
  %v317 = vld [vmem:[%s3 + $0x4] sm:$0xf]
  %v318 = vld [vmem:[%s3 + $0x8] sm:$0xf]
  %v319 = vld [vmem:[%s3 + $0xc] sm:$0xf]
  %v320 = vld [vmem:[%s3 + $0x10] sm:$0x3]
  %v321 = vld [vmem:[%s4] sm:$0x1]
  %v323 = vperm.slane %v321, 0
  %v581 = vunpack.c.l.b16 %v60
  %v582 = vunpack.c.l.b16 %v61
  %v583 = vunpack.c.l.b16 %v62
  %v584 = vunpack.c.l.b16 %v63
  %v585 = vunpack.c.l.b16 %v64
  %v586 = vunpack.c.l.b16 %v65
  %v587 = vunpack.c.l.b16 %v66
  %v588 = vunpack.c.l.b16 %v67
  %v589 = vunpack.c.l.b16 %v68
  %v590 = vunpack.c.l.b16 %v69
  %v591 = vunpack.c.l.b16 %v70
  %v592 = vunpack.c.l.b16 %v71
  %v593 = vunpack.c.l.b16 %v72
  %v594 = vunpack.c.l.b16 %v73
  %v595 = vunpack.c.l.b16 %v74
  %v596 = vunpack.c.l.b16 %v75
  %v597 = vunpack.c.l.b16 %v76
  %v598 = vunpack.c.l.b16 %v77
  %v599 = vunpack.c.l.b16 %v78
  %v600 = vunpack.c.l.b16 %v79
  %v601 = vunpack.c.l.b16 %v80
  %v602 = vunpack.c.l.b16 %v81
  %v603 = vunpack.c.l.b16 %v82
  %v604 = vunpack.c.l.b16 %v83
  %v605 = vunpack.c.l.b16 %v84
  %v606 = vunpack.c.l.b16 %v85
  %v607 = vunpack.c.l.b16 %v86
  %v608 = vunpack.c.l.b16 %v87
  %v609 = vunpack.c.l.b16 %v88
  %v610 = vunpack.c.l.b16 %v89
  %v611 = vunpack.c.l.b16 %v90
  %v612 = vunpack.c.l.b16 %v91
  %v613 = vunpack.c.l.b16 %v92
  %v614 = vunpack.c.l.b16 %v93
  %v615 = vunpack.c.l.b16 %v94
  %v616 = vunpack.c.l.b16 %v95
  %v617 = vunpack.c.l.b16 %v96
  %v618 = vunpack.c.l.b16 %v97
  %v619 = vunpack.c.l.b16 %v98
  %v620 = vunpack.c.l.b16 %v99
  %v621 = vunpack.c.l.b16 %v100
  %v622 = vunpack.c.l.b16 %v101
  %v623 = vunpack.c.l.b16 %v102
  %v624 = vunpack.c.l.b16 %v103
  %v625 = vunpack.c.l.b16 %v104
  %v626 = vunpack.c.l.b16 %v105
  %v627 = vunpack.c.l.b16 %v106
  %v628 = vunpack.c.l.b16 %v107
  %v629 = vunpack.c.l.b16 %v108
  %v630 = vunpack.c.l.b16 %v109
  %v631 = vunpack.c.l.b16 %v110
  %v632 = vunpack.c.l.b16 %v111
  %v633 = vunpack.c.l.b16 %v112
  %v634 = vunpack.c.l.b16 %v113
  %v635 = vunpack.c.l.b16 %v114
  %v636 = vunpack.c.l.b16 %v115
  %v637 = vunpack.c.l.b16 %v116
  %v638 = vunpack.c.l.b16 %v117
  %v639 = vunpack.c.l.b16 %v118
  %v640 = vunpack.c.l.b16 %v119
  %v641 = vunpack.c.l.b16 %v120
  %v642 = vunpack.c.l.b16 %v121
  %v643 = vunpack.c.l.b16 %v122
  %v644 = vunpack.c.l.b16 %v123
  %v645 = vunpack.c.l.b16 %v124
  %v646 = vunpack.c.l.b16 %v125
  %v647 = vunpack.c.l.b16 %v126
  %v648 = vunpack.c.l.b16 %v127
  %v649 = vunpack.c.l.b16 %v128
  %v650 = vunpack.c.l.b16 %v129
  %v651 = vunpack.c.l.b16 %v130
  %v652 = vunpack.c.l.b16 %v131
  %v653 = vunpack.c.l.b16 %v132
  %v654 = vunpack.c.l.b16 %v133
  %v655 = vunpack.c.l.b16 %v134
  %v656 = vunpack.c.l.b16 %v135
  %v657 = vunpack.c.l.b16 %v136
  %v658 = vunpack.c.l.b16 %v137
  %v659 = vunpack.c.l.b16 %v138
  %v660 = vunpack.c.l.b16 %v139
  %v661 = vunpack.c.l.b16 %v140
  %v662 = vunpack.c.l.b16 %v141
  %v663 = vunpack.c.l.b16 %v142
  %v664 = vunpack.c.l.b16 %v143
  %v665 = vunpack.c.l.b16 %v144
  %v666 = vunpack.c.l.b16 %v145
  %v667 = vunpack.c.l.b16 %v146
  %v668 = vunpack.c.l.b16 %v147
  %v669 = vunpack.c.l.b16 %v148
  %v670 = vunpack.c.l.b16 %v149
  %v671 = vunpack.c.l.b16 %v150
  %v672 = vunpack.c.l.b16 %v151
  %v673 = vunpack.c.l.b16 %v152
  %v674 = vunpack.c.l.b16 %v153
  %v675 = vunpack.c.l.b16 %v154
  %v676 = vunpack.c.l.b16 %v155
  %v677 = vunpack.c.l.b16 %v156
  %v678 = vunpack.c.l.b16 %v157
  %v679 = vunpack.c.l.b16 %v158
  %v680 = vunpack.c.l.b16 %v159
  %v681 = vunpack.c.l.b16 %v160
  %v682 = vunpack.c.l.b16 %v161
  %v683 = vunpack.c.l.b16 %v162
  %v684 = vunpack.c.l.b16 %v163
  %v685 = vunpack.c.l.b16 %v164
  %v686 = vunpack.c.l.b16 %v165
  %v687 = vunpack.c.l.b16 %v166
  %v688 = vunpack.c.l.b16 %v167
  %v689 = vunpack.c.l.b16 %v168
  %v690 = vunpack.c.l.b16 %v169
  %v691 = vunpack.c.l.b16 %v170
  %v692 = vunpack.c.l.b16 %v171
  %v693 = vunpack.c.l.b16 %v172
  %v694 = vunpack.c.l.b16 %v173
  %v695 = vunpack.c.l.b16 %v174
  %v696 = vunpack.c.l.b16 %v175
  %v697 = vunpack.c.l.b16 %v176
  %v698 = vunpack.c.l.b16 %v177
  %v699 = vunpack.c.l.b16 %v178
  %v700 = vunpack.c.l.b16 %v179
  %v701 = vunpack.c.l.b16 %v180
  %v702 = vunpack.c.l.b16 %v181
  %v703 = vunpack.c.l.b16 %v182
  %v704 = vunpack.c.l.b16 %v183
  %v705 = vunpack.c.l.b16 %v184
  %v706 = vunpack.c.l.b16 %v185
  %v707 = vunpack.c.l.b16 %v186
  %v708 = vunpack.c.l.b16 %v187
  %v709 = vunpack.c.l.b16 %v188
  %v710 = vunpack.c.l.b16 %v189
  %v711 = vunpack.c.l.b16 %v190
  %v712 = vunpack.c.l.b16 %v191
  %v713 = vunpack.c.l.b16 %v192
  %v714 = vunpack.c.l.b16 %v193
  %v715 = vunpack.c.l.b16 %v194
  %v716 = vunpack.c.l.b16 %v195
  %v717 = vunpack.c.l.b16 %v196
  %v718 = vunpack.c.l.b16 %v197
  %v719 = vunpack.c.l.b16 %v198
  %v720 = vunpack.c.l.b16 %v199
  %v721 = vunpack.c.l.b16 %v200
  %v722 = vunpack.c.l.b16 %v201
  %v723 = vunpack.c.l.b16 %v202
  %v724 = vunpack.c.l.b16 %v203
  %v725 = vunpack.c.l.b16 %v204
  %v726 = vunpack.c.l.b16 %v205
  %v727 = vunpack.c.l.b16 %v206
  %v728 = vunpack.c.l.b16 %v207
  %v729 = vunpack.c.l.b16 %v208
  %v730 = vunpack.c.l.b16 %v209
  %v731 = vunpack.c.l.b16 %v210
  %v732 = vunpack.c.l.b16 %v211
  %v733 = vunpack.c.l.b16 %v212
  %v734 = vunpack.c.l.b16 %v213
  %v735 = vunpack.c.l.b16 %v214
  %v736 = vunpack.c.l.b16 %v215
  %v737 = vunpack.c.l.b16 %v216
  %v738 = vunpack.c.l.b16 %v217
  %v739 = vunpack.c.l.b16 %v218
  %v740 = vunpack.c.l.b16 %v219
  %v741 = vunpack.c.l.b16 %v220
  %v742 = vunpack.c.l.b16 %v221
  %v743 = vunpack.c.l.b16 %v222
  %v744 = vunpack.c.l.b16 %v223
  %v745 = vunpack.c.l.b16 %v224
  %v746 = vunpack.c.l.b16 %v225
  %v747 = vunpack.c.l.b16 %v226
  %v748 = vunpack.c.l.b16 %v227
  %v749 = vunpack.c.l.b16 %v228
  %v750 = vunpack.c.l.b16 %v229
  %v751 = vunpack.c.l.b16 %v230
  %v752 = vunpack.c.l.b16 %v231
  %v753 = vunpack.c.l.b16 %v232
  %v754 = vunpack.c.l.b16 %v233
  %v755 = vunpack.c.l.b16 %v234
  %v756 = vunpack.c.l.b16 %v235
  %v757 = vunpack.c.l.b16 %v236
  %v758 = vunpack.c.l.b16 %v237
  %v759 = vunpack.c.l.b16 %v238
  %v760 = vunpack.c.l.b16 %v239
  %v761 = vunpack.c.l.b16 %v240
  %v762 = vunpack.c.l.b16 %v241
  %v763 = vunpack.c.l.b16 %v242
  %v764 = vunpack.c.l.b16 %v243
  %v765 = vunpack.c.l.b16 %v244
  %v766 = vunpack.c.l.b16 %v245
  %v767 = vunpack.c.l.b16 %v246
  %v768 = vunpack.c.l.b16 %v247
  %v769 = vunpack.c.l.b16 %v248
  %v770 = vunpack.c.l.b16 %v249
  %v771 = vunpack.c.l.b16 %v250
  %v772 = vunpack.c.l.b16 %v251
  %v773 = vunpack.c.l.b16 %v252
  %v774 = vunpack.c.l.b16 %v253
  %v775 = vunpack.c.l.b16 %v254
  %v776 = vunpack.c.l.b16 %v255
  %v777 = vunpack.c.l.b16 %v256
  %v778 = vunpack.c.l.b16 %v257
  %v779 = vunpack.c.l.b16 %v258
  %v780 = vunpack.c.l.b16 %v259
  %v781 = vunpack.c.l.b16 %v260
  %v782 = vunpack.c.l.b16 %v261
  %v783 = vunpack.c.l.b16 %v262
  %v784 = vunpack.c.l.b16 %v263
  %v785 = vunpack.c.l.b16 %v264
  %v786 = vunpack.c.l.b16 %v265
  %v787 = vunpack.c.l.b16 %v266
  %v788 = vunpack.c.l.b16 %v267
  %v789 = vunpack.c.l.b16 %v268
  %v790 = vunpack.c.l.b16 %v269
  %v791 = vunpack.c.l.b16 %v270
  %v792 = vunpack.c.l.b16 %v271
  %v793 = vunpack.c.l.b16 %v272
  %v794 = vunpack.c.l.b16 %v273
  %v795 = vunpack.c.l.b16 %v274
  %v796 = vunpack.c.l.b16 %v275
  %v797 = vunpack.c.l.b16 %v276
  %v798 = vunpack.c.l.b16 %v277
  %v799 = vunpack.c.l.b16 %v278
  %v800 = vunpack.c.l.b16 %v279
  %v801 = vunpack.c.l.b16 %v280
  %v802 = vunpack.c.l.b16 %v281
  %v803 = vunpack.c.l.b16 %v282
  %v804 = vunpack.c.l.b16 %v283
  %v805 = vunpack.c.l.b16 %v284
  %v806 = vunpack.c.l.b16 %v285
  %v807 = vunpack.c.l.b16 %v286
  %v808 = vunpack.c.l.b16 %v287
  %v809 = vunpack.c.l.b16 %v288
  %v810 = vunpack.c.l.b16 %v289
  %v811 = vunpack.c.l.b16 %v290
  %v812 = vunpack.c.l.b16 %v291
  %v813 = vunpack.c.l.b16 %v292
  %v814 = vunpack.c.l.b16 %v293
  %v815 = vunpack.c.l.b16 %v294
  %v816 = vunpack.c.l.b16 %v295
  %v817 = vunpack.c.l.b16 %v296
  %v818 = vunpack.c.l.b16 %v297
  %v819 = vunpack.c.l.b16 %v298
  %v820 = vunpack.c.l.b16 %v299
  %v821 = vunpack.c.l.b16 %v300
  %v822 = vunpack.c.l.b16 %v301
  %v823 = vunpack.c.l.b16 %v302
  %v824 = vunpack.c.l.b16 %v303
  %v825 = vunpack.c.l.b16 %v304
  %v826 = vunpack.c.l.b16 %v305
  %v827 = vunpack.c.l.b16 %v306
  %v828 = vunpack.c.l.b16 %v307
  %v829 = vunpack.c.l.b16 %v308
  %v830 = vunpack.c.l.b16 %v309
  %v831 = vunpack.c.l.b16 %v310
  %v832 = vunpack.c.l.b16 %v311
  %v833 = vunpack.c.l.b16 %v312
  %v834 = vunpack.c.l.b16 %v313
  %v835 = vunpack.c.l.b16 %v314
  %v836 = vunpack.c.l.b16 %v315
  %v837 = vpack.c.b16 %v582, %v581
  %v838 = vpack.c.b16 %v584, %v583
  %v839 = vpack.c.b16 %v586, %v585
  %v840 = vpack.c.b16 %v588, %v587
  %v841 = vpack.c.b16 %v590, %v589
  %v842 = vpack.c.b16 %v592, %v591
  %v843 = vpack.c.b16 %v594, %v593
  %v844 = vpack.c.b16 %v596, %v595
  %v845 = vpack.c.b16 %v598, %v597
  %v846 = vpack.c.b16 %v600, %v599
  %v847 = vpack.c.b16 %v602, %v601
  %v848 = vpack.c.b16 %v604, %v603
  %v849 = vpack.c.b16 %v606, %v605
  %v850 = vpack.c.b16 %v608, %v607
  %v851 = vpack.c.b16 %v610, %v609
  %v852 = vpack.c.b16 %v612, %v611
  %v853 = vpack.c.b16 %v614, %v613
  %v854 = vpack.c.b16 %v616, %v615
  %v855 = vpack.c.b16 %v618, %v617
  %v856 = vpack.c.b16 %v620, %v619
  %v857 = vpack.c.b16 %v622, %v621
  %v858 = vpack.c.b16 %v624, %v623
  %v859 = vpack.c.b16 %v626, %v625
  %v860 = vpack.c.b16 %v628, %v627
  %v861 = vpack.c.b16 %v630, %v629
  %v862 = vpack.c.b16 %v632, %v631
  %v863 = vpack.c.b16 %v634, %v633
  %v864 = vpack.c.b16 %v636, %v635
  %v865 = vpack.c.b16 %v638, %v637
  %v866 = vpack.c.b16 %v640, %v639
  %v867 = vpack.c.b16 %v642, %v641
  %v868 = vpack.c.b16 %v644, %v643
  %v869 = vpack.c.b16 %v646, %v645
  %v870 = vpack.c.b16 %v648, %v647
  %v871 = vpack.c.b16 %v650, %v649
  %v872 = vpack.c.b16 %v652, %v651
  %v873 = vpack.c.b16 %v654, %v653
  %v874 = vpack.c.b16 %v656, %v655
  %v875 = vpack.c.b16 %v658, %v657
  %v876 = vpack.c.b16 %v660, %v659
  %v877 = vpack.c.b16 %v662, %v661
  %v878 = vpack.c.b16 %v664, %v663
  %v879 = vpack.c.b16 %v666, %v665
  %v880 = vpack.c.b16 %v668, %v667
  %v881 = vpack.c.b16 %v670, %v669
  %v882 = vpack.c.b16 %v672, %v671
  %v883 = vpack.c.b16 %v674, %v673
  %v884 = vpack.c.b16 %v676, %v675
  %v885 = vpack.c.b16 %v678, %v677
  %v886 = vpack.c.b16 %v680, %v679
  %v887 = vpack.c.b16 %v682, %v681
  %v888 = vpack.c.b16 %v684, %v683
  %v889 = vpack.c.b16 %v686, %v685
  %v890 = vpack.c.b16 %v688, %v687
  %v891 = vpack.c.b16 %v690, %v689
  %v892 = vpack.c.b16 %v692, %v691
  %v893 = vpack.c.b16 %v694, %v693
  %v894 = vpack.c.b16 %v696, %v695
  %v895 = vpack.c.b16 %v698, %v697
  %v896 = vpack.c.b16 %v700, %v699
  %v897 = vpack.c.b16 %v702, %v701
  %v898 = vpack.c.b16 %v704, %v703
  %v899 = vpack.c.b16 %v706, %v705
  %v900 = vpack.c.b16 %v708, %v707
  %v901 = vpack.c.b16 %v710, %v709
  %v902 = vpack.c.b16 %v712, %v711
  %v903 = vpack.c.b16 %v714, %v713
  %v904 = vpack.c.b16 %v716, %v715
  %v905 = vpack.c.b16 %v718, %v717
  %v906 = vpack.c.b16 %v720, %v719
  %v907 = vpack.c.b16 %v722, %v721
  %v908 = vpack.c.b16 %v724, %v723
  %v909 = vpack.c.b16 %v726, %v725
  %v910 = vpack.c.b16 %v728, %v727
  %v911 = vpack.c.b16 %v730, %v729
  %v912 = vpack.c.b16 %v732, %v731
  %v913 = vpack.c.b16 %v734, %v733
  %v914 = vpack.c.b16 %v736, %v735
  %v915 = vpack.c.b16 %v738, %v737
  %v916 = vpack.c.b16 %v740, %v739
  %v917 = vpack.c.b16 %v742, %v741
  %v918 = vpack.c.b16 %v744, %v743
  %v919 = vpack.c.b16 %v746, %v745
  %v920 = vpack.c.b16 %v748, %v747
  %v921 = vpack.c.b16 %v750, %v749
  %v922 = vpack.c.b16 %v752, %v751
  %v923 = vpack.c.b16 %v754, %v753
  %v924 = vpack.c.b16 %v756, %v755
  %v925 = vpack.c.b16 %v758, %v757
  %v926 = vpack.c.b16 %v760, %v759
  %v927 = vpack.c.b16 %v762, %v761
  %v928 = vpack.c.b16 %v764, %v763
  %v929 = vpack.c.b16 %v766, %v765
  %v930 = vpack.c.b16 %v768, %v767
  %v931 = vpack.c.b16 %v770, %v769
  %v932 = vpack.c.b16 %v772, %v771
  %v933 = vpack.c.b16 %v774, %v773
  %v934 = vpack.c.b16 %v776, %v775
  %v935 = vpack.c.b16 %v778, %v777
  %v936 = vpack.c.b16 %v780, %v779
  %v937 = vpack.c.b16 %v782, %v781
  %v938 = vpack.c.b16 %v784, %v783
  %v939 = vpack.c.b16 %v786, %v785
  %v940 = vpack.c.b16 %v788, %v787
  %v941 = vpack.c.b16 %v790, %v789
  %v942 = vpack.c.b16 %v792, %v791
  %v943 = vpack.c.b16 %v794, %v793
  %v944 = vpack.c.b16 %v796, %v795
  %v945 = vpack.c.b16 %v798, %v797
  %v946 = vpack.c.b16 %v800, %v799
  %v947 = vpack.c.b16 %v802, %v801
  %v948 = vpack.c.b16 %v804, %v803
  %v949 = vpack.c.b16 %v806, %v805
  %v950 = vpack.c.b16 %v808, %v807
  %v951 = vpack.c.b16 %v810, %v809
  %v952 = vpack.c.b16 %v812, %v811
  %v953 = vpack.c.b16 %v814, %v813
  %v954 = vpack.c.b16 %v816, %v815
  %v955 = vpack.c.b16 %v818, %v817
  %v956 = vpack.c.b16 %v820, %v819
  %v957 = vpack.c.b16 %v822, %v821
  %v958 = vpack.c.b16 %v824, %v823
  %v959 = vpack.c.b16 %v826, %v825
  %v960 = vpack.c.b16 %v828, %v827
  %v961 = vpack.c.b16 %v830, %v829
  %v962 = vpack.c.b16 %v832, %v831
  %v963 = vpack.c.b16 %v834, %v833
  %v964 = vpack.c.b16 %v836, %v835
  %v970 = vunpack.c.l.b16 %v316
  %v971 = vunpack.c.l.b16 %v317
  %v972 = vunpack.c.l.b16 %v318
  %v973 = vunpack.c.l.b16 %v319
  %v974 = vunpack.c.l.b16 %v320
  %v975 = vpack.c.b16 %v971, %v970
  %v976 = vpack.c.b16 %v973, %v972
  %v977 = vpack.c.b16 %v974, %v974
  %vm980 = vcmask 293888
  %v982 = vsel %vm980, %v837, 0
  %v985 = vsel %vm980, %v838, 0
  %v988 = vsel %vm980, %v839, 0
  %v991 = vsel %vm980, %v840, 0
  %v994 = vsel %vm980, %v841, 0
  %v997 = vsel %vm980, %v842, 0
  %v1000 = vsel %vm980, %v843, 0
  %v1003 = vsel %vm980, %v844, 0
  %v1006 = vsel %vm980, %v845, 0
  %v1009 = vsel %vm980, %v846, 0
  %v1012 = vsel %vm980, %v847, 0
  %v1015 = vsel %vm980, %v848, 0
  %v1018 = vsel %vm980, %v849, 0
  %v1021 = vsel %vm980, %v850, 0
  %v1024 = vsel %vm980, %v851, 0
  %v1027 = vsel %vm980, %v852, 0
  %v1030 = vsel %vm980, %v853, 0
  %v1033 = vsel %vm980, %v854, 0
  %v1036 = vsel %vm980, %v855, 0
  %v1039 = vsel %vm980, %v856, 0
  %v1042 = vsel %vm980, %v857, 0
  %v1045 = vsel %vm980, %v858, 0
  %v1048 = vsel %vm980, %v859, 0
  %v1051 = vsel %vm980, %v860, 0
  %v1054 = vsel %vm980, %v861, 0
  %v1057 = vsel %vm980, %v862, 0
  %v1060 = vsel %vm980, %v863, 0
  %v1063 = vsel %vm980, %v864, 0
  %v1066 = vsel %vm980, %v865, 0
  %v1069 = vsel %vm980, %v866, 0
  %v1072 = vsel %vm980, %v867, 0
  %v1075 = vsel %vm980, %v868, 0
  %v1078 = vsel %vm980, %v869, 0
  %v1081 = vsel %vm980, %v870, 0
  %v1084 = vsel %vm980, %v871, 0
  %v1087 = vsel %vm980, %v872, 0
  %v1090 = vsel %vm980, %v873, 0
  %v1093 = vsel %vm980, %v874, 0
  %v1096 = vsel %vm980, %v875, 0
  %v1099 = vsel %vm980, %v876, 0
  %v1102 = vsel %vm980, %v877, 0
  %v1105 = vsel %vm980, %v878, 0
  %v1108 = vsel %vm980, %v879, 0
  %v1111 = vsel %vm980, %v880, 0
  %v1114 = vsel %vm980, %v881, 0
  %v1117 = vsel %vm980, %v882, 0
  %v1120 = vsel %vm980, %v883, 0
  %v1123 = vsel %vm980, %v884, 0
  %v1126 = vsel %vm980, %v885, 0
  %v1129 = vsel %vm980, %v886, 0
  %v1132 = vsel %vm980, %v887, 0
  %v1135 = vsel %vm980, %v888, 0
  %v1138 = vsel %vm980, %v889, 0
  %v1141 = vsel %vm980, %v890, 0
  %v1144 = vsel %vm980, %v891, 0
  %v1147 = vsel %vm980, %v892, 0
  %v1150 = vsel %vm980, %v893, 0
  %v1153 = vsel %vm980, %v894, 0
  %v1156 = vsel %vm980, %v895, 0
  %v1159 = vsel %vm980, %v896, 0
  %v1162 = vsel %vm980, %v897, 0
  %v1165 = vsel %vm980, %v898, 0
  %v1168 = vsel %vm980, %v899, 0
  %v1171 = vsel %vm980, %v900, 0
  %v1174 = vsel %vm980, %v901, 0
  %v1177 = vsel %vm980, %v902, 0
  %v1180 = vsel %vm980, %v903, 0
  %v1183 = vsel %vm980, %v904, 0
  %v1186 = vsel %vm980, %v905, 0
  %v1189 = vsel %vm980, %v906, 0
  %v1192 = vsel %vm980, %v907, 0
  %v1195 = vsel %vm980, %v908, 0
  %v1198 = vsel %vm980, %v909, 0
  %v1201 = vsel %vm980, %v910, 0
  %v1204 = vsel %vm980, %v911, 0
  %v1207 = vsel %vm980, %v912, 0
  %v1210 = vsel %vm980, %v913, 0
  %v1213 = vsel %vm980, %v914, 0
  %v1216 = vsel %vm980, %v915, 0
  %v1219 = vsel %vm980, %v916, 0
  %v1222 = vsel %vm980, %v917, 0
  %v1225 = vsel %vm980, %v918, 0
  %v1228 = vsel %vm980, %v919, 0
  %v1231 = vsel %vm980, %v920, 0
  %v1234 = vsel %vm980, %v921, 0
  %v1237 = vsel %vm980, %v922, 0
  %v1240 = vsel %vm980, %v923, 0
  %v1243 = vsel %vm980, %v924, 0
  %v1246 = vsel %vm980, %v925, 0
  %v1249 = vsel %vm980, %v926, 0
  %v1252 = vsel %vm980, %v927, 0
  %v1255 = vsel %vm980, %v928, 0
  %v1258 = vsel %vm980, %v929, 0
  %v1261 = vsel %vm980, %v930, 0
  %v1264 = vsel %vm980, %v931, 0
  %v1267 = vsel %vm980, %v932, 0
  %v1270 = vsel %vm980, %v933, 0
  %v1273 = vsel %vm980, %v934, 0
  %v1276 = vsel %vm980, %v935, 0
  %v1279 = vsel %vm980, %v936, 0
  %v1282 = vsel %vm980, %v937, 0
  %v1285 = vsel %vm980, %v938, 0
  %v1288 = vsel %vm980, %v939, 0
  %v1291 = vsel %vm980, %v940, 0
  %v1294 = vsel %vm980, %v941, 0
  %v1297 = vsel %vm980, %v942, 0
  %v1300 = vsel %vm980, %v943, 0
  %v1303 = vsel %vm980, %v944, 0
  %v1306 = vsel %vm980, %v945, 0
  %v1309 = vsel %vm980, %v946, 0
  %v1312 = vsel %vm980, %v947, 0
  %v1315 = vsel %vm980, %v948, 0
  %v1318 = vsel %vm980, %v949, 0
  %v1321 = vsel %vm980, %v950, 0
  %v1324 = vsel %vm980, %v951, 0
  %v1327 = vsel %vm980, %v952, 0
  %v1330 = vsel %vm980, %v953, 0
  %v1333 = vsel %vm980, %v954, 0
  %v1336 = vsel %vm980, %v955, 0
  %v1339 = vsel %vm980, %v956, 0
  %v1342 = vsel %vm980, %v957, 0
  %v1345 = vsel %vm980, %v958, 0
  %v1348 = vsel %vm980, %v959, 0
  %v1351 = vsel %vm980, %v960, 0
  %v1354 = vsel %vm980, %v961, 0
  %v1357 = vsel %vm980, %v962, 0
  %v1360 = vsel %vm980, %v963, 0
  %v1363 = vsel %vm980, %v964, 0
  %vm1365 = vcmask 1041408
  %v1367 = vsel %vm1365, %v977, 0
  %1369 = vmatpush.bf16.msra.mxu0 0
  %1370 = vmatpush.bf16.msra.mxu0 0
  %1371 = vmatpush.bf16.msra.mxu0 0
  %1372 = vmatpush.bf16.msra.mxu0 0
  %1373 = vmatpush.bf16.msra.mxu0 0
  %1374 = vmatpush.bf16.msra.mxu0 %v1367
  %1375 = vmatpush.bf16.msra.mxu0 %v976
  %1376 = vmatpush.bf16.msra.mxu0 %v975
  %1377 = vmatmul.bf16.gmra.mxu0 %v982
  %v1378 = vpop.f32.mrf.mxu0
  %v1379 = vadd.f32 %v323, %v1378
  %v1380 = vpop.f32.mrf.mxu0
  %v1381 = vadd.f32 %v323, %v1380
  %1382 = vmatmul.bf16.gmra.mxu0 %v985
  %v1383 = vpop.f32.mrf.mxu0
  %v1384 = vadd.f32 %v323, %v1383
  %v1385 = vpop.f32.mrf.mxu0
  %v1386 = vadd.f32 %v323, %v1385
  %1387 = vmatmul.bf16.gmra.mxu0 %v988
  %v1388 = vpop.f32.mrf.mxu0
  %v1389 = vadd.f32 %v323, %v1388
  %v1390 = vpop.f32.mrf.mxu0
  %v1391 = vadd.f32 %v323, %v1390
  %1392 = vmatmul.bf16.gmra.mxu0 %v991
  %v1393 = vpop.f32.mrf.mxu0
  %v1394 = vadd.f32 %v323, %v1393
  %v1395 = vpop.f32.mrf.mxu0
  %v1396 = vadd.f32 %v323, %v1395
  %1397 = vmatmul.bf16.gmra.mxu0 %v994
  %v1398 = vpop.f32.mrf.mxu0
  %v1399 = vadd.f32 %v323, %v1398
  %v1400 = vpop.f32.mrf.mxu0
  %v1401 = vadd.f32 %v323, %v1400
  %1402 = vmatmul.bf16.gmra.mxu0 %v997
  %v1403 = vpop.f32.mrf.mxu0
  %v1404 = vadd.f32 %v323, %v1403
  %v1405 = vpop.f32.mrf.mxu0
  %v1406 = vadd.f32 %v323, %v1405
  %1407 = vmatmul.bf16.gmra.mxu0 %v1000
  %v1408 = vpop.f32.mrf.mxu0
  %v1409 = vadd.f32 %v323, %v1408
  %v1410 = vpop.f32.mrf.mxu0
  %v1411 = vadd.f32 %v323, %v1410
  %1412 = vmatmul.bf16.gmra.mxu0 %v1003
  %v1413 = vpop.f32.mrf.mxu0
  %v1414 = vadd.f32 %v323, %v1413
  %v1415 = vpop.f32.mrf.mxu0
  %v1416 = vadd.f32 %v323, %v1415
  %1417 = vmatmul.bf16.gmra.mxu0 %v1006
  %v1418 = vpop.f32.mrf.mxu0
  %v1419 = vadd.f32 %v323, %v1418
  %v1420 = vpop.f32.mrf.mxu0
  %v1421 = vadd.f32 %v323, %v1420
  %1422 = vmatmul.bf16.gmra.mxu0 %v1009
  %v1423 = vpop.f32.mrf.mxu0
  %v1424 = vadd.f32 %v323, %v1423
  %v1425 = vpop.f32.mrf.mxu0
  %v1426 = vadd.f32 %v323, %v1425
  %1427 = vmatmul.bf16.gmra.mxu0 %v1012
  %v1428 = vpop.f32.mrf.mxu0
  %v1429 = vadd.f32 %v323, %v1428
  %v1430 = vpop.f32.mrf.mxu0
  %v1431 = vadd.f32 %v323, %v1430
  %1432 = vmatmul.bf16.gmra.mxu0 %v1015
  %v1433 = vpop.f32.mrf.mxu0
  %v1434 = vadd.f32 %v323, %v1433
  %v1435 = vpop.f32.mrf.mxu0
  %v1436 = vadd.f32 %v323, %v1435
  %1437 = vmatmul.bf16.gmra.mxu0 %v1018
  %v1438 = vpop.f32.mrf.mxu0
  %v1439 = vadd.f32 %v323, %v1438
  %v1440 = vpop.f32.mrf.mxu0
  %v1441 = vadd.f32 %v323, %v1440
  %1442 = vmatmul.bf16.gmra.mxu0 %v1021
  %v1443 = vpop.f32.mrf.mxu0
  %v1444 = vadd.f32 %v323, %v1443
  %v1445 = vpop.f32.mrf.mxu0
  %v1446 = vadd.f32 %v323, %v1445
  %1447 = vmatmul.bf16.gmra.mxu0 %v1024
  %v1448 = vpop.f32.mrf.mxu0
  %v1449 = vadd.f32 %v323, %v1448
  %v1450 = vpop.f32.mrf.mxu0
  %v1451 = vadd.f32 %v323, %v1450
  %1452 = vmatmul.bf16.gmra.mxu0 %v1027
  %v1453 = vpop.f32.mrf.mxu0
  %v1454 = vadd.f32 %v323, %v1453
  %v1455 = vpop.f32.mrf.mxu0
  %v1456 = vadd.f32 %v323, %v1455
  %1457 = vmatmul.bf16.gmra.mxu0 %v1030
  %v1458 = vpop.f32.mrf.mxu0
  %v1459 = vadd.f32 %v323, %v1458
  %v1460 = vpop.f32.mrf.mxu0
  %v1461 = vadd.f32 %v323, %v1460
  %1462 = vmatmul.bf16.gmra.mxu0 %v1033
  %v1463 = vpop.f32.mrf.mxu0
  %v1464 = vadd.f32 %v323, %v1463
  %v1465 = vpop.f32.mrf.mxu0
  %v1466 = vadd.f32 %v323, %v1465
  %1467 = vmatmul.bf16.gmra.mxu0 %v1036
  %v1468 = vpop.f32.mrf.mxu0
  %v1469 = vadd.f32 %v323, %v1468
  %v1470 = vpop.f32.mrf.mxu0
  %v1471 = vadd.f32 %v323, %v1470
  %1472 = vmatmul.bf16.gmra.mxu0 %v1039
  %v1473 = vpop.f32.mrf.mxu0
  %v1474 = vadd.f32 %v323, %v1473
  %v1475 = vpop.f32.mrf.mxu0
  %v1476 = vadd.f32 %v323, %v1475
  %1477 = vmatmul.bf16.gmra.mxu0 %v1042
  %v1478 = vpop.f32.mrf.mxu0
  %v1479 = vadd.f32 %v323, %v1478
  %v1480 = vpop.f32.mrf.mxu0
  %v1481 = vadd.f32 %v323, %v1480
  %1482 = vmatmul.bf16.gmra.mxu0 %v1045
  %v1483 = vpop.f32.mrf.mxu0
  %v1484 = vadd.f32 %v323, %v1483
  %v1485 = vpop.f32.mrf.mxu0
  %v1486 = vadd.f32 %v323, %v1485
  %1487 = vmatmul.bf16.gmra.mxu0 %v1048
  %v1488 = vpop.f32.mrf.mxu0
  %v1489 = vadd.f32 %v323, %v1488
  %v1490 = vpop.f32.mrf.mxu0
  %v1491 = vadd.f32 %v323, %v1490
  %1492 = vmatmul.bf16.gmra.mxu0 %v1051
  %v1493 = vpop.f32.mrf.mxu0
  %v1494 = vadd.f32 %v323, %v1493
  %v1495 = vpop.f32.mrf.mxu0
  %v1496 = vadd.f32 %v323, %v1495
  %1497 = vmatmul.bf16.gmra.mxu0 %v1054
  %v1498 = vpop.f32.mrf.mxu0
  %v1499 = vadd.f32 %v323, %v1498
  %v1500 = vpop.f32.mrf.mxu0
  %v1501 = vadd.f32 %v323, %v1500
  %1502 = vmatmul.bf16.gmra.mxu0 %v1057
  %v1503 = vpop.f32.mrf.mxu0
  %v1504 = vadd.f32 %v323, %v1503
  %v1505 = vpop.f32.mrf.mxu0
  %v1506 = vadd.f32 %v323, %v1505
  %1507 = vmatmul.bf16.gmra.mxu0 %v1060
  %v1508 = vpop.f32.mrf.mxu0
  %v1509 = vadd.f32 %v323, %v1508
  %v1510 = vpop.f32.mrf.mxu0
  %v1511 = vadd.f32 %v323, %v1510
  %1512 = vmatmul.bf16.gmra.mxu0 %v1063
  %v1513 = vpop.f32.mrf.mxu0
  %v1514 = vadd.f32 %v323, %v1513
  %v1515 = vpop.f32.mrf.mxu0
  %v1516 = vadd.f32 %v323, %v1515
  %1517 = vmatmul.bf16.gmra.mxu0 %v1066
  %v1518 = vpop.f32.mrf.mxu0
  %v1519 = vadd.f32 %v323, %v1518
  %v1520 = vpop.f32.mrf.mxu0
  %v1521 = vadd.f32 %v323, %v1520
  %1522 = vmatmul.bf16.gmra.mxu0 %v1069
  %v1523 = vpop.f32.mrf.mxu0
  %v1524 = vadd.f32 %v323, %v1523
  %v1525 = vpop.f32.mrf.mxu0
  %v1526 = vadd.f32 %v323, %v1525
  %1527 = vmatmul.bf16.gmra.mxu0 %v1072
  %v1528 = vpop.f32.mrf.mxu0
  %v1529 = vadd.f32 %v323, %v1528
  %v1530 = vpop.f32.mrf.mxu0
  %v1531 = vadd.f32 %v323, %v1530
  %1532 = vmatmul.bf16.gmra.mxu0 %v1075
  %v1533 = vpop.f32.mrf.mxu0
  %v1534 = vadd.f32 %v323, %v1533
  %v1535 = vpop.f32.mrf.mxu0
  %v1536 = vadd.f32 %v323, %v1535
  %1537 = vmatmul.bf16.gmra.mxu0 %v1078
  %v1538 = vpop.f32.mrf.mxu0
  %v1539 = vadd.f32 %v323, %v1538
  %v1540 = vpop.f32.mrf.mxu0
  %v1541 = vadd.f32 %v323, %v1540
  %1542 = vmatmul.bf16.gmra.mxu0 %v1081
  %v1543 = vpop.f32.mrf.mxu0
  %v1544 = vadd.f32 %v323, %v1543
  %v1545 = vpop.f32.mrf.mxu0
  %v1546 = vadd.f32 %v323, %v1545
  %1547 = vmatmul.bf16.gmra.mxu0 %v1084
  %v1548 = vpop.f32.mrf.mxu0
  %v1549 = vadd.f32 %v323, %v1548
  %v1550 = vpop.f32.mrf.mxu0
  %v1551 = vadd.f32 %v323, %v1550
  %1552 = vmatmul.bf16.gmra.mxu0 %v1087
  %v1553 = vpop.f32.mrf.mxu0
  %v1554 = vadd.f32 %v323, %v1553
  %v1555 = vpop.f32.mrf.mxu0
  %v1556 = vadd.f32 %v323, %v1555
  %1557 = vmatmul.bf16.gmra.mxu0 %v1090
  %v1558 = vpop.f32.mrf.mxu0
  %v1559 = vadd.f32 %v323, %v1558
  %v1560 = vpop.f32.mrf.mxu0
  %v1561 = vadd.f32 %v323, %v1560
  %1562 = vmatmul.bf16.gmra.mxu0 %v1093
  %v1563 = vpop.f32.mrf.mxu0
  %v1564 = vadd.f32 %v323, %v1563
  %v1565 = vpop.f32.mrf.mxu0
  %v1566 = vadd.f32 %v323, %v1565
  %1567 = vmatmul.bf16.gmra.mxu0 %v1096
  %v1568 = vpop.f32.mrf.mxu0
  %v1569 = vadd.f32 %v323, %v1568
  %v1570 = vpop.f32.mrf.mxu0
  %v1571 = vadd.f32 %v323, %v1570
  %1572 = vmatmul.bf16.gmra.mxu0 %v1099
  %v1573 = vpop.f32.mrf.mxu0
  %v1574 = vadd.f32 %v323, %v1573
  %v1575 = vpop.f32.mrf.mxu0
  %v1576 = vadd.f32 %v323, %v1575
  %1577 = vmatmul.bf16.gmra.mxu0 %v1102
  %v1578 = vpop.f32.mrf.mxu0
  %v1579 = vadd.f32 %v323, %v1578
  %v1580 = vpop.f32.mrf.mxu0
  %v1581 = vadd.f32 %v323, %v1580
  %1582 = vmatmul.bf16.gmra.mxu0 %v1105
  %v1583 = vpop.f32.mrf.mxu0
  %v1584 = vadd.f32 %v323, %v1583
  %v1585 = vpop.f32.mrf.mxu0
  %v1586 = vadd.f32 %v323, %v1585
  %1587 = vmatmul.bf16.gmra.mxu0 %v1108
  %v1588 = vpop.f32.mrf.mxu0
  %v1589 = vadd.f32 %v323, %v1588
  %v1590 = vpop.f32.mrf.mxu0
  %v1591 = vadd.f32 %v323, %v1590
  %1592 = vmatmul.bf16.gmra.mxu0 %v1111
  %v1593 = vpop.f32.mrf.mxu0
  %v1594 = vadd.f32 %v323, %v1593
  %v1595 = vpop.f32.mrf.mxu0
  %v1596 = vadd.f32 %v323, %v1595
  %1597 = vmatmul.bf16.gmra.mxu0 %v1114
  %v1598 = vpop.f32.mrf.mxu0
  %v1599 = vadd.f32 %v323, %v1598
  %v1600 = vpop.f32.mrf.mxu0
  %v1601 = vadd.f32 %v323, %v1600
  %1602 = vmatmul.bf16.gmra.mxu0 %v1117
  %v1603 = vpop.f32.mrf.mxu0
  %v1604 = vadd.f32 %v323, %v1603
  %v1605 = vpop.f32.mrf.mxu0
  %v1606 = vadd.f32 %v323, %v1605
  %1607 = vmatmul.bf16.gmra.mxu0 %v1120
  %v1608 = vpop.f32.mrf.mxu0
  %v1609 = vadd.f32 %v323, %v1608
  %v1610 = vpop.f32.mrf.mxu0
  %v1611 = vadd.f32 %v323, %v1610
  %1612 = vmatmul.bf16.gmra.mxu0 %v1123
  %v1613 = vpop.f32.mrf.mxu0
  %v1614 = vadd.f32 %v323, %v1613
  %v1615 = vpop.f32.mrf.mxu0
  %v1616 = vadd.f32 %v323, %v1615
  %1617 = vmatmul.bf16.gmra.mxu0 %v1126
  %v1618 = vpop.f32.mrf.mxu0
  %v1619 = vadd.f32 %v323, %v1618
  %v1620 = vpop.f32.mrf.mxu0
  %v1621 = vadd.f32 %v323, %v1620
  %1622 = vmatmul.bf16.gmra.mxu0 %v1129
  %v1623 = vpop.f32.mrf.mxu0
  %v1624 = vadd.f32 %v323, %v1623
  %v1625 = vpop.f32.mrf.mxu0
  %v1626 = vadd.f32 %v323, %v1625
  %1627 = vmatmul.bf16.gmra.mxu0 %v1132
  %v1628 = vpop.f32.mrf.mxu0
  %v1629 = vadd.f32 %v323, %v1628
  %v1630 = vpop.f32.mrf.mxu0
  %v1631 = vadd.f32 %v323, %v1630
  %1632 = vmatmul.bf16.gmra.mxu0 %v1135
  %v1633 = vpop.f32.mrf.mxu0
  %v1634 = vadd.f32 %v323, %v1633
  %v1635 = vpop.f32.mrf.mxu0
  %v1636 = vadd.f32 %v323, %v1635
  %1637 = vmatmul.bf16.gmra.mxu0 %v1138
  %v1638 = vpop.f32.mrf.mxu0
  %v1639 = vadd.f32 %v323, %v1638
  %v1640 = vpop.f32.mrf.mxu0
  %v1641 = vadd.f32 %v323, %v1640
  %1642 = vmatmul.bf16.gmra.mxu0 %v1141
  %v1643 = vpop.f32.mrf.mxu0
  %v1644 = vadd.f32 %v323, %v1643
  %v1645 = vpop.f32.mrf.mxu0
  %v1646 = vadd.f32 %v323, %v1645
  %1647 = vmatmul.bf16.gmra.mxu0 %v1144
  %v1648 = vpop.f32.mrf.mxu0
  %v1649 = vadd.f32 %v323, %v1648
  %v1650 = vpop.f32.mrf.mxu0
  %v1651 = vadd.f32 %v323, %v1650
  %1652 = vmatmul.bf16.gmra.mxu0 %v1147
  %v1653 = vpop.f32.mrf.mxu0
  %v1654 = vadd.f32 %v323, %v1653
  %v1655 = vpop.f32.mrf.mxu0
  %v1656 = vadd.f32 %v323, %v1655
  %1657 = vmatmul.bf16.gmra.mxu0 %v1150
  %v1658 = vpop.f32.mrf.mxu0
  %v1659 = vadd.f32 %v323, %v1658
  %v1660 = vpop.f32.mrf.mxu0
  %v1661 = vadd.f32 %v323, %v1660
  %1662 = vmatmul.bf16.gmra.mxu0 %v1153
  %v1663 = vpop.f32.mrf.mxu0
  %v1664 = vadd.f32 %v323, %v1663
  %v1665 = vpop.f32.mrf.mxu0
  %v1666 = vadd.f32 %v323, %v1665
  %1667 = vmatmul.bf16.gmra.mxu0 %v1156
  %v1668 = vpop.f32.mrf.mxu0
  %v1669 = vadd.f32 %v323, %v1668
  %v1670 = vpop.f32.mrf.mxu0
  %v1671 = vadd.f32 %v323, %v1670
  %1672 = vmatmul.bf16.gmra.mxu0 %v1159
  %v1673 = vpop.f32.mrf.mxu0
  %v1674 = vadd.f32 %v323, %v1673
  %v1675 = vpop.f32.mrf.mxu0
  %v1676 = vadd.f32 %v323, %v1675
  %1677 = vmatmul.bf16.gmra.mxu0 %v1162
  %v1678 = vpop.f32.mrf.mxu0
  %v1679 = vadd.f32 %v323, %v1678
  %v1680 = vpop.f32.mrf.mxu0
  %v1681 = vadd.f32 %v323, %v1680
  %1682 = vmatmul.bf16.gmra.mxu0 %v1165
  %v1683 = vpop.f32.mrf.mxu0
  %v1684 = vadd.f32 %v323, %v1683
  %v1685 = vpop.f32.mrf.mxu0
  %v1686 = vadd.f32 %v323, %v1685
  %1687 = vmatmul.bf16.gmra.mxu0 %v1168
  %v1688 = vpop.f32.mrf.mxu0
  %v1689 = vadd.f32 %v323, %v1688
  %v1690 = vpop.f32.mrf.mxu0
  %v1691 = vadd.f32 %v323, %v1690
  %1692 = vmatmul.bf16.gmra.mxu0 %v1171
  %v1693 = vpop.f32.mrf.mxu0
  %v1694 = vadd.f32 %v323, %v1693
  %v1695 = vpop.f32.mrf.mxu0
  %v1696 = vadd.f32 %v323, %v1695
  %1697 = vmatmul.bf16.gmra.mxu0 %v1174
  %v1698 = vpop.f32.mrf.mxu0
  %v1699 = vadd.f32 %v323, %v1698
  %v1700 = vpop.f32.mrf.mxu0
  %v1701 = vadd.f32 %v323, %v1700
  %1702 = vmatmul.bf16.gmra.mxu0 %v1177
  %v1703 = vpop.f32.mrf.mxu0
  %v1704 = vadd.f32 %v323, %v1703
  %v1705 = vpop.f32.mrf.mxu0
  %v1706 = vadd.f32 %v323, %v1705
  %1707 = vmatmul.bf16.gmra.mxu0 %v1180
  %v1708 = vpop.f32.mrf.mxu0
  %v1709 = vadd.f32 %v323, %v1708
  %v1710 = vpop.f32.mrf.mxu0
  %v1711 = vadd.f32 %v323, %v1710
  %1712 = vmatmul.bf16.gmra.mxu0 %v1183
  %v1713 = vpop.f32.mrf.mxu0
  %v1714 = vadd.f32 %v323, %v1713
  %v1715 = vpop.f32.mrf.mxu0
  %v1716 = vadd.f32 %v323, %v1715
  %1717 = vmatmul.bf16.gmra.mxu0 %v1186
  %v1718 = vpop.f32.mrf.mxu0
  %v1719 = vadd.f32 %v323, %v1718
  %v1720 = vpop.f32.mrf.mxu0
  %v1721 = vadd.f32 %v323, %v1720
  %1722 = vmatmul.bf16.gmra.mxu0 %v1189
  %v1723 = vpop.f32.mrf.mxu0
  %v1724 = vadd.f32 %v323, %v1723
  %v1725 = vpop.f32.mrf.mxu0
  %v1726 = vadd.f32 %v323, %v1725
  %1727 = vmatmul.bf16.gmra.mxu0 %v1192
  %v1728 = vpop.f32.mrf.mxu0
  %v1729 = vadd.f32 %v323, %v1728
  %v1730 = vpop.f32.mrf.mxu0
  %v1731 = vadd.f32 %v323, %v1730
  %1732 = vmatmul.bf16.gmra.mxu0 %v1195
  %v1733 = vpop.f32.mrf.mxu0
  %v1734 = vadd.f32 %v323, %v1733
  %v1735 = vpop.f32.mrf.mxu0
  %v1736 = vadd.f32 %v323, %v1735
  %1737 = vmatmul.bf16.gmra.mxu0 %v1198
  %v1738 = vpop.f32.mrf.mxu0
  %v1739 = vadd.f32 %v323, %v1738
  %v1740 = vpop.f32.mrf.mxu0
  %v1741 = vadd.f32 %v323, %v1740
  %1742 = vmatmul.bf16.gmra.mxu0 %v1201
  %v1743 = vpop.f32.mrf.mxu0
  %v1744 = vadd.f32 %v323, %v1743
  %v1745 = vpop.f32.mrf.mxu0
  %v1746 = vadd.f32 %v323, %v1745
  %1747 = vmatmul.bf16.gmra.mxu0 %v1204
  %v1748 = vpop.f32.mrf.mxu0
  %v1749 = vadd.f32 %v323, %v1748
  %v1750 = vpop.f32.mrf.mxu0
  %v1751 = vadd.f32 %v323, %v1750
  %1752 = vmatmul.bf16.gmra.mxu0 %v1207
  %v1753 = vpop.f32.mrf.mxu0
  %v1754 = vadd.f32 %v323, %v1753
  %v1755 = vpop.f32.mrf.mxu0
  %v1756 = vadd.f32 %v323, %v1755
  %1757 = vmatmul.bf16.gmra.mxu0 %v1210
  %v1758 = vpop.f32.mrf.mxu0
  %v1759 = vadd.f32 %v323, %v1758
  %v1760 = vpop.f32.mrf.mxu0
  %v1761 = vadd.f32 %v323, %v1760
  %1762 = vmatmul.bf16.gmra.mxu0 %v1213
  %v1763 = vpop.f32.mrf.mxu0
  %v1764 = vadd.f32 %v323, %v1763
  %v1765 = vpop.f32.mrf.mxu0
  %v1766 = vadd.f32 %v323, %v1765
  %1767 = vmatmul.bf16.gmra.mxu0 %v1216
  %v1768 = vpop.f32.mrf.mxu0
  %v1769 = vadd.f32 %v323, %v1768
  %v1770 = vpop.f32.mrf.mxu0
  %v1771 = vadd.f32 %v323, %v1770
  %1772 = vmatmul.bf16.gmra.mxu0 %v1219
  %v1773 = vpop.f32.mrf.mxu0
  %v1774 = vadd.f32 %v323, %v1773
  %v1775 = vpop.f32.mrf.mxu0
  %v1776 = vadd.f32 %v323, %v1775
  %1777 = vmatmul.bf16.gmra.mxu0 %v1222
  %v1778 = vpop.f32.mrf.mxu0
  %v1779 = vadd.f32 %v323, %v1778
  %v1780 = vpop.f32.mrf.mxu0
  %v1781 = vadd.f32 %v323, %v1780
  %1782 = vmatmul.bf16.gmra.mxu0 %v1225
  %v1783 = vpop.f32.mrf.mxu0
  %v1784 = vadd.f32 %v323, %v1783
  %v1785 = vpop.f32.mrf.mxu0
  %v1786 = vadd.f32 %v323, %v1785
  %1787 = vmatmul.bf16.gmra.mxu0 %v1228
  %v1788 = vpop.f32.mrf.mxu0
  %v1789 = vadd.f32 %v323, %v1788
  %v1790 = vpop.f32.mrf.mxu0
  %v1791 = vadd.f32 %v323, %v1790
  %1792 = vmatmul.bf16.gmra.mxu0 %v1231
  %v1793 = vpop.f32.mrf.mxu0
  %v1794 = vadd.f32 %v323, %v1793
  %v1795 = vpop.f32.mrf.mxu0
  %v1796 = vadd.f32 %v323, %v1795
  %1797 = vmatmul.bf16.gmra.mxu0 %v1234
  %v1798 = vpop.f32.mrf.mxu0
  %v1799 = vadd.f32 %v323, %v1798
  %v1800 = vpop.f32.mrf.mxu0
  %v1801 = vadd.f32 %v323, %v1800
  %1802 = vmatmul.bf16.gmra.mxu0 %v1237
  %v1803 = vpop.f32.mrf.mxu0
  %v1804 = vadd.f32 %v323, %v1803
  %v1805 = vpop.f32.mrf.mxu0
  %v1806 = vadd.f32 %v323, %v1805
  %1807 = vmatmul.bf16.gmra.mxu0 %v1240
  %v1808 = vpop.f32.mrf.mxu0
  %v1809 = vadd.f32 %v323, %v1808
  %v1810 = vpop.f32.mrf.mxu0
  %v1811 = vadd.f32 %v323, %v1810
  %1812 = vmatmul.bf16.gmra.mxu0 %v1243
  %v1813 = vpop.f32.mrf.mxu0
  %v1814 = vadd.f32 %v323, %v1813
  %v1815 = vpop.f32.mrf.mxu0
  %v1816 = vadd.f32 %v323, %v1815
  %1817 = vmatmul.bf16.gmra.mxu0 %v1246
  %v1818 = vpop.f32.mrf.mxu0
  %v1819 = vadd.f32 %v323, %v1818
  %v1820 = vpop.f32.mrf.mxu0
  %v1821 = vadd.f32 %v323, %v1820
  %1822 = vmatmul.bf16.gmra.mxu0 %v1249
  %v1823 = vpop.f32.mrf.mxu0
  %v1824 = vadd.f32 %v323, %v1823
  %v1825 = vpop.f32.mrf.mxu0
  %v1826 = vadd.f32 %v323, %v1825
  %1827 = vmatmul.bf16.gmra.mxu0 %v1252
  %v1828 = vpop.f32.mrf.mxu0
  %v1829 = vadd.f32 %v323, %v1828
  %v1830 = vpop.f32.mrf.mxu0
  %v1831 = vadd.f32 %v323, %v1830
  %1832 = vmatmul.bf16.gmra.mxu0 %v1255
  %v1833 = vpop.f32.mrf.mxu0
  %v1834 = vadd.f32 %v323, %v1833
  %v1835 = vpop.f32.mrf.mxu0
  %v1836 = vadd.f32 %v323, %v1835
  %1837 = vmatmul.bf16.gmra.mxu0 %v1258
  %v1838 = vpop.f32.mrf.mxu0
  %v1839 = vadd.f32 %v323, %v1838
  %v1840 = vpop.f32.mrf.mxu0
  %v1841 = vadd.f32 %v323, %v1840
  %1842 = vmatmul.bf16.gmra.mxu0 %v1261
  %v1843 = vpop.f32.mrf.mxu0
  %v1844 = vadd.f32 %v323, %v1843
  %v1845 = vpop.f32.mrf.mxu0
  %v1846 = vadd.f32 %v323, %v1845
  %1847 = vmatmul.bf16.gmra.mxu0 %v1264
  %v1848 = vpop.f32.mrf.mxu0
  %v1849 = vadd.f32 %v323, %v1848
  %v1850 = vpop.f32.mrf.mxu0
  %v1851 = vadd.f32 %v323, %v1850
  %1852 = vmatmul.bf16.gmra.mxu0 %v1267
  %v1853 = vpop.f32.mrf.mxu0
  %v1854 = vadd.f32 %v323, %v1853
  %v1855 = vpop.f32.mrf.mxu0
  %v1856 = vadd.f32 %v323, %v1855
  %1857 = vmatmul.bf16.gmra.mxu0 %v1270
  %v1858 = vpop.f32.mrf.mxu0
  %v1859 = vadd.f32 %v323, %v1858
  %v1860 = vpop.f32.mrf.mxu0
  %v1861 = vadd.f32 %v323, %v1860
  %1862 = vmatmul.bf16.gmra.mxu0 %v1273
  %v1863 = vpop.f32.mrf.mxu0
  %v1864 = vadd.f32 %v323, %v1863
  %v1865 = vpop.f32.mrf.mxu0
  %v1866 = vadd.f32 %v323, %v1865
  %1867 = vmatmul.bf16.gmra.mxu0 %v1276
  %v1868 = vpop.f32.mrf.mxu0
  %v1869 = vadd.f32 %v323, %v1868
  %v1870 = vpop.f32.mrf.mxu0
  %v1871 = vadd.f32 %v323, %v1870
  %1872 = vmatmul.bf16.gmra.mxu0 %v1279
  %v1873 = vpop.f32.mrf.mxu0
  %v1874 = vadd.f32 %v323, %v1873
  %v1875 = vpop.f32.mrf.mxu0
  %v1876 = vadd.f32 %v323, %v1875
  %1877 = vmatmul.bf16.gmra.mxu0 %v1282
  %v1878 = vpop.f32.mrf.mxu0
  %v1879 = vadd.f32 %v323, %v1878
  %v1880 = vpop.f32.mrf.mxu0
  %v1881 = vadd.f32 %v323, %v1880
  %1882 = vmatmul.bf16.gmra.mxu0 %v1285
  %v1883 = vpop.f32.mrf.mxu0
  %v1884 = vadd.f32 %v323, %v1883
  %v1885 = vpop.f32.mrf.mxu0
  %v1886 = vadd.f32 %v323, %v1885
  %1887 = vmatmul.bf16.gmra.mxu0 %v1288
  %v1888 = vpop.f32.mrf.mxu0
  %v1889 = vadd.f32 %v323, %v1888
  %v1890 = vpop.f32.mrf.mxu0
  %v1891 = vadd.f32 %v323, %v1890
  %1892 = vmatmul.bf16.gmra.mxu0 %v1291
  %v1893 = vpop.f32.mrf.mxu0
  %v1894 = vadd.f32 %v323, %v1893
  %v1895 = vpop.f32.mrf.mxu0
  %v1896 = vadd.f32 %v323, %v1895
  %1897 = vmatmul.bf16.gmra.mxu0 %v1294
  %v1898 = vpop.f32.mrf.mxu0
  %v1899 = vadd.f32 %v323, %v1898
  %v1900 = vpop.f32.mrf.mxu0
  %v1901 = vadd.f32 %v323, %v1900
  %1902 = vmatmul.bf16.gmra.mxu0 %v1297
  %v1903 = vpop.f32.mrf.mxu0
  %v1904 = vadd.f32 %v323, %v1903
  %v1905 = vpop.f32.mrf.mxu0
  %v1906 = vadd.f32 %v323, %v1905
  %1907 = vmatmul.bf16.gmra.mxu0 %v1300
  %v1908 = vpop.f32.mrf.mxu0
  %v1909 = vadd.f32 %v323, %v1908
  %v1910 = vpop.f32.mrf.mxu0
  %v1911 = vadd.f32 %v323, %v1910
  %1912 = vmatmul.bf16.gmra.mxu0 %v1303
  %v1913 = vpop.f32.mrf.mxu0
  %v1914 = vadd.f32 %v323, %v1913
  %v1915 = vpop.f32.mrf.mxu0
  %v1916 = vadd.f32 %v323, %v1915
  %1917 = vmatmul.bf16.gmra.mxu0 %v1306
  %v1918 = vpop.f32.mrf.mxu0
  %v1919 = vadd.f32 %v323, %v1918
  %v1920 = vpop.f32.mrf.mxu0
  %v1921 = vadd.f32 %v323, %v1920
  %1922 = vmatmul.bf16.gmra.mxu0 %v1309
  %v1923 = vpop.f32.mrf.mxu0
  %v1924 = vadd.f32 %v323, %v1923
  %v1925 = vpop.f32.mrf.mxu0
  %v1926 = vadd.f32 %v323, %v1925
  %1927 = vmatmul.bf16.gmra.mxu0 %v1312
  %v1928 = vpop.f32.mrf.mxu0
  %v1929 = vadd.f32 %v323, %v1928
  %v1930 = vpop.f32.mrf.mxu0
  %v1931 = vadd.f32 %v323, %v1930
  %1932 = vmatmul.bf16.gmra.mxu0 %v1315
  %v1933 = vpop.f32.mrf.mxu0
  %v1934 = vadd.f32 %v323, %v1933
  %v1935 = vpop.f32.mrf.mxu0
  %v1936 = vadd.f32 %v323, %v1935
  %1937 = vmatmul.bf16.gmra.mxu0 %v1318
  %v1938 = vpop.f32.mrf.mxu0
  %v1939 = vadd.f32 %v323, %v1938
  %v1940 = vpop.f32.mrf.mxu0
  %v1941 = vadd.f32 %v323, %v1940
  %1942 = vmatmul.bf16.gmra.mxu0 %v1321
  %v1943 = vpop.f32.mrf.mxu0
  %v1944 = vadd.f32 %v323, %v1943
  %v1945 = vpop.f32.mrf.mxu0
  %v1946 = vadd.f32 %v323, %v1945
  %1947 = vmatmul.bf16.gmra.mxu0 %v1324
  %v1948 = vpop.f32.mrf.mxu0
  %v1949 = vadd.f32 %v323, %v1948
  %v1950 = vpop.f32.mrf.mxu0
  %v1951 = vadd.f32 %v323, %v1950
  %1952 = vmatmul.bf16.gmra.mxu0 %v1327
  %v1953 = vpop.f32.mrf.mxu0
  %v1954 = vadd.f32 %v323, %v1953
  %v1955 = vpop.f32.mrf.mxu0
  %v1956 = vadd.f32 %v323, %v1955
  %1957 = vmatmul.bf16.gmra.mxu0 %v1330
  %v1958 = vpop.f32.mrf.mxu0
  %v1959 = vadd.f32 %v323, %v1958
  %v1960 = vpop.f32.mrf.mxu0
  %v1961 = vadd.f32 %v323, %v1960
  %1962 = vmatmul.bf16.gmra.mxu0 %v1333
  %v1963 = vpop.f32.mrf.mxu0
  %v1964 = vadd.f32 %v323, %v1963
  %v1965 = vpop.f32.mrf.mxu0
  %v1966 = vadd.f32 %v323, %v1965
  %1967 = vmatmul.bf16.gmra.mxu0 %v1336
  %v1968 = vpop.f32.mrf.mxu0
  %v1969 = vadd.f32 %v323, %v1968
  %v1970 = vpop.f32.mrf.mxu0
  %v1971 = vadd.f32 %v323, %v1970
  %1972 = vmatmul.bf16.gmra.mxu0 %v1339
  %v1973 = vpop.f32.mrf.mxu0
  %v1974 = vadd.f32 %v323, %v1973
  %v1975 = vpop.f32.mrf.mxu0
  %v1976 = vadd.f32 %v323, %v1975
  %1977 = vmatmul.bf16.gmra.mxu0 %v1342
  %v1978 = vpop.f32.mrf.mxu0
  %v1979 = vadd.f32 %v323, %v1978
  %v1980 = vpop.f32.mrf.mxu0
  %v1981 = vadd.f32 %v323, %v1980
  %1982 = vmatmul.bf16.gmra.mxu0 %v1345
  %v1983 = vpop.f32.mrf.mxu0
  %v1984 = vadd.f32 %v323, %v1983
  %v1985 = vpop.f32.mrf.mxu0
  %v1986 = vadd.f32 %v323, %v1985
  %1987 = vmatmul.bf16.gmra.mxu0 %v1348
  %v1988 = vpop.f32.mrf.mxu0
  %v1989 = vadd.f32 %v323, %v1988
  %v1990 = vpop.f32.mrf.mxu0
  %v1991 = vadd.f32 %v323, %v1990
  %1992 = vmatmul.bf16.gmra.mxu0 %v1351
  %v1993 = vpop.f32.mrf.mxu0
  %v1994 = vadd.f32 %v323, %v1993
  %v1995 = vpop.f32.mrf.mxu0
  %v1996 = vadd.f32 %v323, %v1995
  %1997 = vmatmul.bf16.gmra.mxu0 %v1354
  %v1998 = vpop.f32.mrf.mxu0
  %v1999 = vadd.f32 %v323, %v1998
  %v2000 = vpop.f32.mrf.mxu0
  %v2001 = vadd.f32 %v323, %v2000
  %2002 = vmatmul.bf16.gmra.mxu0 %v1357
  %v2003 = vpop.f32.mrf.mxu0
  %v2004 = vadd.f32 %v323, %v2003
  %v2005 = vpop.f32.mrf.mxu0
  %v2006 = vadd.f32 %v323, %v2005
  %2007 = vmatmul.bf16.gmra.mxu0 %v1360
  %v2008 = vpop.f32.mrf.mxu0
  %v2009 = vadd.f32 %v323, %v2008
  %v2010 = vpop.f32.mrf.mxu0
  %v2011 = vadd.f32 %v323, %v2010
  %2012 = vmatmul.bf16.gmra.mxu0 %v1363
  %v2013 = vpop.f32.mrf.mxu0
  %v2014 = vadd.f32 %v323, %v2013
  %v2015 = vpop.f32.mrf.mxu0
  %v2016 = vadd.f32 %v323, %v2015
  %2017 = vdwg.mxu0
  %v2018 = vmax.f32 %v1379, 0.0
  %v2019 = vmax.f32 %v1381, 0.0
  %v2020 = vmax.f32 %v1384, 0.0
  %v2021 = vmax.f32 %v1386, 0.0
  %v2022 = vmax.f32 %v1389, 0.0
  %v2023 = vmax.f32 %v1391, 0.0
  %v2024 = vmax.f32 %v1394, 0.0
  %v2025 = vmax.f32 %v1396, 0.0
  %v2026 = vmax.f32 %v1399, 0.0
  %v2027 = vmax.f32 %v1401, 0.0
  %v2028 = vmax.f32 %v1404, 0.0
  %v2029 = vmax.f32 %v1406, 0.0
  %v2030 = vmax.f32 %v1409, 0.0
  %v2031 = vmax.f32 %v1411, 0.0
  %v2032 = vmax.f32 %v1414, 0.0
  %v2033 = vmax.f32 %v1416, 0.0
  %v2034 = vmax.f32 %v1419, 0.0
  %v2035 = vmax.f32 %v1421, 0.0
  %v2036 = vmax.f32 %v1424, 0.0
  %v2037 = vmax.f32 %v1426, 0.0
  %v2038 = vmax.f32 %v1429, 0.0
  %v2039 = vmax.f32 %v1431, 0.0
  %v2040 = vmax.f32 %v1434, 0.0
  %v2041 = vmax.f32 %v1436, 0.0
  %v2042 = vmax.f32 %v1439, 0.0
  %v2043 = vmax.f32 %v1441, 0.0
  %v2044 = vmax.f32 %v1444, 0.0
  %v2045 = vmax.f32 %v1446, 0.0
  %v2046 = vmax.f32 %v1449, 0.0
  %v2047 = vmax.f32 %v1451, 0.0
  %v2048 = vmax.f32 %v1454, 0.0
  %v2049 = vmax.f32 %v1456, 0.0
  %v2050 = vmax.f32 %v1459, 0.0
  %v2051 = vmax.f32 %v1461, 0.0
  %v2052 = vmax.f32 %v1464, 0.0
  %v2053 = vmax.f32 %v1466, 0.0
  %v2054 = vmax.f32 %v1469, 0.0
  %v2055 = vmax.f32 %v1471, 0.0
  %v2056 = vmax.f32 %v1474, 0.0
  %v2057 = vmax.f32 %v1476, 0.0
  %v2058 = vmax.f32 %v1479, 0.0
  %v2059 = vmax.f32 %v1481, 0.0
  %v2060 = vmax.f32 %v1484, 0.0
  %v2061 = vmax.f32 %v1486, 0.0
  %v2062 = vmax.f32 %v1489, 0.0
  %v2063 = vmax.f32 %v1491, 0.0
  %v2064 = vmax.f32 %v1494, 0.0
  %v2065 = vmax.f32 %v1496, 0.0
  %v2066 = vmax.f32 %v1499, 0.0
  %v2067 = vmax.f32 %v1501, 0.0
  %v2068 = vmax.f32 %v1504, 0.0
  %v2069 = vmax.f32 %v1506, 0.0
  %v2070 = vmax.f32 %v1509, 0.0
  %v2071 = vmax.f32 %v1511, 0.0
  %v2072 = vmax.f32 %v1514, 0.0
  %v2073 = vmax.f32 %v1516, 0.0
  %v2074 = vmax.f32 %v1519, 0.0
  %v2075 = vmax.f32 %v1521, 0.0
  %v2076 = vmax.f32 %v1524, 0.0
  %v2077 = vmax.f32 %v1526, 0.0
  %v2078 = vmax.f32 %v1529, 0.0
  %v2079 = vmax.f32 %v1531, 0.0
  %v2080 = vmax.f32 %v1534, 0.0
  %v2081 = vmax.f32 %v1536, 0.0
  %v2082 = vmax.f32 %v1539, 0.0
  %v2083 = vmax.f32 %v1541, 0.0
  %v2084 = vmax.f32 %v1544, 0.0
  %v2085 = vmax.f32 %v1546, 0.0
  %v2086 = vmax.f32 %v1549, 0.0
  %v2087 = vmax.f32 %v1551, 0.0
  %v2088 = vmax.f32 %v1554, 0.0
  %v2089 = vmax.f32 %v1556, 0.0
  %v2090 = vmax.f32 %v1559, 0.0
  %v2091 = vmax.f32 %v1561, 0.0
  %v2092 = vmax.f32 %v1564, 0.0
  %v2093 = vmax.f32 %v1566, 0.0
  %v2094 = vmax.f32 %v1569, 0.0
  %v2095 = vmax.f32 %v1571, 0.0
  %v2096 = vmax.f32 %v1574, 0.0
  %v2097 = vmax.f32 %v1576, 0.0
  %v2098 = vmax.f32 %v1579, 0.0
  %v2099 = vmax.f32 %v1581, 0.0
  %v2100 = vmax.f32 %v1584, 0.0
  %v2101 = vmax.f32 %v1586, 0.0
  %v2102 = vmax.f32 %v1589, 0.0
  %v2103 = vmax.f32 %v1591, 0.0
  %v2104 = vmax.f32 %v1594, 0.0
  %v2105 = vmax.f32 %v1596, 0.0
  %v2106 = vmax.f32 %v1599, 0.0
  %v2107 = vmax.f32 %v1601, 0.0
  %v2108 = vmax.f32 %v1604, 0.0
  %v2109 = vmax.f32 %v1606, 0.0
  %v2110 = vmax.f32 %v1609, 0.0
  %v2111 = vmax.f32 %v1611, 0.0
  %v2112 = vmax.f32 %v1614, 0.0
  %v2113 = vmax.f32 %v1616, 0.0
  %v2114 = vmax.f32 %v1619, 0.0
  %v2115 = vmax.f32 %v1621, 0.0
  %v2116 = vmax.f32 %v1624, 0.0
  %v2117 = vmax.f32 %v1626, 0.0
  %v2118 = vmax.f32 %v1629, 0.0
  %v2119 = vmax.f32 %v1631, 0.0
  %v2120 = vmax.f32 %v1634, 0.0
  %v2121 = vmax.f32 %v1636, 0.0
  %v2122 = vmax.f32 %v1639, 0.0
  %v2123 = vmax.f32 %v1641, 0.0
  %v2124 = vmax.f32 %v1644, 0.0
  %v2125 = vmax.f32 %v1646, 0.0
  %v2126 = vmax.f32 %v1649, 0.0
  %v2127 = vmax.f32 %v1651, 0.0
  %v2128 = vmax.f32 %v1654, 0.0
  %v2129 = vmax.f32 %v1656, 0.0
  %v2130 = vmax.f32 %v1659, 0.0
  %v2131 = vmax.f32 %v1661, 0.0
  %v2132 = vmax.f32 %v1664, 0.0
  %v2133 = vmax.f32 %v1666, 0.0
  %v2134 = vmax.f32 %v1669, 0.0
  %v2135 = vmax.f32 %v1671, 0.0
  %v2136 = vmax.f32 %v1674, 0.0
  %v2137 = vmax.f32 %v1676, 0.0
  %v2138 = vmax.f32 %v1679, 0.0
  %v2139 = vmax.f32 %v1681, 0.0
  %v2140 = vmax.f32 %v1684, 0.0
  %v2141 = vmax.f32 %v1686, 0.0
  %v2142 = vmax.f32 %v1689, 0.0
  %v2143 = vmax.f32 %v1691, 0.0
  %v2144 = vmax.f32 %v1694, 0.0
  %v2145 = vmax.f32 %v1696, 0.0
  %v2146 = vmax.f32 %v1699, 0.0
  %v2147 = vmax.f32 %v1701, 0.0
  %v2148 = vmax.f32 %v1704, 0.0
  %v2149 = vmax.f32 %v1706, 0.0
  %v2150 = vmax.f32 %v1709, 0.0
  %v2151 = vmax.f32 %v1711, 0.0
  %v2152 = vmax.f32 %v1714, 0.0
  %v2153 = vmax.f32 %v1716, 0.0
  %v2154 = vmax.f32 %v1719, 0.0
  %v2155 = vmax.f32 %v1721, 0.0
  %v2156 = vmax.f32 %v1724, 0.0
  %v2157 = vmax.f32 %v1726, 0.0
  %v2158 = vmax.f32 %v1729, 0.0
  %v2159 = vmax.f32 %v1731, 0.0
  %v2160 = vmax.f32 %v1734, 0.0
  %v2161 = vmax.f32 %v1736, 0.0
  %v2162 = vmax.f32 %v1739, 0.0
  %v2163 = vmax.f32 %v1741, 0.0
  %v2164 = vmax.f32 %v1744, 0.0
  %v2165 = vmax.f32 %v1746, 0.0
  %v2166 = vmax.f32 %v1749, 0.0
  %v2167 = vmax.f32 %v1751, 0.0
  %v2168 = vmax.f32 %v1754, 0.0
  %v2169 = vmax.f32 %v1756, 0.0
  %v2170 = vmax.f32 %v1759, 0.0
  %v2171 = vmax.f32 %v1761, 0.0
  %v2172 = vmax.f32 %v1764, 0.0
  %v2173 = vmax.f32 %v1766, 0.0
  %v2174 = vmax.f32 %v1769, 0.0
  %v2175 = vmax.f32 %v1771, 0.0
  %v2176 = vmax.f32 %v1774, 0.0
  %v2177 = vmax.f32 %v1776, 0.0
  %v2178 = vmax.f32 %v1779, 0.0
  %v2179 = vmax.f32 %v1781, 0.0
  %v2180 = vmax.f32 %v1784, 0.0
  %v2181 = vmax.f32 %v1786, 0.0
  %v2182 = vmax.f32 %v1789, 0.0
  %v2183 = vmax.f32 %v1791, 0.0
  %v2184 = vmax.f32 %v1794, 0.0
  %v2185 = vmax.f32 %v1796, 0.0
  %v2186 = vmax.f32 %v1799, 0.0
  %v2187 = vmax.f32 %v1801, 0.0
  %v2188 = vmax.f32 %v1804, 0.0
  %v2189 = vmax.f32 %v1806, 0.0
  %v2190 = vmax.f32 %v1809, 0.0
  %v2191 = vmax.f32 %v1811, 0.0
  %v2192 = vmax.f32 %v1814, 0.0
  %v2193 = vmax.f32 %v1816, 0.0
  %v2194 = vmax.f32 %v1819, 0.0
  %v2195 = vmax.f32 %v1821, 0.0
  %v2196 = vmax.f32 %v1824, 0.0
  %v2197 = vmax.f32 %v1826, 0.0
  %v2198 = vmax.f32 %v1829, 0.0
  %v2199 = vmax.f32 %v1831, 0.0
  %v2200 = vmax.f32 %v1834, 0.0
  %v2201 = vmax.f32 %v1836, 0.0
  %v2202 = vmax.f32 %v1839, 0.0
  %v2203 = vmax.f32 %v1841, 0.0
  %v2204 = vmax.f32 %v1844, 0.0
  %v2205 = vmax.f32 %v1846, 0.0
  %v2206 = vmax.f32 %v1849, 0.0
  %v2207 = vmax.f32 %v1851, 0.0
  %v2208 = vmax.f32 %v1854, 0.0
  %v2209 = vmax.f32 %v1856, 0.0
  %v2210 = vmax.f32 %v1859, 0.0
  %v2211 = vmax.f32 %v1861, 0.0
  %v2212 = vmax.f32 %v1864, 0.0
  %v2213 = vmax.f32 %v1866, 0.0
  %v2214 = vmax.f32 %v1869, 0.0
  %v2215 = vmax.f32 %v1871, 0.0
  %v2216 = vmax.f32 %v1874, 0.0
  %v2217 = vmax.f32 %v1876, 0.0
  %v2218 = vmax.f32 %v1879, 0.0
  %v2219 = vmax.f32 %v1881, 0.0
  %v2220 = vmax.f32 %v1884, 0.0
  %v2221 = vmax.f32 %v1886, 0.0
  %v2222 = vmax.f32 %v1889, 0.0
  %v2223 = vmax.f32 %v1891, 0.0
  %v2224 = vmax.f32 %v1894, 0.0
  %v2225 = vmax.f32 %v1896, 0.0
  %v2226 = vmax.f32 %v1899, 0.0
  %v2227 = vmax.f32 %v1901, 0.0
  %v2228 = vmax.f32 %v1904, 0.0
  %v2229 = vmax.f32 %v1906, 0.0
  %v2230 = vmax.f32 %v1909, 0.0
  %v2231 = vmax.f32 %v1911, 0.0
  %v2232 = vmax.f32 %v1914, 0.0
  %v2233 = vmax.f32 %v1916, 0.0
  %v2234 = vmax.f32 %v1919, 0.0
  %v2235 = vmax.f32 %v1921, 0.0
  %v2236 = vmax.f32 %v1924, 0.0
  %v2237 = vmax.f32 %v1926, 0.0
  %v2238 = vmax.f32 %v1929, 0.0
  %v2239 = vmax.f32 %v1931, 0.0
  %v2240 = vmax.f32 %v1934, 0.0
  %v2241 = vmax.f32 %v1936, 0.0
  %v2242 = vmax.f32 %v1939, 0.0
  %v2243 = vmax.f32 %v1941, 0.0
  %v2244 = vmax.f32 %v1944, 0.0
  %v2245 = vmax.f32 %v1946, 0.0
  %v2246 = vmax.f32 %v1949, 0.0
  %v2247 = vmax.f32 %v1951, 0.0
  %v2248 = vmax.f32 %v1954, 0.0
  %v2249 = vmax.f32 %v1956, 0.0
  %v2250 = vmax.f32 %v1959, 0.0
  %v2251 = vmax.f32 %v1961, 0.0
  %v2252 = vmax.f32 %v1964, 0.0
  %v2253 = vmax.f32 %v1966, 0.0
  %v2254 = vmax.f32 %v1969, 0.0
  %v2255 = vmax.f32 %v1971, 0.0
  %v2256 = vmax.f32 %v1974, 0.0
  %v2257 = vmax.f32 %v1976, 0.0
  %v2258 = vmax.f32 %v1979, 0.0
  %v2259 = vmax.f32 %v1981, 0.0
  %v2260 = vmax.f32 %v1984, 0.0
  %v2261 = vmax.f32 %v1986, 0.0
  %v2262 = vmax.f32 %v1989, 0.0
  %v2263 = vmax.f32 %v1991, 0.0
  %v2264 = vmax.f32 %v1994, 0.0
  %v2265 = vmax.f32 %v1996, 0.0
  %v2266 = vmax.f32 %v1999, 0.0
  %v2267 = vmax.f32 %v2001, 0.0
  %v2268 = vmax.f32 %v2004, 0.0
  %v2269 = vmax.f32 %v2006, 0.0
  %v2270 = vmax.f32 %v2009, 0.0
  %v2271 = vmax.f32 %v2011, 0.0
  %v2272 = vmax.f32 %v2014, 0.0
  %v2273 = vmax.f32 %v2016, 0.0
  %v2274 = vmax.f32 %v2018, %v2082
  %v2275 = vmax.f32 %v2019, %v2083
  %v2276 = vmax.f32 %v2020, %v2084
  %v2277 = vmax.f32 %v2021, %v2085
  %v2278 = vmax.f32 %v2022, %v2086
  %v2279 = vmax.f32 %v2023, %v2087
  %v2280 = vmax.f32 %v2024, %v2088
  %v2281 = vmax.f32 %v2025, %v2089
  %v2282 = vmax.f32 %v2026, %v2090
  %v2283 = vmax.f32 %v2027, %v2091
  %v2284 = vmax.f32 %v2028, %v2092
  %v2285 = vmax.f32 %v2029, %v2093
  %v2286 = vmax.f32 %v2030, %v2094
  %v2287 = vmax.f32 %v2031, %v2095
  %v2288 = vmax.f32 %v2032, %v2096
  %v2289 = vmax.f32 %v2033, %v2097
  %v2290 = vmax.f32 %v2034, %v2098
  %v2291 = vmax.f32 %v2035, %v2099
  %v2292 = vmax.f32 %v2036, %v2100
  %v2293 = vmax.f32 %v2037, %v2101
  %v2294 = vmax.f32 %v2038, %v2102
  %v2295 = vmax.f32 %v2039, %v2103
  %v2296 = vmax.f32 %v2040, %v2104
  %v2297 = vmax.f32 %v2041, %v2105
  %v2298 = vmax.f32 %v2042, %v2106
  %v2299 = vmax.f32 %v2043, %v2107
  %v2300 = vmax.f32 %v2044, %v2108
  %v2301 = vmax.f32 %v2045, %v2109
  %v2302 = vmax.f32 %v2046, %v2110
  %v2303 = vmax.f32 %v2047, %v2111
  %v2304 = vmax.f32 %v2048, %v2112
  %v2305 = vmax.f32 %v2049, %v2113
  %v2306 = vmax.f32 %v2050, %v2114
  %v2307 = vmax.f32 %v2051, %v2115
  %v2308 = vmax.f32 %v2052, %v2116
  %v2309 = vmax.f32 %v2053, %v2117
  %v2310 = vmax.f32 %v2054, %v2118
  %v2311 = vmax.f32 %v2055, %v2119
  %v2312 = vmax.f32 %v2056, %v2120
  %v2313 = vmax.f32 %v2057, %v2121
  %v2314 = vmax.f32 %v2058, %v2122
  %v2315 = vmax.f32 %v2059, %v2123
  %v2316 = vmax.f32 %v2060, %v2124
  %v2317 = vmax.f32 %v2061, %v2125
  %v2318 = vmax.f32 %v2062, %v2126
  %v2319 = vmax.f32 %v2063, %v2127
  %v2320 = vmax.f32 %v2064, %v2128
  %v2321 = vmax.f32 %v2065, %v2129
  %v2322 = vmax.f32 %v2066, %v2130
  %v2323 = vmax.f32 %v2067, %v2131
  %v2324 = vmax.f32 %v2068, %v2132
  %v2325 = vmax.f32 %v2069, %v2133
  %v2326 = vmax.f32 %v2070, %v2134
  %v2327 = vmax.f32 %v2071, %v2135
  %v2328 = vmax.f32 %v2072, %v2136
  %v2329 = vmax.f32 %v2073, %v2137
  %v2330 = vmax.f32 %v2074, %v2138
  %v2331 = vmax.f32 %v2075, %v2139
  %v2332 = vmax.f32 %v2076, %v2140
  %v2333 = vmax.f32 %v2077, %v2141
  %v2334 = vmax.f32 %v2078, %v2142
  %v2335 = vmax.f32 %v2079, %v2143
  %v2336 = vmax.f32 %v2080, %v2144
  %v2337 = vmax.f32 %v2081, %v2145
  %v2338 = vmax.f32 %v2146, %v2210
  %v2339 = vmax.f32 %v2147, %v2211
  %v2340 = vmax.f32 %v2148, %v2212
  %v2341 = vmax.f32 %v2149, %v2213
  %v2342 = vmax.f32 %v2150, %v2214
  %v2343 = vmax.f32 %v2151, %v2215
  %v2344 = vmax.f32 %v2152, %v2216
  %v2345 = vmax.f32 %v2153, %v2217
  %v2346 = vmax.f32 %v2154, %v2218
  %v2347 = vmax.f32 %v2155, %v2219
  %v2348 = vmax.f32 %v2156, %v2220
  %v2349 = vmax.f32 %v2157, %v2221
  %v2350 = vmax.f32 %v2158, %v2222
  %v2351 = vmax.f32 %v2159, %v2223
  %v2352 = vmax.f32 %v2160, %v2224
  %v2353 = vmax.f32 %v2161, %v2225
  %v2354 = vmax.f32 %v2162, %v2226
  %v2355 = vmax.f32 %v2163, %v2227
  %v2356 = vmax.f32 %v2164, %v2228
  %v2357 = vmax.f32 %v2165, %v2229
  %v2358 = vmax.f32 %v2166, %v2230
  %v2359 = vmax.f32 %v2167, %v2231
  %v2360 = vmax.f32 %v2168, %v2232
  %v2361 = vmax.f32 %v2169, %v2233
  %v2362 = vmax.f32 %v2170, %v2234
  %v2363 = vmax.f32 %v2171, %v2235
  %v2364 = vmax.f32 %v2172, %v2236
  %v2365 = vmax.f32 %v2173, %v2237
  %v2366 = vmax.f32 %v2174, %v2238
  %v2367 = vmax.f32 %v2175, %v2239
  %v2368 = vmax.f32 %v2176, %v2240
  %v2369 = vmax.f32 %v2177, %v2241
  %v2370 = vmax.f32 %v2178, %v2242
  %v2371 = vmax.f32 %v2179, %v2243
  %v2372 = vmax.f32 %v2180, %v2244
  %v2373 = vmax.f32 %v2181, %v2245
  %v2374 = vmax.f32 %v2182, %v2246
  %v2375 = vmax.f32 %v2183, %v2247
  %v2376 = vmax.f32 %v2184, %v2248
  %v2377 = vmax.f32 %v2185, %v2249
  %v2378 = vmax.f32 %v2186, %v2250
  %v2379 = vmax.f32 %v2187, %v2251
  %v2380 = vmax.f32 %v2188, %v2252
  %v2381 = vmax.f32 %v2189, %v2253
  %v2382 = vmax.f32 %v2190, %v2254
  %v2383 = vmax.f32 %v2191, %v2255
  %v2384 = vmax.f32 %v2192, %v2256
  %v2385 = vmax.f32 %v2193, %v2257
  %v2386 = vmax.f32 %v2194, %v2258
  %v2387 = vmax.f32 %v2195, %v2259
  %v2388 = vmax.f32 %v2196, %v2260
  %v2389 = vmax.f32 %v2197, %v2261
  %v2390 = vmax.f32 %v2198, %v2262
  %v2391 = vmax.f32 %v2199, %v2263
  %v2392 = vmax.f32 %v2200, %v2264
  %v2393 = vmax.f32 %v2201, %v2265
  %v2394 = vmax.f32 %v2202, %v2266
  %v2395 = vmax.f32 %v2203, %v2267
  %v2396 = vmax.f32 %v2204, %v2268
  %v2397 = vmax.f32 %v2205, %v2269
  %v2398 = vmax.f32 %v2206, %v2270
  %v2399 = vmax.f32 %v2207, %v2271
  %v2400 = vmax.f32 %v2208, %v2272
  %v2401 = vmax.f32 %v2209, %v2273
  %v2402 = vmax.f32 %v2274, %v2338
  %v2403 = vmax.f32 %v2275, %v2339
  %v2404 = vmax.f32 %v2276, %v2340
  %v2405 = vmax.f32 %v2277, %v2341
  %v2406 = vmax.f32 %v2278, %v2342
  %v2407 = vmax.f32 %v2279, %v2343
  %v2408 = vmax.f32 %v2280, %v2344
  %v2409 = vmax.f32 %v2281, %v2345
  %v2410 = vmax.f32 %v2282, %v2346
  %v2411 = vmax.f32 %v2283, %v2347
  %v2412 = vmax.f32 %v2284, %v2348
  %v2413 = vmax.f32 %v2285, %v2349
  %v2414 = vmax.f32 %v2286, %v2350
  %v2415 = vmax.f32 %v2287, %v2351
  %v2416 = vmax.f32 %v2288, %v2352
  %v2417 = vmax.f32 %v2289, %v2353
  %v2418 = vmax.f32 %v2290, %v2354
  %v2419 = vmax.f32 %v2291, %v2355
  %v2420 = vmax.f32 %v2292, %v2356
  %v2421 = vmax.f32 %v2293, %v2357
  %v2422 = vmax.f32 %v2294, %v2358
  %v2423 = vmax.f32 %v2295, %v2359
  %v2424 = vmax.f32 %v2296, %v2360
  %v2425 = vmax.f32 %v2297, %v2361
  %v2426 = vmax.f32 %v2298, %v2362
  %v2427 = vmax.f32 %v2299, %v2363
  %v2428 = vmax.f32 %v2300, %v2364
  %v2429 = vmax.f32 %v2301, %v2365
  %v2430 = vmax.f32 %v2302, %v2366
  %v2431 = vmax.f32 %v2303, %v2367
  %v2432 = vmax.f32 %v2304, %v2368
  %v2433 = vmax.f32 %v2305, %v2369
  %v2434 = vmax.f32 %v2306, %v2370
  %v2435 = vmax.f32 %v2307, %v2371
  %v2436 = vmax.f32 %v2308, %v2372
  %v2437 = vmax.f32 %v2309, %v2373
  %v2438 = vmax.f32 %v2310, %v2374
  %v2439 = vmax.f32 %v2311, %v2375
  %v2440 = vmax.f32 %v2312, %v2376
  %v2441 = vmax.f32 %v2313, %v2377
  %v2442 = vmax.f32 %v2314, %v2378
  %v2443 = vmax.f32 %v2315, %v2379
  %v2444 = vmax.f32 %v2316, %v2380
  %v2445 = vmax.f32 %v2317, %v2381
  %v2446 = vmax.f32 %v2318, %v2382
  %v2447 = vmax.f32 %v2319, %v2383
  %v2448 = vmax.f32 %v2320, %v2384
  %v2449 = vmax.f32 %v2321, %v2385
  %v2450 = vmax.f32 %v2322, %v2386
  %v2451 = vmax.f32 %v2323, %v2387
  %v2452 = vmax.f32 %v2324, %v2388
  %v2453 = vmax.f32 %v2325, %v2389
  %v2454 = vmax.f32 %v2326, %v2390
  %v2455 = vmax.f32 %v2327, %v2391
  %v2456 = vmax.f32 %v2328, %v2392
  %v2457 = vmax.f32 %v2329, %v2393
  %v2458 = vmax.f32 %v2330, %v2394
  %v2459 = vmax.f32 %v2331, %v2395
  %v2460 = vmax.f32 %v2332, %v2396
  %v2461 = vmax.f32 %v2333, %v2397
  %v2462 = vmax.f32 %v2334, %v2398
  %v2463 = vmax.f32 %v2335, %v2399
  %v2464 = vmax.f32 %v2336, %v2400
  %v2465 = vmax.f32 %v2337, %v2401
  %vm2466 = vcmask 261120
  %2467 = vst.msk [vmem:[#allocation2] sm:$0xff] %vm2466, 0.0
  %2468 = vst.msk [vmem:[#allocation2 + $0x8] sm:$0xff] %vm2466, 0.0
  %2469 = vst.msk [vmem:[#allocation2 + $0x10] sm:$0xff] %vm2466, 0.0
  %2470 = vst.msk [vmem:[#allocation2 + $0x18] sm:$0xff] %vm2466, 0.0
  %2471 = vst.msk [vmem:[#allocation2 + $0x20] sm:$0xff] %vm2466, 0.0
  %2472 = vst.msk [vmem:[#allocation2 + $0x28] sm:$0xff] %vm2466, 0.0
  %2473 = vst.msk [vmem:[#allocation2 + $0x30] sm:$0xff] %vm2466, 0.0
  %2474 = vst.msk [vmem:[#allocation2 + $0x38] sm:$0xff] %vm2466, 0.0
  %2475 = vst.msk [vmem:[#allocation2 + $0x40] sm:$0xff] %vm2466, 0.0
  %2476 = vst.msk [vmem:[#allocation2 + $0x48] sm:$0xff] %vm2466, 0.0
  %2477 = vst.msk [vmem:[#allocation2 + $0x50] sm:$0xff] %vm2466, 0.0
  %2478 = vst.msk [vmem:[#allocation2 + $0x58] sm:$0xff] %vm2466, 0.0
  %2479 = vst.msk [vmem:[#allocation2 + $0x60] sm:$0xff] %vm2466, 0.0
  %2480 = vst.msk [vmem:[#allocation2 + $0x68] sm:$0xff] %vm2466, 0.0
  %2481 = vst.msk [vmem:[#allocation2 + $0x70] sm:$0xff] %vm2466, 0.0
  %2482 = vst.msk [vmem:[#allocation2 + $0x78] sm:$0xff] %vm2466, 0.0
  %2483 = vst.msk [vmem:[#allocation2 + $0x80] sm:$0xff] %vm2466, 0.0
  %2484 = vst.msk [vmem:[#allocation2 + $0x88] sm:$0xff] %vm2466, 0.0
  %2485 = vst.msk [vmem:[#allocation2 + $0x90] sm:$0xff] %vm2466, 0.0
  %2486 = vst.msk [vmem:[#allocation2 + $0x98] sm:$0xff] %vm2466, 0.0
  %2487 = vst.msk [vmem:[#allocation2 + $0xa0] sm:$0xff] %vm2466, 0.0
  %2488 = vst.msk [vmem:[#allocation2 + $0xa8] sm:$0xff] %vm2466, 0.0
  %2489 = vst.msk [vmem:[#allocation2 + $0xb0] sm:$0xff] %vm2466, 0.0
  %2490 = vst.msk [vmem:[#allocation2 + $0xb8] sm:$0xff] %vm2466, 0.0
  %2491 = vst.msk [vmem:[#allocation2 + $0xc0] sm:$0xff] %vm2466, 0.0
  %2492 = vst.msk [vmem:[#allocation2 + $0xc8] sm:$0xff] %vm2466, 0.0
  %2493 = vst.msk [vmem:[#allocation2 + $0xd0] sm:$0xff] %vm2466, 0.0
  %2494 = vst.msk [vmem:[#allocation2 + $0xd8] sm:$0xff] %vm2466, 0.0
  %2495 = vst.msk [vmem:[#allocation2 + $0xe0] sm:$0xff] %vm2466, 0.0
  %2496 = vst.msk [vmem:[#allocation2 + $0xe8] sm:$0xff] %vm2466, 0.0
  %2497 = vst.msk [vmem:[#allocation2 + $0xf0] sm:$0xff] %vm2466, 0.0
  %2498 = vst.msk [vmem:[#allocation2 + $0xf8] sm:$0xff] %vm2466, 0.0
  %2499 = vst.msk [vmem:[#allocation2 + $0x100] sm:$0xff] %vm2466, 0.0
  %2500 = vst.msk [vmem:[#allocation2 + $0x108] sm:$0xff] %vm2466, 0.0
  %2501 = vst.msk [vmem:[#allocation2 + $0x110] sm:$0xff] %vm2466, 0.0
  %2502 = vst.msk [vmem:[#allocation2 + $0x118] sm:$0xff] %vm2466, 0.0
  %2503 = vst.msk [vmem:[#allocation2 + $0x120] sm:$0xff] %vm2466, 0.0
  %2504 = vst.msk [vmem:[#allocation2 + $0x128] sm:$0xff] %vm2466, 0.0
  %2505 = vst.msk [vmem:[#allocation2 + $0x130] sm:$0xff] %vm2466, 0.0
  %2506 = vst.msk [vmem:[#allocation2 + $0x138] sm:$0xff] %vm2466, 0.0
  %2507 = vst.msk [vmem:[#allocation2 + $0x140] sm:$0xff] %vm2466, 0.0
  %2508 = vst.msk [vmem:[#allocation2 + $0x148] sm:$0xff] %vm2466, 0.0
  %2509 = vst.msk [vmem:[#allocation2 + $0x150] sm:$0xff] %vm2466, 0.0
  %2510 = vst.msk [vmem:[#allocation2 + $0x158] sm:$0xff] %vm2466, 0.0
  %2511 = vst.msk [vmem:[#allocation2 + $0x160] sm:$0xff] %vm2466, 0.0
  %2512 = vst.msk [vmem:[#allocation2 + $0x168] sm:$0xff] %vm2466, 0.0
  %2513 = vst.msk [vmem:[#allocation2 + $0x170] sm:$0xff] %vm2466, 0.0
  %2514 = vst.msk [vmem:[#allocation2 + $0x178] sm:$0xff] %vm2466, 0.0
  %2515 = vst.msk [vmem:[#allocation2 + $0x180] sm:$0xff] %vm2466, 0.0
  %2516 = vst.msk [vmem:[#allocation2 + $0x188] sm:$0xff] %vm2466, 0.0
  %2517 = vst.msk [vmem:[#allocation2 + $0x190] sm:$0xff] %vm2466, 0.0
  %2518 = vst.msk [vmem:[#allocation2 + $0x198] sm:$0xff] %vm2466, 0.0
  %2519 = vst.msk [vmem:[#allocation2 + $0x1a0] sm:$0xff] %vm2466, 0.0
  %2520 = vst.msk [vmem:[#allocation2 + $0x1a8] sm:$0xff] %vm2466, 0.0
  %2521 = vst.msk [vmem:[#allocation2 + $0x1b0] sm:$0xff] %vm2466, 0.0
  %2522 = vst.msk [vmem:[#allocation2 + $0x1b8] sm:$0xff] %vm2466, 0.0
  %2523 = vst.msk [vmem:[#allocation2 + $0x1c0] sm:$0xff] %vm2466, 0.0
  %2524 = vst.msk [vmem:[#allocation2 + $0x1c8] sm:$0xff] %vm2466, 0.0
  %2525 = vst.msk [vmem:[#allocation2 + $0x1d0] sm:$0xff] %vm2466, 0.0
  %2526 = vst.msk [vmem:[#allocation2 + $0x1d8] sm:$0xff] %vm2466, 0.0
  %2527 = vst.msk [vmem:[#allocation2 + $0x1e0] sm:$0xff] %vm2466, 0.0
  %2528 = vst.msk [vmem:[#allocation2 + $0x1e8] sm:$0xff] %vm2466, 0.0
  %2529 = vst.msk [vmem:[#allocation2 + $0x1f0] sm:$0xff] %vm2466, 0.0
  %2530 = vst.msk [vmem:[#allocation2 + $0x1f8] sm:$0xff] %vm2466, 0.0
  %2531 = vst.msk [vmem:[#allocation2 + $0x200] sm:$0xff] %vm2466, 0.0
  %2532 = vst.msk [vmem:[#allocation2 + $0x208] sm:$0xff] %vm2466, 0.0
  %2533 = vst.msk [vmem:[#allocation2 + $0x210] sm:$0xff] %vm2466, 0.0
  %2534 = vst.msk [vmem:[#allocation2 + $0x218] sm:$0xff] %vm2466, 0.0
  %2535 = vst.msk [vmem:[#allocation2 + $0x220] sm:$0xff] %vm2466, 0.0
  %2536 = vst.msk [vmem:[#allocation2 + $0x228] sm:$0xff] %vm2466, 0.0
  %2537 = vst.msk [vmem:[#allocation2 + $0x230] sm:$0xff] %vm2466, 0.0
  %2538 = vst.msk [vmem:[#allocation2 + $0x238] sm:$0xff] %vm2466, 0.0
  %2539 = vst.msk [vmem:[#allocation2 + $0x240] sm:$0xff] %vm2466, 0.0
  %2540 = vst.msk [vmem:[#allocation2 + $0x248] sm:$0xff] %vm2466, 0.0
  %2541 = vst.msk [vmem:[#allocation2 + $0x250] sm:$0xff] %vm2466, 0.0
  %2542 = vst.msk [vmem:[#allocation2 + $0x258] sm:$0xff] %vm2466, 0.0
  %2543 = vst.msk [vmem:[#allocation2 + $0x260] sm:$0xff] %vm2466, 0.0
  %2544 = vst.msk [vmem:[#allocation2 + $0x268] sm:$0xff] %vm2466, 0.0
  %2545 = vst.msk [vmem:[#allocation2 + $0x270] sm:$0xff] %vm2466, 0.0
  %2546 = vst.msk [vmem:[#allocation2 + $0x278] sm:$0xff] %vm2466, 0.0
  %2547 = vst.msk [vmem:[#allocation2 + $0x280] sm:$0xff] %vm2466, 0.0
  %2548 = vst.msk [vmem:[#allocation2 + $0x288] sm:$0xff] %vm2466, 0.0
  %2549 = vst.msk [vmem:[#allocation2 + $0x290] sm:$0xff] %vm2466, 0.0
  %2550 = vst.msk [vmem:[#allocation2 + $0x298] sm:$0xff] %vm2466, 0.0
  %2551 = vst.msk [vmem:[#allocation2 + $0x2a0] sm:$0xff] %vm2466, 0.0
  %2552 = vst.msk [vmem:[#allocation2 + $0x2a8] sm:$0xff] %vm2466, 0.0
  %2553 = vst.msk [vmem:[#allocation2 + $0x2b0] sm:$0xff] %vm2466, 0.0
  %2554 = vst.msk [vmem:[#allocation2 + $0x2b8] sm:$0xff] %vm2466, 0.0
  %2555 = vst.msk [vmem:[#allocation2 + $0x2c0] sm:$0xff] %vm2466, 0.0
  %2556 = vst.msk [vmem:[#allocation2 + $0x2c8] sm:$0xff] %vm2466, 0.0
  %2557 = vst.msk [vmem:[#allocation2 + $0x2d0] sm:$0xff] %vm2466, 0.0
  %2558 = vst.msk [vmem:[#allocation2 + $0x2d8] sm:$0xff] %vm2466, 0.0
  %2559 = vst.msk [vmem:[#allocation2 + $0x2e0] sm:$0xff] %vm2466, 0.0
  %2560 = vst.msk [vmem:[#allocation2 + $0x2e8] sm:$0xff] %vm2466, 0.0
  %2561 = vst.msk [vmem:[#allocation2 + $0x2f0] sm:$0xff] %vm2466, 0.0
  %2562 = vst.msk [vmem:[#allocation2 + $0x2f8] sm:$0xff] %vm2466, 0.0
  %2563 = vst.msk [vmem:[#allocation2 + $0x300] sm:$0xff] %vm2466, 0.0
  %2564 = vst.msk [vmem:[#allocation2 + $0x308] sm:$0xff] %vm2466, 0.0
  %2565 = vst.msk [vmem:[#allocation2 + $0x310] sm:$0xff] %vm2466, 0.0
  %2566 = vst.msk [vmem:[#allocation2 + $0x318] sm:$0xff] %vm2466, 0.0
  %2567 = vst.msk [vmem:[#allocation2 + $0x58] sm:$0xff] %vm2466, %v2402
  %2568 = vst.msk [vmem:[#allocation2 + $0x60] sm:$0xff] %vm2466, %v2403
  %2569 = vst.msk [vmem:[#allocation2 + $0x68] sm:$0xff] %vm2466, %v2404
  %2570 = vst.msk [vmem:[#allocation2 + $0x70] sm:$0xff] %vm2466, %v2405
  %2571 = vst.msk [vmem:[#allocation2 + $0x78] sm:$0xff] %vm2466, %v2406
  %2572 = vst.msk [vmem:[#allocation2 + $0x80] sm:$0xff] %vm2466, %v2407
  %2573 = vst.msk [vmem:[#allocation2 + $0x88] sm:$0xff] %vm2466, %v2408
  %2574 = vst.msk [vmem:[#allocation2 + $0x90] sm:$0xff] %vm2466, %v2409
  %2575 = vst.msk [vmem:[#allocation2 + $0xa8] sm:$0xff] %vm2466, %v2410
  %2576 = vst.msk [vmem:[#allocation2 + $0xb0] sm:$0xff] %vm2466, %v2411
  %2577 = vst.msk [vmem:[#allocation2 + $0xb8] sm:$0xff] %vm2466, %v2412
  %2578 = vst.msk [vmem:[#allocation2 + $0xc0] sm:$0xff] %vm2466, %v2413
  %2579 = vst.msk [vmem:[#allocation2 + $0xc8] sm:$0xff] %vm2466, %v2414
  %2580 = vst.msk [vmem:[#allocation2 + $0xd0] sm:$0xff] %vm2466, %v2415
  %2581 = vst.msk [vmem:[#allocation2 + $0xd8] sm:$0xff] %vm2466, %v2416
  %2582 = vst.msk [vmem:[#allocation2 + $0xe0] sm:$0xff] %vm2466, %v2417
  %2583 = vst.msk [vmem:[#allocation2 + $0xf8] sm:$0xff] %vm2466, %v2418
  %2584 = vst.msk [vmem:[#allocation2 + $0x100] sm:$0xff] %vm2466, %v2419
  %2585 = vst.msk [vmem:[#allocation2 + $0x108] sm:$0xff] %vm2466, %v2420
  %2586 = vst.msk [vmem:[#allocation2 + $0x110] sm:$0xff] %vm2466, %v2421
  %2587 = vst.msk [vmem:[#allocation2 + $0x118] sm:$0xff] %vm2466, %v2422
  %2588 = vst.msk [vmem:[#allocation2 + $0x120] sm:$0xff] %vm2466, %v2423
  %2589 = vst.msk [vmem:[#allocation2 + $0x128] sm:$0xff] %vm2466, %v2424
  %2590 = vst.msk [vmem:[#allocation2 + $0x130] sm:$0xff] %vm2466, %v2425
  %2591 = vst.msk [vmem:[#allocation2 + $0x148] sm:$0xff] %vm2466, %v2426
  %2592 = vst.msk [vmem:[#allocation2 + $0x150] sm:$0xff] %vm2466, %v2427
  %2593 = vst.msk [vmem:[#allocation2 + $0x158] sm:$0xff] %vm2466, %v2428
  %2594 = vst.msk [vmem:[#allocation2 + $0x160] sm:$0xff] %vm2466, %v2429
  %2595 = vst.msk [vmem:[#allocation2 + $0x168] sm:$0xff] %vm2466, %v2430
  %2596 = vst.msk [vmem:[#allocation2 + $0x170] sm:$0xff] %vm2466, %v2431
  %2597 = vst.msk [vmem:[#allocation2 + $0x178] sm:$0xff] %vm2466, %v2432
  %2598 = vst.msk [vmem:[#allocation2 + $0x180] sm:$0xff] %vm2466, %v2433
  %2599 = vst.msk [vmem:[#allocation2 + $0x198] sm:$0xff] %vm2466, %v2434
  %2600 = vst.msk [vmem:[#allocation2 + $0x1a0] sm:$0xff] %vm2466, %v2435
  %2601 = vst.msk [vmem:[#allocation2 + $0x1a8] sm:$0xff] %vm2466, %v2436
  %2602 = vst.msk [vmem:[#allocation2 + $0x1b0] sm:$0xff] %vm2466, %v2437
  %2603 = vst.msk [vmem:[#allocation2 + $0x1b8] sm:$0xff] %vm2466, %v2438
  %2604 = vst.msk [vmem:[#allocation2 + $0x1c0] sm:$0xff] %vm2466, %v2439
  %2605 = vst.msk [vmem:[#allocation2 + $0x1c8] sm:$0xff] %vm2466, %v2440
  %2606 = vst.msk [vmem:[#allocation2 + $0x1d0] sm:$0xff] %vm2466, %v2441
  %2607 = vst.msk [vmem:[#allocation2 + $0x1e8] sm:$0xff] %vm2466, %v2442
  %2608 = vst.msk [vmem:[#allocation2 + $0x1f0] sm:$0xff] %vm2466, %v2443
  %2609 = vst.msk [vmem:[#allocation2 + $0x1f8] sm:$0xff] %vm2466, %v2444
  %2610 = vst.msk [vmem:[#allocation2 + $0x200] sm:$0xff] %vm2466, %v2445
  %2611 = vst.msk [vmem:[#allocation2 + $0x208] sm:$0xff] %vm2466, %v2446
  %2612 = vst.msk [vmem:[#allocation2 + $0x210] sm:$0xff] %vm2466, %v2447
  %2613 = vst.msk [vmem:[#allocation2 + $0x218] sm:$0xff] %vm2466, %v2448
  %2614 = vst.msk [vmem:[#allocation2 + $0x220] sm:$0xff] %vm2466, %v2449
  %2615 = vst.msk [vmem:[#allocation2 + $0x238] sm:$0xff] %vm2466, %v2450
  %2616 = vst.msk [vmem:[#allocation2 + $0x240] sm:$0xff] %vm2466, %v2451
  %2617 = vst.msk [vmem:[#allocation2 + $0x248] sm:$0xff] %vm2466, %v2452
  %2618 = vst.msk [vmem:[#allocation2 + $0x250] sm:$0xff] %vm2466, %v2453
  %2619 = vst.msk [vmem:[#allocation2 + $0x258] sm:$0xff] %vm2466, %v2454
  %2620 = vst.msk [vmem:[#allocation2 + $0x260] sm:$0xff] %vm2466, %v2455
  %2621 = vst.msk [vmem:[#allocation2 + $0x268] sm:$0xff] %vm2466, %v2456
  %2622 = vst.msk [vmem:[#allocation2 + $0x270] sm:$0xff] %vm2466, %v2457
  %2623 = vst.msk [vmem:[#allocation2 + $0x288] sm:$0xff] %vm2466, %v2458
  %2624 = vst.msk [vmem:[#allocation2 + $0x290] sm:$0xff] %vm2466, %v2459
  %2625 = vst.msk [vmem:[#allocation2 + $0x298] sm:$0xff] %vm2466, %v2460
  %2626 = vst.msk [vmem:[#allocation2 + $0x2a0] sm:$0xff] %vm2466, %v2461
  %2627 = vst.msk [vmem:[#allocation2 + $0x2a8] sm:$0xff] %vm2466, %v2462
  %2628 = vst.msk [vmem:[#allocation2 + $0x2b0] sm:$0xff] %vm2466, %v2463
  %2629 = vst.msk [vmem:[#allocation2 + $0x2b8] sm:$0xff] %vm2466, %v2464
  %2630 = vst.msk [vmem:[#allocation2 + $0x2c0] sm:$0xff] %vm2466, %v2465
  %v2631 = vld [vmem:[%s5] sm:$0xf]
  %v2632 = vld [vmem:[%s5 + $0x4] sm:$0xf]
  %v2633 = vld [vmem:[%s5 + $0x8] sm:$0xf]
  %v2634 = vld [vmem:[%s5 + $0xc] sm:$0xf]
  %v2635 = vld [vmem:[%s5 + $0x10] sm:$0xf]
  %v2636 = vld [vmem:[%s5 + $0x14] sm:$0xf]
  %v2637 = vld [vmem:[%s5 + $0x18] sm:$0xf]
  %v2638 = vld [vmem:[%s5 + $0x1c] sm:$0xf]
  %v2639 = vld [vmem:[%s5 + $0x20] sm:$0xf]
  %v2640 = vld [vmem:[%s5 + $0x24] sm:$0xf]
  %v2641 = vld [vmem:[%s5 + $0x28] sm:$0xf]
  %v2642 = vld [vmem:[%s5 + $0x2c] sm:$0xf]
  %v2643 = vld [vmem:[%s5 + $0x30] sm:$0xf]
  %v2644 = vld [vmem:[%s5 + $0x34] sm:$0xf]
  %v2645 = vld [vmem:[%s5 + $0x38] sm:$0xf]
  %v2646 = vld [vmem:[%s5 + $0x3c] sm:$0xf]
  %v2647 = vld [vmem:[%s5 + $0x40] sm:$0xf]
  %v2648 = vld [vmem:[%s5 + $0x44] sm:$0xf]
  %v2649 = vld [vmem:[%s5 + $0x48] sm:$0xf]
  %v2650 = vld [vmem:[%s5 + $0x4c] sm:$0xf]
  %v2651 = vld [vmem:[%s5 + $0x50] sm:$0xf]
  %v2652 = vld [vmem:[%s5 + $0x54] sm:$0xf]
  %v2653 = vld [vmem:[%s5 + $0x58] sm:$0xf]
  %v2654 = vld [vmem:[%s5 + $0x5c] sm:$0xf]
  %v2655 = vld [vmem:[%s5 + $0x60] sm:$0xf]
  %v2656 = vld [vmem:[%s5 + $0x64] sm:$0xf]
  %v2657 = vld [vmem:[%s5 + $0x68] sm:$0xf]
  %v2658 = vld [vmem:[%s5 + $0x6c] sm:$0xf]
  %v2659 = vld [vmem:[%s5 + $0x70] sm:$0xf]
  %v2660 = vld [vmem:[%s5 + $0x74] sm:$0xf]
  %v2661 = vld [vmem:[%s5 + $0x78] sm:$0xf]
  %v2662 = vld [vmem:[%s5 + $0x7c] sm:$0xf]
  %v2663 = vld [vmem:[%s5 + $0x80] sm:$0xf]
  %v2664 = vld [vmem:[%s5 + $0x84] sm:$0xf]
  %v2665 = vld [vmem:[%s5 + $0x88] sm:$0xf]
  %v2666 = vld [vmem:[%s5 + $0x8c] sm:$0xf]
  %v2667 = vld [vmem:[#allocation2] sm:$0xff]
  %v2668 = vld [vmem:[#allocation2 + $0x8] sm:$0xff]
  %v2669 = vld [vmem:[#allocation2 + $0x10] sm:$0xff]
  %v2670 = vld [vmem:[#allocation2 + $0x18] sm:$0xff]
  %v2671 = vld [vmem:[#allocation2 + $0x20] sm:$0xff]
  %v2672 = vld [vmem:[#allocation2 + $0x28] sm:$0xff]
  %v2673 = vld [vmem:[#allocation2 + $0x30] sm:$0xff]
  %v2674 = vld [vmem:[#allocation2 + $0x38] sm:$0xff]
  %v2675 = vld [vmem:[#allocation2 + $0x50] sm:$0xff]
  %v2676 = vld [vmem:[#allocation2 + $0x58] sm:$0xff]
  %v2677 = vld [vmem:[#allocation2 + $0x60] sm:$0xff]
  %v2678 = vld [vmem:[#allocation2 + $0x68] sm:$0xff]
  %v2679 = vld [vmem:[#allocation2 + $0x70] sm:$0xff]
  %v2680 = vld [vmem:[#allocation2 + $0x78] sm:$0xff]
  %v2681 = vld [vmem:[#allocation2 + $0x80] sm:$0xff]
  %v2682 = vld [vmem:[#allocation2 + $0x88] sm:$0xff]
  %v2683 = vld [vmem:[#allocation2 + $0xa0] sm:$0xff]
  %v2684 = vld [vmem:[#allocation2 + $0xa8] sm:$0xff]
  %v2685 = vld [vmem:[#allocation2 + $0xb0] sm:$0xff]
  %v2686 = vld [vmem:[#allocation2 + $0xb8] sm:$0xff]
  %v2687 = vld [vmem:[#allocation2 + $0xc0] sm:$0xff]
  %v2688 = vld [vmem:[#allocation2 + $0xc8] sm:$0xff]
  %v2689 = vld [vmem:[#allocation2 + $0xd0] sm:$0xff]
  %v2690 = vld [vmem:[#allocation2 + $0xd8] sm:$0xff]
  %v2691 = vld [vmem:[#allocation2 + $0xf0] sm:$0xff]
  %v2692 = vld [vmem:[#allocation2 + $0xf8] sm:$0xff]
  %v2693 = vld [vmem:[#allocation2 + $0x100] sm:$0xff]
  %v2694 = vld [vmem:[#allocation2 + $0x108] sm:$0xff]
  %v2695 = vld [vmem:[#allocation2 + $0x110] sm:$0xff]
  %v2696 = vld [vmem:[#allocation2 + $0x118] sm:$0xff]
  %v2697 = vld [vmem:[#allocation2 + $0x120] sm:$0xff]
  %v2698 = vld [vmem:[#allocation2 + $0x128] sm:$0xff]
  %v2699 = vld [vmem:[#allocation2 + $0x140] sm:$0xff]
  %v2700 = vld [vmem:[#allocation2 + $0x148] sm:$0xff]
  %v2701 = vld [vmem:[#allocation2 + $0x150] sm:$0xff]
  %v2702 = vld [vmem:[#allocation2 + $0x158] sm:$0xff]
  %v2703 = vld [vmem:[#allocation2 + $0x160] sm:$0xff]
  %v2704 = vld [vmem:[#allocation2 + $0x168] sm:$0xff]
  %v2705 = vld [vmem:[#allocation2 + $0x170] sm:$0xff]
  %v2706 = vld [vmem:[#allocation2 + $0x178] sm:$0xff]
  %v2707 = vld [vmem:[#allocation2 + $0x190] sm:$0xff]
  %v2708 = vld [vmem:[#allocation2 + $0x198] sm:$0xff]
  %v2709 = vld [vmem:[#allocation2 + $0x1a0] sm:$0xff]
  %v2710 = vld [vmem:[#allocation2 + $0x1a8] sm:$0xff]
  %v2711 = vld [vmem:[#allocation2 + $0x1b0] sm:$0xff]
  %v2712 = vld [vmem:[#allocation2 + $0x1b8] sm:$0xff]
  %v2713 = vld [vmem:[#allocation2 + $0x1c0] sm:$0xff]
  %v2714 = vld [vmem:[#allocation2 + $0x1c8] sm:$0xff]
  %v2715 = vld [vmem:[#allocation2 + $0x1e0] sm:$0xff]
  %v2716 = vld [vmem:[#allocation2 + $0x1e8] sm:$0xff]
  %v2717 = vld [vmem:[#allocation2 + $0x1f0] sm:$0xff]
  %v2718 = vld [vmem:[#allocation2 + $0x1f8] sm:$0xff]
  %v2719 = vld [vmem:[#allocation2 + $0x200] sm:$0xff]
  %v2720 = vld [vmem:[#allocation2 + $0x208] sm:$0xff]
  %v2721 = vld [vmem:[#allocation2 + $0x210] sm:$0xff]
  %v2722 = vld [vmem:[#allocation2 + $0x218] sm:$0xff]
  %v2723 = vld [vmem:[#allocation2 + $0x230] sm:$0xff]
  %v2724 = vld [vmem:[#allocation2 + $0x238] sm:$0xff]
  %v2725 = vld [vmem:[#allocation2 + $0x240] sm:$0xff]
  %v2726 = vld [vmem:[#allocation2 + $0x248] sm:$0xff]
  %v2727 = vld [vmem:[#allocation2 + $0x250] sm:$0xff]
  %v2728 = vld [vmem:[#allocation2 + $0x258] sm:$0xff]
  %v2729 = vld [vmem:[#allocation2 + $0x260] sm:$0xff]
  %v2730 = vld [vmem:[#allocation2 + $0x268] sm:$0xff]
  %v2731 = vpack.c.bf16 %v2668, %v2667
  %v2732 = vpack.c.bf16 %v2670, %v2669
  %v2733 = vpack.c.bf16 %v2672, %v2671
  %v2734 = vpack.c.bf16 %v2674, %v2673
  %v2735 = vpack.c.bf16 %v2676, %v2675
  %v2736 = vpack.c.bf16 %v2678, %v2677
  %v2737 = vpack.c.bf16 %v2680, %v2679
  %v2738 = vpack.c.bf16 %v2682, %v2681
  %v2739 = vpack.c.bf16 %v2684, %v2683
  %v2740 = vpack.c.bf16 %v2686, %v2685
  %v2741 = vpack.c.bf16 %v2688, %v2687
  %v2742 = vpack.c.bf16 %v2690, %v2689
  %v2743 = vpack.c.bf16 %v2692, %v2691
  %v2744 = vpack.c.bf16 %v2694, %v2693
  %v2745 = vpack.c.bf16 %v2696, %v2695
  %v2746 = vpack.c.bf16 %v2698, %v2697
  %v2747 = vpack.c.bf16 %v2700, %v2699
  %v2748 = vpack.c.bf16 %v2702, %v2701
  %v2749 = vpack.c.bf16 %v2704, %v2703
  %v2750 = vpack.c.bf16 %v2706, %v2705
  %v2751 = vpack.c.bf16 %v2708, %v2707
  %v2752 = vpack.c.bf16 %v2710, %v2709
  %v2753 = vpack.c.bf16 %v2712, %v2711
  %v2754 = vpack.c.bf16 %v2714, %v2713
  %v2755 = vpack.c.bf16 %v2716, %v2715
  %v2756 = vpack.c.bf16 %v2718, %v2717
  %v2757 = vpack.c.bf16 %v2720, %v2719
  %v2758 = vpack.c.bf16 %v2722, %v2721
  %v2759 = vpack.c.bf16 %v2724, %v2723
  %v2760 = vpack.c.bf16 %v2726, %v2725
  %v2761 = vpack.c.bf16 %v2728, %v2727
  %v2762 = vpack.c.bf16 %v2730, %v2729
  %v2763 = vld [vmem:[#allocation2 + $0x40] sm:$0xff]
  %v2764 = vld [vmem:[#allocation2 + $0x90] sm:$0xff]
  %v2765 = vld [vmem:[#allocation2 + $0xe0] sm:$0xff]
  %v2766 = vld [vmem:[#allocation2 + $0x130] sm:$0xff]
  %v2767 = vld [vmem:[#allocation2 + $0x180] sm:$0xff]
  %v2768 = vld [vmem:[#allocation2 + $0x1d0] sm:$0xff]
  %v2769 = vld [vmem:[#allocation2 + $0x220] sm:$0xff]
  %v2770 = vld [vmem:[#allocation2 + $0x270] sm:$0xff]
  %v2771 = vpack.c.bf16 %v2669, %v2668
  %v2772 = vpack.c.bf16 %v2671, %v2670
  %v2773 = vpack.c.bf16 %v2673, %v2672
  %v2774 = vpack.c.bf16 %v2763, %v2674
  %v2775 = vpack.c.bf16 %v2677, %v2676
  %v2776 = vpack.c.bf16 %v2679, %v2678
  %v2777 = vpack.c.bf16 %v2681, %v2680
  %v2778 = vpack.c.bf16 %v2764, %v2682
  %v2779 = vpack.c.bf16 %v2685, %v2684
  %v2780 = vpack.c.bf16 %v2687, %v2686
  %v2781 = vpack.c.bf16 %v2689, %v2688
  %v2782 = vpack.c.bf16 %v2765, %v2690
  %v2783 = vpack.c.bf16 %v2693, %v2692
  %v2784 = vpack.c.bf16 %v2695, %v2694
  %v2785 = vpack.c.bf16 %v2697, %v2696
  %v2786 = vpack.c.bf16 %v2766, %v2698
  %v2787 = vpack.c.bf16 %v2701, %v2700
  %v2788 = vpack.c.bf16 %v2703, %v2702
  %v2789 = vpack.c.bf16 %v2705, %v2704
  %v2790 = vpack.c.bf16 %v2767, %v2706
  %v2791 = vpack.c.bf16 %v2709, %v2708
  %v2792 = vpack.c.bf16 %v2711, %v2710
  %v2793 = vpack.c.bf16 %v2713, %v2712
  %v2794 = vpack.c.bf16 %v2768, %v2714
  %v2795 = vpack.c.bf16 %v2717, %v2716
  %v2796 = vpack.c.bf16 %v2719, %v2718
  %v2797 = vpack.c.bf16 %v2721, %v2720
  %v2798 = vpack.c.bf16 %v2769, %v2722
  %v2799 = vpack.c.bf16 %v2725, %v2724
  %v2800 = vpack.c.bf16 %v2727, %v2726
  %v2801 = vpack.c.bf16 %v2729, %v2728
  %v2802 = vpack.c.bf16 %v2770, %v2730
  %v2807 = vunpack.c.l.b16 %v2635
  %v2808 = vunpack.c.l.b16 %v2636
  %v2809 = vunpack.c.l.b16 %v2637
  %v2810 = vunpack.c.l.b16 %v2638
  %v2811 = vpack.c.b16 %v2808, %v2807
  %v2812 = vpack.c.b16 %v2810, %v2809
  %v2816 = vsel %vm2466, %v2771, 0
  %v2819 = vsel %vm2466, %v2772, 0
  %v2822 = vsel %vm2466, %v2773, 0
  %v2825 = vsel %vm2466, %v2774, 0
  %v2828 = vsel %vm2466, %v2775, 0
  %v2831 = vsel %vm2466, %v2776, 0
  %v2834 = vsel %vm2466, %v2777, 0
  %v2837 = vsel %vm2466, %v2778, 0
  %v2840 = vsel %vm2466, %v2779, 0
  %v2843 = vsel %vm2466, %v2780, 0
  %v2846 = vsel %vm2466, %v2781, 0
  %v2849 = vsel %vm2466, %v2782, 0
  %v2852 = vsel %vm2466, %v2783, 0
  %v2855 = vsel %vm2466, %v2784, 0
  %v2858 = vsel %vm2466, %v2785, 0
  %v2861 = vsel %vm2466, %v2786, 0
  %v2864 = vsel %vm2466, %v2787, 0
  %v2867 = vsel %vm2466, %v2788, 0
  %v2870 = vsel %vm2466, %v2789, 0
  %v2873 = vsel %vm2466, %v2790, 0
  %v2876 = vsel %vm2466, %v2791, 0
  %v2879 = vsel %vm2466, %v2792, 0
  %v2882 = vsel %vm2466, %v2793, 0
  %v2885 = vsel %vm2466, %v2794, 0
  %v2888 = vsel %vm2466, %v2795, 0
  %v2891 = vsel %vm2466, %v2796, 0
  %v2894 = vsel %vm2466, %v2797, 0
  %v2897 = vsel %vm2466, %v2798, 0
  %v2900 = vsel %vm2466, %v2799, 0
  %v2903 = vsel %vm2466, %v2800, 0
  %v2906 = vsel %vm2466, %v2801, 0
  %v2909 = vsel %vm2466, %v2802, 0
  %2911 = vmatpush.bf16.msra.mxu0 0
  %2912 = vmatpush.bf16.msra.mxu0 0
  %2913 = vmatpush.bf16.msra.mxu0 0
  %2914 = vmatpush.bf16.msra.mxu0 0
  %2915 = vmatpush.bf16.msra.mxu0 0
  %2916 = vmatpush.bf16.msra.mxu0 0
  %2917 = vmatpush.bf16.msra.mxu0 %v2812
  %2918 = vmatpush.bf16.msra.mxu0 %v2811
  %2919 = vmatmul.bf16.gmra.mxu0 %v2816
  %v2920 = vpop.f32.mrf.mxu0
  %v2921 = vadd.f32 0.0, %v2920
  %v2922 = vpop.f32.mrf.mxu0
  %v2923 = vadd.f32 0.0, %v2922
  %2924 = vmatmul.bf16.gmra.mxu0 %v2819
  %v2925 = vpop.f32.mrf.mxu0
  %v2926 = vadd.f32 0.0, %v2925
  %v2927 = vpop.f32.mrf.mxu0
  %v2928 = vadd.f32 0.0, %v2927
  %2929 = vmatmul.bf16.gmra.mxu0 %v2822
  %v2930 = vpop.f32.mrf.mxu0
  %v2931 = vadd.f32 0.0, %v2930
  %v2932 = vpop.f32.mrf.mxu0
  %v2933 = vadd.f32 0.0, %v2932
  %2934 = vmatmul.bf16.gmra.mxu0 %v2825
  %v2935 = vpop.f32.mrf.mxu0
  %v2936 = vadd.f32 0.0, %v2935
  %v2937 = vpop.f32.mrf.mxu0
  %v2938 = vadd.f32 0.0, %v2937
  %2939 = vmatmul.bf16.gmra.mxu0 %v2828
  %v2940 = vpop.f32.mrf.mxu0
  %v2941 = vadd.f32 0.0, %v2940
  %v2942 = vpop.f32.mrf.mxu0
  %v2943 = vadd.f32 0.0, %v2942
  %2944 = vmatmul.bf16.gmra.mxu0 %v2831
  %v2945 = vpop.f32.mrf.mxu0
  %v2946 = vadd.f32 0.0, %v2945
  %v2947 = vpop.f32.mrf.mxu0
  %v2948 = vadd.f32 0.0, %v2947
  %2949 = vmatmul.bf16.gmra.mxu0 %v2834
  %v2950 = vpop.f32.mrf.mxu0
  %v2951 = vadd.f32 0.0, %v2950
  %v2952 = vpop.f32.mrf.mxu0
  %v2953 = vadd.f32 0.0, %v2952
  %2954 = vmatmul.bf16.gmra.mxu0 %v2837
  %v2955 = vpop.f32.mrf.mxu0
  %v2956 = vadd.f32 0.0, %v2955
  %v2957 = vpop.f32.mrf.mxu0
  %v2958 = vadd.f32 0.0, %v2957
  %2959 = vmatmul.bf16.gmra.mxu0 %v2840
  %v2960 = vpop.f32.mrf.mxu0
  %v2961 = vadd.f32 0.0, %v2960
  %v2962 = vpop.f32.mrf.mxu0
  %v2963 = vadd.f32 0.0, %v2962
  %2964 = vmatmul.bf16.gmra.mxu0 %v2843
  %v2965 = vpop.f32.mrf.mxu0
  %v2966 = vadd.f32 0.0, %v2965
  %v2967 = vpop.f32.mrf.mxu0
  %v2968 = vadd.f32 0.0, %v2967
  %2969 = vmatmul.bf16.gmra.mxu0 %v2846
  %v2970 = vpop.f32.mrf.mxu0
  %v2971 = vadd.f32 0.0, %v2970
  %v2972 = vpop.f32.mrf.mxu0
  %v2973 = vadd.f32 0.0, %v2972
  %2974 = vmatmul.bf16.gmra.mxu0 %v2849
  %v2975 = vpop.f32.mrf.mxu0
  %v2976 = vadd.f32 0.0, %v2975
  %v2977 = vpop.f32.mrf.mxu0
  %v2978 = vadd.f32 0.0, %v2977
  %2979 = vmatmul.bf16.gmra.mxu0 %v2852
  %v2980 = vpop.f32.mrf.mxu0
  %v2981 = vadd.f32 0.0, %v2980
  %v2982 = vpop.f32.mrf.mxu0
  %v2983 = vadd.f32 0.0, %v2982
  %2984 = vmatmul.bf16.gmra.mxu0 %v2855
  %v2985 = vpop.f32.mrf.mxu0
  %v2986 = vadd.f32 0.0, %v2985
  %v2987 = vpop.f32.mrf.mxu0
  %v2988 = vadd.f32 0.0, %v2987
  %2989 = vmatmul.bf16.gmra.mxu0 %v2858
  %v2990 = vpop.f32.mrf.mxu0
  %v2991 = vadd.f32 0.0, %v2990
  %v2992 = vpop.f32.mrf.mxu0
  %v2993 = vadd.f32 0.0, %v2992
  %2994 = vmatmul.bf16.gmra.mxu0 %v2861
  %v2995 = vpop.f32.mrf.mxu0
  %v2996 = vadd.f32 0.0, %v2995
  %v2997 = vpop.f32.mrf.mxu0
  %v2998 = vadd.f32 0.0, %v2997
  %2999 = vmatmul.bf16.gmra.mxu0 %v2864
  %v3000 = vpop.f32.mrf.mxu0
  %v3001 = vadd.f32 0.0, %v3000
  %v3002 = vpop.f32.mrf.mxu0
  %v3003 = vadd.f32 0.0, %v3002
  %3004 = vmatmul.bf16.gmra.mxu0 %v2867
  %v3005 = vpop.f32.mrf.mxu0
  %v3006 = vadd.f32 0.0, %v3005
  %v3007 = vpop.f32.mrf.mxu0
  %v3008 = vadd.f32 0.0, %v3007
  %3009 = vmatmul.bf16.gmra.mxu0 %v2870
  %v3010 = vpop.f32.mrf.mxu0
  %v3011 = vadd.f32 0.0, %v3010
  %v3012 = vpop.f32.mrf.mxu0
  %v3013 = vadd.f32 0.0, %v3012
  %3014 = vmatmul.bf16.gmra.mxu0 %v2873
  %v3015 = vpop.f32.mrf.mxu0
  %v3016 = vadd.f32 0.0, %v3015
  %v3017 = vpop.f32.mrf.mxu0
  %v3018 = vadd.f32 0.0, %v3017
  %3019 = vmatmul.bf16.gmra.mxu0 %v2876
  %v3020 = vpop.f32.mrf.mxu0
  %v3021 = vadd.f32 0.0, %v3020
  %v3022 = vpop.f32.mrf.mxu0
  %v3023 = vadd.f32 0.0, %v3022
  %3024 = vmatmul.bf16.gmra.mxu0 %v2879
  %v3025 = vpop.f32.mrf.mxu0
  %v3026 = vadd.f32 0.0, %v3025
  %v3027 = vpop.f32.mrf.mxu0
  %v3028 = vadd.f32 0.0, %v3027
  %3029 = vmatmul.bf16.gmra.mxu0 %v2882
  %v3030 = vpop.f32.mrf.mxu0
  %v3031 = vadd.f32 0.0, %v3030
  %v3032 = vpop.f32.mrf.mxu0
  %v3033 = vadd.f32 0.0, %v3032
  %3034 = vmatmul.bf16.gmra.mxu0 %v2885
  %v3035 = vpop.f32.mrf.mxu0
  %v3036 = vadd.f32 0.0, %v3035
  %v3037 = vpop.f32.mrf.mxu0
  %v3038 = vadd.f32 0.0, %v3037
  %3039 = vmatmul.bf16.gmra.mxu0 %v2888
  %v3040 = vpop.f32.mrf.mxu0
  %v3041 = vadd.f32 0.0, %v3040
  %v3042 = vpop.f32.mrf.mxu0
  %v3043 = vadd.f32 0.0, %v3042
  %3044 = vmatmul.bf16.gmra.mxu0 %v2891
  %v3045 = vpop.f32.mrf.mxu0
  %v3046 = vadd.f32 0.0, %v3045
  %v3047 = vpop.f32.mrf.mxu0
  %v3048 = vadd.f32 0.0, %v3047
  %3049 = vmatmul.bf16.gmra.mxu0 %v2894
  %v3050 = vpop.f32.mrf.mxu0
  %v3051 = vadd.f32 0.0, %v3050
  %v3052 = vpop.f32.mrf.mxu0
  %v3053 = vadd.f32 0.0, %v3052
  %3054 = vmatmul.bf16.gmra.mxu0 %v2897
  %v3055 = vpop.f32.mrf.mxu0
  %v3056 = vadd.f32 0.0, %v3055
  %v3057 = vpop.f32.mrf.mxu0
  %v3058 = vadd.f32 0.0, %v3057
  %3059 = vmatmul.bf16.gmra.mxu0 %v2900
  %v3060 = vpop.f32.mrf.mxu0
  %v3061 = vadd.f32 0.0, %v3060
  %v3062 = vpop.f32.mrf.mxu0
  %v3063 = vadd.f32 0.0, %v3062
  %3064 = vmatmul.bf16.gmra.mxu0 %v2903
  %v3065 = vpop.f32.mrf.mxu0
  %v3066 = vadd.f32 0.0, %v3065
  %v3067 = vpop.f32.mrf.mxu0
  %v3068 = vadd.f32 0.0, %v3067
  %3069 = vmatmul.bf16.gmra.mxu0 %v2906
  %v3070 = vpop.f32.mrf.mxu0
  %v3071 = vadd.f32 0.0, %v3070
  %v3072 = vpop.f32.mrf.mxu0
  %v3073 = vadd.f32 0.0, %v3072
  %3074 = vmatmul.bf16.gmra.mxu0 %v2909
  %v3075 = vpop.f32.mrf.mxu0
  %v3076 = vadd.f32 0.0, %v3075
  %v3077 = vpop.f32.mrf.mxu0
  %v3078 = vadd.f32 0.0, %v3077
  %3079 = vdwg.mxu0
  %v3084 = vunpack.c.l.b16 %v2631
  %v3085 = vunpack.c.l.b16 %v2632
  %v3086 = vunpack.c.l.b16 %v2633
  %v3087 = vunpack.c.l.b16 %v2634
  %v3088 = vpack.c.b16 %v3085, %v3084
  %v3089 = vpack.c.b16 %v3087, %v3086
  %v3093 = vsel %vm2466, %v2731, 0
  %v3096 = vsel %vm2466, %v2732, 0
  %v3099 = vsel %vm2466, %v2733, 0
  %v3102 = vsel %vm2466, %v2734, 0
  %v3105 = vsel %vm2466, %v2735, 0
  %v3108 = vsel %vm2466, %v2736, 0
  %v3111 = vsel %vm2466, %v2737, 0
  %v3114 = vsel %vm2466, %v2738, 0
  %v3117 = vsel %vm2466, %v2739, 0
  %v3120 = vsel %vm2466, %v2740, 0
  %v3123 = vsel %vm2466, %v2741, 0
  %v3126 = vsel %vm2466, %v2742, 0
  %v3129 = vsel %vm2466, %v2743, 0
  %v3132 = vsel %vm2466, %v2744, 0
  %v3135 = vsel %vm2466, %v2745, 0
  %v3138 = vsel %vm2466, %v2746, 0
  %v3141 = vsel %vm2466, %v2747, 0
  %v3144 = vsel %vm2466, %v2748, 0
  %v3147 = vsel %vm2466, %v2749, 0
  %v3150 = vsel %vm2466, %v2750, 0
  %v3153 = vsel %vm2466, %v2751, 0
  %v3156 = vsel %vm2466, %v2752, 0
  %v3159 = vsel %vm2466, %v2753, 0
  %v3162 = vsel %vm2466, %v2754, 0
  %v3165 = vsel %vm2466, %v2755, 0
  %v3168 = vsel %vm2466, %v2756, 0
  %v3171 = vsel %vm2466, %v2757, 0
  %v3174 = vsel %vm2466, %v2758, 0
  %v3177 = vsel %vm2466, %v2759, 0
  %v3180 = vsel %vm2466, %v2760, 0
  %v3183 = vsel %vm2466, %v2761, 0
  %v3186 = vsel %vm2466, %v2762, 0
  %3188 = vmatpush.bf16.msra.mxu0 0
  %3189 = vmatpush.bf16.msra.mxu0 0
  %3190 = vmatpush.bf16.msra.mxu0 0
  %3191 = vmatpush.bf16.msra.mxu0 0
  %3192 = vmatpush.bf16.msra.mxu0 0
  %3193 = vmatpush.bf16.msra.mxu0 0
  %3194 = vmatpush.bf16.msra.mxu0 %v3089
  %3195 = vmatpush.bf16.msra.mxu0 %v3088
  %3196 = vmatmul.bf16.gmra.mxu0 %v3093
  %v3197 = vpop.f32.mrf.mxu0
  %v3198 = vadd.f32 %v2921, %v3197
  %v3199 = vpop.f32.mrf.mxu0
  %v3200 = vadd.f32 %v2923, %v3199
  %3201 = vmatmul.bf16.gmra.mxu0 %v3096
  %v3202 = vpop.f32.mrf.mxu0
  %v3203 = vadd.f32 %v2926, %v3202
  %v3204 = vpop.f32.mrf.mxu0
  %v3205 = vadd.f32 %v2928, %v3204
  %3206 = vmatmul.bf16.gmra.mxu0 %v3099
  %v3207 = vpop.f32.mrf.mxu0
  %v3208 = vadd.f32 %v2931, %v3207
  %v3209 = vpop.f32.mrf.mxu0
  %v3210 = vadd.f32 %v2933, %v3209
  %3211 = vmatmul.bf16.gmra.mxu0 %v3102
  %v3212 = vpop.f32.mrf.mxu0
  %v3213 = vadd.f32 %v2936, %v3212
  %v3214 = vpop.f32.mrf.mxu0
  %v3215 = vadd.f32 %v2938, %v3214
  %3216 = vmatmul.bf16.gmra.mxu0 %v3105
  %v3217 = vpop.f32.mrf.mxu0
  %v3218 = vadd.f32 %v2941, %v3217
  %v3219 = vpop.f32.mrf.mxu0
  %v3220 = vadd.f32 %v2943, %v3219
  %3221 = vmatmul.bf16.gmra.mxu0 %v3108
  %v3222 = vpop.f32.mrf.mxu0
  %v3223 = vadd.f32 %v2946, %v3222
  %v3224 = vpop.f32.mrf.mxu0
  %v3225 = vadd.f32 %v2948, %v3224
  %3226 = vmatmul.bf16.gmra.mxu0 %v3111
  %v3227 = vpop.f32.mrf.mxu0
  %v3228 = vadd.f32 %v2951, %v3227
  %v3229 = vpop.f32.mrf.mxu0
  %v3230 = vadd.f32 %v2953, %v3229
  %3231 = vmatmul.bf16.gmra.mxu0 %v3114
  %v3232 = vpop.f32.mrf.mxu0
  %v3233 = vadd.f32 %v2956, %v3232
  %v3234 = vpop.f32.mrf.mxu0
  %v3235 = vadd.f32 %v2958, %v3234
  %3236 = vmatmul.bf16.gmra.mxu0 %v3117
  %v3237 = vpop.f32.mrf.mxu0
  %v3238 = vadd.f32 %v2961, %v3237
  %v3239 = vpop.f32.mrf.mxu0
  %v3240 = vadd.f32 %v2963, %v3239
  %3241 = vmatmul.bf16.gmra.mxu0 %v3120
  %v3242 = vpop.f32.mrf.mxu0
  %v3243 = vadd.f32 %v2966, %v3242
  %v3244 = vpop.f32.mrf.mxu0
  %v3245 = vadd.f32 %v2968, %v3244
  %3246 = vmatmul.bf16.gmra.mxu0 %v3123
  %v3247 = vpop.f32.mrf.mxu0
  %v3248 = vadd.f32 %v2971, %v3247
  %v3249 = vpop.f32.mrf.mxu0
  %v3250 = vadd.f32 %v2973, %v3249
  %3251 = vmatmul.bf16.gmra.mxu0 %v3126
  %v3252 = vpop.f32.mrf.mxu0
  %v3253 = vadd.f32 %v2976, %v3252
  %v3254 = vpop.f32.mrf.mxu0
  %v3255 = vadd.f32 %v2978, %v3254
  %3256 = vmatmul.bf16.gmra.mxu0 %v3129
  %v3257 = vpop.f32.mrf.mxu0
  %v3258 = vadd.f32 %v2981, %v3257
  %v3259 = vpop.f32.mrf.mxu0
  %v3260 = vadd.f32 %v2983, %v3259
  %3261 = vmatmul.bf16.gmra.mxu0 %v3132
  %v3262 = vpop.f32.mrf.mxu0
  %v3263 = vadd.f32 %v2986, %v3262
  %v3264 = vpop.f32.mrf.mxu0
  %v3265 = vadd.f32 %v2988, %v3264
  %3266 = vmatmul.bf16.gmra.mxu0 %v3135
  %v3267 = vpop.f32.mrf.mxu0
  %v3268 = vadd.f32 %v2991, %v3267
  %v3269 = vpop.f32.mrf.mxu0
  %v3270 = vadd.f32 %v2993, %v3269
  %3271 = vmatmul.bf16.gmra.mxu0 %v3138
  %v3272 = vpop.f32.mrf.mxu0
  %v3273 = vadd.f32 %v2996, %v3272
  %v3274 = vpop.f32.mrf.mxu0
  %v3275 = vadd.f32 %v2998, %v3274
  %3276 = vmatmul.bf16.gmra.mxu0 %v3141
  %v3277 = vpop.f32.mrf.mxu0
  %v3278 = vadd.f32 %v3001, %v3277
  %v3279 = vpop.f32.mrf.mxu0
  %v3280 = vadd.f32 %v3003, %v3279
  %3281 = vmatmul.bf16.gmra.mxu0 %v3144
  %v3282 = vpop.f32.mrf.mxu0
  %v3283 = vadd.f32 %v3006, %v3282
  %v3284 = vpop.f32.mrf.mxu0
  %v3285 = vadd.f32 %v3008, %v3284
  %3286 = vmatmul.bf16.gmra.mxu0 %v3147
  %v3287 = vpop.f32.mrf.mxu0
  %v3288 = vadd.f32 %v3011, %v3287
  %v3289 = vpop.f32.mrf.mxu0
  %v3290 = vadd.f32 %v3013, %v3289
  %3291 = vmatmul.bf16.gmra.mxu0 %v3150
  %v3292 = vpop.f32.mrf.mxu0
  %v3293 = vadd.f32 %v3016, %v3292
  %v3294 = vpop.f32.mrf.mxu0
  %v3295 = vadd.f32 %v3018, %v3294
  %3296 = vmatmul.bf16.gmra.mxu0 %v3153
  %v3297 = vpop.f32.mrf.mxu0
  %v3298 = vadd.f32 %v3021, %v3297
  %v3299 = vpop.f32.mrf.mxu0
  %v3300 = vadd.f32 %v3023, %v3299
  %3301 = vmatmul.bf16.gmra.mxu0 %v3156
  %v3302 = vpop.f32.mrf.mxu0
  %v3303 = vadd.f32 %v3026, %v3302
  %v3304 = vpop.f32.mrf.mxu0
  %v3305 = vadd.f32 %v3028, %v3304
  %3306 = vmatmul.bf16.gmra.mxu0 %v3159
  %v3307 = vpop.f32.mrf.mxu0
  %v3308 = vadd.f32 %v3031, %v3307
  %v3309 = vpop.f32.mrf.mxu0
  %v3310 = vadd.f32 %v3033, %v3309
  %3311 = vmatmul.bf16.gmra.mxu0 %v3162
  %v3312 = vpop.f32.mrf.mxu0
  %v3313 = vadd.f32 %v3036, %v3312
  %v3314 = vpop.f32.mrf.mxu0
  %v3315 = vadd.f32 %v3038, %v3314
  %3316 = vmatmul.bf16.gmra.mxu0 %v3165
  %v3317 = vpop.f32.mrf.mxu0
  %v3318 = vadd.f32 %v3041, %v3317
  %v3319 = vpop.f32.mrf.mxu0
  %v3320 = vadd.f32 %v3043, %v3319
  %3321 = vmatmul.bf16.gmra.mxu0 %v3168
  %v3322 = vpop.f32.mrf.mxu0
  %v3323 = vadd.f32 %v3046, %v3322
  %v3324 = vpop.f32.mrf.mxu0
  %v3325 = vadd.f32 %v3048, %v3324
  %3326 = vmatmul.bf16.gmra.mxu0 %v3171
  %v3327 = vpop.f32.mrf.mxu0
  %v3328 = vadd.f32 %v3051, %v3327
  %v3329 = vpop.f32.mrf.mxu0
  %v3330 = vadd.f32 %v3053, %v3329
  %3331 = vmatmul.bf16.gmra.mxu0 %v3174
  %v3332 = vpop.f32.mrf.mxu0
  %v3333 = vadd.f32 %v3056, %v3332
  %v3334 = vpop.f32.mrf.mxu0
  %v3335 = vadd.f32 %v3058, %v3334
  %3336 = vmatmul.bf16.gmra.mxu0 %v3177
  %v3337 = vpop.f32.mrf.mxu0
  %v3338 = vadd.f32 %v3061, %v3337
  %v3339 = vpop.f32.mrf.mxu0
  %v3340 = vadd.f32 %v3063, %v3339
  %3341 = vmatmul.bf16.gmra.mxu0 %v3180
  %v3342 = vpop.f32.mrf.mxu0
  %v3343 = vadd.f32 %v3066, %v3342
  %v3344 = vpop.f32.mrf.mxu0
  %v3345 = vadd.f32 %v3068, %v3344
  %3346 = vmatmul.bf16.gmra.mxu0 %v3183
  %v3347 = vpop.f32.mrf.mxu0
  %v3348 = vadd.f32 %v3071, %v3347
  %v3349 = vpop.f32.mrf.mxu0
  %v3350 = vadd.f32 %v3073, %v3349
  %3351 = vmatmul.bf16.gmra.mxu0 %v3186
  %v3352 = vpop.f32.mrf.mxu0
  %v3353 = vadd.f32 %v3076, %v3352
  %v3354 = vpop.f32.mrf.mxu0
  %v3355 = vadd.f32 %v3078, %v3354
  %3356 = vdwg.mxu0
  %v3357 = vld [vmem:[#allocation2 + $0x10] sm:$0xff]
  %v3358 = vld [vmem:[#allocation2 + $0x18] sm:$0xff]
  %v3359 = vld [vmem:[#allocation2 + $0x20] sm:$0xff]
  %v3360 = vld [vmem:[#allocation2 + $0x28] sm:$0xff]
  %v3361 = vld [vmem:[#allocation2 + $0x30] sm:$0xff]
  %v3362 = vld [vmem:[#allocation2 + $0x38] sm:$0xff]
  %v3363 = vld [vmem:[#allocation2 + $0x40] sm:$0xff]
  %v3364 = vld [vmem:[#allocation2 + $0x48] sm:$0xff]
  %v3365 = vld [vmem:[#allocation2 + $0x60] sm:$0xff]
  %v3366 = vld [vmem:[#allocation2 + $0x68] sm:$0xff]
  %v3367 = vld [vmem:[#allocation2 + $0x70] sm:$0xff]
  %v3368 = vld [vmem:[#allocation2 + $0x78] sm:$0xff]
  %v3369 = vld [vmem:[#allocation2 + $0x80] sm:$0xff]
  %v3370 = vld [vmem:[#allocation2 + $0x88] sm:$0xff]
  %v3371 = vld [vmem:[#allocation2 + $0x90] sm:$0xff]
  %v3372 = vld [vmem:[#allocation2 + $0x98] sm:$0xff]
  %v3373 = vld [vmem:[#allocation2 + $0xb0] sm:$0xff]
  %v3374 = vld [vmem:[#allocation2 + $0xb8] sm:$0xff]
  %v3375 = vld [vmem:[#allocation2 + $0xc0] sm:$0xff]
  %v3376 = vld [vmem:[#allocation2 + $0xc8] sm:$0xff]
  %v3377 = vld [vmem:[#allocation2 + $0xd0] sm:$0xff]
  %v3378 = vld [vmem:[#allocation2 + $0xd8] sm:$0xff]
  %v3379 = vld [vmem:[#allocation2 + $0xe0] sm:$0xff]
  %v3380 = vld [vmem:[#allocation2 + $0xe8] sm:$0xff]
  %v3381 = vld [vmem:[#allocation2 + $0x100] sm:$0xff]
  %v3382 = vld [vmem:[#allocation2 + $0x108] sm:$0xff]
  %v3383 = vld [vmem:[#allocation2 + $0x110] sm:$0xff]
  %v3384 = vld [vmem:[#allocation2 + $0x118] sm:$0xff]
  %v3385 = vld [vmem:[#allocation2 + $0x120] sm:$0xff]
  %v3386 = vld [vmem:[#allocation2 + $0x128] sm:$0xff]
  %v3387 = vld [vmem:[#allocation2 + $0x130] sm:$0xff]
  %v3388 = vld [vmem:[#allocation2 + $0x138] sm:$0xff]
  %v3389 = vld [vmem:[#allocation2 + $0x150] sm:$0xff]
  %v3390 = vld [vmem:[#allocation2 + $0x158] sm:$0xff]
  %v3391 = vld [vmem:[#allocation2 + $0x160] sm:$0xff]
  %v3392 = vld [vmem:[#allocation2 + $0x168] sm:$0xff]
  %v3393 = vld [vmem:[#allocation2 + $0x170] sm:$0xff]
  %v3394 = vld [vmem:[#allocation2 + $0x178] sm:$0xff]
  %v3395 = vld [vmem:[#allocation2 + $0x180] sm:$0xff]
  %v3396 = vld [vmem:[#allocation2 + $0x188] sm:$0xff]
  %v3397 = vld [vmem:[#allocation2 + $0x1a0] sm:$0xff]
  %v3398 = vld [vmem:[#allocation2 + $0x1a8] sm:$0xff]
  %v3399 = vld [vmem:[#allocation2 + $0x1b0] sm:$0xff]
  %v3400 = vld [vmem:[#allocation2 + $0x1b8] sm:$0xff]
  %v3401 = vld [vmem:[#allocation2 + $0x1c0] sm:$0xff]
  %v3402 = vld [vmem:[#allocation2 + $0x1c8] sm:$0xff]
  %v3403 = vld [vmem:[#allocation2 + $0x1d0] sm:$0xff]
  %v3404 = vld [vmem:[#allocation2 + $0x1d8] sm:$0xff]
  %v3405 = vld [vmem:[#allocation2 + $0x1f0] sm:$0xff]
  %v3406 = vld [vmem:[#allocation2 + $0x1f8] sm:$0xff]
  %v3407 = vld [vmem:[#allocation2 + $0x200] sm:$0xff]
  %v3408 = vld [vmem:[#allocation2 + $0x208] sm:$0xff]
  %v3409 = vld [vmem:[#allocation2 + $0x210] sm:$0xff]
  %v3410 = vld [vmem:[#allocation2 + $0x218] sm:$0xff]
  %v3411 = vld [vmem:[#allocation2 + $0x220] sm:$0xff]
  %v3412 = vld [vmem:[#allocation2 + $0x228] sm:$0xff]
  %v3413 = vld [vmem:[#allocation2 + $0x240] sm:$0xff]
  %v3414 = vld [vmem:[#allocation2 + $0x248] sm:$0xff]
  %v3415 = vld [vmem:[#allocation2 + $0x250] sm:$0xff]
  %v3416 = vld [vmem:[#allocation2 + $0x258] sm:$0xff]
  %v3417 = vld [vmem:[#allocation2 + $0x260] sm:$0xff]
  %v3418 = vld [vmem:[#allocation2 + $0x268] sm:$0xff]
  %v3419 = vld [vmem:[#allocation2 + $0x270] sm:$0xff]
  %v3420 = vld [vmem:[#allocation2 + $0x278] sm:$0xff]
  %v3421 = vpack.c.bf16 %v3358, %v3357
  %v3422 = vpack.c.bf16 %v3360, %v3359
  %v3423 = vpack.c.bf16 %v3362, %v3361
  %v3424 = vpack.c.bf16 %v3364, %v3363
  %v3425 = vpack.c.bf16 %v3366, %v3365
  %v3426 = vpack.c.bf16 %v3368, %v3367
  %v3427 = vpack.c.bf16 %v3370, %v3369
  %v3428 = vpack.c.bf16 %v3372, %v3371
  %v3429 = vpack.c.bf16 %v3374, %v3373
  %v3430 = vpack.c.bf16 %v3376, %v3375
  %v3431 = vpack.c.bf16 %v3378, %v3377
  %v3432 = vpack.c.bf16 %v3380, %v3379
  %v3433 = vpack.c.bf16 %v3382, %v3381
  %v3434 = vpack.c.bf16 %v3384, %v3383
  %v3435 = vpack.c.bf16 %v3386, %v3385
  %v3436 = vpack.c.bf16 %v3388, %v3387
  %v3437 = vpack.c.bf16 %v3390, %v3389
  %v3438 = vpack.c.bf16 %v3392, %v3391
  %v3439 = vpack.c.bf16 %v3394, %v3393
  %v3440 = vpack.c.bf16 %v3396, %v3395
  %v3441 = vpack.c.bf16 %v3398, %v3397
  %v3442 = vpack.c.bf16 %v3400, %v3399
  %v3443 = vpack.c.bf16 %v3402, %v3401
  %v3444 = vpack.c.bf16 %v3404, %v3403
  %v3445 = vpack.c.bf16 %v3406, %v3405
  %v3446 = vpack.c.bf16 %v3408, %v3407
  %v3447 = vpack.c.bf16 %v3410, %v3409
  %v3448 = vpack.c.bf16 %v3412, %v3411
  %v3449 = vpack.c.bf16 %v3414, %v3413
  %v3450 = vpack.c.bf16 %v3416, %v3415
  %v3451 = vpack.c.bf16 %v3418, %v3417
  %v3452 = vpack.c.bf16 %v3420, %v3419
  %v3457 = vunpack.c.l.b16 %v2639
  %v3458 = vunpack.c.l.b16 %v2640
  %v3459 = vunpack.c.l.b16 %v2641
  %v3460 = vunpack.c.l.b16 %v2642
  %v3461 = vpack.c.b16 %v3458, %v3457
  %v3462 = vpack.c.b16 %v3460, %v3459
  %v3466 = vsel %vm2466, %v3421, 0
  %v3469 = vsel %vm2466, %v3422, 0
  %v3472 = vsel %vm2466, %v3423, 0
  %v3475 = vsel %vm2466, %v3424, 0
  %v3478 = vsel %vm2466, %v3425, 0
  %v3481 = vsel %vm2466, %v3426, 0
  %v3484 = vsel %vm2466, %v3427, 0
  %v3487 = vsel %vm2466, %v3428, 0
  %v3490 = vsel %vm2466, %v3429, 0
  %v3493 = vsel %vm2466, %v3430, 0
  %v3496 = vsel %vm2466, %v3431, 0
  %v3499 = vsel %vm2466, %v3432, 0
  %v3502 = vsel %vm2466, %v3433, 0
  %v3505 = vsel %vm2466, %v3434, 0
  %v3508 = vsel %vm2466, %v3435, 0
  %v3511 = vsel %vm2466, %v3436, 0
  %v3514 = vsel %vm2466, %v3437, 0
  %v3517 = vsel %vm2466, %v3438, 0
  %v3520 = vsel %vm2466, %v3439, 0
  %v3523 = vsel %vm2466, %v3440, 0
  %v3526 = vsel %vm2466, %v3441, 0
  %v3529 = vsel %vm2466, %v3442, 0
  %v3532 = vsel %vm2466, %v3443, 0
  %v3535 = vsel %vm2466, %v3444, 0
  %v3538 = vsel %vm2466, %v3445, 0
  %v3541 = vsel %vm2466, %v3446, 0
  %v3544 = vsel %vm2466, %v3447, 0
  %v3547 = vsel %vm2466, %v3448, 0
  %v3550 = vsel %vm2466, %v3449, 0
  %v3553 = vsel %vm2466, %v3450, 0
  %v3556 = vsel %vm2466, %v3451, 0
  %v3559 = vsel %vm2466, %v3452, 0
  %3561 = vmatpush.bf16.msra.mxu0 0
  %3562 = vmatpush.bf16.msra.mxu0 0
  %3563 = vmatpush.bf16.msra.mxu0 0
  %3564 = vmatpush.bf16.msra.mxu0 0
  %3565 = vmatpush.bf16.msra.mxu0 0
  %3566 = vmatpush.bf16.msra.mxu0 0
  %3567 = vmatpush.bf16.msra.mxu0 %v3462
  %3568 = vmatpush.bf16.msra.mxu0 %v3461
  %3569 = vmatmul.bf16.gmra.mxu0 %v3466
  %v3570 = vpop.f32.mrf.mxu0
  %v3571 = vadd.f32 0.0, %v3570
  %v3572 = vpop.f32.mrf.mxu0
  %v3573 = vadd.f32 0.0, %v3572
  %3574 = vmatmul.bf16.gmra.mxu0 %v3469
  %v3575 = vpop.f32.mrf.mxu0
  %v3576 = vadd.f32 0.0, %v3575
  %v3577 = vpop.f32.mrf.mxu0
  %v3578 = vadd.f32 0.0, %v3577
  %3579 = vmatmul.bf16.gmra.mxu0 %v3472
  %v3580 = vpop.f32.mrf.mxu0
  %v3581 = vadd.f32 0.0, %v3580
  %v3582 = vpop.f32.mrf.mxu0
  %v3583 = vadd.f32 0.0, %v3582
  %3584 = vmatmul.bf16.gmra.mxu0 %v3475
  %v3585 = vpop.f32.mrf.mxu0
  %v3586 = vadd.f32 0.0, %v3585
  %v3587 = vpop.f32.mrf.mxu0
  %v3588 = vadd.f32 0.0, %v3587
  %3589 = vmatmul.bf16.gmra.mxu0 %v3478
  %v3590 = vpop.f32.mrf.mxu0
  %v3591 = vadd.f32 0.0, %v3590
  %v3592 = vpop.f32.mrf.mxu0
  %v3593 = vadd.f32 0.0, %v3592
  %3594 = vmatmul.bf16.gmra.mxu0 %v3481
  %v3595 = vpop.f32.mrf.mxu0
  %v3596 = vadd.f32 0.0, %v3595
  %v3597 = vpop.f32.mrf.mxu0
  %v3598 = vadd.f32 0.0, %v3597
  %3599 = vmatmul.bf16.gmra.mxu0 %v3484
  %v3600 = vpop.f32.mrf.mxu0
  %v3601 = vadd.f32 0.0, %v3600
  %v3602 = vpop.f32.mrf.mxu0
  %v3603 = vadd.f32 0.0, %v3602
  %3604 = vmatmul.bf16.gmra.mxu0 %v3487
  %v3605 = vpop.f32.mrf.mxu0
  %v3606 = vadd.f32 0.0, %v3605
  %v3607 = vpop.f32.mrf.mxu0
  %v3608 = vadd.f32 0.0, %v3607
  %3609 = vmatmul.bf16.gmra.mxu0 %v3490
  %v3610 = vpop.f32.mrf.mxu0
  %v3611 = vadd.f32 0.0, %v3610
  %v3612 = vpop.f32.mrf.mxu0
  %v3613 = vadd.f32 0.0, %v3612
  %3614 = vmatmul.bf16.gmra.mxu0 %v3493
  %v3615 = vpop.f32.mrf.mxu0
  %v3616 = vadd.f32 0.0, %v3615
  %v3617 = vpop.f32.mrf.mxu0
  %v3618 = vadd.f32 0.0, %v3617
  %3619 = vmatmul.bf16.gmra.mxu0 %v3496
  %v3620 = vpop.f32.mrf.mxu0
  %v3621 = vadd.f32 0.0, %v3620
  %v3622 = vpop.f32.mrf.mxu0
  %v3623 = vadd.f32 0.0, %v3622
  %3624 = vmatmul.bf16.gmra.mxu0 %v3499
  %v3625 = vpop.f32.mrf.mxu0
  %v3626 = vadd.f32 0.0, %v3625
  %v3627 = vpop.f32.mrf.mxu0
  %v3628 = vadd.f32 0.0, %v3627
  %3629 = vmatmul.bf16.gmra.mxu0 %v3502
  %v3630 = vpop.f32.mrf.mxu0
  %v3631 = vadd.f32 0.0, %v3630
  %v3632 = vpop.f32.mrf.mxu0
  %v3633 = vadd.f32 0.0, %v3632
  %3634 = vmatmul.bf16.gmra.mxu0 %v3505
  %v3635 = vpop.f32.mrf.mxu0
  %v3636 = vadd.f32 0.0, %v3635
  %v3637 = vpop.f32.mrf.mxu0
  %v3638 = vadd.f32 0.0, %v3637
  %3639 = vmatmul.bf16.gmra.mxu0 %v3508
  %v3640 = vpop.f32.mrf.mxu0
  %v3641 = vadd.f32 0.0, %v3640
  %v3642 = vpop.f32.mrf.mxu0
  %v3643 = vadd.f32 0.0, %v3642
  %3644 = vmatmul.bf16.gmra.mxu0 %v3511
  %v3645 = vpop.f32.mrf.mxu0
  %v3646 = vadd.f32 0.0, %v3645
  %v3647 = vpop.f32.mrf.mxu0
  %v3648 = vadd.f32 0.0, %v3647
  %3649 = vmatmul.bf16.gmra.mxu0 %v3514
  %v3650 = vpop.f32.mrf.mxu0
  %v3651 = vadd.f32 0.0, %v3650
  %v3652 = vpop.f32.mrf.mxu0
  %v3653 = vadd.f32 0.0, %v3652
  %3654 = vmatmul.bf16.gmra.mxu0 %v3517
  %v3655 = vpop.f32.mrf.mxu0
  %v3656 = vadd.f32 0.0, %v3655
  %v3657 = vpop.f32.mrf.mxu0
  %v3658 = vadd.f32 0.0, %v3657
  %3659 = vmatmul.bf16.gmra.mxu0 %v3520
  %v3660 = vpop.f32.mrf.mxu0
  %v3661 = vadd.f32 0.0, %v3660
  %v3662 = vpop.f32.mrf.mxu0
  %v3663 = vadd.f32 0.0, %v3662
  %3664 = vmatmul.bf16.gmra.mxu0 %v3523
  %v3665 = vpop.f32.mrf.mxu0
  %v3666 = vadd.f32 0.0, %v3665
  %v3667 = vpop.f32.mrf.mxu0
  %v3668 = vadd.f32 0.0, %v3667
  %3669 = vmatmul.bf16.gmra.mxu0 %v3526
  %v3670 = vpop.f32.mrf.mxu0
  %v3671 = vadd.f32 0.0, %v3670
  %v3672 = vpop.f32.mrf.mxu0
  %v3673 = vadd.f32 0.0, %v3672
  %3674 = vmatmul.bf16.gmra.mxu0 %v3529
  %v3675 = vpop.f32.mrf.mxu0
  %v3676 = vadd.f32 0.0, %v3675
  %v3677 = vpop.f32.mrf.mxu0
  %v3678 = vadd.f32 0.0, %v3677
  %3679 = vmatmul.bf16.gmra.mxu0 %v3532
  %v3680 = vpop.f32.mrf.mxu0
  %v3681 = vadd.f32 0.0, %v3680
  %v3682 = vpop.f32.mrf.mxu0
  %v3683 = vadd.f32 0.0, %v3682
  %3684 = vmatmul.bf16.gmra.mxu0 %v3535
  %v3685 = vpop.f32.mrf.mxu0
  %v3686 = vadd.f32 0.0, %v3685
  %v3687 = vpop.f32.mrf.mxu0
  %v3688 = vadd.f32 0.0, %v3687
  %3689 = vmatmul.bf16.gmra.mxu0 %v3538
  %v3690 = vpop.f32.mrf.mxu0
  %v3691 = vadd.f32 0.0, %v3690
  %v3692 = vpop.f32.mrf.mxu0
  %v3693 = vadd.f32 0.0, %v3692
  %3694 = vmatmul.bf16.gmra.mxu0 %v3541
  %v3695 = vpop.f32.mrf.mxu0
  %v3696 = vadd.f32 0.0, %v3695
  %v3697 = vpop.f32.mrf.mxu0
  %v3698 = vadd.f32 0.0, %v3697
  %3699 = vmatmul.bf16.gmra.mxu0 %v3544
  %v3700 = vpop.f32.mrf.mxu0
  %v3701 = vadd.f32 0.0, %v3700
  %v3702 = vpop.f32.mrf.mxu0
  %v3703 = vadd.f32 0.0, %v3702
  %3704 = vmatmul.bf16.gmra.mxu0 %v3547
  %v3705 = vpop.f32.mrf.mxu0
  %v3706 = vadd.f32 0.0, %v3705
  %v3707 = vpop.f32.mrf.mxu0
  %v3708 = vadd.f32 0.0, %v3707
  %3709 = vmatmul.bf16.gmra.mxu0 %v3550
  %v3710 = vpop.f32.mrf.mxu0
  %v3711 = vadd.f32 0.0, %v3710
  %v3712 = vpop.f32.mrf.mxu0
  %v3713 = vadd.f32 0.0, %v3712
  %3714 = vmatmul.bf16.gmra.mxu0 %v3553
  %v3715 = vpop.f32.mrf.mxu0
  %v3716 = vadd.f32 0.0, %v3715
  %v3717 = vpop.f32.mrf.mxu0
  %v3718 = vadd.f32 0.0, %v3717
  %3719 = vmatmul.bf16.gmra.mxu0 %v3556
  %v3720 = vpop.f32.mrf.mxu0
  %v3721 = vadd.f32 0.0, %v3720
  %v3722 = vpop.f32.mrf.mxu0
  %v3723 = vadd.f32 0.0, %v3722
  %3724 = vmatmul.bf16.gmra.mxu0 %v3559
  %v3725 = vpop.f32.mrf.mxu0
  %v3726 = vadd.f32 0.0, %v3725
  %v3727 = vpop.f32.mrf.mxu0
  %v3728 = vadd.f32 0.0, %v3727
  %3729 = vdwg.mxu0
  %v3730 = vadd.f32 %v3198, %v3571
  %v3731 = vadd.f32 %v3200, %v3573
  %v3732 = vadd.f32 %v3203, %v3576
  %v3733 = vadd.f32 %v3205, %v3578
  %v3734 = vadd.f32 %v3208, %v3581
  %v3735 = vadd.f32 %v3210, %v3583
  %v3736 = vadd.f32 %v3213, %v3586
  %v3737 = vadd.f32 %v3215, %v3588
  %v3738 = vadd.f32 %v3218, %v3591
  %v3739 = vadd.f32 %v3220, %v3593
  %v3740 = vadd.f32 %v3223, %v3596
  %v3741 = vadd.f32 %v3225, %v3598
  %v3742 = vadd.f32 %v3228, %v3601
  %v3743 = vadd.f32 %v3230, %v3603
  %v3744 = vadd.f32 %v3233, %v3606
  %v3745 = vadd.f32 %v3235, %v3608
  %v3746 = vadd.f32 %v3238, %v3611
  %v3747 = vadd.f32 %v3240, %v3613
  %v3748 = vadd.f32 %v3243, %v3616
  %v3749 = vadd.f32 %v3245, %v3618
  %v3750 = vadd.f32 %v3248, %v3621
  %v3751 = vadd.f32 %v3250, %v3623
  %v3752 = vadd.f32 %v3253, %v3626
  %v3753 = vadd.f32 %v3255, %v3628
  %v3754 = vadd.f32 %v3258, %v3631
  %v3755 = vadd.f32 %v3260, %v3633
  %v3756 = vadd.f32 %v3263, %v3636
  %v3757 = vadd.f32 %v3265, %v3638
  %v3758 = vadd.f32 %v3268, %v3641
  %v3759 = vadd.f32 %v3270, %v3643
  %v3760 = vadd.f32 %v3273, %v3646
  %v3761 = vadd.f32 %v3275, %v3648
  %v3762 = vadd.f32 %v3278, %v3651
  %v3763 = vadd.f32 %v3280, %v3653
  %v3764 = vadd.f32 %v3283, %v3656
  %v3765 = vadd.f32 %v3285, %v3658
  %v3766 = vadd.f32 %v3288, %v3661
  %v3767 = vadd.f32 %v3290, %v3663
  %v3768 = vadd.f32 %v3293, %v3666
  %v3769 = vadd.f32 %v3295, %v3668
  %v3770 = vadd.f32 %v3298, %v3671
  %v3771 = vadd.f32 %v3300, %v3673
  %v3772 = vadd.f32 %v3303, %v3676
  %v3773 = vadd.f32 %v3305, %v3678
  %v3774 = vadd.f32 %v3308, %v3681
  %v3775 = vadd.f32 %v3310, %v3683
  %v3776 = vadd.f32 %v3313, %v3686
  %v3777 = vadd.f32 %v3315, %v3688
  %v3778 = vadd.f32 %v3318, %v3691
  %v3779 = vadd.f32 %v3320, %v3693
  %v3780 = vadd.f32 %v3323, %v3696
  %v3781 = vadd.f32 %v3325, %v3698
  %v3782 = vadd.f32 %v3328, %v3701
  %v3783 = vadd.f32 %v3330, %v3703
  %v3784 = vadd.f32 %v3333, %v3706
  %v3785 = vadd.f32 %v3335, %v3708
  %v3786 = vadd.f32 %v3338, %v3711
  %v3787 = vadd.f32 %v3340, %v3713
  %v3788 = vadd.f32 %v3343, %v3716
  %v3789 = vadd.f32 %v3345, %v3718
  %v3790 = vadd.f32 %v3348, %v3721
  %v3791 = vadd.f32 %v3350, %v3723
  %v3792 = vadd.f32 %v3353, %v3726
  %v3793 = vadd.f32 %v3355, %v3728
  %v3794 = vld [vmem:[#allocation2 + $0x280] sm:$0xff]
  %v3795 = vld [vmem:[#allocation2 + $0x288] sm:$0xff]
  %v3796 = vld [vmem:[#allocation2 + $0x290] sm:$0xff]
  %v3797 = vld [vmem:[#allocation2 + $0x298] sm:$0xff]
  %v3798 = vld [vmem:[#allocation2 + $0x2a0] sm:$0xff]
  %v3799 = vld [vmem:[#allocation2 + $0x2a8] sm:$0xff]
  %v3800 = vld [vmem:[#allocation2 + $0x2b0] sm:$0xff]
  %v3801 = vld [vmem:[#allocation2 + $0x2b8] sm:$0xff]
  %v3802 = vpack.c.bf16 %v3795, %v3794
  %v3803 = vpack.c.bf16 %v3797, %v3796
  %v3804 = vpack.c.bf16 %v3799, %v3798
  %v3805 = vpack.c.bf16 %v3801, %v3800
  %v3810 = vunpack.c.l.b16 %v2643
  %v3811 = vunpack.c.l.b16 %v2644
  %v3812 = vunpack.c.l.b16 %v2645
  %v3813 = vunpack.c.l.b16 %v2646
  %v3814 = vpack.c.b16 %v3811, %v3810
  %v3815 = vpack.c.b16 %v3813, %v3812
  %v3819 = vsel %vm2466, %v3802, 0
  %v3822 = vsel %vm2466, %v3803, 0
  %v3825 = vsel %vm2466, %v3804, 0
  %v3828 = vsel %vm2466, %v3805, 0
  %3830 = vmatpush.bf16.msra.mxu0 0
  %3831 = vmatpush.bf16.msra.mxu0 0
  %3832 = vmatpush.bf16.msra.mxu0 0
  %3833 = vmatpush.bf16.msra.mxu0 0
  %3834 = vmatpush.bf16.msra.mxu0 0
  %3835 = vmatpush.bf16.msra.mxu0 0
  %3836 = vmatpush.bf16.msra.mxu0 %v3815
  %3837 = vmatpush.bf16.msra.mxu0 %v3814
  %3838 = vmatmul.bf16.gmra.mxu0 %v3105
  %v3839 = vpop.f32.mrf.mxu0
  %v3840 = vadd.f32 0.0, %v3839
  %v3841 = vpop.f32.mrf.mxu0
  %v3842 = vadd.f32 0.0, %v3841
  %3843 = vmatmul.bf16.gmra.mxu0 %v3108
  %v3844 = vpop.f32.mrf.mxu0
  %v3845 = vadd.f32 0.0, %v3844
  %v3846 = vpop.f32.mrf.mxu0
  %v3847 = vadd.f32 0.0, %v3846
  %3848 = vmatmul.bf16.gmra.mxu0 %v3111
  %v3849 = vpop.f32.mrf.mxu0
  %v3850 = vadd.f32 0.0, %v3849
  %v3851 = vpop.f32.mrf.mxu0
  %v3852 = vadd.f32 0.0, %v3851
  %3853 = vmatmul.bf16.gmra.mxu0 %v3114
  %v3854 = vpop.f32.mrf.mxu0
  %v3855 = vadd.f32 0.0, %v3854
  %v3856 = vpop.f32.mrf.mxu0
  %v3857 = vadd.f32 0.0, %v3856
  %3858 = vmatmul.bf16.gmra.mxu0 %v3117
  %v3859 = vpop.f32.mrf.mxu0
  %v3860 = vadd.f32 0.0, %v3859
  %v3861 = vpop.f32.mrf.mxu0
  %v3862 = vadd.f32 0.0, %v3861
  %3863 = vmatmul.bf16.gmra.mxu0 %v3120
  %v3864 = vpop.f32.mrf.mxu0
  %v3865 = vadd.f32 0.0, %v3864
  %v3866 = vpop.f32.mrf.mxu0
  %v3867 = vadd.f32 0.0, %v3866
  %3868 = vmatmul.bf16.gmra.mxu0 %v3123
  %v3869 = vpop.f32.mrf.mxu0
  %v3870 = vadd.f32 0.0, %v3869
  %v3871 = vpop.f32.mrf.mxu0
  %v3872 = vadd.f32 0.0, %v3871
  %3873 = vmatmul.bf16.gmra.mxu0 %v3126
  %v3874 = vpop.f32.mrf.mxu0
  %v3875 = vadd.f32 0.0, %v3874
  %v3876 = vpop.f32.mrf.mxu0
  %v3877 = vadd.f32 0.0, %v3876
  %3878 = vmatmul.bf16.gmra.mxu0 %v3129
  %v3879 = vpop.f32.mrf.mxu0
  %v3880 = vadd.f32 0.0, %v3879
  %v3881 = vpop.f32.mrf.mxu0
  %v3882 = vadd.f32 0.0, %v3881
  %3883 = vmatmul.bf16.gmra.mxu0 %v3132
  %v3884 = vpop.f32.mrf.mxu0
  %v3885 = vadd.f32 0.0, %v3884
  %v3886 = vpop.f32.mrf.mxu0
  %v3887 = vadd.f32 0.0, %v3886
  %3888 = vmatmul.bf16.gmra.mxu0 %v3135
  %v3889 = vpop.f32.mrf.mxu0
  %v3890 = vadd.f32 0.0, %v3889
  %v3891 = vpop.f32.mrf.mxu0
  %v3892 = vadd.f32 0.0, %v3891
  %3893 = vmatmul.bf16.gmra.mxu0 %v3138
  %v3894 = vpop.f32.mrf.mxu0
  %v3895 = vadd.f32 0.0, %v3894
  %v3896 = vpop.f32.mrf.mxu0
  %v3897 = vadd.f32 0.0, %v3896
  %3898 = vmatmul.bf16.gmra.mxu0 %v3141
  %v3899 = vpop.f32.mrf.mxu0
  %v3900 = vadd.f32 0.0, %v3899
  %v3901 = vpop.f32.mrf.mxu0
  %v3902 = vadd.f32 0.0, %v3901
  %3903 = vmatmul.bf16.gmra.mxu0 %v3144
  %v3904 = vpop.f32.mrf.mxu0
  %v3905 = vadd.f32 0.0, %v3904
  %v3906 = vpop.f32.mrf.mxu0
  %v3907 = vadd.f32 0.0, %v3906
  %3908 = vmatmul.bf16.gmra.mxu0 %v3147
  %v3909 = vpop.f32.mrf.mxu0
  %v3910 = vadd.f32 0.0, %v3909
  %v3911 = vpop.f32.mrf.mxu0
  %v3912 = vadd.f32 0.0, %v3911
  %3913 = vmatmul.bf16.gmra.mxu0 %v3150
  %v3914 = vpop.f32.mrf.mxu0
  %v3915 = vadd.f32 0.0, %v3914
  %v3916 = vpop.f32.mrf.mxu0
  %v3917 = vadd.f32 0.0, %v3916
  %3918 = vmatmul.bf16.gmra.mxu0 %v3153
  %v3919 = vpop.f32.mrf.mxu0
  %v3920 = vadd.f32 0.0, %v3919
  %v3921 = vpop.f32.mrf.mxu0
  %v3922 = vadd.f32 0.0, %v3921
  %3923 = vmatmul.bf16.gmra.mxu0 %v3156
  %v3924 = vpop.f32.mrf.mxu0
  %v3925 = vadd.f32 0.0, %v3924
  %v3926 = vpop.f32.mrf.mxu0
  %v3927 = vadd.f32 0.0, %v3926
  %3928 = vmatmul.bf16.gmra.mxu0 %v3159
  %v3929 = vpop.f32.mrf.mxu0
  %v3930 = vadd.f32 0.0, %v3929
  %v3931 = vpop.f32.mrf.mxu0
  %v3932 = vadd.f32 0.0, %v3931
  %3933 = vmatmul.bf16.gmra.mxu0 %v3162
  %v3934 = vpop.f32.mrf.mxu0
  %v3935 = vadd.f32 0.0, %v3934
  %v3936 = vpop.f32.mrf.mxu0
  %v3937 = vadd.f32 0.0, %v3936
  %3938 = vmatmul.bf16.gmra.mxu0 %v3165
  %v3939 = vpop.f32.mrf.mxu0
  %v3940 = vadd.f32 0.0, %v3939
  %v3941 = vpop.f32.mrf.mxu0
  %v3942 = vadd.f32 0.0, %v3941
  %3943 = vmatmul.bf16.gmra.mxu0 %v3168
  %v3944 = vpop.f32.mrf.mxu0
  %v3945 = vadd.f32 0.0, %v3944
  %v3946 = vpop.f32.mrf.mxu0
  %v3947 = vadd.f32 0.0, %v3946
  %3948 = vmatmul.bf16.gmra.mxu0 %v3171
  %v3949 = vpop.f32.mrf.mxu0
  %v3950 = vadd.f32 0.0, %v3949
  %v3951 = vpop.f32.mrf.mxu0
  %v3952 = vadd.f32 0.0, %v3951
  %3953 = vmatmul.bf16.gmra.mxu0 %v3174
  %v3954 = vpop.f32.mrf.mxu0
  %v3955 = vadd.f32 0.0, %v3954
  %v3956 = vpop.f32.mrf.mxu0
  %v3957 = vadd.f32 0.0, %v3956
  %3958 = vmatmul.bf16.gmra.mxu0 %v3177
  %v3959 = vpop.f32.mrf.mxu0
  %v3960 = vadd.f32 0.0, %v3959
  %v3961 = vpop.f32.mrf.mxu0
  %v3962 = vadd.f32 0.0, %v3961
  %3963 = vmatmul.bf16.gmra.mxu0 %v3180
  %v3964 = vpop.f32.mrf.mxu0
  %v3965 = vadd.f32 0.0, %v3964
  %v3966 = vpop.f32.mrf.mxu0
  %v3967 = vadd.f32 0.0, %v3966
  %3968 = vmatmul.bf16.gmra.mxu0 %v3183
  %v3969 = vpop.f32.mrf.mxu0
  %v3970 = vadd.f32 0.0, %v3969
  %v3971 = vpop.f32.mrf.mxu0
  %v3972 = vadd.f32 0.0, %v3971
  %3973 = vmatmul.bf16.gmra.mxu0 %v3186
  %v3974 = vpop.f32.mrf.mxu0
  %v3975 = vadd.f32 0.0, %v3974
  %v3976 = vpop.f32.mrf.mxu0
  %v3977 = vadd.f32 0.0, %v3976
  %3978 = vmatmul.bf16.gmra.mxu0 %v3819
  %v3979 = vpop.f32.mrf.mxu0
  %v3980 = vadd.f32 0.0, %v3979
  %v3981 = vpop.f32.mrf.mxu0
  %v3982 = vadd.f32 0.0, %v3981
  %3983 = vmatmul.bf16.gmra.mxu0 %v3822
  %v3984 = vpop.f32.mrf.mxu0
  %v3985 = vadd.f32 0.0, %v3984
  %v3986 = vpop.f32.mrf.mxu0
  %v3987 = vadd.f32 0.0, %v3986
  %3988 = vmatmul.bf16.gmra.mxu0 %v3825
  %v3989 = vpop.f32.mrf.mxu0
  %v3990 = vadd.f32 0.0, %v3989
  %v3991 = vpop.f32.mrf.mxu0
  %v3992 = vadd.f32 0.0, %v3991
  %3993 = vmatmul.bf16.gmra.mxu0 %v3828
  %v3994 = vpop.f32.mrf.mxu0
  %v3995 = vadd.f32 0.0, %v3994
  %v3996 = vpop.f32.mrf.mxu0
  %v3997 = vadd.f32 0.0, %v3996
  %3998 = vdwg.mxu0
  %v3999 = vadd.f32 %v3730, %v3840
  %v4000 = vadd.f32 %v3731, %v3842
  %v4001 = vadd.f32 %v3732, %v3845
  %v4002 = vadd.f32 %v3733, %v3847
  %v4003 = vadd.f32 %v3734, %v3850
  %v4004 = vadd.f32 %v3735, %v3852
  %v4005 = vadd.f32 %v3736, %v3855
  %v4006 = vadd.f32 %v3737, %v3857
  %v4007 = vadd.f32 %v3738, %v3860
  %v4008 = vadd.f32 %v3739, %v3862
  %v4009 = vadd.f32 %v3740, %v3865
  %v4010 = vadd.f32 %v3741, %v3867
  %v4011 = vadd.f32 %v3742, %v3870
  %v4012 = vadd.f32 %v3743, %v3872
  %v4013 = vadd.f32 %v3744, %v3875
  %v4014 = vadd.f32 %v3745, %v3877
  %v4015 = vadd.f32 %v3746, %v3880
  %v4016 = vadd.f32 %v3747, %v3882
  %v4017 = vadd.f32 %v3748, %v3885
  %v4018 = vadd.f32 %v3749, %v3887
  %v4019 = vadd.f32 %v3750, %v3890
  %v4020 = vadd.f32 %v3751, %v3892
  %v4021 = vadd.f32 %v3752, %v3895
  %v4022 = vadd.f32 %v3753, %v3897
  %v4023 = vadd.f32 %v3754, %v3900
  %v4024 = vadd.f32 %v3755, %v3902
  %v4025 = vadd.f32 %v3756, %v3905
  %v4026 = vadd.f32 %v3757, %v3907
  %v4027 = vadd.f32 %v3758, %v3910
  %v4028 = vadd.f32 %v3759, %v3912
  %v4029 = vadd.f32 %v3760, %v3915
  %v4030 = vadd.f32 %v3761, %v3917
  %v4031 = vadd.f32 %v3762, %v3920
  %v4032 = vadd.f32 %v3763, %v3922
  %v4033 = vadd.f32 %v3764, %v3925
  %v4034 = vadd.f32 %v3765, %v3927
  %v4035 = vadd.f32 %v3766, %v3930
  %v4036 = vadd.f32 %v3767, %v3932
  %v4037 = vadd.f32 %v3768, %v3935
  %v4038 = vadd.f32 %v3769, %v3937
  %v4039 = vadd.f32 %v3770, %v3940
  %v4040 = vadd.f32 %v3771, %v3942
  %v4041 = vadd.f32 %v3772, %v3945
  %v4042 = vadd.f32 %v3773, %v3947
  %v4043 = vadd.f32 %v3774, %v3950
  %v4044 = vadd.f32 %v3775, %v3952
  %v4045 = vadd.f32 %v3776, %v3955
  %v4046 = vadd.f32 %v3777, %v3957
  %v4047 = vadd.f32 %v3778, %v3960
  %v4048 = vadd.f32 %v3779, %v3962
  %v4049 = vadd.f32 %v3780, %v3965
  %v4050 = vadd.f32 %v3781, %v3967
  %v4051 = vadd.f32 %v3782, %v3970
  %v4052 = vadd.f32 %v3783, %v3972
  %v4053 = vadd.f32 %v3784, %v3975
  %v4054 = vadd.f32 %v3785, %v3977
  %v4055 = vadd.f32 %v3786, %v3980
  %v4056 = vadd.f32 %v3787, %v3982
  %v4057 = vadd.f32 %v3788, %v3985
  %v4058 = vadd.f32 %v3789, %v3987
  %v4059 = vadd.f32 %v3790, %v3990
  %v4060 = vadd.f32 %v3791, %v3992
  %v4061 = vadd.f32 %v3792, %v3995
  %v4062 = vadd.f32 %v3793, %v3997
  %v4063 = vld [vmem:[#allocation2 + $0x288] sm:$0xff]
  %v4064 = vld [vmem:[#allocation2 + $0x290] sm:$0xff]
  %v4065 = vld [vmem:[#allocation2 + $0x298] sm:$0xff]
  %v4066 = vld [vmem:[#allocation2 + $0x2a0] sm:$0xff]
  %v4067 = vld [vmem:[#allocation2 + $0x2a8] sm:$0xff]
  %v4068 = vld [vmem:[#allocation2 + $0x2b0] sm:$0xff]
  %v4069 = vld [vmem:[#allocation2 + $0x2b8] sm:$0xff]
  %v4070 = vld [vmem:[#allocation2 + $0x2c0] sm:$0xff]
  %v4071 = vpack.c.bf16 %v4064, %v4063
  %v4072 = vpack.c.bf16 %v4066, %v4065
  %v4073 = vpack.c.bf16 %v4068, %v4067
  %v4074 = vpack.c.bf16 %v4070, %v4069
  %v4079 = vunpack.c.l.b16 %v2647
  %v4080 = vunpack.c.l.b16 %v2648
  %v4081 = vunpack.c.l.b16 %v2649
  %v4082 = vunpack.c.l.b16 %v2650
  %v4083 = vpack.c.b16 %v4080, %v4079
  %v4084 = vpack.c.b16 %v4082, %v4081
  %v4088 = vsel %vm2466, %v4071, 0
  %v4091 = vsel %vm2466, %v4072, 0
  %v4094 = vsel %vm2466, %v4073, 0
  %v4097 = vsel %vm2466, %v4074, 0
  %4099 = vmatpush.bf16.msra.mxu0 0
  %4100 = vmatpush.bf16.msra.mxu0 0
  %4101 = vmatpush.bf16.msra.mxu0 0
  %4102 = vmatpush.bf16.msra.mxu0 0
  %4103 = vmatpush.bf16.msra.mxu0 0
  %4104 = vmatpush.bf16.msra.mxu0 0
  %4105 = vmatpush.bf16.msra.mxu0 %v4084
  %4106 = vmatpush.bf16.msra.mxu0 %v4083
  %4107 = vmatmul.bf16.gmra.mxu0 %v2828
  %v4108 = vpop.f32.mrf.mxu0
  %v4109 = vadd.f32 0.0, %v4108
  %v4110 = vpop.f32.mrf.mxu0
  %v4111 = vadd.f32 0.0, %v4110
  %4112 = vmatmul.bf16.gmra.mxu0 %v2831
  %v4113 = vpop.f32.mrf.mxu0
  %v4114 = vadd.f32 0.0, %v4113
  %v4115 = vpop.f32.mrf.mxu0
  %v4116 = vadd.f32 0.0, %v4115
  %4117 = vmatmul.bf16.gmra.mxu0 %v2834
  %v4118 = vpop.f32.mrf.mxu0
  %v4119 = vadd.f32 0.0, %v4118
  %v4120 = vpop.f32.mrf.mxu0
  %v4121 = vadd.f32 0.0, %v4120
  %4122 = vmatmul.bf16.gmra.mxu0 %v2837
  %v4123 = vpop.f32.mrf.mxu0
  %v4124 = vadd.f32 0.0, %v4123
  %v4125 = vpop.f32.mrf.mxu0
  %v4126 = vadd.f32 0.0, %v4125
  %4127 = vmatmul.bf16.gmra.mxu0 %v2840
  %v4128 = vpop.f32.mrf.mxu0
  %v4129 = vadd.f32 0.0, %v4128
  %v4130 = vpop.f32.mrf.mxu0
  %v4131 = vadd.f32 0.0, %v4130
  %4132 = vmatmul.bf16.gmra.mxu0 %v2843
  %v4133 = vpop.f32.mrf.mxu0
  %v4134 = vadd.f32 0.0, %v4133
  %v4135 = vpop.f32.mrf.mxu0
  %v4136 = vadd.f32 0.0, %v4135
  %4137 = vmatmul.bf16.gmra.mxu0 %v2846
  %v4138 = vpop.f32.mrf.mxu0
  %v4139 = vadd.f32 0.0, %v4138
  %v4140 = vpop.f32.mrf.mxu0
  %v4141 = vadd.f32 0.0, %v4140
  %4142 = vmatmul.bf16.gmra.mxu0 %v2849
  %v4143 = vpop.f32.mrf.mxu0
  %v4144 = vadd.f32 0.0, %v4143
  %v4145 = vpop.f32.mrf.mxu0
  %v4146 = vadd.f32 0.0, %v4145
  %4147 = vmatmul.bf16.gmra.mxu0 %v2852
  %v4148 = vpop.f32.mrf.mxu0
  %v4149 = vadd.f32 0.0, %v4148
  %v4150 = vpop.f32.mrf.mxu0
  %v4151 = vadd.f32 0.0, %v4150
  %4152 = vmatmul.bf16.gmra.mxu0 %v2855
  %v4153 = vpop.f32.mrf.mxu0
  %v4154 = vadd.f32 0.0, %v4153
  %v4155 = vpop.f32.mrf.mxu0
  %v4156 = vadd.f32 0.0, %v4155
  %4157 = vmatmul.bf16.gmra.mxu0 %v2858
  %v4158 = vpop.f32.mrf.mxu0
  %v4159 = vadd.f32 0.0, %v4158
  %v4160 = vpop.f32.mrf.mxu0
  %v4161 = vadd.f32 0.0, %v4160
  %4162 = vmatmul.bf16.gmra.mxu0 %v2861
  %v4163 = vpop.f32.mrf.mxu0
  %v4164 = vadd.f32 0.0, %v4163
  %v4165 = vpop.f32.mrf.mxu0
  %v4166 = vadd.f32 0.0, %v4165
  %4167 = vmatmul.bf16.gmra.mxu0 %v2864
  %v4168 = vpop.f32.mrf.mxu0
  %v4169 = vadd.f32 0.0, %v4168
  %v4170 = vpop.f32.mrf.mxu0
  %v4171 = vadd.f32 0.0, %v4170
  %4172 = vmatmul.bf16.gmra.mxu0 %v2867
  %v4173 = vpop.f32.mrf.mxu0
  %v4174 = vadd.f32 0.0, %v4173
  %v4175 = vpop.f32.mrf.mxu0
  %v4176 = vadd.f32 0.0, %v4175
  %4177 = vmatmul.bf16.gmra.mxu0 %v2870
  %v4178 = vpop.f32.mrf.mxu0
  %v4179 = vadd.f32 0.0, %v4178
  %v4180 = vpop.f32.mrf.mxu0
  %v4181 = vadd.f32 0.0, %v4180
  %4182 = vmatmul.bf16.gmra.mxu0 %v2873
  %v4183 = vpop.f32.mrf.mxu0
  %v4184 = vadd.f32 0.0, %v4183
  %v4185 = vpop.f32.mrf.mxu0
  %v4186 = vadd.f32 0.0, %v4185
  %4187 = vmatmul.bf16.gmra.mxu0 %v2876
  %v4188 = vpop.f32.mrf.mxu0
  %v4189 = vadd.f32 0.0, %v4188
  %v4190 = vpop.f32.mrf.mxu0
  %v4191 = vadd.f32 0.0, %v4190
  %4192 = vmatmul.bf16.gmra.mxu0 %v2879
  %v4193 = vpop.f32.mrf.mxu0
  %v4194 = vadd.f32 0.0, %v4193
  %v4195 = vpop.f32.mrf.mxu0
  %v4196 = vadd.f32 0.0, %v4195
  %4197 = vmatmul.bf16.gmra.mxu0 %v2882
  %v4198 = vpop.f32.mrf.mxu0
  %v4199 = vadd.f32 0.0, %v4198
  %v4200 = vpop.f32.mrf.mxu0
  %v4201 = vadd.f32 0.0, %v4200
  %4202 = vmatmul.bf16.gmra.mxu0 %v2885
  %v4203 = vpop.f32.mrf.mxu0
  %v4204 = vadd.f32 0.0, %v4203
  %v4205 = vpop.f32.mrf.mxu0
  %v4206 = vadd.f32 0.0, %v4205
  %4207 = vmatmul.bf16.gmra.mxu0 %v2888
  %v4208 = vpop.f32.mrf.mxu0
  %v4209 = vadd.f32 0.0, %v4208
  %v4210 = vpop.f32.mrf.mxu0
  %v4211 = vadd.f32 0.0, %v4210
  %4212 = vmatmul.bf16.gmra.mxu0 %v2891
  %v4213 = vpop.f32.mrf.mxu0
  %v4214 = vadd.f32 0.0, %v4213
  %v4215 = vpop.f32.mrf.mxu0
  %v4216 = vadd.f32 0.0, %v4215
  %4217 = vmatmul.bf16.gmra.mxu0 %v2894
  %v4218 = vpop.f32.mrf.mxu0
  %v4219 = vadd.f32 0.0, %v4218
  %v4220 = vpop.f32.mrf.mxu0
  %v4221 = vadd.f32 0.0, %v4220
  %4222 = vmatmul.bf16.gmra.mxu0 %v2897
  %v4223 = vpop.f32.mrf.mxu0
  %v4224 = vadd.f32 0.0, %v4223
  %v4225 = vpop.f32.mrf.mxu0
  %v4226 = vadd.f32 0.0, %v4225
  %4227 = vmatmul.bf16.gmra.mxu0 %v2900
  %v4228 = vpop.f32.mrf.mxu0
  %v4229 = vadd.f32 0.0, %v4228
  %v4230 = vpop.f32.mrf.mxu0
  %v4231 = vadd.f32 0.0, %v4230
  %4232 = vmatmul.bf16.gmra.mxu0 %v2903
  %v4233 = vpop.f32.mrf.mxu0
  %v4234 = vadd.f32 0.0, %v4233
  %v4235 = vpop.f32.mrf.mxu0
  %v4236 = vadd.f32 0.0, %v4235
  %4237 = vmatmul.bf16.gmra.mxu0 %v2906
  %v4238 = vpop.f32.mrf.mxu0
  %v4239 = vadd.f32 0.0, %v4238
  %v4240 = vpop.f32.mrf.mxu0
  %v4241 = vadd.f32 0.0, %v4240
  %4242 = vmatmul.bf16.gmra.mxu0 %v2909
  %v4243 = vpop.f32.mrf.mxu0
  %v4244 = vadd.f32 0.0, %v4243
  %v4245 = vpop.f32.mrf.mxu0
  %v4246 = vadd.f32 0.0, %v4245
  %4247 = vmatmul.bf16.gmra.mxu0 %v4088
  %v4248 = vpop.f32.mrf.mxu0
  %v4249 = vadd.f32 0.0, %v4248
  %v4250 = vpop.f32.mrf.mxu0
  %v4251 = vadd.f32 0.0, %v4250
  %4252 = vmatmul.bf16.gmra.mxu0 %v4091
  %v4253 = vpop.f32.mrf.mxu0
  %v4254 = vadd.f32 0.0, %v4253
  %v4255 = vpop.f32.mrf.mxu0
  %v4256 = vadd.f32 0.0, %v4255
  %4257 = vmatmul.bf16.gmra.mxu0 %v4094
  %v4258 = vpop.f32.mrf.mxu0
  %v4259 = vadd.f32 0.0, %v4258
  %v4260 = vpop.f32.mrf.mxu0
  %v4261 = vadd.f32 0.0, %v4260
  %4262 = vmatmul.bf16.gmra.mxu0 %v4097
  %v4263 = vpop.f32.mrf.mxu0
  %v4264 = vadd.f32 0.0, %v4263
  %v4265 = vpop.f32.mrf.mxu0
  %v4266 = vadd.f32 0.0, %v4265
  %4267 = vdwg.mxu0
  %v4268 = vadd.f32 %v3999, %v4109
  %v4269 = vadd.f32 %v4000, %v4111
  %v4270 = vadd.f32 %v4001, %v4114
  %v4271 = vadd.f32 %v4002, %v4116
  %v4272 = vadd.f32 %v4003, %v4119
  %v4273 = vadd.f32 %v4004, %v4121
  %v4274 = vadd.f32 %v4005, %v4124
  %v4275 = vadd.f32 %v4006, %v4126
  %v4276 = vadd.f32 %v4007, %v4129
  %v4277 = vadd.f32 %v4008, %v4131
  %v4278 = vadd.f32 %v4009, %v4134
  %v4279 = vadd.f32 %v4010, %v4136
  %v4280 = vadd.f32 %v4011, %v4139
  %v4281 = vadd.f32 %v4012, %v4141
  %v4282 = vadd.f32 %v4013, %v4144
  %v4283 = vadd.f32 %v4014, %v4146
  %v4284 = vadd.f32 %v4015, %v4149
  %v4285 = vadd.f32 %v4016, %v4151
  %v4286 = vadd.f32 %v4017, %v4154
  %v4287 = vadd.f32 %v4018, %v4156
  %v4288 = vadd.f32 %v4019, %v4159
  %v4289 = vadd.f32 %v4020, %v4161
  %v4290 = vadd.f32 %v4021, %v4164
  %v4291 = vadd.f32 %v4022, %v4166
  %v4292 = vadd.f32 %v4023, %v4169
  %v4293 = vadd.f32 %v4024, %v4171
  %v4294 = vadd.f32 %v4025, %v4174
  %v4295 = vadd.f32 %v4026, %v4176
  %v4296 = vadd.f32 %v4027, %v4179
  %v4297 = vadd.f32 %v4028, %v4181
  %v4298 = vadd.f32 %v4029, %v4184
  %v4299 = vadd.f32 %v4030, %v4186
  %v4300 = vadd.f32 %v4031, %v4189
  %v4301 = vadd.f32 %v4032, %v4191
  %v4302 = vadd.f32 %v4033, %v4194
  %v4303 = vadd.f32 %v4034, %v4196
  %v4304 = vadd.f32 %v4035, %v4199
  %v4305 = vadd.f32 %v4036, %v4201
  %v4306 = vadd.f32 %v4037, %v4204
  %v4307 = vadd.f32 %v4038, %v4206
  %v4308 = vadd.f32 %v4039, %v4209
  %v4309 = vadd.f32 %v4040, %v4211
  %v4310 = vadd.f32 %v4041, %v4214
  %v4311 = vadd.f32 %v4042, %v4216
  %v4312 = vadd.f32 %v4043, %v4219
  %v4313 = vadd.f32 %v4044, %v4221
  %v4314 = vadd.f32 %v4045, %v4224
  %v4315 = vadd.f32 %v4046, %v4226
  %v4316 = vadd.f32 %v4047, %v4229
  %v4317 = vadd.f32 %v4048, %v4231
  %v4318 = vadd.f32 %v4049, %v4234
  %v4319 = vadd.f32 %v4050, %v4236
  %v4320 = vadd.f32 %v4051, %v4239
  %v4321 = vadd.f32 %v4052, %v4241
  %v4322 = vadd.f32 %v4053, %v4244
  %v4323 = vadd.f32 %v4054, %v4246
  %v4324 = vadd.f32 %v4055, %v4249
  %v4325 = vadd.f32 %v4056, %v4251
  %v4326 = vadd.f32 %v4057, %v4254
  %v4327 = vadd.f32 %v4058, %v4256
  %v4328 = vadd.f32 %v4059, %v4259
  %v4329 = vadd.f32 %v4060, %v4261
  %v4330 = vadd.f32 %v4061, %v4264
  %v4331 = vadd.f32 %v4062, %v4266
  %v4332 = vld [vmem:[#allocation2 + $0x290] sm:$0xff]
  %v4333 = vld [vmem:[#allocation2 + $0x298] sm:$0xff]
  %v4334 = vld [vmem:[#allocation2 + $0x2a0] sm:$0xff]
  %v4335 = vld [vmem:[#allocation2 + $0x2a8] sm:$0xff]
  %v4336 = vld [vmem:[#allocation2 + $0x2b0] sm:$0xff]
  %v4337 = vld [vmem:[#allocation2 + $0x2b8] sm:$0xff]
  %v4338 = vld [vmem:[#allocation2 + $0x2c0] sm:$0xff]
  %v4339 = vld [vmem:[#allocation2 + $0x2c8] sm:$0xff]
  %v4340 = vpack.c.bf16 %v4333, %v4332
  %v4341 = vpack.c.bf16 %v4335, %v4334
  %v4342 = vpack.c.bf16 %v4337, %v4336
  %v4343 = vpack.c.bf16 %v4339, %v4338
  %v4348 = vunpack.c.l.b16 %v2651
  %v4349 = vunpack.c.l.b16 %v2652
  %v4350 = vunpack.c.l.b16 %v2653
  %v4351 = vunpack.c.l.b16 %v2654
  %v4352 = vpack.c.b16 %v4349, %v4348
  %v4353 = vpack.c.b16 %v4351, %v4350
  %v4357 = vsel %vm2466, %v4340, 0
  %v4360 = vsel %vm2466, %v4341, 0
  %v4363 = vsel %vm2466, %v4342, 0
  %v4366 = vsel %vm2466, %v4343, 0
  %4368 = vmatpush.bf16.msra.mxu0 0
  %4369 = vmatpush.bf16.msra.mxu0 0
  %4370 = vmatpush.bf16.msra.mxu0 0
  %4371 = vmatpush.bf16.msra.mxu0 0
  %4372 = vmatpush.bf16.msra.mxu0 0
  %4373 = vmatpush.bf16.msra.mxu0 0
  %4374 = vmatpush.bf16.msra.mxu0 %v4353
  %4375 = vmatpush.bf16.msra.mxu0 %v4352
  %4376 = vmatmul.bf16.gmra.mxu0 %v3478
  %v4377 = vpop.f32.mrf.mxu0
  %v4378 = vadd.f32 0.0, %v4377
  %v4379 = vpop.f32.mrf.mxu0
  %v4380 = vadd.f32 0.0, %v4379
  %4381 = vmatmul.bf16.gmra.mxu0 %v3481
  %v4382 = vpop.f32.mrf.mxu0
  %v4383 = vadd.f32 0.0, %v4382
  %v4384 = vpop.f32.mrf.mxu0
  %v4385 = vadd.f32 0.0, %v4384
  %4386 = vmatmul.bf16.gmra.mxu0 %v3484
  %v4387 = vpop.f32.mrf.mxu0
  %v4388 = vadd.f32 0.0, %v4387
  %v4389 = vpop.f32.mrf.mxu0
  %v4390 = vadd.f32 0.0, %v4389
  %4391 = vmatmul.bf16.gmra.mxu0 %v3487
  %v4392 = vpop.f32.mrf.mxu0
  %v4393 = vadd.f32 0.0, %v4392
  %v4394 = vpop.f32.mrf.mxu0
  %v4395 = vadd.f32 0.0, %v4394
  %4396 = vmatmul.bf16.gmra.mxu0 %v3490
  %v4397 = vpop.f32.mrf.mxu0
  %v4398 = vadd.f32 0.0, %v4397
  %v4399 = vpop.f32.mrf.mxu0
  %v4400 = vadd.f32 0.0, %v4399
  %4401 = vmatmul.bf16.gmra.mxu0 %v3493
  %v4402 = vpop.f32.mrf.mxu0
  %v4403 = vadd.f32 0.0, %v4402
  %v4404 = vpop.f32.mrf.mxu0
  %v4405 = vadd.f32 0.0, %v4404
  %4406 = vmatmul.bf16.gmra.mxu0 %v3496
  %v4407 = vpop.f32.mrf.mxu0
  %v4408 = vadd.f32 0.0, %v4407
  %v4409 = vpop.f32.mrf.mxu0
  %v4410 = vadd.f32 0.0, %v4409
  %4411 = vmatmul.bf16.gmra.mxu0 %v3499
  %v4412 = vpop.f32.mrf.mxu0
  %v4413 = vadd.f32 0.0, %v4412
  %v4414 = vpop.f32.mrf.mxu0
  %v4415 = vadd.f32 0.0, %v4414
  %4416 = vmatmul.bf16.gmra.mxu0 %v3502
  %v4417 = vpop.f32.mrf.mxu0
  %v4418 = vadd.f32 0.0, %v4417
  %v4419 = vpop.f32.mrf.mxu0
  %v4420 = vadd.f32 0.0, %v4419
  %4421 = vmatmul.bf16.gmra.mxu0 %v3505
  %v4422 = vpop.f32.mrf.mxu0
  %v4423 = vadd.f32 0.0, %v4422
  %v4424 = vpop.f32.mrf.mxu0
  %v4425 = vadd.f32 0.0, %v4424
  %4426 = vmatmul.bf16.gmra.mxu0 %v3508
  %v4427 = vpop.f32.mrf.mxu0
  %v4428 = vadd.f32 0.0, %v4427
  %v4429 = vpop.f32.mrf.mxu0
  %v4430 = vadd.f32 0.0, %v4429
  %4431 = vmatmul.bf16.gmra.mxu0 %v3511
  %v4432 = vpop.f32.mrf.mxu0
  %v4433 = vadd.f32 0.0, %v4432
  %v4434 = vpop.f32.mrf.mxu0
  %v4435 = vadd.f32 0.0, %v4434
  %4436 = vmatmul.bf16.gmra.mxu0 %v3514
  %v4437 = vpop.f32.mrf.mxu0
  %v4438 = vadd.f32 0.0, %v4437
  %v4439 = vpop.f32.mrf.mxu0
  %v4440 = vadd.f32 0.0, %v4439
  %4441 = vmatmul.bf16.gmra.mxu0 %v3517
  %v4442 = vpop.f32.mrf.mxu0
  %v4443 = vadd.f32 0.0, %v4442
  %v4444 = vpop.f32.mrf.mxu0
  %v4445 = vadd.f32 0.0, %v4444
  %4446 = vmatmul.bf16.gmra.mxu0 %v3520
  %v4447 = vpop.f32.mrf.mxu0
  %v4448 = vadd.f32 0.0, %v4447
  %v4449 = vpop.f32.mrf.mxu0
  %v4450 = vadd.f32 0.0, %v4449
  %4451 = vmatmul.bf16.gmra.mxu0 %v3523
  %v4452 = vpop.f32.mrf.mxu0
  %v4453 = vadd.f32 0.0, %v4452
  %v4454 = vpop.f32.mrf.mxu0
  %v4455 = vadd.f32 0.0, %v4454
  %4456 = vmatmul.bf16.gmra.mxu0 %v3526
  %v4457 = vpop.f32.mrf.mxu0
  %v4458 = vadd.f32 0.0, %v4457
  %v4459 = vpop.f32.mrf.mxu0
  %v4460 = vadd.f32 0.0, %v4459
  %4461 = vmatmul.bf16.gmra.mxu0 %v3529
  %v4462 = vpop.f32.mrf.mxu0
  %v4463 = vadd.f32 0.0, %v4462
  %v4464 = vpop.f32.mrf.mxu0
  %v4465 = vadd.f32 0.0, %v4464
  %4466 = vmatmul.bf16.gmra.mxu0 %v3532
  %v4467 = vpop.f32.mrf.mxu0
  %v4468 = vadd.f32 0.0, %v4467
  %v4469 = vpop.f32.mrf.mxu0
  %v4470 = vadd.f32 0.0, %v4469
  %4471 = vmatmul.bf16.gmra.mxu0 %v3535
  %v4472 = vpop.f32.mrf.mxu0
  %v4473 = vadd.f32 0.0, %v4472
  %v4474 = vpop.f32.mrf.mxu0
  %v4475 = vadd.f32 0.0, %v4474
  %4476 = vmatmul.bf16.gmra.mxu0 %v3538
  %v4477 = vpop.f32.mrf.mxu0
  %v4478 = vadd.f32 0.0, %v4477
  %v4479 = vpop.f32.mrf.mxu0
  %v4480 = vadd.f32 0.0, %v4479
  %4481 = vmatmul.bf16.gmra.mxu0 %v3541
  %v4482 = vpop.f32.mrf.mxu0
  %v4483 = vadd.f32 0.0, %v4482
  %v4484 = vpop.f32.mrf.mxu0
  %v4485 = vadd.f32 0.0, %v4484
  %4486 = vmatmul.bf16.gmra.mxu0 %v3544
  %v4487 = vpop.f32.mrf.mxu0
  %v4488 = vadd.f32 0.0, %v4487
  %v4489 = vpop.f32.mrf.mxu0
  %v4490 = vadd.f32 0.0, %v4489
  %4491 = vmatmul.bf16.gmra.mxu0 %v3547
  %v4492 = vpop.f32.mrf.mxu0
  %v4493 = vadd.f32 0.0, %v4492
  %v4494 = vpop.f32.mrf.mxu0
  %v4495 = vadd.f32 0.0, %v4494
  %4496 = vmatmul.bf16.gmra.mxu0 %v3550
  %v4497 = vpop.f32.mrf.mxu0
  %v4498 = vadd.f32 0.0, %v4497
  %v4499 = vpop.f32.mrf.mxu0
  %v4500 = vadd.f32 0.0, %v4499
  %4501 = vmatmul.bf16.gmra.mxu0 %v3553
  %v4502 = vpop.f32.mrf.mxu0
  %v4503 = vadd.f32 0.0, %v4502
  %v4504 = vpop.f32.mrf.mxu0
  %v4505 = vadd.f32 0.0, %v4504
  %4506 = vmatmul.bf16.gmra.mxu0 %v3556
  %v4507 = vpop.f32.mrf.mxu0
  %v4508 = vadd.f32 0.0, %v4507
  %v4509 = vpop.f32.mrf.mxu0
  %v4510 = vadd.f32 0.0, %v4509
  %4511 = vmatmul.bf16.gmra.mxu0 %v3559
  %v4512 = vpop.f32.mrf.mxu0
  %v4513 = vadd.f32 0.0, %v4512
  %v4514 = vpop.f32.mrf.mxu0
  %v4515 = vadd.f32 0.0, %v4514
  %4516 = vmatmul.bf16.gmra.mxu0 %v4357
  %v4517 = vpop.f32.mrf.mxu0
  %v4518 = vadd.f32 0.0, %v4517
  %v4519 = vpop.f32.mrf.mxu0
  %v4520 = vadd.f32 0.0, %v4519
  %4521 = vmatmul.bf16.gmra.mxu0 %v4360
  %v4522 = vpop.f32.mrf.mxu0
  %v4523 = vadd.f32 0.0, %v4522
  %v4524 = vpop.f32.mrf.mxu0
  %v4525 = vadd.f32 0.0, %v4524
  %4526 = vmatmul.bf16.gmra.mxu0 %v4363
  %v4527 = vpop.f32.mrf.mxu0
  %v4528 = vadd.f32 0.0, %v4527
  %v4529 = vpop.f32.mrf.mxu0
  %v4530 = vadd.f32 0.0, %v4529
  %4531 = vmatmul.bf16.gmra.mxu0 %v4366
  %v4532 = vpop.f32.mrf.mxu0
  %v4533 = vadd.f32 0.0, %v4532
  %v4534 = vpop.f32.mrf.mxu0
  %v4535 = vadd.f32 0.0, %v4534
  %4536 = vdwg.mxu0
  %v4537 = vadd.f32 %v4268, %v4378
  %v4538 = vadd.f32 %v4269, %v4380
  %v4539 = vadd.f32 %v4270, %v4383
  %v4540 = vadd.f32 %v4271, %v4385
  %v4541 = vadd.f32 %v4272, %v4388
  %v4542 = vadd.f32 %v4273, %v4390
  %v4543 = vadd.f32 %v4274, %v4393
  %v4544 = vadd.f32 %v4275, %v4395
  %v4545 = vadd.f32 %v4276, %v4398
  %v4546 = vadd.f32 %v4277, %v4400
  %v4547 = vadd.f32 %v4278, %v4403
  %v4548 = vadd.f32 %v4279, %v4405
  %v4549 = vadd.f32 %v4280, %v4408
  %v4550 = vadd.f32 %v4281, %v4410
  %v4551 = vadd.f32 %v4282, %v4413
  %v4552 = vadd.f32 %v4283, %v4415
  %v4553 = vadd.f32 %v4284, %v4418
  %v4554 = vadd.f32 %v4285, %v4420
  %v4555 = vadd.f32 %v4286, %v4423
  %v4556 = vadd.f32 %v4287, %v4425
  %v4557 = vadd.f32 %v4288, %v4428
  %v4558 = vadd.f32 %v4289, %v4430
  %v4559 = vadd.f32 %v4290, %v4433
  %v4560 = vadd.f32 %v4291, %v4435
  %v4561 = vadd.f32 %v4292, %v4438
  %v4562 = vadd.f32 %v4293, %v4440
  %v4563 = vadd.f32 %v4294, %v4443
  %v4564 = vadd.f32 %v4295, %v4445
  %v4565 = vadd.f32 %v4296, %v4448
  %v4566 = vadd.f32 %v4297, %v4450
  %v4567 = vadd.f32 %v4298, %v4453
  %v4568 = vadd.f32 %v4299, %v4455
  %v4569 = vadd.f32 %v4300, %v4458
  %v4570 = vadd.f32 %v4301, %v4460
  %v4571 = vadd.f32 %v4302, %v4463
  %v4572 = vadd.f32 %v4303, %v4465
  %v4573 = vadd.f32 %v4304, %v4468
  %v4574 = vadd.f32 %v4305, %v4470
  %v4575 = vadd.f32 %v4306, %v4473
  %v4576 = vadd.f32 %v4307, %v4475
  %v4577 = vadd.f32 %v4308, %v4478
  %v4578 = vadd.f32 %v4309, %v4480
  %v4579 = vadd.f32 %v4310, %v4483
  %v4580 = vadd.f32 %v4311, %v4485
  %v4581 = vadd.f32 %v4312, %v4488
  %v4582 = vadd.f32 %v4313, %v4490
  %v4583 = vadd.f32 %v4314, %v4493
  %v4584 = vadd.f32 %v4315, %v4495
  %v4585 = vadd.f32 %v4316, %v4498
  %v4586 = vadd.f32 %v4317, %v4500
  %v4587 = vadd.f32 %v4318, %v4503
  %v4588 = vadd.f32 %v4319, %v4505
  %v4589 = vadd.f32 %v4320, %v4508
  %v4590 = vadd.f32 %v4321, %v4510
  %v4591 = vadd.f32 %v4322, %v4513
  %v4592 = vadd.f32 %v4323, %v4515
  %v4593 = vadd.f32 %v4324, %v4518
  %v4594 = vadd.f32 %v4325, %v4520
  %v4595 = vadd.f32 %v4326, %v4523
  %v4596 = vadd.f32 %v4327, %v4525
  %v4597 = vadd.f32 %v4328, %v4528
  %v4598 = vadd.f32 %v4329, %v4530
  %v4599 = vadd.f32 %v4330, %v4533
  %v4600 = vadd.f32 %v4331, %v4535
  %v4601 = vld [vmem:[#allocation2 + $0x2d0] sm:$0xff]
  %v4602 = vld [vmem:[#allocation2 + $0x2d8] sm:$0xff]
  %v4603 = vld [vmem:[#allocation2 + $0x2e0] sm:$0xff]
  %v4604 = vld [vmem:[#allocation2 + $0x2e8] sm:$0xff]
  %v4605 = vld [vmem:[#allocation2 + $0x2f0] sm:$0xff]
  %v4606 = vld [vmem:[#allocation2 + $0x2f8] sm:$0xff]
  %v4607 = vld [vmem:[#allocation2 + $0x300] sm:$0xff]
  %v4608 = vld [vmem:[#allocation2 + $0x308] sm:$0xff]
  %v4609 = vpack.c.bf16 %v4602, %v4601
  %v4610 = vpack.c.bf16 %v4604, %v4603
  %v4611 = vpack.c.bf16 %v4606, %v4605
  %v4612 = vpack.c.bf16 %v4608, %v4607
  %v4617 = vunpack.c.l.b16 %v2655
  %v4618 = vunpack.c.l.b16 %v2656
  %v4619 = vunpack.c.l.b16 %v2657
  %v4620 = vunpack.c.l.b16 %v2658
  %v4621 = vpack.c.b16 %v4618, %v4617
  %v4622 = vpack.c.b16 %v4620, %v4619
  %v4626 = vsel %vm2466, %v4609, 0
  %v4629 = vsel %vm2466, %v4610, 0
  %v4632 = vsel %vm2466, %v4611, 0
  %v4635 = vsel %vm2466, %v4612, 0
  %4637 = vmatpush.bf16.msra.mxu0 0
  %4638 = vmatpush.bf16.msra.mxu0 0
  %4639 = vmatpush.bf16.msra.mxu0 0
  %4640 = vmatpush.bf16.msra.mxu0 0
  %4641 = vmatpush.bf16.msra.mxu0 0
  %4642 = vmatpush.bf16.msra.mxu0 0
  %4643 = vmatpush.bf16.msra.mxu0 %v4622
  %4644 = vmatpush.bf16.msra.mxu0 %v4621
  %4645 = vmatmul.bf16.gmra.mxu0 %v3117
  %v4646 = vpop.f32.mrf.mxu0
  %v4647 = vadd.f32 0.0, %v4646
  %v4648 = vpop.f32.mrf.mxu0
  %v4649 = vadd.f32 0.0, %v4648
  %4650 = vmatmul.bf16.gmra.mxu0 %v3120
  %v4651 = vpop.f32.mrf.mxu0
  %v4652 = vadd.f32 0.0, %v4651
  %v4653 = vpop.f32.mrf.mxu0
  %v4654 = vadd.f32 0.0, %v4653
  %4655 = vmatmul.bf16.gmra.mxu0 %v3123
  %v4656 = vpop.f32.mrf.mxu0
  %v4657 = vadd.f32 0.0, %v4656
  %v4658 = vpop.f32.mrf.mxu0
  %v4659 = vadd.f32 0.0, %v4658
  %4660 = vmatmul.bf16.gmra.mxu0 %v3126
  %v4661 = vpop.f32.mrf.mxu0
  %v4662 = vadd.f32 0.0, %v4661
  %v4663 = vpop.f32.mrf.mxu0
  %v4664 = vadd.f32 0.0, %v4663
  %4665 = vmatmul.bf16.gmra.mxu0 %v3129
  %v4666 = vpop.f32.mrf.mxu0
  %v4667 = vadd.f32 0.0, %v4666
  %v4668 = vpop.f32.mrf.mxu0
  %v4669 = vadd.f32 0.0, %v4668
  %4670 = vmatmul.bf16.gmra.mxu0 %v3132
  %v4671 = vpop.f32.mrf.mxu0
  %v4672 = vadd.f32 0.0, %v4671
  %v4673 = vpop.f32.mrf.mxu0
  %v4674 = vadd.f32 0.0, %v4673
  %4675 = vmatmul.bf16.gmra.mxu0 %v3135
  %v4676 = vpop.f32.mrf.mxu0
  %v4677 = vadd.f32 0.0, %v4676
  %v4678 = vpop.f32.mrf.mxu0
  %v4679 = vadd.f32 0.0, %v4678
  %4680 = vmatmul.bf16.gmra.mxu0 %v3138
  %v4681 = vpop.f32.mrf.mxu0
  %v4682 = vadd.f32 0.0, %v4681
  %v4683 = vpop.f32.mrf.mxu0
  %v4684 = vadd.f32 0.0, %v4683
  %4685 = vmatmul.bf16.gmra.mxu0 %v3141
  %v4686 = vpop.f32.mrf.mxu0
  %v4687 = vadd.f32 0.0, %v4686
  %v4688 = vpop.f32.mrf.mxu0
  %v4689 = vadd.f32 0.0, %v4688
  %4690 = vmatmul.bf16.gmra.mxu0 %v3144
  %v4691 = vpop.f32.mrf.mxu0
  %v4692 = vadd.f32 0.0, %v4691
  %v4693 = vpop.f32.mrf.mxu0
  %v4694 = vadd.f32 0.0, %v4693
  %4695 = vmatmul.bf16.gmra.mxu0 %v3147
  %v4696 = vpop.f32.mrf.mxu0
  %v4697 = vadd.f32 0.0, %v4696
  %v4698 = vpop.f32.mrf.mxu0
  %v4699 = vadd.f32 0.0, %v4698
  %4700 = vmatmul.bf16.gmra.mxu0 %v3150
  %v4701 = vpop.f32.mrf.mxu0
  %v4702 = vadd.f32 0.0, %v4701
  %v4703 = vpop.f32.mrf.mxu0
  %v4704 = vadd.f32 0.0, %v4703
  %4705 = vmatmul.bf16.gmra.mxu0 %v3153
  %v4706 = vpop.f32.mrf.mxu0
  %v4707 = vadd.f32 0.0, %v4706
  %v4708 = vpop.f32.mrf.mxu0
  %v4709 = vadd.f32 0.0, %v4708
  %4710 = vmatmul.bf16.gmra.mxu0 %v3156
  %v4711 = vpop.f32.mrf.mxu0
  %v4712 = vadd.f32 0.0, %v4711
  %v4713 = vpop.f32.mrf.mxu0
  %v4714 = vadd.f32 0.0, %v4713
  %4715 = vmatmul.bf16.gmra.mxu0 %v3159
  %v4716 = vpop.f32.mrf.mxu0
  %v4717 = vadd.f32 0.0, %v4716
  %v4718 = vpop.f32.mrf.mxu0
  %v4719 = vadd.f32 0.0, %v4718
  %4720 = vmatmul.bf16.gmra.mxu0 %v3162
  %v4721 = vpop.f32.mrf.mxu0
  %v4722 = vadd.f32 0.0, %v4721
  %v4723 = vpop.f32.mrf.mxu0
  %v4724 = vadd.f32 0.0, %v4723
  %4725 = vmatmul.bf16.gmra.mxu0 %v3165
  %v4726 = vpop.f32.mrf.mxu0
  %v4727 = vadd.f32 0.0, %v4726
  %v4728 = vpop.f32.mrf.mxu0
  %v4729 = vadd.f32 0.0, %v4728
  %4730 = vmatmul.bf16.gmra.mxu0 %v3168
  %v4731 = vpop.f32.mrf.mxu0
  %v4732 = vadd.f32 0.0, %v4731
  %v4733 = vpop.f32.mrf.mxu0
  %v4734 = vadd.f32 0.0, %v4733
  %4735 = vmatmul.bf16.gmra.mxu0 %v3171
  %v4736 = vpop.f32.mrf.mxu0
  %v4737 = vadd.f32 0.0, %v4736
  %v4738 = vpop.f32.mrf.mxu0
  %v4739 = vadd.f32 0.0, %v4738
  %4740 = vmatmul.bf16.gmra.mxu0 %v3174
  %v4741 = vpop.f32.mrf.mxu0
  %v4742 = vadd.f32 0.0, %v4741
  %v4743 = vpop.f32.mrf.mxu0
  %v4744 = vadd.f32 0.0, %v4743
  %4745 = vmatmul.bf16.gmra.mxu0 %v3177
  %v4746 = vpop.f32.mrf.mxu0
  %v4747 = vadd.f32 0.0, %v4746
  %v4748 = vpop.f32.mrf.mxu0
  %v4749 = vadd.f32 0.0, %v4748
  %4750 = vmatmul.bf16.gmra.mxu0 %v3180
  %v4751 = vpop.f32.mrf.mxu0
  %v4752 = vadd.f32 0.0, %v4751
  %v4753 = vpop.f32.mrf.mxu0
  %v4754 = vadd.f32 0.0, %v4753
  %4755 = vmatmul.bf16.gmra.mxu0 %v3183
  %v4756 = vpop.f32.mrf.mxu0
  %v4757 = vadd.f32 0.0, %v4756
  %v4758 = vpop.f32.mrf.mxu0
  %v4759 = vadd.f32 0.0, %v4758
  %4760 = vmatmul.bf16.gmra.mxu0 %v3186
  %v4761 = vpop.f32.mrf.mxu0
  %v4762 = vadd.f32 0.0, %v4761
  %v4763 = vpop.f32.mrf.mxu0
  %v4764 = vadd.f32 0.0, %v4763
  %4765 = vmatmul.bf16.gmra.mxu0 %v3819
  %v4766 = vpop.f32.mrf.mxu0
  %v4767 = vadd.f32 0.0, %v4766
  %v4768 = vpop.f32.mrf.mxu0
  %v4769 = vadd.f32 0.0, %v4768
  %4770 = vmatmul.bf16.gmra.mxu0 %v3822
  %v4771 = vpop.f32.mrf.mxu0
  %v4772 = vadd.f32 0.0, %v4771
  %v4773 = vpop.f32.mrf.mxu0
  %v4774 = vadd.f32 0.0, %v4773
  %4775 = vmatmul.bf16.gmra.mxu0 %v3825
  %v4776 = vpop.f32.mrf.mxu0
  %v4777 = vadd.f32 0.0, %v4776
  %v4778 = vpop.f32.mrf.mxu0
  %v4779 = vadd.f32 0.0, %v4778
  %4780 = vmatmul.bf16.gmra.mxu0 %v3828
  %v4781 = vpop.f32.mrf.mxu0
  %v4782 = vadd.f32 0.0, %v4781
  %v4783 = vpop.f32.mrf.mxu0
  %v4784 = vadd.f32 0.0, %v4783
  %4785 = vmatmul.bf16.gmra.mxu0 %v4626
  %v4786 = vpop.f32.mrf.mxu0
  %v4787 = vadd.f32 0.0, %v4786
  %v4788 = vpop.f32.mrf.mxu0
  %v4789 = vadd.f32 0.0, %v4788
  %4790 = vmatmul.bf16.gmra.mxu0 %v4629
  %v4791 = vpop.f32.mrf.mxu0
  %v4792 = vadd.f32 0.0, %v4791
  %v4793 = vpop.f32.mrf.mxu0
  %v4794 = vadd.f32 0.0, %v4793
  %4795 = vmatmul.bf16.gmra.mxu0 %v4632
  %v4796 = vpop.f32.mrf.mxu0
  %v4797 = vadd.f32 0.0, %v4796
  %v4798 = vpop.f32.mrf.mxu0
  %v4799 = vadd.f32 0.0, %v4798
  %4800 = vmatmul.bf16.gmra.mxu0 %v4635
  %v4801 = vpop.f32.mrf.mxu0
  %v4802 = vadd.f32 0.0, %v4801
  %v4803 = vpop.f32.mrf.mxu0
  %v4804 = vadd.f32 0.0, %v4803
  %4805 = vdwg.mxu0
  %v4806 = vadd.f32 %v4537, %v4647
  %v4807 = vadd.f32 %v4538, %v4649
  %v4808 = vadd.f32 %v4539, %v4652
  %v4809 = vadd.f32 %v4540, %v4654
  %v4810 = vadd.f32 %v4541, %v4657
  %v4811 = vadd.f32 %v4542, %v4659
  %v4812 = vadd.f32 %v4543, %v4662
  %v4813 = vadd.f32 %v4544, %v4664
  %v4814 = vadd.f32 %v4545, %v4667
  %v4815 = vadd.f32 %v4546, %v4669
  %v4816 = vadd.f32 %v4547, %v4672
  %v4817 = vadd.f32 %v4548, %v4674
  %v4818 = vadd.f32 %v4549, %v4677
  %v4819 = vadd.f32 %v4550, %v4679
  %v4820 = vadd.f32 %v4551, %v4682
  %v4821 = vadd.f32 %v4552, %v4684
  %v4822 = vadd.f32 %v4553, %v4687
  %v4823 = vadd.f32 %v4554, %v4689
  %v4824 = vadd.f32 %v4555, %v4692
  %v4825 = vadd.f32 %v4556, %v4694
  %v4826 = vadd.f32 %v4557, %v4697
  %v4827 = vadd.f32 %v4558, %v4699
  %v4828 = vadd.f32 %v4559, %v4702
  %v4829 = vadd.f32 %v4560, %v4704
  %v4830 = vadd.f32 %v4561, %v4707
  %v4831 = vadd.f32 %v4562, %v4709
  %v4832 = vadd.f32 %v4563, %v4712
  %v4833 = vadd.f32 %v4564, %v4714
  %v4834 = vadd.f32 %v4565, %v4717
  %v4835 = vadd.f32 %v4566, %v4719
  %v4836 = vadd.f32 %v4567, %v4722
  %v4837 = vadd.f32 %v4568, %v4724
  %v4838 = vadd.f32 %v4569, %v4727
  %v4839 = vadd.f32 %v4570, %v4729
  %v4840 = vadd.f32 %v4571, %v4732
  %v4841 = vadd.f32 %v4572, %v4734
  %v4842 = vadd.f32 %v4573, %v4737
  %v4843 = vadd.f32 %v4574, %v4739
  %v4844 = vadd.f32 %v4575, %v4742
  %v4845 = vadd.f32 %v4576, %v4744
  %v4846 = vadd.f32 %v4577, %v4747
  %v4847 = vadd.f32 %v4578, %v4749
  %v4848 = vadd.f32 %v4579, %v4752
  %v4849 = vadd.f32 %v4580, %v4754
  %v4850 = vadd.f32 %v4581, %v4757
  %v4851 = vadd.f32 %v4582, %v4759
  %v4852 = vadd.f32 %v4583, %v4762
  %v4853 = vadd.f32 %v4584, %v4764
  %v4854 = vadd.f32 %v4585, %v4767
  %v4855 = vadd.f32 %v4586, %v4769
  %v4856 = vadd.f32 %v4587, %v4772
  %v4857 = vadd.f32 %v4588, %v4774
  %v4858 = vadd.f32 %v4589, %v4777
  %v4859 = vadd.f32 %v4590, %v4779
  %v4860 = vadd.f32 %v4591, %v4782
  %v4861 = vadd.f32 %v4592, %v4784
  %v4862 = vadd.f32 %v4593, %v4787
  %v4863 = vadd.f32 %v4594, %v4789
  %v4864 = vadd.f32 %v4595, %v4792
  %v4865 = vadd.f32 %v4596, %v4794
  %v4866 = vadd.f32 %v4597, %v4797
  %v4867 = vadd.f32 %v4598, %v4799
  %v4868 = vadd.f32 %v4599, %v4802
  %v4869 = vadd.f32 %v4600, %v4804
  %v4870 = vld [vmem:[#allocation2 + $0x2d8] sm:$0xff]
  %v4871 = vld [vmem:[#allocation2 + $0x2e0] sm:$0xff]
  %v4872 = vld [vmem:[#allocation2 + $0x2e8] sm:$0xff]
  %v4873 = vld [vmem:[#allocation2 + $0x2f0] sm:$0xff]
  %v4874 = vld [vmem:[#allocation2 + $0x2f8] sm:$0xff]
  %v4875 = vld [vmem:[#allocation2 + $0x300] sm:$0xff]
  %v4876 = vld [vmem:[#allocation2 + $0x308] sm:$0xff]
  %v4877 = vld [vmem:[#allocation2 + $0x310] sm:$0xff]
  %v4878 = vpack.c.bf16 %v4871, %v4870
  %v4879 = vpack.c.bf16 %v4873, %v4872
  %v4880 = vpack.c.bf16 %v4875, %v4874
  %v4881 = vpack.c.bf16 %v4877, %v4876
  %v4886 = vunpack.c.l.b16 %v2659
  %v4887 = vunpack.c.l.b16 %v2660
  %v4888 = vunpack.c.l.b16 %v2661
  %v4889 = vunpack.c.l.b16 %v2662
  %v4890 = vpack.c.b16 %v4887, %v4886
  %v4891 = vpack.c.b16 %v4889, %v4888
  %v4895 = vsel %vm2466, %v4878, 0
  %v4898 = vsel %vm2466, %v4879, 0
  %v4901 = vsel %vm2466, %v4880, 0
  %v4904 = vsel %vm2466, %v4881, 0
  %4906 = vmatpush.bf16.msra.mxu0 0
  %4907 = vmatpush.bf16.msra.mxu0 0
  %4908 = vmatpush.bf16.msra.mxu0 0
  %4909 = vmatpush.bf16.msra.mxu0 0
  %4910 = vmatpush.bf16.msra.mxu0 0
  %4911 = vmatpush.bf16.msra.mxu0 0
  %4912 = vmatpush.bf16.msra.mxu0 %v4891
  %4913 = vmatpush.bf16.msra.mxu0 %v4890
  %4914 = vmatmul.bf16.gmra.mxu0 %v2840
  %v4915 = vpop.f32.mrf.mxu0
  %v4916 = vadd.f32 0.0, %v4915
  %v4917 = vpop.f32.mrf.mxu0
  %v4918 = vadd.f32 0.0, %v4917
  %4919 = vmatmul.bf16.gmra.mxu0 %v2843
  %v4920 = vpop.f32.mrf.mxu0
  %v4921 = vadd.f32 0.0, %v4920
  %v4922 = vpop.f32.mrf.mxu0
  %v4923 = vadd.f32 0.0, %v4922
  %4924 = vmatmul.bf16.gmra.mxu0 %v2846
  %v4925 = vpop.f32.mrf.mxu0
  %v4926 = vadd.f32 0.0, %v4925
  %v4927 = vpop.f32.mrf.mxu0
  %v4928 = vadd.f32 0.0, %v4927
  %4929 = vmatmul.bf16.gmra.mxu0 %v2849
  %v4930 = vpop.f32.mrf.mxu0
  %v4931 = vadd.f32 0.0, %v4930
  %v4932 = vpop.f32.mrf.mxu0
  %v4933 = vadd.f32 0.0, %v4932
  %4934 = vmatmul.bf16.gmra.mxu0 %v2852
  %v4935 = vpop.f32.mrf.mxu0
  %v4936 = vadd.f32 0.0, %v4935
  %v4937 = vpop.f32.mrf.mxu0
  %v4938 = vadd.f32 0.0, %v4937
  %4939 = vmatmul.bf16.gmra.mxu0 %v2855
  %v4940 = vpop.f32.mrf.mxu0
  %v4941 = vadd.f32 0.0, %v4940
  %v4942 = vpop.f32.mrf.mxu0
  %v4943 = vadd.f32 0.0, %v4942
  %4944 = vmatmul.bf16.gmra.mxu0 %v2858
  %v4945 = vpop.f32.mrf.mxu0
  %v4946 = vadd.f32 0.0, %v4945
  %v4947 = vpop.f32.mrf.mxu0
  %v4948 = vadd.f32 0.0, %v4947
  %4949 = vmatmul.bf16.gmra.mxu0 %v2861
  %v4950 = vpop.f32.mrf.mxu0
  %v4951 = vadd.f32 0.0, %v4950
  %v4952 = vpop.f32.mrf.mxu0
  %v4953 = vadd.f32 0.0, %v4952
  %4954 = vmatmul.bf16.gmra.mxu0 %v2864
  %v4955 = vpop.f32.mrf.mxu0
  %v4956 = vadd.f32 0.0, %v4955
  %v4957 = vpop.f32.mrf.mxu0
  %v4958 = vadd.f32 0.0, %v4957
  %4959 = vmatmul.bf16.gmra.mxu0 %v2867
  %v4960 = vpop.f32.mrf.mxu0
  %v4961 = vadd.f32 0.0, %v4960
  %v4962 = vpop.f32.mrf.mxu0
  %v4963 = vadd.f32 0.0, %v4962
  %4964 = vmatmul.bf16.gmra.mxu0 %v2870
  %v4965 = vpop.f32.mrf.mxu0
  %v4966 = vadd.f32 0.0, %v4965
  %v4967 = vpop.f32.mrf.mxu0
  %v4968 = vadd.f32 0.0, %v4967
  %4969 = vmatmul.bf16.gmra.mxu0 %v2873
  %v4970 = vpop.f32.mrf.mxu0
  %v4971 = vadd.f32 0.0, %v4970
  %v4972 = vpop.f32.mrf.mxu0
  %v4973 = vadd.f32 0.0, %v4972
  %4974 = vmatmul.bf16.gmra.mxu0 %v2876
  %v4975 = vpop.f32.mrf.mxu0
  %v4976 = vadd.f32 0.0, %v4975
  %v4977 = vpop.f32.mrf.mxu0
  %v4978 = vadd.f32 0.0, %v4977
  %4979 = vmatmul.bf16.gmra.mxu0 %v2879
  %v4980 = vpop.f32.mrf.mxu0
  %v4981 = vadd.f32 0.0, %v4980
  %v4982 = vpop.f32.mrf.mxu0
  %v4983 = vadd.f32 0.0, %v4982
  %4984 = vmatmul.bf16.gmra.mxu0 %v2882
  %v4985 = vpop.f32.mrf.mxu0
  %v4986 = vadd.f32 0.0, %v4985
  %v4987 = vpop.f32.mrf.mxu0
  %v4988 = vadd.f32 0.0, %v4987
  %4989 = vmatmul.bf16.gmra.mxu0 %v2885
  %v4990 = vpop.f32.mrf.mxu0
  %v4991 = vadd.f32 0.0, %v4990
  %v4992 = vpop.f32.mrf.mxu0
  %v4993 = vadd.f32 0.0, %v4992
  %4994 = vmatmul.bf16.gmra.mxu0 %v2888
  %v4995 = vpop.f32.mrf.mxu0
  %v4996 = vadd.f32 0.0, %v4995
  %v4997 = vpop.f32.mrf.mxu0
  %v4998 = vadd.f32 0.0, %v4997
  %4999 = vmatmul.bf16.gmra.mxu0 %v2891
  %v5000 = vpop.f32.mrf.mxu0
  %v5001 = vadd.f32 0.0, %v5000
  %v5002 = vpop.f32.mrf.mxu0
  %v5003 = vadd.f32 0.0, %v5002
  %5004 = vmatmul.bf16.gmra.mxu0 %v2894
  %v5005 = vpop.f32.mrf.mxu0
  %v5006 = vadd.f32 0.0, %v5005
  %v5007 = vpop.f32.mrf.mxu0
  %v5008 = vadd.f32 0.0, %v5007
  %5009 = vmatmul.bf16.gmra.mxu0 %v2897
  %v5010 = vpop.f32.mrf.mxu0
  %v5011 = vadd.f32 0.0, %v5010
  %v5012 = vpop.f32.mrf.mxu0
  %v5013 = vadd.f32 0.0, %v5012
  %5014 = vmatmul.bf16.gmra.mxu0 %v2900
  %v5015 = vpop.f32.mrf.mxu0
  %v5016 = vadd.f32 0.0, %v5015
  %v5017 = vpop.f32.mrf.mxu0
  %v5018 = vadd.f32 0.0, %v5017
  %5019 = vmatmul.bf16.gmra.mxu0 %v2903
  %v5020 = vpop.f32.mrf.mxu0
  %v5021 = vadd.f32 0.0, %v5020
  %v5022 = vpop.f32.mrf.mxu0
  %v5023 = vadd.f32 0.0, %v5022
  %5024 = vmatmul.bf16.gmra.mxu0 %v2906
  %v5025 = vpop.f32.mrf.mxu0
  %v5026 = vadd.f32 0.0, %v5025
  %v5027 = vpop.f32.mrf.mxu0
  %v5028 = vadd.f32 0.0, %v5027
  %5029 = vmatmul.bf16.gmra.mxu0 %v2909
  %v5030 = vpop.f32.mrf.mxu0
  %v5031 = vadd.f32 0.0, %v5030
  %v5032 = vpop.f32.mrf.mxu0
  %v5033 = vadd.f32 0.0, %v5032
  %5034 = vmatmul.bf16.gmra.mxu0 %v4088
  %v5035 = vpop.f32.mrf.mxu0
  %v5036 = vadd.f32 0.0, %v5035
  %v5037 = vpop.f32.mrf.mxu0
  %v5038 = vadd.f32 0.0, %v5037
  %5039 = vmatmul.bf16.gmra.mxu0 %v4091
  %v5040 = vpop.f32.mrf.mxu0
  %v5041 = vadd.f32 0.0, %v5040
  %v5042 = vpop.f32.mrf.mxu0
  %v5043 = vadd.f32 0.0, %v5042
  %5044 = vmatmul.bf16.gmra.mxu0 %v4094
  %v5045 = vpop.f32.mrf.mxu0
  %v5046 = vadd.f32 0.0, %v5045
  %v5047 = vpop.f32.mrf.mxu0
  %v5048 = vadd.f32 0.0, %v5047
  %5049 = vmatmul.bf16.gmra.mxu0 %v4097
  %v5050 = vpop.f32.mrf.mxu0
  %v5051 = vadd.f32 0.0, %v5050
  %v5052 = vpop.f32.mrf.mxu0
  %v5053 = vadd.f32 0.0, %v5052
  %5054 = vmatmul.bf16.gmra.mxu0 %v4895
  %v5055 = vpop.f32.mrf.mxu0
  %v5056 = vadd.f32 0.0, %v5055
  %v5057 = vpop.f32.mrf.mxu0
  %v5058 = vadd.f32 0.0, %v5057
  %5059 = vmatmul.bf16.gmra.mxu0 %v4898
  %v5060 = vpop.f32.mrf.mxu0
  %v5061 = vadd.f32 0.0, %v5060
  %v5062 = vpop.f32.mrf.mxu0
  %v5063 = vadd.f32 0.0, %v5062
  %5064 = vmatmul.bf16.gmra.mxu0 %v4901
  %v5065 = vpop.f32.mrf.mxu0
  %v5066 = vadd.f32 0.0, %v5065
  %v5067 = vpop.f32.mrf.mxu0
  %v5068 = vadd.f32 0.0, %v5067
  %5069 = vmatmul.bf16.gmra.mxu0 %v4904
  %v5070 = vpop.f32.mrf.mxu0
  %v5071 = vadd.f32 0.0, %v5070
  %v5072 = vpop.f32.mrf.mxu0
  %v5073 = vadd.f32 0.0, %v5072
  %5074 = vdwg.mxu0
  %v5075 = vadd.f32 %v4806, %v4916
  %v5076 = vadd.f32 %v4807, %v4918
  %v5077 = vadd.f32 %v4808, %v4921
  %v5078 = vadd.f32 %v4809, %v4923
  %v5079 = vadd.f32 %v4810, %v4926
  %v5080 = vadd.f32 %v4811, %v4928
  %v5081 = vadd.f32 %v4812, %v4931
  %v5082 = vadd.f32 %v4813, %v4933
  %v5083 = vadd.f32 %v4814, %v4936
  %v5084 = vadd.f32 %v4815, %v4938
  %v5085 = vadd.f32 %v4816, %v4941
  %v5086 = vadd.f32 %v4817, %v4943
  %v5087 = vadd.f32 %v4818, %v4946
  %v5088 = vadd.f32 %v4819, %v4948
  %v5089 = vadd.f32 %v4820, %v4951
  %v5090 = vadd.f32 %v4821, %v4953
  %v5091 = vadd.f32 %v4822, %v4956
  %v5092 = vadd.f32 %v4823, %v4958
  %v5093 = vadd.f32 %v4824, %v4961
  %v5094 = vadd.f32 %v4825, %v4963
  %v5095 = vadd.f32 %v4826, %v4966
  %v5096 = vadd.f32 %v4827, %v4968
  %v5097 = vadd.f32 %v4828, %v4971
  %v5098 = vadd.f32 %v4829, %v4973
  %v5099 = vadd.f32 %v4830, %v4976
  %v5100 = vadd.f32 %v4831, %v4978
  %v5101 = vadd.f32 %v4832, %v4981
  %v5102 = vadd.f32 %v4833, %v4983
  %v5103 = vadd.f32 %v4834, %v4986
  %v5104 = vadd.f32 %v4835, %v4988
  %v5105 = vadd.f32 %v4836, %v4991
  %v5106 = vadd.f32 %v4837, %v4993
  %v5107 = vadd.f32 %v4838, %v4996
  %v5108 = vadd.f32 %v4839, %v4998
  %v5109 = vadd.f32 %v4840, %v5001
  %v5110 = vadd.f32 %v4841, %v5003
  %v5111 = vadd.f32 %v4842, %v5006
  %v5112 = vadd.f32 %v4843, %v5008
  %v5113 = vadd.f32 %v4844, %v5011
  %v5114 = vadd.f32 %v4845, %v5013
  %v5115 = vadd.f32 %v4846, %v5016
  %v5116 = vadd.f32 %v4847, %v5018
  %v5117 = vadd.f32 %v4848, %v5021
  %v5118 = vadd.f32 %v4849, %v5023
  %v5119 = vadd.f32 %v4850, %v5026
  %v5120 = vadd.f32 %v4851, %v5028
  %v5121 = vadd.f32 %v4852, %v5031
  %v5122 = vadd.f32 %v4853, %v5033
  %v5123 = vadd.f32 %v4854, %v5036
  %v5124 = vadd.f32 %v4855, %v5038
  %v5125 = vadd.f32 %v4856, %v5041
  %v5126 = vadd.f32 %v4857, %v5043
  %v5127 = vadd.f32 %v4858, %v5046
  %v5128 = vadd.f32 %v4859, %v5048
  %v5129 = vadd.f32 %v4860, %v5051
  %v5130 = vadd.f32 %v4861, %v5053
  %v5131 = vadd.f32 %v4862, %v5056
  %v5132 = vadd.f32 %v4863, %v5058
  %v5133 = vadd.f32 %v4864, %v5061
  %v5134 = vadd.f32 %v4865, %v5063
  %v5135 = vadd.f32 %v4866, %v5066
  %v5136 = vadd.f32 %v4867, %v5068
  %v5137 = vadd.f32 %v4868, %v5071
  %v5138 = vadd.f32 %v4869, %v5073
  %v5139 = vld [vmem:[#allocation2 + $0x2e0] sm:$0xff]
  %v5140 = vld [vmem:[#allocation2 + $0x2e8] sm:$0xff]
  %v5141 = vld [vmem:[#allocation2 + $0x2f0] sm:$0xff]
  %v5142 = vld [vmem:[#allocation2 + $0x2f8] sm:$0xff]
  %v5143 = vld [vmem:[#allocation2 + $0x300] sm:$0xff]
  %v5144 = vld [vmem:[#allocation2 + $0x308] sm:$0xff]
  %v5145 = vld [vmem:[#allocation2 + $0x310] sm:$0xff]
  %v5146 = vld [vmem:[#allocation2 + $0x318] sm:$0xff]
  %v5147 = vpack.c.bf16 %v5140, %v5139
  %v5148 = vpack.c.bf16 %v5142, %v5141
  %v5149 = vpack.c.bf16 %v5144, %v5143
  %v5150 = vpack.c.bf16 %v5146, %v5145
  %v5155 = vunpack.c.l.b16 %v2663
  %v5156 = vunpack.c.l.b16 %v2664
  %v5157 = vunpack.c.l.b16 %v2665
  %v5158 = vunpack.c.l.b16 %v2666
  %v5159 = vpack.c.b16 %v5156, %v5155
  %v5160 = vpack.c.b16 %v5158, %v5157
  %v5164 = vsel %vm2466, %v5147, 0
  %v5167 = vsel %vm2466, %v5148, 0
  %v5170 = vsel %vm2466, %v5149, 0
  %v5173 = vsel %vm2466, %v5150, 0
  %5175 = vmatpush.bf16.msra.mxu0 0
  %5176 = vmatpush.bf16.msra.mxu0 0
  %5177 = vmatpush.bf16.msra.mxu0 0
  %5178 = vmatpush.bf16.msra.mxu0 0
  %5179 = vmatpush.bf16.msra.mxu0 0
  %5180 = vmatpush.bf16.msra.mxu0 0
  %5181 = vmatpush.bf16.msra.mxu0 %v5160
  %5182 = vmatpush.bf16.msra.mxu0 %v5159
  %5183 = vmatmul.bf16.gmra.mxu0 %v3490
  %v5184 = vpop.f32.mrf.mxu0
  %v5185 = vadd.f32 0.0, %v5184
  %v5186 = vpop.f32.mrf.mxu0
  %v5187 = vadd.f32 0.0, %v5186
  %5188 = vmatmul.bf16.gmra.mxu0 %v3493
  %v5189 = vpop.f32.mrf.mxu0
  %v5190 = vadd.f32 0.0, %v5189
  %v5191 = vpop.f32.mrf.mxu0
  %v5192 = vadd.f32 0.0, %v5191
  %5193 = vmatmul.bf16.gmra.mxu0 %v3496
  %v5194 = vpop.f32.mrf.mxu0
  %v5195 = vadd.f32 0.0, %v5194
  %v5196 = vpop.f32.mrf.mxu0
  %v5197 = vadd.f32 0.0, %v5196
  %5198 = vmatmul.bf16.gmra.mxu0 %v3499
  %v5199 = vpop.f32.mrf.mxu0
  %v5200 = vadd.f32 0.0, %v5199
  %v5201 = vpop.f32.mrf.mxu0
  %v5202 = vadd.f32 0.0, %v5201
  %5203 = vmatmul.bf16.gmra.mxu0 %v3502
  %v5204 = vpop.f32.mrf.mxu0
  %v5205 = vadd.f32 0.0, %v5204
  %v5206 = vpop.f32.mrf.mxu0
  %v5207 = vadd.f32 0.0, %v5206
  %5208 = vmatmul.bf16.gmra.mxu0 %v3505
  %v5209 = vpop.f32.mrf.mxu0
  %v5210 = vadd.f32 0.0, %v5209
  %v5211 = vpop.f32.mrf.mxu0
  %v5212 = vadd.f32 0.0, %v5211
  %5213 = vmatmul.bf16.gmra.mxu0 %v3508
  %v5214 = vpop.f32.mrf.mxu0
  %v5215 = vadd.f32 0.0, %v5214
  %v5216 = vpop.f32.mrf.mxu0
  %v5217 = vadd.f32 0.0, %v5216
  %5218 = vmatmul.bf16.gmra.mxu0 %v3511
  %v5219 = vpop.f32.mrf.mxu0
  %v5220 = vadd.f32 0.0, %v5219
  %v5221 = vpop.f32.mrf.mxu0
  %v5222 = vadd.f32 0.0, %v5221
  %5223 = vmatmul.bf16.gmra.mxu0 %v3514
  %v5224 = vpop.f32.mrf.mxu0
  %v5225 = vadd.f32 0.0, %v5224
  %v5226 = vpop.f32.mrf.mxu0
  %v5227 = vadd.f32 0.0, %v5226
  %5228 = vmatmul.bf16.gmra.mxu0 %v3517
  %v5229 = vpop.f32.mrf.mxu0
  %v5230 = vadd.f32 0.0, %v5229
  %v5231 = vpop.f32.mrf.mxu0
  %v5232 = vadd.f32 0.0, %v5231
  %5233 = vmatmul.bf16.gmra.mxu0 %v3520
  %v5234 = vpop.f32.mrf.mxu0
  %v5235 = vadd.f32 0.0, %v5234
  %v5236 = vpop.f32.mrf.mxu0
  %v5237 = vadd.f32 0.0, %v5236
  %5238 = vmatmul.bf16.gmra.mxu0 %v3523
  %v5239 = vpop.f32.mrf.mxu0
  %v5240 = vadd.f32 0.0, %v5239
  %v5241 = vpop.f32.mrf.mxu0
  %v5242 = vadd.f32 0.0, %v5241
  %5243 = vmatmul.bf16.gmra.mxu0 %v3526
  %v5244 = vpop.f32.mrf.mxu0
  %v5245 = vadd.f32 0.0, %v5244
  %v5246 = vpop.f32.mrf.mxu0
  %v5247 = vadd.f32 0.0, %v5246
  %5248 = vmatmul.bf16.gmra.mxu0 %v3529
  %v5249 = vpop.f32.mrf.mxu0
  %v5250 = vadd.f32 0.0, %v5249
  %v5251 = vpop.f32.mrf.mxu0
  %v5252 = vadd.f32 0.0, %v5251
  %5253 = vmatmul.bf16.gmra.mxu0 %v3532
  %v5254 = vpop.f32.mrf.mxu0
  %v5255 = vadd.f32 0.0, %v5254
  %v5256 = vpop.f32.mrf.mxu0
  %v5257 = vadd.f32 0.0, %v5256
  %5258 = vmatmul.bf16.gmra.mxu0 %v3535
  %v5259 = vpop.f32.mrf.mxu0
  %v5260 = vadd.f32 0.0, %v5259
  %v5261 = vpop.f32.mrf.mxu0
  %v5262 = vadd.f32 0.0, %v5261
  %5263 = vmatmul.bf16.gmra.mxu0 %v3538
  %v5264 = vpop.f32.mrf.mxu0
  %v5265 = vadd.f32 0.0, %v5264
  %v5266 = vpop.f32.mrf.mxu0
  %v5267 = vadd.f32 0.0, %v5266
  %5268 = vmatmul.bf16.gmra.mxu0 %v3541
  %v5269 = vpop.f32.mrf.mxu0
  %v5270 = vadd.f32 0.0, %v5269
  %v5271 = vpop.f32.mrf.mxu0
  %v5272 = vadd.f32 0.0, %v5271
  %5273 = vmatmul.bf16.gmra.mxu0 %v3544
  %v5274 = vpop.f32.mrf.mxu0
  %v5275 = vadd.f32 0.0, %v5274
  %v5276 = vpop.f32.mrf.mxu0
  %v5277 = vadd.f32 0.0, %v5276
  %5278 = vmatmul.bf16.gmra.mxu0 %v3547
  %v5279 = vpop.f32.mrf.mxu0
  %v5280 = vadd.f32 0.0, %v5279
  %v5281 = vpop.f32.mrf.mxu0
  %v5282 = vadd.f32 0.0, %v5281
  %5283 = vmatmul.bf16.gmra.mxu0 %v3550
  %v5284 = vpop.f32.mrf.mxu0
  %v5285 = vadd.f32 0.0, %v5284
  %v5286 = vpop.f32.mrf.mxu0
  %v5287 = vadd.f32 0.0, %v5286
  %5288 = vmatmul.bf16.gmra.mxu0 %v3553
  %v5289 = vpop.f32.mrf.mxu0
  %v5290 = vadd.f32 0.0, %v5289
  %v5291 = vpop.f32.mrf.mxu0
  %v5292 = vadd.f32 0.0, %v5291
  %5293 = vmatmul.bf16.gmra.mxu0 %v3556
  %v5294 = vpop.f32.mrf.mxu0
  %v5295 = vadd.f32 0.0, %v5294
  %v5296 = vpop.f32.mrf.mxu0
  %v5297 = vadd.f32 0.0, %v5296
  %5298 = vmatmul.bf16.gmra.mxu0 %v3559
  %v5299 = vpop.f32.mrf.mxu0
  %v5300 = vadd.f32 0.0, %v5299
  %v5301 = vpop.f32.mrf.mxu0
  %v5302 = vadd.f32 0.0, %v5301
  %5303 = vmatmul.bf16.gmra.mxu0 %v4357
  %v5304 = vpop.f32.mrf.mxu0
  %v5305 = vadd.f32 0.0, %v5304
  %v5306 = vpop.f32.mrf.mxu0
  %v5307 = vadd.f32 0.0, %v5306
  %5308 = vmatmul.bf16.gmra.mxu0 %v4360
  %v5309 = vpop.f32.mrf.mxu0
  %v5310 = vadd.f32 0.0, %v5309
  %v5311 = vpop.f32.mrf.mxu0
  %v5312 = vadd.f32 0.0, %v5311
  %5313 = vmatmul.bf16.gmra.mxu0 %v4363
  %v5314 = vpop.f32.mrf.mxu0
  %v5315 = vadd.f32 0.0, %v5314
  %v5316 = vpop.f32.mrf.mxu0
  %v5317 = vadd.f32 0.0, %v5316
  %5318 = vmatmul.bf16.gmra.mxu0 %v4366
  %v5319 = vpop.f32.mrf.mxu0
  %v5320 = vadd.f32 0.0, %v5319
  %v5321 = vpop.f32.mrf.mxu0
  %v5322 = vadd.f32 0.0, %v5321
  %5323 = vmatmul.bf16.gmra.mxu0 %v5164
  %v5324 = vpop.f32.mrf.mxu0
  %v5325 = vadd.f32 0.0, %v5324
  %v5326 = vpop.f32.mrf.mxu0
  %v5327 = vadd.f32 0.0, %v5326
  %5328 = vmatmul.bf16.gmra.mxu0 %v5167
  %v5329 = vpop.f32.mrf.mxu0
  %v5330 = vadd.f32 0.0, %v5329
  %v5331 = vpop.f32.mrf.mxu0
  %v5332 = vadd.f32 0.0, %v5331
  %5333 = vmatmul.bf16.gmra.mxu0 %v5170
  %v5334 = vpop.f32.mrf.mxu0
  %v5335 = vadd.f32 0.0, %v5334
  %v5336 = vpop.f32.mrf.mxu0
  %v5337 = vadd.f32 0.0, %v5336
  %5338 = vmatmul.bf16.gmra.mxu0 %v5173
  %v5339 = vpop.f32.mrf.mxu0
  %v5340 = vadd.f32 0.0, %v5339
  %v5341 = vpop.f32.mrf.mxu0
  %v5342 = vadd.f32 0.0, %v5341
  %5343 = vdwg.mxu0
  %v5344 = vadd.f32 %v5075, %v5185
  %v5345 = vadd.f32 %v5076, %v5187
  %v5346 = vadd.f32 %v5077, %v5190
  %v5347 = vadd.f32 %v5078, %v5192
  %v5348 = vadd.f32 %v5079, %v5195
  %v5349 = vadd.f32 %v5080, %v5197
  %v5350 = vadd.f32 %v5081, %v5200
  %v5351 = vadd.f32 %v5082, %v5202
  %v5352 = vadd.f32 %v5083, %v5205
  %v5353 = vadd.f32 %v5084, %v5207
  %v5354 = vadd.f32 %v5085, %v5210
  %v5355 = vadd.f32 %v5086, %v5212
  %v5356 = vadd.f32 %v5087, %v5215
  %v5357 = vadd.f32 %v5088, %v5217
  %v5358 = vadd.f32 %v5089, %v5220
  %v5359 = vadd.f32 %v5090, %v5222
  %v5360 = vadd.f32 %v5091, %v5225
  %v5361 = vadd.f32 %v5092, %v5227
  %v5362 = vadd.f32 %v5093, %v5230
  %v5363 = vadd.f32 %v5094, %v5232
  %v5364 = vadd.f32 %v5095, %v5235
  %v5365 = vadd.f32 %v5096, %v5237
  %v5366 = vadd.f32 %v5097, %v5240
  %v5367 = vadd.f32 %v5098, %v5242
  %v5368 = vadd.f32 %v5099, %v5245
  %v5369 = vadd.f32 %v5100, %v5247
  %v5370 = vadd.f32 %v5101, %v5250
  %v5371 = vadd.f32 %v5102, %v5252
  %v5372 = vadd.f32 %v5103, %v5255
  %v5373 = vadd.f32 %v5104, %v5257
  %v5374 = vadd.f32 %v5105, %v5260
  %v5375 = vadd.f32 %v5106, %v5262
  %v5376 = vadd.f32 %v5107, %v5265
  %v5377 = vadd.f32 %v5108, %v5267
  %v5378 = vadd.f32 %v5109, %v5270
  %v5379 = vadd.f32 %v5110, %v5272
  %v5380 = vadd.f32 %v5111, %v5275
  %v5381 = vadd.f32 %v5112, %v5277
  %v5382 = vadd.f32 %v5113, %v5280
  %v5383 = vadd.f32 %v5114, %v5282
  %v5384 = vadd.f32 %v5115, %v5285
  %v5385 = vadd.f32 %v5116, %v5287
  %v5386 = vadd.f32 %v5117, %v5290
  %v5387 = vadd.f32 %v5118, %v5292
  %v5388 = vadd.f32 %v5119, %v5295
  %v5389 = vadd.f32 %v5120, %v5297
  %v5390 = vadd.f32 %v5121, %v5300
  %v5391 = vadd.f32 %v5122, %v5302
  %v5392 = vadd.f32 %v5123, %v5305
  %v5393 = vadd.f32 %v5124, %v5307
  %v5394 = vadd.f32 %v5125, %v5310
  %v5395 = vadd.f32 %v5126, %v5312
  %v5396 = vadd.f32 %v5127, %v5315
  %v5397 = vadd.f32 %v5128, %v5317
  %v5398 = vadd.f32 %v5129, %v5320
  %v5399 = vadd.f32 %v5130, %v5322
  %v5400 = vadd.f32 %v5131, %v5325
  %v5401 = vadd.f32 %v5132, %v5327
  %v5402 = vadd.f32 %v5133, %v5330
  %v5403 = vadd.f32 %v5134, %v5332
  %v5404 = vadd.f32 %v5135, %v5335
  %v5405 = vadd.f32 %v5136, %v5337
  %v5406 = vadd.f32 %v5137, %v5340
  %v5407 = vadd.f32 %v5138, %v5342
  %v5408 = vld [vmem:[%s6] sm:$0x1]
  %v5410 = vperm.slane %v5408, 0
  %v5412 = vadd.f32 %v5344, %v5410
  %v5413 = vadd.f32 %v5345, %v5410
  %v5414 = vadd.f32 %v5346, %v5410
  %v5415 = vadd.f32 %v5347, %v5410
  %v5416 = vadd.f32 %v5348, %v5410
  %v5417 = vadd.f32 %v5349, %v5410
  %v5418 = vadd.f32 %v5350, %v5410
  %v5419 = vadd.f32 %v5351, %v5410
  %v5420 = vadd.f32 %v5352, %v5410
  %v5421 = vadd.f32 %v5353, %v5410
  %v5422 = vadd.f32 %v5354, %v5410
  %v5423 = vadd.f32 %v5355, %v5410
  %v5424 = vadd.f32 %v5356, %v5410
  %v5425 = vadd.f32 %v5357, %v5410
  %v5426 = vadd.f32 %v5358, %v5410
  %v5427 = vadd.f32 %v5359, %v5410
  %v5428 = vadd.f32 %v5360, %v5410
  %v5429 = vadd.f32 %v5361, %v5410
  %v5430 = vadd.f32 %v5362, %v5410
  %v5431 = vadd.f32 %v5363, %v5410
  %v5432 = vadd.f32 %v5364, %v5410
  %v5433 = vadd.f32 %v5365, %v5410
  %v5434 = vadd.f32 %v5366, %v5410
  %v5435 = vadd.f32 %v5367, %v5410
  %v5436 = vadd.f32 %v5368, %v5410
  %v5437 = vadd.f32 %v5369, %v5410
  %v5438 = vadd.f32 %v5370, %v5410
  %v5439 = vadd.f32 %v5371, %v5410
  %v5440 = vadd.f32 %v5372, %v5410
  %v5441 = vadd.f32 %v5373, %v5410
  %v5442 = vadd.f32 %v5374, %v5410
  %v5443 = vadd.f32 %v5375, %v5410
  %v5444 = vadd.f32 %v5376, %v5410
  %v5445 = vadd.f32 %v5377, %v5410
  %v5446 = vadd.f32 %v5378, %v5410
  %v5447 = vadd.f32 %v5379, %v5410
  %v5448 = vadd.f32 %v5380, %v5410
  %v5449 = vadd.f32 %v5381, %v5410
  %v5450 = vadd.f32 %v5382, %v5410
  %v5451 = vadd.f32 %v5383, %v5410
  %v5452 = vadd.f32 %v5384, %v5410
  %v5453 = vadd.f32 %v5385, %v5410
  %v5454 = vadd.f32 %v5386, %v5410
  %v5455 = vadd.f32 %v5387, %v5410
  %v5456 = vadd.f32 %v5388, %v5410
  %v5457 = vadd.f32 %v5389, %v5410
  %v5458 = vadd.f32 %v5390, %v5410
  %v5459 = vadd.f32 %v5391, %v5410
  %v5460 = vadd.f32 %v5392, %v5410
  %v5461 = vadd.f32 %v5393, %v5410
  %v5462 = vadd.f32 %v5394, %v5410
  %v5463 = vadd.f32 %v5395, %v5410
  %v5464 = vadd.f32 %v5396, %v5410
  %v5465 = vadd.f32 %v5397, %v5410
  %v5466 = vadd.f32 %v5398, %v5410
  %v5467 = vadd.f32 %v5399, %v5410
  %v5468 = vadd.f32 %v5400, %v5410
  %v5469 = vadd.f32 %v5401, %v5410
  %v5470 = vadd.f32 %v5402, %v5410
  %v5471 = vadd.f32 %v5403, %v5410
  %v5472 = vadd.f32 %v5404, %v5410
  %v5473 = vadd.f32 %v5405, %v5410
  %v5474 = vadd.f32 %v5406, %v5410
  %v5475 = vadd.f32 %v5407, %v5410
  %v5476 = vmax.f32 %v5412, 0.0
  %v5477 = vmax.f32 %v5413, 0.0
  %v5478 = vmax.f32 %v5414, 0.0
  %v5479 = vmax.f32 %v5415, 0.0
  %v5480 = vmax.f32 %v5416, 0.0
  %v5481 = vmax.f32 %v5417, 0.0
  %v5482 = vmax.f32 %v5418, 0.0
  %v5483 = vmax.f32 %v5419, 0.0
  %v5484 = vmax.f32 %v5420, 0.0
  %v5485 = vmax.f32 %v5421, 0.0
  %v5486 = vmax.f32 %v5422, 0.0
  %v5487 = vmax.f32 %v5423, 0.0
  %v5488 = vmax.f32 %v5424, 0.0
  %v5489 = vmax.f32 %v5425, 0.0
  %v5490 = vmax.f32 %v5426, 0.0
  %v5491 = vmax.f32 %v5427, 0.0
  %v5492 = vmax.f32 %v5428, 0.0
  %v5493 = vmax.f32 %v5429, 0.0
  %v5494 = vmax.f32 %v5430, 0.0
  %v5495 = vmax.f32 %v5431, 0.0
  %v5496 = vmax.f32 %v5432, 0.0
  %v5497 = vmax.f32 %v5433, 0.0
  %v5498 = vmax.f32 %v5434, 0.0
  %v5499 = vmax.f32 %v5435, 0.0
  %v5500 = vmax.f32 %v5436, 0.0
  %v5501 = vmax.f32 %v5437, 0.0
  %v5502 = vmax.f32 %v5438, 0.0
  %v5503 = vmax.f32 %v5439, 0.0
  %v5504 = vmax.f32 %v5440, 0.0
  %v5505 = vmax.f32 %v5441, 0.0
  %v5506 = vmax.f32 %v5442, 0.0
  %v5507 = vmax.f32 %v5443, 0.0
  %v5508 = vmax.f32 %v5444, 0.0
  %v5509 = vmax.f32 %v5445, 0.0
  %v5510 = vmax.f32 %v5446, 0.0
  %v5511 = vmax.f32 %v5447, 0.0
  %v5512 = vmax.f32 %v5448, 0.0
  %v5513 = vmax.f32 %v5449, 0.0
  %v5514 = vmax.f32 %v5450, 0.0
  %v5515 = vmax.f32 %v5451, 0.0
  %v5516 = vmax.f32 %v5452, 0.0
  %v5517 = vmax.f32 %v5453, 0.0
  %v5518 = vmax.f32 %v5454, 0.0
  %v5519 = vmax.f32 %v5455, 0.0
  %v5520 = vmax.f32 %v5456, 0.0
  %v5521 = vmax.f32 %v5457, 0.0
  %v5522 = vmax.f32 %v5458, 0.0
  %v5523 = vmax.f32 %v5459, 0.0
  %v5524 = vmax.f32 %v5460, 0.0
  %v5525 = vmax.f32 %v5461, 0.0
  %v5526 = vmax.f32 %v5462, 0.0
  %v5527 = vmax.f32 %v5463, 0.0
  %v5528 = vmax.f32 %v5464, 0.0
  %v5529 = vmax.f32 %v5465, 0.0
  %v5530 = vmax.f32 %v5466, 0.0
  %v5531 = vmax.f32 %v5467, 0.0
  %v5532 = vmax.f32 %v5468, 0.0
  %v5533 = vmax.f32 %v5469, 0.0
  %v5534 = vmax.f32 %v5470, 0.0
  %v5535 = vmax.f32 %v5471, 0.0
  %v5536 = vmax.f32 %v5472, 0.0
  %v5537 = vmax.f32 %v5473, 0.0
  %v5538 = vmax.f32 %v5474, 0.0
  %v5539 = vmax.f32 %v5475, 0.0
  %v5540 = vmax.f32 %v5476, %v5477
  %v5541 = vmax.f32 %v5484, %v5485
  %v5542 = vmax.f32 %v5540, %v5541
  %v5543 = vmax.f32 %v5478, %v5479
  %v5544 = vmax.f32 %v5486, %v5487
  %v5545 = vmax.f32 %v5543, %v5544
  %v5546 = vmax.f32 %v5480, %v5481
  %v5547 = vmax.f32 %v5488, %v5489
  %v5548 = vmax.f32 %v5546, %v5547
  %v5549 = vmax.f32 %v5482, %v5483
  %v5550 = vmax.f32 %v5490, %v5491
  %v5551 = vmax.f32 %v5549, %v5550
  %v5552 = vmax.f32 %v5492, %v5493
  %v5553 = vmax.f32 %v5500, %v5501
  %v5554 = vmax.f32 %v5552, %v5553
  %v5555 = vmax.f32 %v5494, %v5495
  %v5556 = vmax.f32 %v5502, %v5503
  %v5557 = vmax.f32 %v5555, %v5556
  %v5558 = vmax.f32 %v5496, %v5497
  %v5559 = vmax.f32 %v5504, %v5505
  %v5560 = vmax.f32 %v5558, %v5559
  %v5561 = vmax.f32 %v5498, %v5499
  %v5562 = vmax.f32 %v5506, %v5507
  %v5563 = vmax.f32 %v5561, %v5562
  %v5564 = vmax.f32 %v5508, %v5509
  %v5565 = vmax.f32 %v5516, %v5517
  %v5566 = vmax.f32 %v5564, %v5565
  %v5567 = vmax.f32 %v5510, %v5511
  %v5568 = vmax.f32 %v5518, %v5519
  %v5569 = vmax.f32 %v5567, %v5568
  %v5570 = vmax.f32 %v5512, %v5513
  %v5571 = vmax.f32 %v5520, %v5521
  %v5572 = vmax.f32 %v5570, %v5571
  %v5573 = vmax.f32 %v5514, %v5515
  %v5574 = vmax.f32 %v5522, %v5523
  %v5575 = vmax.f32 %v5573, %v5574
  %v5576 = vmax.f32 %v5524, %v5525
  %v5577 = vmax.f32 %v5532, %v5533
  %v5578 = vmax.f32 %v5576, %v5577
  %v5579 = vmax.f32 %v5526, %v5527
  %v5580 = vmax.f32 %v5534, %v5535
  %v5581 = vmax.f32 %v5579, %v5580
  %v5582 = vmax.f32 %v5528, %v5529
  %v5583 = vmax.f32 %v5536, %v5537
  %v5584 = vmax.f32 %v5582, %v5583
  %v5585 = vmax.f32 %v5530, %v5531
  %v5586 = vmax.f32 %v5538, %v5539
  %v5587 = vmax.f32 %v5585, %v5586
  %5589 = vrot.lane.b32.xlu0 %v5545, 64
  %v5590 = vpop.permute.xlu0 %5589
  %5593 = vrot.lane.b32.xlu0 %v5551, 64
  %v5594 = vpop.permute.xlu0 %5593
  %5597 = vrot.lane.b32.xlu0 %v5557, 64
  %v5598 = vpop.permute.xlu0 %5597
  %5601 = vrot.lane.b32.xlu0 %v5563, 64
  %v5602 = vpop.permute.xlu0 %5601
  %5605 = vrot.lane.b32.xlu0 %v5569, 64
  %v5606 = vpop.permute.xlu0 %5605
  %5609 = vrot.lane.b32.xlu0 %v5575, 64
  %v5610 = vpop.permute.xlu0 %5609
  %5613 = vrot.lane.b32.xlu0 %v5581, 64
  %v5614 = vpop.permute.xlu0 %5613
  %5617 = vrot.lane.b32.xlu0 %v5587, 64
  %v5618 = vpop.permute.xlu0 %5617
  %vm5620 = vcmask 523264
  %v5621 = vsel %vm5620, %v5542, %v5590
  %v5622 = vsel %vm5620, %v5548, %v5594
  %v5623 = vsel %vm5620, %v5554, %v5598
  %v5624 = vsel %vm5620, %v5560, %v5602
  %v5625 = vsel %vm5620, %v5566, %v5606
  %v5626 = vsel %vm5620, %v5572, %v5610
  %v5627 = vsel %vm5620, %v5578, %v5614
  %v5628 = vsel %vm5620, %v5584, %v5618
  %v5629 = vld [vmem:[%s7] sm:$0xf]
  %v5630 = vld [vmem:[%s7 + $0x4] sm:$0xf]
  %v5631 = vld [vmem:[%s7 + $0x8] sm:$0xf]
  %v5632 = vld [vmem:[%s7 + $0xc] sm:$0xf]
  %v5633 = vld [vmem:[%s7 + $0x10] sm:$0xf]
  %v5634 = vld [vmem:[%s7 + $0x14] sm:$0xf]
  %v5635 = vld [vmem:[%s7 + $0x18] sm:$0xf]
  %v5636 = vld [vmem:[%s7 + $0x1c] sm:$0xf]
  %v5637 = vld [vmem:[%s7 + $0x20] sm:$0xf]
  %v5638 = vld [vmem:[%s7 + $0x24] sm:$0xf]
  %v5639 = vld [vmem:[%s7 + $0x28] sm:$0xf]
  %v5640 = vld [vmem:[%s7 + $0x2c] sm:$0xf]
  %v5641 = vld [vmem:[%s7 + $0x30] sm:$0xf]
  %v5642 = vld [vmem:[%s7 + $0x34] sm:$0xf]
  %v5643 = vld [vmem:[%s7 + $0x38] sm:$0xf]
  %v5644 = vld [vmem:[%s7 + $0x3c] sm:$0xf]
  %v5645 = vld [vmem:[%s7 + $0x40] sm:$0xf]
  %v5646 = vld [vmem:[%s7 + $0x44] sm:$0xf]
  %v5647 = vld [vmem:[%s7 + $0x48] sm:$0xf]
  %v5648 = vld [vmem:[%s7 + $0x4c] sm:$0xf]
  %v5649 = vld [vmem:[%s7 + $0x50] sm:$0xf]
  %v5650 = vld [vmem:[%s7 + $0x54] sm:$0xf]
  %v5651 = vld [vmem:[%s7 + $0x58] sm:$0xf]
  %v5652 = vld [vmem:[%s7 + $0x5c] sm:$0xf]
  %v5653 = vld [vmem:[%s7 + $0x60] sm:$0xf]
  %v5654 = vld [vmem:[%s7 + $0x64] sm:$0xf]
  %v5655 = vld [vmem:[%s7 + $0x68] sm:$0xf]
  %v5656 = vld [vmem:[%s7 + $0x6c] sm:$0xf]
  %v5657 = vld [vmem:[%s7 + $0x70] sm:$0xf]
  %v5658 = vld [vmem:[%s7 + $0x74] sm:$0xf]
  %v5659 = vld [vmem:[%s7 + $0x78] sm:$0xf]
  %v5660 = vld [vmem:[%s7 + $0x7c] sm:$0xf]
  %v5661 = vld [vmem:[%s7 + $0x80] sm:$0xf]
  %v5662 = vld [vmem:[%s7 + $0x84] sm:$0xf]
  %v5663 = vld [vmem:[%s7 + $0x88] sm:$0xf]
  %v5664 = vld [vmem:[%s7 + $0x8c] sm:$0xf]
  %v5665 = vld [vmem:[%s7 + $0x90] sm:$0xf]
  %v5666 = vld [vmem:[%s7 + $0x94] sm:$0xf]
  %v5667 = vld [vmem:[%s7 + $0x98] sm:$0xf]
  %v5668 = vld [vmem:[%s7 + $0x9c] sm:$0xf]
  %v5669 = vld [vmem:[%s7 + $0xa0] sm:$0xf]
  %v5670 = vld [vmem:[%s7 + $0xa4] sm:$0xf]
  %v5671 = vld [vmem:[%s7 + $0xa8] sm:$0xf]
  %v5672 = vld [vmem:[%s7 + $0xac] sm:$0xf]
  %v5673 = vld [vmem:[%s7 + $0xb0] sm:$0xf]
  %v5674 = vld [vmem:[%s7 + $0xb4] sm:$0xf]
  %v5675 = vld [vmem:[%s7 + $0xb8] sm:$0xf]
  %v5676 = vld [vmem:[%s7 + $0xbc] sm:$0xf]
  %v5677 = vld [vmem:[%s7 + $0xc0] sm:$0xf]
  %v5678 = vld [vmem:[%s7 + $0xc4] sm:$0xf]
  %v5679 = vld [vmem:[%s7 + $0xc8] sm:$0xf]
  %v5680 = vld [vmem:[%s7 + $0xcc] sm:$0xf]
  %v5681 = vld [vmem:[%s7 + $0xd0] sm:$0xf]
  %v5682 = vld [vmem:[%s7 + $0xd4] sm:$0xf]
  %v5683 = vld [vmem:[%s7 + $0xd8] sm:$0xf]
  %v5684 = vld [vmem:[%s7 + $0xdc] sm:$0xf]
  %v5685 = vld [vmem:[%s7 + $0xe0] sm:$0xf]
  %v5686 = vld [vmem:[%s7 + $0xe4] sm:$0xf]
  %v5687 = vld [vmem:[%s7 + $0xe8] sm:$0xf]
  %v5688 = vld [vmem:[%s7 + $0xec] sm:$0xf]
  %v5689 = vld [vmem:[%s7 + $0xf0] sm:$0xf]
  %v5690 = vld [vmem:[%s7 + $0xf4] sm:$0xf]
  %v5691 = vld [vmem:[%s7 + $0xf8] sm:$0xf]
  %v5692 = vld [vmem:[%s7 + $0xfc] sm:$0xf]
  %v5693 = vld [vmem:[%s7 + $0x100] sm:$0xf]
  %v5694 = vld [vmem:[%s7 + $0x104] sm:$0xf]
  %v5695 = vld [vmem:[%s7 + $0x108] sm:$0xf]
  %v5696 = vld [vmem:[%s7 + $0x10c] sm:$0xf]
  %v5697 = vld [vmem:[%s7 + $0x110] sm:$0xf]
  %v5698 = vld [vmem:[%s7 + $0x114] sm:$0xf]
  %v5699 = vld [vmem:[%s7 + $0x118] sm:$0xf]
  %v5700 = vld [vmem:[%s7 + $0x11c] sm:$0xf]
  %v5701 = vld [vmem:[%s7 + $0x120] sm:$0xf]
  %v5702 = vld [vmem:[%s7 + $0x124] sm:$0xf]
  %v5703 = vld [vmem:[%s7 + $0x128] sm:$0xf]
  %v5704 = vld [vmem:[%s7 + $0x12c] sm:$0xf]
  %v5705 = vld [vmem:[%s7 + $0x130] sm:$0xf]
  %v5706 = vld [vmem:[%s7 + $0x134] sm:$0xf]
  %v5707 = vld [vmem:[%s7 + $0x138] sm:$0xf]
  %v5708 = vld [vmem:[%s7 + $0x13c] sm:$0xf]
  %v5709 = vld [vmem:[%s7 + $0x140] sm:$0xf]
  %v5710 = vld [vmem:[%s7 + $0x144] sm:$0xf]
  %v5711 = vld [vmem:[%s7 + $0x148] sm:$0xf]
  %v5712 = vld [vmem:[%s7 + $0x14c] sm:$0xf]
  %v5713 = vld [vmem:[%s7 + $0x150] sm:$0xf]
  %v5714 = vld [vmem:[%s7 + $0x154] sm:$0xf]
  %v5715 = vld [vmem:[%s7 + $0x158] sm:$0xf]
  %v5716 = vld [vmem:[%s7 + $0x15c] sm:$0xf]
  %v5717 = vld [vmem:[%s7 + $0x160] sm:$0xf]
  %v5718 = vld [vmem:[%s7 + $0x164] sm:$0xf]
  %v5719 = vld [vmem:[%s7 + $0x168] sm:$0xf]
  %v5720 = vld [vmem:[%s7 + $0x16c] sm:$0xf]
  %v5721 = vld [vmem:[%s7 + $0x170] sm:$0xf]
  %v5722 = vld [vmem:[%s7 + $0x174] sm:$0xf]
  %v5723 = vld [vmem:[%s7 + $0x178] sm:$0xf]
  %v5724 = vld [vmem:[%s7 + $0x17c] sm:$0xf]
  %v5725 = vld [vmem:[%s7 + $0x180] sm:$0xf]
  %v5726 = vld [vmem:[%s7 + $0x184] sm:$0xf]
  %v5727 = vld [vmem:[%s7 + $0x188] sm:$0xf]
  %v5728 = vld [vmem:[%s7 + $0x18c] sm:$0xf]
  %v5729 = vld [vmem:[%s7 + $0x190] sm:$0xf]
  %v5730 = vld [vmem:[%s7 + $0x194] sm:$0xf]
  %v5731 = vld [vmem:[%s7 + $0x198] sm:$0xf]
  %v5732 = vld [vmem:[%s7 + $0x19c] sm:$0xf]
  %v5733 = vld [vmem:[%s7 + $0x1a0] sm:$0xf]
  %v5734 = vld [vmem:[%s7 + $0x1a4] sm:$0xf]
  %v5735 = vld [vmem:[%s7 + $0x1a8] sm:$0xf]
  %v5736 = vld [vmem:[%s7 + $0x1ac] sm:$0xf]
  %v5737 = vld [vmem:[%s7 + $0x1b0] sm:$0xf]
  %v5738 = vld [vmem:[%s7 + $0x1b4] sm:$0xf]
  %v5739 = vld [vmem:[%s7 + $0x1b8] sm:$0xf]
  %v5740 = vld [vmem:[%s7 + $0x1bc] sm:$0xf]
  %v5741 = vld [vmem:[%s7 + $0x1c0] sm:$0xf]
  %v5742 = vld [vmem:[%s7 + $0x1c4] sm:$0xf]
  %v5743 = vld [vmem:[%s7 + $0x1c8] sm:$0xf]
  %v5744 = vld [vmem:[%s7 + $0x1cc] sm:$0xf]
  %v5745 = vld [vmem:[%s7 + $0x1d0] sm:$0xf]
  %v5746 = vld [vmem:[%s7 + $0x1d4] sm:$0xf]
  %v5747 = vld [vmem:[%s7 + $0x1d8] sm:$0xf]
  %v5748 = vld [vmem:[%s7 + $0x1dc] sm:$0xf]
  %v5749 = vld [vmem:[%s7 + $0x1e0] sm:$0xf]
  %v5750 = vld [vmem:[%s7 + $0x1e4] sm:$0xf]
  %v5751 = vld [vmem:[%s7 + $0x1e8] sm:$0xf]
  %v5752 = vld [vmem:[%s7 + $0x1ec] sm:$0xf]
  %v5753 = vld [vmem:[%s7 + $0x1f0] sm:$0xf]
  %v5754 = vld [vmem:[%s7 + $0x1f4] sm:$0xf]
  %v5755 = vld [vmem:[%s7 + $0x1f8] sm:$0xf]
  %v5756 = vld [vmem:[%s7 + $0x1fc] sm:$0xf]
  %v5757 = vpack.c.bf16 %v5621, %v5621
  %v5758 = vpack.c.bf16 %v5622, %v5622
  %v5759 = vpack.c.bf16 %v5623, %v5623
  %v5760 = vpack.c.bf16 %v5624, %v5624
  %v5761 = vpack.c.bf16 %v5625, %v5625
  %v5762 = vpack.c.bf16 %v5626, %v5626
  %v5763 = vpack.c.bf16 %v5627, %v5627
  %v5764 = vpack.c.bf16 %v5628, %v5628
  %v5765 = vld [vmem:[%s8] sm:$0x1]
  %v5767 = vperm.slane %v5765, 0
  %v5897 = vunpack.c.l.b16 %v5629
  %v5898 = vunpack.c.l.b16 %v5630
  %v5899 = vunpack.c.l.b16 %v5631
  %v5900 = vunpack.c.l.b16 %v5632
  %v5901 = vunpack.c.l.b16 %v5633
  %v5902 = vunpack.c.l.b16 %v5634
  %v5903 = vunpack.c.l.b16 %v5635
  %v5904 = vunpack.c.l.b16 %v5636
  %v5905 = vunpack.c.l.b16 %v5637
  %v5906 = vunpack.c.l.b16 %v5638
  %v5907 = vunpack.c.l.b16 %v5639
  %v5908 = vunpack.c.l.b16 %v5640
  %v5909 = vunpack.c.l.b16 %v5641
  %v5910 = vunpack.c.l.b16 %v5642
  %v5911 = vunpack.c.l.b16 %v5643
  %v5912 = vunpack.c.l.b16 %v5644
  %v5913 = vunpack.c.l.b16 %v5645
  %v5914 = vunpack.c.l.b16 %v5646
  %v5915 = vunpack.c.l.b16 %v5647
  %v5916 = vunpack.c.l.b16 %v5648
  %v5917 = vunpack.c.l.b16 %v5649
  %v5918 = vunpack.c.l.b16 %v5650
  %v5919 = vunpack.c.l.b16 %v5651
  %v5920 = vunpack.c.l.b16 %v5652
  %v5921 = vunpack.c.l.b16 %v5653
  %v5922 = vunpack.c.l.b16 %v5654
  %v5923 = vunpack.c.l.b16 %v5655
  %v5924 = vunpack.c.l.b16 %v5656
  %v5925 = vunpack.c.l.b16 %v5657
  %v5926 = vunpack.c.l.b16 %v5658
  %v5927 = vunpack.c.l.b16 %v5659
  %v5928 = vunpack.c.l.b16 %v5660
  %v5929 = vunpack.c.l.b16 %v5661
  %v5930 = vunpack.c.l.b16 %v5662
  %v5931 = vunpack.c.l.b16 %v5663
  %v5932 = vunpack.c.l.b16 %v5664
  %v5933 = vunpack.c.l.b16 %v5665
  %v5934 = vunpack.c.l.b16 %v5666
  %v5935 = vunpack.c.l.b16 %v5667
  %v5936 = vunpack.c.l.b16 %v5668
  %v5937 = vunpack.c.l.b16 %v5669
  %v5938 = vunpack.c.l.b16 %v5670
  %v5939 = vunpack.c.l.b16 %v5671
  %v5940 = vunpack.c.l.b16 %v5672
  %v5941 = vunpack.c.l.b16 %v5673
  %v5942 = vunpack.c.l.b16 %v5674
  %v5943 = vunpack.c.l.b16 %v5675
  %v5944 = vunpack.c.l.b16 %v5676
  %v5945 = vunpack.c.l.b16 %v5677
  %v5946 = vunpack.c.l.b16 %v5678
  %v5947 = vunpack.c.l.b16 %v5679
  %v5948 = vunpack.c.l.b16 %v5680
  %v5949 = vunpack.c.l.b16 %v5681
  %v5950 = vunpack.c.l.b16 %v5682
  %v5951 = vunpack.c.l.b16 %v5683
  %v5952 = vunpack.c.l.b16 %v5684
  %v5953 = vunpack.c.l.b16 %v5685
  %v5954 = vunpack.c.l.b16 %v5686
  %v5955 = vunpack.c.l.b16 %v5687
  %v5956 = vunpack.c.l.b16 %v5688
  %v5957 = vunpack.c.l.b16 %v5689
  %v5958 = vunpack.c.l.b16 %v5690
  %v5959 = vunpack.c.l.b16 %v5691
  %v5960 = vunpack.c.l.b16 %v5692
  %v5961 = vunpack.c.l.b16 %v5693
  %v5962 = vunpack.c.l.b16 %v5694
  %v5963 = vunpack.c.l.b16 %v5695
  %v5964 = vunpack.c.l.b16 %v5696
  %v5965 = vunpack.c.l.b16 %v5697
  %v5966 = vunpack.c.l.b16 %v5698
  %v5967 = vunpack.c.l.b16 %v5699
  %v5968 = vunpack.c.l.b16 %v5700
  %v5969 = vunpack.c.l.b16 %v5701
  %v5970 = vunpack.c.l.b16 %v5702
  %v5971 = vunpack.c.l.b16 %v5703
  %v5972 = vunpack.c.l.b16 %v5704
  %v5973 = vunpack.c.l.b16 %v5705
  %v5974 = vunpack.c.l.b16 %v5706
  %v5975 = vunpack.c.l.b16 %v5707
  %v5976 = vunpack.c.l.b16 %v5708
  %v5977 = vunpack.c.l.b16 %v5709
  %v5978 = vunpack.c.l.b16 %v5710
  %v5979 = vunpack.c.l.b16 %v5711
  %v5980 = vunpack.c.l.b16 %v5712
  %v5981 = vunpack.c.l.b16 %v5713
  %v5982 = vunpack.c.l.b16 %v5714
  %v5983 = vunpack.c.l.b16 %v5715
  %v5984 = vunpack.c.l.b16 %v5716
  %v5985 = vunpack.c.l.b16 %v5717
  %v5986 = vunpack.c.l.b16 %v5718
  %v5987 = vunpack.c.l.b16 %v5719
  %v5988 = vunpack.c.l.b16 %v5720
  %v5989 = vunpack.c.l.b16 %v5721
  %v5990 = vunpack.c.l.b16 %v5722
  %v5991 = vunpack.c.l.b16 %v5723
  %v5992 = vunpack.c.l.b16 %v5724
  %v5993 = vunpack.c.l.b16 %v5725
  %v5994 = vunpack.c.l.b16 %v5726
  %v5995 = vunpack.c.l.b16 %v5727
  %v5996 = vunpack.c.l.b16 %v5728
  %v5997 = vunpack.c.l.b16 %v5729
  %v5998 = vunpack.c.l.b16 %v5730
  %v5999 = vunpack.c.l.b16 %v5731
  %v6000 = vunpack.c.l.b16 %v5732
  %v6001 = vunpack.c.l.b16 %v5733
  %v6002 = vunpack.c.l.b16 %v5734
  %v6003 = vunpack.c.l.b16 %v5735
  %v6004 = vunpack.c.l.b16 %v5736
  %v6005 = vunpack.c.l.b16 %v5737
  %v6006 = vunpack.c.l.b16 %v5738
  %v6007 = vunpack.c.l.b16 %v5739
  %v6008 = vunpack.c.l.b16 %v5740
  %v6009 = vunpack.c.l.b16 %v5741
  %v6010 = vunpack.c.l.b16 %v5742
  %v6011 = vunpack.c.l.b16 %v5743
  %v6012 = vunpack.c.l.b16 %v5744
  %v6013 = vunpack.c.l.b16 %v5745
  %v6014 = vunpack.c.l.b16 %v5746
  %v6015 = vunpack.c.l.b16 %v5747
  %v6016 = vunpack.c.l.b16 %v5748
  %v6017 = vunpack.c.l.b16 %v5749
  %v6018 = vunpack.c.l.b16 %v5750
  %v6019 = vunpack.c.l.b16 %v5751
  %v6020 = vunpack.c.l.b16 %v5752
  %v6021 = vunpack.c.l.b16 %v5753
  %v6022 = vunpack.c.l.b16 %v5754
  %v6023 = vunpack.c.l.b16 %v5755
  %v6024 = vunpack.c.l.b16 %v5756
  %v6025 = vpack.c.b16 %v5898, %v5897
  %v6026 = vpack.c.b16 %v5900, %v5899
  %v6027 = vpack.c.b16 %v5902, %v5901
  %v6028 = vpack.c.b16 %v5904, %v5903
  %v6029 = vpack.c.b16 %v5906, %v5905
  %v6030 = vpack.c.b16 %v5908, %v5907
  %v6031 = vpack.c.b16 %v5910, %v5909
  %v6032 = vpack.c.b16 %v5912, %v5911
  %v6033 = vpack.c.b16 %v5914, %v5913
  %v6034 = vpack.c.b16 %v5916, %v5915
  %v6035 = vpack.c.b16 %v5918, %v5917
  %v6036 = vpack.c.b16 %v5920, %v5919
  %v6037 = vpack.c.b16 %v5922, %v5921
  %v6038 = vpack.c.b16 %v5924, %v5923
  %v6039 = vpack.c.b16 %v5926, %v5925
  %v6040 = vpack.c.b16 %v5928, %v5927
  %v6041 = vpack.c.b16 %v5930, %v5929
  %v6042 = vpack.c.b16 %v5932, %v5931
  %v6043 = vpack.c.b16 %v5934, %v5933
  %v6044 = vpack.c.b16 %v5936, %v5935
  %v6045 = vpack.c.b16 %v5938, %v5937
  %v6046 = vpack.c.b16 %v5940, %v5939
  %v6047 = vpack.c.b16 %v5942, %v5941
  %v6048 = vpack.c.b16 %v5944, %v5943
  %v6049 = vpack.c.b16 %v5946, %v5945
  %v6050 = vpack.c.b16 %v5948, %v5947
  %v6051 = vpack.c.b16 %v5950, %v5949
  %v6052 = vpack.c.b16 %v5952, %v5951
  %v6053 = vpack.c.b16 %v5954, %v5953
  %v6054 = vpack.c.b16 %v5956, %v5955
  %v6055 = vpack.c.b16 %v5958, %v5957
  %v6056 = vpack.c.b16 %v5960, %v5959
  %v6057 = vpack.c.b16 %v5962, %v5961
  %v6058 = vpack.c.b16 %v5964, %v5963
  %v6059 = vpack.c.b16 %v5966, %v5965
  %v6060 = vpack.c.b16 %v5968, %v5967
  %v6061 = vpack.c.b16 %v5970, %v5969
  %v6062 = vpack.c.b16 %v5972, %v5971
  %v6063 = vpack.c.b16 %v5974, %v5973
  %v6064 = vpack.c.b16 %v5976, %v5975
  %v6065 = vpack.c.b16 %v5978, %v5977
  %v6066 = vpack.c.b16 %v5980, %v5979
  %v6067 = vpack.c.b16 %v5982, %v5981
  %v6068 = vpack.c.b16 %v5984, %v5983
  %v6069 = vpack.c.b16 %v5986, %v5985
  %v6070 = vpack.c.b16 %v5988, %v5987
  %v6071 = vpack.c.b16 %v5990, %v5989
  %v6072 = vpack.c.b16 %v5992, %v5991
  %v6073 = vpack.c.b16 %v5994, %v5993
  %v6074 = vpack.c.b16 %v5996, %v5995
  %v6075 = vpack.c.b16 %v5998, %v5997
  %v6076 = vpack.c.b16 %v6000, %v5999
  %v6077 = vpack.c.b16 %v6002, %v6001
  %v6078 = vpack.c.b16 %v6004, %v6003
  %v6079 = vpack.c.b16 %v6006, %v6005
  %v6080 = vpack.c.b16 %v6008, %v6007
  %v6081 = vpack.c.b16 %v6010, %v6009
  %v6082 = vpack.c.b16 %v6012, %v6011
  %v6083 = vpack.c.b16 %v6014, %v6013
  %v6084 = vpack.c.b16 %v6016, %v6015
  %v6085 = vpack.c.b16 %v6018, %v6017
  %v6086 = vpack.c.b16 %v6020, %v6019
  %v6087 = vpack.c.b16 %v6022, %v6021
  %v6088 = vpack.c.b16 %v6024, %v6023
  %6153 = vmatpush.bf16.msra.mxu0 %v6032
  %6154 = vmatpush.bf16.msra.mxu0 %v6031
  %6155 = vmatpush.bf16.msra.mxu0 %v6030
  %6156 = vmatpush.bf16.msra.mxu0 %v6029
  %6157 = vmatpush.bf16.msra.mxu0 %v6028
  %6158 = vmatpush.bf16.msra.mxu0 %v6027
  %6159 = vmatpush.bf16.msra.mxu0 %v6026
  %6160 = vmatpush.bf16.msra.mxu0 %v6025
  %6161 = vmatmul.bf16.gmra.mxu0 %v5757
  %v6162 = vpop.f32.mrf.mxu0
  %v6163 = vadd.f32 %v5767, %v6162
  %v6164 = vpop.f32.mrf.mxu0
  %6165 = vdwg.mxu0
  %6166 = vmatpush.bf16.msra.mxu0 %v6040
  %6167 = vmatpush.bf16.msra.mxu0 %v6039
  %6168 = vmatpush.bf16.msra.mxu0 %v6038
  %6169 = vmatpush.bf16.msra.mxu0 %v6037
  %6170 = vmatpush.bf16.msra.mxu0 %v6036
  %6171 = vmatpush.bf16.msra.mxu0 %v6035
  %6172 = vmatpush.bf16.msra.mxu0 %v6034
  %6173 = vmatpush.bf16.msra.mxu0 %v6033
  %6174 = vmatmul.bf16.gmra.mxu0 %v5758
  %v6175 = vpop.f32.mrf.mxu0
  %v6176 = vadd.f32 %v6163, %v6175
  %v6177 = vpop.f32.mrf.mxu0
  %6178 = vdwg.mxu0
  %6179 = vmatpush.bf16.msra.mxu0 %v6048
  %6180 = vmatpush.bf16.msra.mxu0 %v6047
  %6181 = vmatpush.bf16.msra.mxu0 %v6046
  %6182 = vmatpush.bf16.msra.mxu0 %v6045
  %6183 = vmatpush.bf16.msra.mxu0 %v6044
  %6184 = vmatpush.bf16.msra.mxu0 %v6043
  %6185 = vmatpush.bf16.msra.mxu0 %v6042
  %6186 = vmatpush.bf16.msra.mxu0 %v6041
  %6187 = vmatmul.bf16.gmra.mxu0 %v5759
  %v6188 = vpop.f32.mrf.mxu0
  %v6189 = vadd.f32 %v6176, %v6188
  %v6190 = vpop.f32.mrf.mxu0
  %6191 = vdwg.mxu0
  %6192 = vmatpush.bf16.msra.mxu0 %v6056
  %6193 = vmatpush.bf16.msra.mxu0 %v6055
  %6194 = vmatpush.bf16.msra.mxu0 %v6054
  %6195 = vmatpush.bf16.msra.mxu0 %v6053
  %6196 = vmatpush.bf16.msra.mxu0 %v6052
  %6197 = vmatpush.bf16.msra.mxu0 %v6051
  %6198 = vmatpush.bf16.msra.mxu0 %v6050
  %6199 = vmatpush.bf16.msra.mxu0 %v6049
  %6200 = vmatmul.bf16.gmra.mxu0 %v5760
  %v6201 = vpop.f32.mrf.mxu0
  %v6202 = vadd.f32 %v6189, %v6201
  %v6203 = vpop.f32.mrf.mxu0
  %6204 = vdwg.mxu0
  %6205 = vmatpush.bf16.msra.mxu0 %v6064
  %6206 = vmatpush.bf16.msra.mxu0 %v6063
  %6207 = vmatpush.bf16.msra.mxu0 %v6062
  %6208 = vmatpush.bf16.msra.mxu0 %v6061
  %6209 = vmatpush.bf16.msra.mxu0 %v6060
  %6210 = vmatpush.bf16.msra.mxu0 %v6059
  %6211 = vmatpush.bf16.msra.mxu0 %v6058
  %6212 = vmatpush.bf16.msra.mxu0 %v6057
  %6213 = vmatmul.bf16.gmra.mxu0 %v5761
  %v6214 = vpop.f32.mrf.mxu0
  %v6215 = vadd.f32 %v6202, %v6214
  %v6216 = vpop.f32.mrf.mxu0
  %6217 = vdwg.mxu0
  %6218 = vmatpush.bf16.msra.mxu0 %v6072
  %6219 = vmatpush.bf16.msra.mxu0 %v6071
  %6220 = vmatpush.bf16.msra.mxu0 %v6070
  %6221 = vmatpush.bf16.msra.mxu0 %v6069
  %6222 = vmatpush.bf16.msra.mxu0 %v6068
  %6223 = vmatpush.bf16.msra.mxu0 %v6067
  %6224 = vmatpush.bf16.msra.mxu0 %v6066
  %6225 = vmatpush.bf16.msra.mxu0 %v6065
  %6226 = vmatmul.bf16.gmra.mxu0 %v5762
  %v6227 = vpop.f32.mrf.mxu0
  %v6228 = vadd.f32 %v6215, %v6227
  %v6229 = vpop.f32.mrf.mxu0
  %6230 = vdwg.mxu0
  %6231 = vmatpush.bf16.msra.mxu0 %v6080
  %6232 = vmatpush.bf16.msra.mxu0 %v6079
  %6233 = vmatpush.bf16.msra.mxu0 %v6078
  %6234 = vmatpush.bf16.msra.mxu0 %v6077
  %6235 = vmatpush.bf16.msra.mxu0 %v6076
  %6236 = vmatpush.bf16.msra.mxu0 %v6075
  %6237 = vmatpush.bf16.msra.mxu0 %v6074
  %6238 = vmatpush.bf16.msra.mxu0 %v6073
  %6239 = vmatmul.bf16.gmra.mxu0 %v5763
  %v6240 = vpop.f32.mrf.mxu0
  %v6241 = vadd.f32 %v6228, %v6240
  %v6242 = vpop.f32.mrf.mxu0
  %6243 = vdwg.mxu0
  %6244 = vmatpush.bf16.msra.mxu0 %v6088
  %6245 = vmatpush.bf16.msra.mxu0 %v6087
  %6246 = vmatpush.bf16.msra.mxu0 %v6086
  %6247 = vmatpush.bf16.msra.mxu0 %v6085
  %6248 = vmatpush.bf16.msra.mxu0 %v6084
  %6249 = vmatpush.bf16.msra.mxu0 %v6083
  %6250 = vmatpush.bf16.msra.mxu0 %v6082
  %6251 = vmatpush.bf16.msra.mxu0 %v6081
  %6252 = vmatmul.bf16.gmra.mxu0 %v5764
  %v6253 = vpop.f32.mrf.mxu0
  %v6254 = vadd.f32 %v6241, %v6253
  %v6255 = vpop.f32.mrf.mxu0
  %6256 = vdwg.mxu0
  %v6257 = vmax.f32 %v6254, 0.0
  %v6258 = vld [vmem:[%s1] sm:$0xff]
  %v6259 = vld [vmem:[%s9] sm:$0xf]
  %v6260 = vld [vmem:[%s9 + $0x4] sm:$0xf]
  %v6261 = vpack.c.bf16 %v6258, %v6258
  %v6262 = vld [vmem:[%s10] sm:$0x1]
  %v6264 = vperm.slane %v6262, 0
  %v6268 = vunpack.c.l.b16 %v6259
  %v6269 = vunpack.c.l.b16 %v6260
  %v6270 = vpack.c.b16 %v6269, %v6268
  %vm6272 = vcmask 130048
  %v6274 = vsel %vm6272, %v6261, 0
  %6276 = vmatpush.bf16.msra.mxu0 0
  %6277 = vmatpush.bf16.msra.mxu0 0
  %6278 = vmatpush.bf16.msra.mxu0 0
  %6279 = vmatpush.bf16.msra.mxu0 0
  %6280 = vmatpush.bf16.msra.mxu0 0
  %6281 = vmatpush.bf16.msra.mxu0 0
  %6282 = vmatpush.bf16.msra.mxu0 0
  %6283 = vmatpush.bf16.msra.mxu0 %v6270
  %6284 = vmatmul.bf16.gmra.mxu0 %v6274
  %v6285 = vpop.f32.mrf.mxu0
  %v6286 = vadd.f32 %v6264, %v6285
  %v6287 = vpop.f32.mrf.mxu0
  %6288 = vdwg.mxu0
  %v6289 = vmax.f32 %v6286, 0.0
  %v6290 = vld [vmem:[%s2] sm:$0xf]
  %v6291 = vld [vmem:[%s2 + $0x4] sm:$0xf]
  %v6292 = vld [vmem:[%s2 + $0x8] sm:$0xf]
  %v6293 = vld [vmem:[%s2 + $0xc] sm:$0xf]
  %v6294 = vld [vmem:[%s2 + $0x10] sm:$0xf]
  %v6295 = vld [vmem:[%s2 + $0x14] sm:$0xf]
  %v6296 = vld [vmem:[%s2 + $0x18] sm:$0xf]
  %v6297 = vld [vmem:[%s2 + $0x1c] sm:$0xf]
  %v6298 = vld [vmem:[%s11] sm:$0xf]
  %v6299 = vld [vmem:[%s13] sm:$0x1]
  %v6301 = vperm.slane %v6299, 0
  %v6311 = vunpack.c.l.b16 %v6290
  %v6312 = vunpack.c.l.b16 %v6291
  %v6313 = vunpack.c.l.b16 %v6292
  %v6314 = vunpack.c.l.b16 %v6293
  %v6315 = vunpack.c.l.b16 %v6294
  %v6316 = vunpack.c.l.b16 %v6295
  %v6317 = vunpack.c.l.b16 %v6296
  %v6318 = vunpack.c.l.b16 %v6297
  %v6319 = vpack.c.b16 %v6312, %v6311
  %v6320 = vpack.c.b16 %v6314, %v6313
  %v6321 = vpack.c.b16 %v6316, %v6315
  %v6322 = vpack.c.b16 %v6318, %v6317
  %vm6323 = vcmask 64512
  %v6325 = vsel %vm6323, %v6319, 0
  %v6328 = vsel %vm6323, %v6320, 0
  %v6331 = vsel %vm6323, %v6321, 0
  %v6334 = vsel %vm6323, %v6322, 0
  %vm6336 = vcmask 1043456
  %v6338 = vsel %vm6336, %v6298, 0
  %6340 = vmatpush.bf16.msra.mxu0 0
  %6341 = vmatpush.bf16.msra.mxu0 0
  %6342 = vmatpush.bf16.msra.mxu0 0
  %6343 = vmatpush.bf16.msra.mxu0 0
  %6344 = vmatpush.bf16.msra.mxu0 0
  %6345 = vmatpush.bf16.msra.mxu0 0
  %6346 = vmatpush.bf16.msra.mxu0 0
  %6347 = vmatpush.bf16.msra.mxu0 %v6338
  %6348 = vmatmul.bf16.gmra.mxu0 %v6325
  %v6349 = vpop.f32.mrf.mxu0
  %v6350 = vadd.f32 %v6301, %v6349
  %v6351 = vpop.f32.mrf.mxu0
  %v6352 = vadd.f32 %v6301, %v6351
  %6353 = vmatmul.bf16.gmra.mxu0 %v6328
  %v6354 = vpop.f32.mrf.mxu0
  %v6355 = vadd.f32 %v6301, %v6354
  %v6356 = vpop.f32.mrf.mxu0
  %v6357 = vadd.f32 %v6301, %v6356
  %6358 = vmatmul.bf16.gmra.mxu0 %v6331
  %v6359 = vpop.f32.mrf.mxu0
  %v6360 = vadd.f32 %v6301, %v6359
  %v6361 = vpop.f32.mrf.mxu0
  %v6362 = vadd.f32 %v6301, %v6361
  %6363 = vmatmul.bf16.gmra.mxu0 %v6334
  %v6364 = vpop.f32.mrf.mxu0
  %v6365 = vadd.f32 %v6301, %v6364
  %v6366 = vpop.f32.mrf.mxu0
  %v6367 = vadd.f32 %v6301, %v6366
  %6368 = vdwg.mxu0
  %v6369 = vld [vmem:[%s12] sm:$0xf]
  %v6370 = vld [vmem:[%s12 + $0x4] sm:$0xf]
  %v6371 = vld [vmem:[%s12 + $0x8] sm:$0xf]
  %v6372 = vld [vmem:[%s12 + $0xc] sm:$0xf]
  %v6373 = vld [vmem:[%s14] sm:$0xf]
  %v6374 = vld [vmem:[%s14 + $0x4] sm:$0xf]
  %v6375 = vld [vmem:[%s14 + $0x8] sm:$0xf]
  %v6376 = vld [vmem:[%s14 + $0xc] sm:$0xf]
  %v6377 = vld [vmem:[%s14 + $0x10] sm:$0xf]
  %v6378 = vld [vmem:[%s14 + $0x14] sm:$0xf]
  %v6379 = vld [vmem:[%s14 + $0x18] sm:$0xf]
  %v6380 = vld [vmem:[%s14 + $0x1c] sm:$0xf]
  %v6381 = vld [vmem:[%s15] sm:$0x1]
  %v6386 = vunpack.c.l.b16 %v6369
  %v6387 = vunpack.c.l.b16 %v6370
  %v6388 = vunpack.c.l.b16 %v6371
  %v6389 = vunpack.c.l.b16 %v6372
  %v6390 = vpack.c.b16 %v6387, %v6386
  %v6391 = vpack.c.b16 %v6389, %v6388
  %v6395 = vsel %vm2466, 0, 0
  %6397 = vmatpush.bf16.msra.mxu0 0
  %6398 = vmatpush.bf16.msra.mxu0 0
  %6399 = vmatpush.bf16.msra.mxu0 0
  %6400 = vmatpush.bf16.msra.mxu0 0
  %6401 = vmatpush.bf16.msra.mxu0 0
  %6402 = vmatpush.bf16.msra.mxu0 0
  %6403 = vmatpush.bf16.msra.mxu0 %v6391
  %6404 = vmatpush.bf16.msra.mxu0 %v6390
  %6405 = vmatmul.bf16.gmra.mxu0 %v6395
  %v6406 = vpop.f32.mrf.mxu0
  %v6407 = vadd.f32 0.0, %v6406
  %v6408 = vpop.f32.mrf.mxu0
  %6409 = vdwg.mxu0
  %v6410 = vadd.f32 %v6350, %v6407
  %v6411 = vmul.f32 %v6410, 0.5
  %v6412 = vtanh.pop %v6411
  %v6413 = vadd.f32 %v6412, 1.0
  %v6414 = vmul.f32 %v6413, 0.5
  %v6415 = vtanh.pop %v6410
  %v6416 = vmul.f32 %v6414, 0.0
  %6418 = vrot.lane.b32.xlu0 %v6415, 64
  %v6419 = vpop.permute.xlu0 %6418
  %v6421 = vmul.f32 %v6414, %v6419
  %6423 = vrot.lane.b32.xlu0 %v6421, 32
  %v6424 = vpop.permute.xlu0 %6423
  %v6426 = vadd.f32 %v6416, %v6424
  %v6427 = vtanh.pop %v6426
  %6429 = vrot.lane.b32.xlu0 %v6427, 64
  %v6430 = vpop.permute.xlu0 %6429
  %v6432 = vmul.f32 %v6414, %v6430
  %6434 = vrot.lane.b32.xlu0 %v6432, 32
  %v6435 = vpop.permute.xlu0 %6434
  %v6437 = vsel %vm2466, %v6435, 0.0
  %v6438 = vpack.c.bf16 %v6437, %v6437
  %v6440 = vperm.slane %v6381, 0
  %v6450 = vunpack.c.l.b16 %v6373
  %v6451 = vunpack.c.l.b16 %v6374
  %v6452 = vunpack.c.l.b16 %v6375
  %v6453 = vunpack.c.l.b16 %v6376
  %v6454 = vunpack.c.l.b16 %v6377
  %v6455 = vunpack.c.l.b16 %v6378
  %v6456 = vunpack.c.l.b16 %v6379
  %v6457 = vunpack.c.l.b16 %v6380
  %v6458 = vpack.c.b16 %v6451, %v6450
  %v6459 = vpack.c.b16 %v6453, %v6452
  %v6460 = vpack.c.b16 %v6455, %v6454
  %v6461 = vpack.c.b16 %v6457, %v6456
  %v6467 = vsel %vm5620, %v6438, 0
  %6469 = vmatpush.bf16.msra.mxu0 0
  %6470 = vmatpush.bf16.msra.mxu0 0
  %6471 = vmatpush.bf16.msra.mxu0 0
  %6472 = vmatpush.bf16.msra.mxu0 0
  %6473 = vmatpush.bf16.msra.mxu0 %v6461
  %6474 = vmatpush.bf16.msra.mxu0 %v6460
  %6475 = vmatpush.bf16.msra.mxu0 %v6459
  %6476 = vmatpush.bf16.msra.mxu0 %v6458
  %6477 = vmatmul.bf16.gmra.mxu0 %v6467
  %v6478 = vpop.f32.mrf.mxu0
  %v6479 = vadd.f32 %v6440, %v6478
  %v6480 = vpop.f32.mrf.mxu0
  %6481 = vdwg.mxu0
  %v6482 = vmul.f32 %v6479, 0.5
  %v6483 = vtanh.pop %v6482
  %v6484 = vadd.f32 %v6483, 1.0
  %v6485 = vmul.f32 %v6484, 0.5
  %v6486 = vtanh.pop %v6479
  %v6487 = vmul.f32 %v6485, 0.0
  %6489 = vrot.lane.b32.xlu0 %v6486, 64
  %v6490 = vpop.permute.xlu0 %6489
  %v6492 = vmul.f32 %v6485, %v6490
  %6494 = vrot.lane.b32.xlu0 %v6492, 32
  %v6495 = vpop.permute.xlu0 %6494
  %v6497 = vadd.f32 %v6487, %v6495
  %v6498 = vtanh.pop %v6497
  %6500 = vrot.lane.b32.xlu0 %v6498, 64
  %v6501 = vpop.permute.xlu0 %6500
  %v6503 = vmul.f32 %v6485, %v6501
  %v6504 = vpack.c.bf16 %v6432, %v6432
  %6506 = vrot.lane.b32.xlu0 %v6504, 32
  %v6507 = vpop.permute.xlu0 %6506
  %v6509 = vsel %vm2466, %v6507, 0
  %6511 = vmatpush.bf16.msra.mxu0 0
  %6512 = vmatpush.bf16.msra.mxu0 0
  %6513 = vmatpush.bf16.msra.mxu0 0
  %6514 = vmatpush.bf16.msra.mxu0 0
  %6515 = vmatpush.bf16.msra.mxu0 0
  %6516 = vmatpush.bf16.msra.mxu0 0
  %6517 = vmatpush.bf16.msra.mxu0 %v6391
  %6518 = vmatpush.bf16.msra.mxu0 %v6390
  %6519 = vmatmul.bf16.gmra.mxu0 %v6509
  %v6520 = vpop.f32.mrf.mxu0
  %v6521 = vadd.f32 0.0, %v6520
  %v6522 = vpop.f32.mrf.mxu0
  %6523 = vdwg.mxu0
  %v6524 = vadd.f32 %v6352, %v6521
  %v6525 = vmul.f32 %v6524, 0.5
  %v6526 = vtanh.pop %v6525
  %v6527 = vadd.f32 %v6526, 1.0
  %v6528 = vmul.f32 %v6527, 0.5
  %v6529 = vtanh.pop %v6524
  %v6530 = vmul.f32 %v6528, %v6426
  %6532 = vrot.lane.b32.xlu0 %v6529, 64
  %v6533 = vpop.permute.xlu0 %6532
  %v6535 = vmul.f32 %v6528, %v6533
  %6537 = vrot.lane.b32.xlu0 %v6535, 32
  %v6538 = vpop.permute.xlu0 %6537
  %v6540 = vadd.f32 %v6530, %v6538
  %v6541 = vtanh.pop %v6540
  %6543 = vrot.lane.b32.xlu0 %v6541, 64
  %v6544 = vpop.permute.xlu0 %6543
  %v6546 = vmul.f32 %v6528, %v6544
  %6548 = vrot.lane.b32.xlu0 %v6546, 32
  %v6549 = vpop.permute.xlu0 %6548
  %6552 = vrot.lane.b32.xlu0 %v6503, 64
  %v6553 = vpop.permute.xlu0 %6552
  %v6555 = vsel %vm2466, %v6549, %v6553
  %v6556 = vpack.c.bf16 %v6555, %v6555
  %v6558 = vsel %vm5620, %v6556, 0
  %6560 = vmatpush.bf16.msra.mxu0 0
  %6561 = vmatpush.bf16.msra.mxu0 0
  %6562 = vmatpush.bf16.msra.mxu0 0
  %6563 = vmatpush.bf16.msra.mxu0 0
  %6564 = vmatpush.bf16.msra.mxu0 %v6461
  %6565 = vmatpush.bf16.msra.mxu0 %v6460
  %6566 = vmatpush.bf16.msra.mxu0 %v6459
  %6567 = vmatpush.bf16.msra.mxu0 %v6458
  %6568 = vmatmul.bf16.gmra.mxu0 %v6558
  %v6569 = vpop.f32.mrf.mxu0
  %v6570 = vadd.f32 %v6440, %v6569
  %v6571 = vpop.f32.mrf.mxu0
  %6572 = vdwg.mxu0
  %v6573 = vmul.f32 %v6570, 0.5
  %v6574 = vtanh.pop %v6573
  %v6575 = vadd.f32 %v6574, 1.0
  %v6576 = vmul.f32 %v6575, 0.5
  %v6577 = vtanh.pop %v6570
  %v6578 = vmul.f32 %v6576, %v6497
  %6580 = vrot.lane.b32.xlu0 %v6577, 64
  %v6581 = vpop.permute.xlu0 %6580
  %v6583 = vmul.f32 %v6576, %v6581
  %6585 = vrot.lane.b32.xlu0 %v6583, 32
  %v6586 = vpop.permute.xlu0 %6585
  %v6588 = vadd.f32 %v6578, %v6586
  %v6589 = vtanh.pop %v6588
  %6591 = vrot.lane.b32.xlu0 %v6589, 64
  %v6592 = vpop.permute.xlu0 %6591
  %v6594 = vmul.f32 %v6576, %v6592
  %v6595 = vpack.c.bf16 %v6546, %v6546
  %6597 = vrot.lane.b32.xlu0 %v6595, 32
  %v6598 = vpop.permute.xlu0 %6597
  %v6600 = vsel %vm2466, %v6598, 0
  %6602 = vmatpush.bf16.msra.mxu0 0
  %6603 = vmatpush.bf16.msra.mxu0 0
  %6604 = vmatpush.bf16.msra.mxu0 0
  %6605 = vmatpush.bf16.msra.mxu0 0
  %6606 = vmatpush.bf16.msra.mxu0 0
  %6607 = vmatpush.bf16.msra.mxu0 0
  %6608 = vmatpush.bf16.msra.mxu0 %v6391
  %6609 = vmatpush.bf16.msra.mxu0 %v6390
  %6610 = vmatmul.bf16.gmra.mxu0 %v6600
  %v6611 = vpop.f32.mrf.mxu0
  %v6612 = vadd.f32 0.0, %v6611
  %v6613 = vpop.f32.mrf.mxu0
  %6614 = vdwg.mxu0
  %v6615 = vadd.f32 %v6355, %v6612
  %v6616 = vmul.f32 %v6615, 0.5
  %v6617 = vtanh.pop %v6616
  %v6618 = vadd.f32 %v6617, 1.0
  %v6619 = vmul.f32 %v6618, 0.5
  %v6620 = vtanh.pop %v6615
  %v6621 = vmul.f32 %v6619, %v6540
  %6623 = vrot.lane.b32.xlu0 %v6620, 64
  %v6624 = vpop.permute.xlu0 %6623
  %v6626 = vmul.f32 %v6619, %v6624
  %6628 = vrot.lane.b32.xlu0 %v6626, 32
  %v6629 = vpop.permute.xlu0 %6628
  %v6631 = vadd.f32 %v6621, %v6629
  %v6632 = vtanh.pop %v6631
  %6634 = vrot.lane.b32.xlu0 %v6632, 64
  %v6635 = vpop.permute.xlu0 %6634
  %v6637 = vmul.f32 %v6619, %v6635
  %6639 = vrot.lane.b32.xlu0 %v6637, 32
  %v6640 = vpop.permute.xlu0 %6639
  %6643 = vrot.lane.b32.xlu0 %v6594, 64
  %v6644 = vpop.permute.xlu0 %6643
  %v6646 = vsel %vm2466, %v6640, %v6644
  %v6647 = vpack.c.bf16 %v6646, %v6646
  %v6649 = vsel %vm5620, %v6647, 0
  %6651 = vmatpush.bf16.msra.mxu0 0
  %6652 = vmatpush.bf16.msra.mxu0 0
  %6653 = vmatpush.bf16.msra.mxu0 0
  %6654 = vmatpush.bf16.msra.mxu0 0
  %6655 = vmatpush.bf16.msra.mxu0 %v6461
  %6656 = vmatpush.bf16.msra.mxu0 %v6460
  %6657 = vmatpush.bf16.msra.mxu0 %v6459
  %6658 = vmatpush.bf16.msra.mxu0 %v6458
  %6659 = vmatmul.bf16.gmra.mxu0 %v6649
  %v6660 = vpop.f32.mrf.mxu0
  %v6661 = vadd.f32 %v6440, %v6660
  %v6662 = vpop.f32.mrf.mxu0
  %6663 = vdwg.mxu0
  %v6664 = vmul.f32 %v6661, 0.5
  %v6665 = vtanh.pop %v6664
  %v6666 = vadd.f32 %v6665, 1.0
  %v6667 = vmul.f32 %v6666, 0.5
  %v6668 = vtanh.pop %v6661
  %v6669 = vmul.f32 %v6667, %v6588
  %6671 = vrot.lane.b32.xlu0 %v6668, 64
  %v6672 = vpop.permute.xlu0 %6671
  %v6674 = vmul.f32 %v6667, %v6672
  %6676 = vrot.lane.b32.xlu0 %v6674, 32
  %v6677 = vpop.permute.xlu0 %6676
  %v6679 = vadd.f32 %v6669, %v6677
  %v6680 = vtanh.pop %v6679
  %6682 = vrot.lane.b32.xlu0 %v6680, 64
  %v6683 = vpop.permute.xlu0 %6682
  %v6685 = vmul.f32 %v6667, %v6683
  %v6686 = vpack.c.bf16 %v6637, %v6637
  %6688 = vrot.lane.b32.xlu0 %v6686, 32
  %v6689 = vpop.permute.xlu0 %6688
  %v6691 = vsel %vm2466, %v6689, 0
  %6693 = vmatpush.bf16.msra.mxu0 0
  %6694 = vmatpush.bf16.msra.mxu0 0
  %6695 = vmatpush.bf16.msra.mxu0 0
  %6696 = vmatpush.bf16.msra.mxu0 0
  %6697 = vmatpush.bf16.msra.mxu0 0
  %6698 = vmatpush.bf16.msra.mxu0 0
  %6699 = vmatpush.bf16.msra.mxu0 %v6391
  %6700 = vmatpush.bf16.msra.mxu0 %v6390
  %6701 = vmatmul.bf16.gmra.mxu0 %v6691
  %v6702 = vpop.f32.mrf.mxu0
  %v6703 = vadd.f32 0.0, %v6702
  %v6704 = vpop.f32.mrf.mxu0
  %6705 = vdwg.mxu0
  %v6706 = vadd.f32 %v6357, %v6703
  %v6707 = vmul.f32 %v6706, 0.5
  %v6708 = vtanh.pop %v6707
  %v6709 = vadd.f32 %v6708, 1.0
  %v6710 = vmul.f32 %v6709, 0.5
  %v6711 = vtanh.pop %v6706
  %v6712 = vmul.f32 %v6710, %v6631
  %6714 = vrot.lane.b32.xlu0 %v6711, 64
  %v6715 = vpop.permute.xlu0 %6714
  %v6717 = vmul.f32 %v6710, %v6715
  %6719 = vrot.lane.b32.xlu0 %v6717, 32
  %v6720 = vpop.permute.xlu0 %6719
  %v6722 = vadd.f32 %v6712, %v6720
  %v6723 = vtanh.pop %v6722
  %6725 = vrot.lane.b32.xlu0 %v6723, 64
  %v6726 = vpop.permute.xlu0 %6725
  %v6728 = vmul.f32 %v6710, %v6726
  %6730 = vrot.lane.b32.xlu0 %v6728, 32
  %v6731 = vpop.permute.xlu0 %6730
  %6734 = vrot.lane.b32.xlu0 %v6685, 64
  %v6735 = vpop.permute.xlu0 %6734
  %v6737 = vsel %vm2466, %v6731, %v6735
  %v6738 = vpack.c.bf16 %v6737, %v6737
  %v6740 = vsel %vm5620, %v6738, 0
  %6742 = vmatpush.bf16.msra.mxu0 0
  %6743 = vmatpush.bf16.msra.mxu0 0
  %6744 = vmatpush.bf16.msra.mxu0 0
  %6745 = vmatpush.bf16.msra.mxu0 0
  %6746 = vmatpush.bf16.msra.mxu0 %v6461
  %6747 = vmatpush.bf16.msra.mxu0 %v6460
  %6748 = vmatpush.bf16.msra.mxu0 %v6459
  %6749 = vmatpush.bf16.msra.mxu0 %v6458
  %6750 = vmatmul.bf16.gmra.mxu0 %v6740
  %v6751 = vpop.f32.mrf.mxu0
  %v6752 = vadd.f32 %v6440, %v6751
  %v6753 = vpop.f32.mrf.mxu0
  %6754 = vdwg.mxu0
  %v6755 = vmul.f32 %v6752, 0.5
  %v6756 = vtanh.pop %v6755
  %v6757 = vadd.f32 %v6756, 1.0
  %v6758 = vmul.f32 %v6757, 0.5
  %v6759 = vtanh.pop %v6752
  %v6760 = vmul.f32 %v6758, %v6679
  %6762 = vrot.lane.b32.xlu0 %v6759, 64
  %v6763 = vpop.permute.xlu0 %6762
  %v6765 = vmul.f32 %v6758, %v6763
  %6767 = vrot.lane.b32.xlu0 %v6765, 32
  %v6768 = vpop.permute.xlu0 %6767
  %v6770 = vadd.f32 %v6760, %v6768
  %v6771 = vtanh.pop %v6770
  %6773 = vrot.lane.b32.xlu0 %v6771, 64
  %v6774 = vpop.permute.xlu0 %6773
  %v6776 = vmul.f32 %v6758, %v6774
  %v6777 = vpack.c.bf16 %v6728, %v6728
  %6779 = vrot.lane.b32.xlu0 %v6777, 32
  %v6780 = vpop.permute.xlu0 %6779
  %v6782 = vsel %vm2466, %v6780, 0
  %6784 = vmatpush.bf16.msra.mxu0 0
  %6785 = vmatpush.bf16.msra.mxu0 0
  %6786 = vmatpush.bf16.msra.mxu0 0
  %6787 = vmatpush.bf16.msra.mxu0 0
  %6788 = vmatpush.bf16.msra.mxu0 0
  %6789 = vmatpush.bf16.msra.mxu0 0
  %6790 = vmatpush.bf16.msra.mxu0 %v6391
  %6791 = vmatpush.bf16.msra.mxu0 %v6390
  %6792 = vmatmul.bf16.gmra.mxu0 %v6782
  %v6793 = vpop.f32.mrf.mxu0
  %v6794 = vadd.f32 0.0, %v6793
  %v6795 = vpop.f32.mrf.mxu0
  %6796 = vdwg.mxu0
  %v6797 = vadd.f32 %v6360, %v6794
  %v6798 = vmul.f32 %v6797, 0.5
  %v6799 = vtanh.pop %v6798
  %v6800 = vadd.f32 %v6799, 1.0
  %v6801 = vmul.f32 %v6800, 0.5
  %v6802 = vtanh.pop %v6797
  %v6803 = vmul.f32 %v6801, %v6722
  %6805 = vrot.lane.b32.xlu0 %v6802, 64
  %v6806 = vpop.permute.xlu0 %6805
  %v6808 = vmul.f32 %v6801, %v6806
  %6810 = vrot.lane.b32.xlu0 %v6808, 32
  %v6811 = vpop.permute.xlu0 %6810
  %v6813 = vadd.f32 %v6803, %v6811
  %v6814 = vtanh.pop %v6813
  %6816 = vrot.lane.b32.xlu0 %v6814, 64
  %v6817 = vpop.permute.xlu0 %6816
  %v6819 = vmul.f32 %v6801, %v6817
  %6821 = vrot.lane.b32.xlu0 %v6819, 32
  %v6822 = vpop.permute.xlu0 %6821
  %6825 = vrot.lane.b32.xlu0 %v6776, 64
  %v6826 = vpop.permute.xlu0 %6825
  %v6828 = vsel %vm2466, %v6822, %v6826
  %v6829 = vpack.c.bf16 %v6828, %v6828
  %v6831 = vsel %vm5620, %v6829, 0
  %6833 = vmatpush.bf16.msra.mxu0 0
  %6834 = vmatpush.bf16.msra.mxu0 0
  %6835 = vmatpush.bf16.msra.mxu0 0
  %6836 = vmatpush.bf16.msra.mxu0 0
  %6837 = vmatpush.bf16.msra.mxu0 %v6461
  %6838 = vmatpush.bf16.msra.mxu0 %v6460
  %6839 = vmatpush.bf16.msra.mxu0 %v6459
  %6840 = vmatpush.bf16.msra.mxu0 %v6458
  %6841 = vmatmul.bf16.gmra.mxu0 %v6831
  %v6842 = vpop.f32.mrf.mxu0
  %v6843 = vadd.f32 %v6440, %v6842
  %v6844 = vpop.f32.mrf.mxu0
  %6845 = vdwg.mxu0
  %v6846 = vmul.f32 %v6843, 0.5
  %v6847 = vtanh.pop %v6846
  %v6848 = vadd.f32 %v6847, 1.0
  %v6849 = vmul.f32 %v6848, 0.5
  %v6850 = vtanh.pop %v6843
  %v6851 = vmul.f32 %v6849, %v6770
  %6853 = vrot.lane.b32.xlu0 %v6850, 64
  %v6854 = vpop.permute.xlu0 %6853
  %v6856 = vmul.f32 %v6849, %v6854
  %6858 = vrot.lane.b32.xlu0 %v6856, 32
  %v6859 = vpop.permute.xlu0 %6858
  %v6861 = vadd.f32 %v6851, %v6859
  %v6862 = vtanh.pop %v6861
  %6864 = vrot.lane.b32.xlu0 %v6862, 64
  %v6865 = vpop.permute.xlu0 %6864
  %v6867 = vmul.f32 %v6849, %v6865
  %v6868 = vpack.c.bf16 %v6819, %v6819
  %6870 = vrot.lane.b32.xlu0 %v6868, 32
  %v6871 = vpop.permute.xlu0 %6870
  %v6873 = vsel %vm2466, %v6871, 0
  %6875 = vmatpush.bf16.msra.mxu0 0
  %6876 = vmatpush.bf16.msra.mxu0 0
  %6877 = vmatpush.bf16.msra.mxu0 0
  %6878 = vmatpush.bf16.msra.mxu0 0
  %6879 = vmatpush.bf16.msra.mxu0 0
  %6880 = vmatpush.bf16.msra.mxu0 0
  %6881 = vmatpush.bf16.msra.mxu0 %v6391
  %6882 = vmatpush.bf16.msra.mxu0 %v6390
  %6883 = vmatmul.bf16.gmra.mxu0 %v6873
  %v6884 = vpop.f32.mrf.mxu0
  %v6885 = vadd.f32 0.0, %v6884
  %v6886 = vpop.f32.mrf.mxu0
  %6887 = vdwg.mxu0
  %v6888 = vadd.f32 %v6362, %v6885
  %v6889 = vmul.f32 %v6888, 0.5
  %v6890 = vtanh.pop %v6889
  %v6891 = vadd.f32 %v6890, 1.0
  %v6892 = vmul.f32 %v6891, 0.5
  %v6893 = vtanh.pop %v6888
  %v6894 = vmul.f32 %v6892, %v6813
  %6896 = vrot.lane.b32.xlu0 %v6893, 64
  %v6897 = vpop.permute.xlu0 %6896
  %v6899 = vmul.f32 %v6892, %v6897
  %6901 = vrot.lane.b32.xlu0 %v6899, 32
  %v6902 = vpop.permute.xlu0 %6901
  %v6904 = vadd.f32 %v6894, %v6902
  %v6905 = vtanh.pop %v6904
  %6907 = vrot.lane.b32.xlu0 %v6905, 64
  %v6908 = vpop.permute.xlu0 %6907
  %v6910 = vmul.f32 %v6892, %v6908
  %6912 = vrot.lane.b32.xlu0 %v6910, 32
  %v6913 = vpop.permute.xlu0 %6912
  %6916 = vrot.lane.b32.xlu0 %v6867, 64
  %v6917 = vpop.permute.xlu0 %6916
  %v6919 = vsel %vm2466, %v6913, %v6917
  %v6920 = vpack.c.bf16 %v6919, %v6919
  %v6922 = vsel %vm5620, %v6920, 0
  %6924 = vmatpush.bf16.msra.mxu0 0
  %6925 = vmatpush.bf16.msra.mxu0 0
  %6926 = vmatpush.bf16.msra.mxu0 0
  %6927 = vmatpush.bf16.msra.mxu0 0
  %6928 = vmatpush.bf16.msra.mxu0 %v6461
  %6929 = vmatpush.bf16.msra.mxu0 %v6460
  %6930 = vmatpush.bf16.msra.mxu0 %v6459
  %6931 = vmatpush.bf16.msra.mxu0 %v6458
  %6932 = vmatmul.bf16.gmra.mxu0 %v6922
  %v6933 = vpop.f32.mrf.mxu0
  %v6934 = vadd.f32 %v6440, %v6933
  %v6935 = vpop.f32.mrf.mxu0
  %6936 = vdwg.mxu0
  %v6937 = vmul.f32 %v6934, 0.5
  %v6938 = vtanh.pop %v6937
  %v6939 = vadd.f32 %v6938, 1.0
  %v6940 = vmul.f32 %v6939, 0.5
  %v6941 = vtanh.pop %v6934
  %v6942 = vmul.f32 %v6940, %v6861
  %6944 = vrot.lane.b32.xlu0 %v6941, 64
  %v6945 = vpop.permute.xlu0 %6944
  %v6947 = vmul.f32 %v6940, %v6945
  %6949 = vrot.lane.b32.xlu0 %v6947, 32
  %v6950 = vpop.permute.xlu0 %6949
  %v6952 = vadd.f32 %v6942, %v6950
  %v6953 = vtanh.pop %v6952
  %6955 = vrot.lane.b32.xlu0 %v6953, 64
  %v6956 = vpop.permute.xlu0 %6955
  %v6958 = vmul.f32 %v6940, %v6956
  %v6959 = vpack.c.bf16 %v6910, %v6910
  %6961 = vrot.lane.b32.xlu0 %v6959, 32
  %v6962 = vpop.permute.xlu0 %6961
  %v6964 = vsel %vm2466, %v6962, 0
  %6966 = vmatpush.bf16.msra.mxu0 0
  %6967 = vmatpush.bf16.msra.mxu0 0
  %6968 = vmatpush.bf16.msra.mxu0 0
  %6969 = vmatpush.bf16.msra.mxu0 0
  %6970 = vmatpush.bf16.msra.mxu0 0
  %6971 = vmatpush.bf16.msra.mxu0 0
  %6972 = vmatpush.bf16.msra.mxu0 %v6391
  %6973 = vmatpush.bf16.msra.mxu0 %v6390
  %6974 = vmatmul.bf16.gmra.mxu0 %v6964
  %v6975 = vpop.f32.mrf.mxu0
  %v6976 = vadd.f32 0.0, %v6975
  %v6977 = vpop.f32.mrf.mxu0
  %6978 = vdwg.mxu0
  %v6979 = vadd.f32 %v6365, %v6976
  %v6980 = vmul.f32 %v6979, 0.5
  %v6981 = vtanh.pop %v6980
  %v6982 = vadd.f32 %v6981, 1.0
  %v6983 = vmul.f32 %v6982, 0.5
  %v6984 = vtanh.pop %v6979
  %v6985 = vmul.f32 %v6983, %v6904
  %6987 = vrot.lane.b32.xlu0 %v6984, 64
  %v6988 = vpop.permute.xlu0 %6987
  %v6990 = vmul.f32 %v6983, %v6988
  %6992 = vrot.lane.b32.xlu0 %v6990, 32
  %v6993 = vpop.permute.xlu0 %6992
  %v6995 = vadd.f32 %v6985, %v6993
  %v6996 = vtanh.pop %v6995
  %6998 = vrot.lane.b32.xlu0 %v6996, 64
  %v6999 = vpop.permute.xlu0 %6998
  %v7001 = vmul.f32 %v6983, %v6999
  %7003 = vrot.lane.b32.xlu0 %v7001, 32
  %v7004 = vpop.permute.xlu0 %7003
  %7007 = vrot.lane.b32.xlu0 %v6958, 64
  %v7008 = vpop.permute.xlu0 %7007
  %v7010 = vsel %vm2466, %v7004, %v7008
  %v7011 = vpack.c.bf16 %v7010, %v7010
  %v7013 = vsel %vm5620, %v7011, 0
  %7015 = vmatpush.bf16.msra.mxu0 0
  %7016 = vmatpush.bf16.msra.mxu0 0
  %7017 = vmatpush.bf16.msra.mxu0 0
  %7018 = vmatpush.bf16.msra.mxu0 0
  %7019 = vmatpush.bf16.msra.mxu0 %v6461
  %7020 = vmatpush.bf16.msra.mxu0 %v6460
  %7021 = vmatpush.bf16.msra.mxu0 %v6459
  %7022 = vmatpush.bf16.msra.mxu0 %v6458
  %7023 = vmatmul.bf16.gmra.mxu0 %v7013
  %v7024 = vpop.f32.mrf.mxu0
  %v7025 = vadd.f32 %v6440, %v7024
  %v7026 = vpop.f32.mrf.mxu0
  %7027 = vdwg.mxu0
  %v7028 = vmul.f32 %v7025, 0.5
  %v7029 = vtanh.pop %v7028
  %v7030 = vadd.f32 %v7029, 1.0
  %v7031 = vmul.f32 %v7030, 0.5
  %v7032 = vtanh.pop %v7025
  %v7033 = vmul.f32 %v7031, %v6952
  %7035 = vrot.lane.b32.xlu0 %v7032, 64
  %v7036 = vpop.permute.xlu0 %7035
  %v7038 = vmul.f32 %v7031, %v7036
  %7040 = vrot.lane.b32.xlu0 %v7038, 32
  %v7041 = vpop.permute.xlu0 %7040
  %v7043 = vadd.f32 %v7033, %v7041
  %v7044 = vtanh.pop %v7043
  %7046 = vrot.lane.b32.xlu0 %v7044, 64
  %v7047 = vpop.permute.xlu0 %7046
  %v7049 = vmul.f32 %v7031, %v7047
  %v7050 = vpack.c.bf16 %v7001, %v7001
  %7052 = vrot.lane.b32.xlu0 %v7050, 32
  %v7053 = vpop.permute.xlu0 %7052
  %v7055 = vsel %vm2466, %v7053, 0
  %7057 = vmatpush.bf16.msra.mxu0 0
  %7058 = vmatpush.bf16.msra.mxu0 0
  %7059 = vmatpush.bf16.msra.mxu0 0
  %7060 = vmatpush.bf16.msra.mxu0 0
  %7061 = vmatpush.bf16.msra.mxu0 0
  %7062 = vmatpush.bf16.msra.mxu0 0
  %7063 = vmatpush.bf16.msra.mxu0 %v6391
  %7064 = vmatpush.bf16.msra.mxu0 %v6390
  %7065 = vmatmul.bf16.gmra.mxu0 %v7055
  %v7066 = vpop.f32.mrf.mxu0
  %v7067 = vadd.f32 0.0, %v7066
  %v7068 = vpop.f32.mrf.mxu0
  %7069 = vdwg.mxu0
  %v7070 = vadd.f32 %v6367, %v7067
  %v7071 = vmul.f32 %v7070, 0.5
  %v7072 = vtanh.pop %v7071
  %v7073 = vadd.f32 %v7072, 1.0
  %v7074 = vmul.f32 %v7073, 0.5
  %v7075 = vtanh.pop %v7070
  %v7076 = vmul.f32 %v7074, %v6995
  %7078 = vrot.lane.b32.xlu0 %v7075, 64
  %v7079 = vpop.permute.xlu0 %7078
  %v7081 = vmul.f32 %v7074, %v7079
  %7083 = vrot.lane.b32.xlu0 %v7081, 32
  %v7084 = vpop.permute.xlu0 %7083
  %v7086 = vadd.f32 %v7076, %v7084
  %v7087 = vtanh.pop %v7086
  %7089 = vrot.lane.b32.xlu0 %v7087, 64
  %v7090 = vpop.permute.xlu0 %7089
  %v7092 = vmul.f32 %v7074, %v7090
  %7094 = vrot.lane.b32.xlu0 %v7092, 32
  %v7095 = vpop.permute.xlu0 %7094
  %7098 = vrot.lane.b32.xlu0 %v7049, 64
  %v7099 = vpop.permute.xlu0 %7098
  %v7101 = vsel %vm2466, %v7095, %v7099
  %v7102 = vpack.c.bf16 %v7101, %v7101
  %v7104 = vsel %vm5620, %v7102, 0
  %7106 = vmatpush.bf16.msra.mxu0 0
  %7107 = vmatpush.bf16.msra.mxu0 0
  %7108 = vmatpush.bf16.msra.mxu0 0
  %7109 = vmatpush.bf16.msra.mxu0 0
  %7110 = vmatpush.bf16.msra.mxu0 %v6461
  %7111 = vmatpush.bf16.msra.mxu0 %v6460
  %7112 = vmatpush.bf16.msra.mxu0 %v6459
  %7113 = vmatpush.bf16.msra.mxu0 %v6458
  %7114 = vmatmul.bf16.gmra.mxu0 %v7104
  %v7115 = vpop.f32.mrf.mxu0
  %v7116 = vadd.f32 %v6440, %v7115
  %v7117 = vpop.f32.mrf.mxu0
  %7118 = vdwg.mxu0
  %v7119 = vmul.f32 %v7116, 0.5
  %v7120 = vtanh.pop %v7119
  %v7121 = vadd.f32 %v7120, 1.0
  %v7122 = vmul.f32 %v7121, 0.5
  %v7123 = vtanh.pop %v7116
  %v7124 = vmul.f32 %v7122, %v7043
  %7126 = vrot.lane.b32.xlu0 %v7123, 64
  %v7127 = vpop.permute.xlu0 %7126
  %v7129 = vmul.f32 %v7122, %v7127
  %7131 = vrot.lane.b32.xlu0 %v7129, 32
  %v7132 = vpop.permute.xlu0 %7131
  %v7134 = vadd.f32 %v7124, %v7132
  %v7135 = vtanh.pop %v7134
  %7137 = vrot.lane.b32.xlu0 %v7135, 64
  %v7138 = vpop.permute.xlu0 %7137
  %v7140 = vmul.f32 %v7122, %v7138
  %7142 = vrot.lane.b32.xlu0 %v6257, 32
  %v7143 = vpop.permute.xlu0 %7142
  %7146 = vrot.lane.b32.xlu0 %v7140, 96
  %v7147 = vpop.permute.xlu0 %7146
  %v7149 = vsel %vm2466, %v6289, %v7143
  %v7150 = vsel %vm5620, %v7149, %v7147
  %v7151 = vld [vmem:[%s16] sm:$0xf]
  %v7152 = vld [vmem:[%s16 + $0x4] sm:$0xf]
  %v7153 = vld [vmem:[%s16 + $0x8] sm:$0xf]
  %v7154 = vld [vmem:[%s16 + $0xc] sm:$0xf]
  %v7155 = vld [vmem:[%s16 + $0x10] sm:$0xf]
  %v7156 = vld [vmem:[%s16 + $0x14] sm:$0xf]
  %v7157 = vld [vmem:[%s16 + $0x18] sm:$0xf]
  %v7158 = vld [vmem:[%s16 + $0x1c] sm:$0xf]
  %v7159 = vld [vmem:[%s16 + $0x20] sm:$0xf]
  %v7160 = vld [vmem:[%s16 + $0x24] sm:$0xf]
  %v7161 = vld [vmem:[%s16 + $0x28] sm:$0xf]
  %v7162 = vld [vmem:[%s16 + $0x2c] sm:$0xf]
  %v7163 = vpack.c.bf16 %v7150, %v7150
  %v7164 = vld [vmem:[%s17] sm:$0x1]
  %v7166 = vperm.slane %v7164, 0
  %v7180 = vunpack.c.l.b16 %v7151
  %v7181 = vunpack.c.l.b16 %v7152
  %v7182 = vunpack.c.l.b16 %v7153
  %v7183 = vunpack.c.l.b16 %v7154
  %v7184 = vunpack.c.l.b16 %v7155
  %v7185 = vunpack.c.l.b16 %v7156
  %v7186 = vunpack.c.l.b16 %v7157
  %v7187 = vunpack.c.l.b16 %v7158
  %v7188 = vunpack.c.l.b16 %v7159
  %v7189 = vunpack.c.l.b16 %v7160
  %v7190 = vunpack.c.l.b16 %v7161
  %v7191 = vunpack.c.l.b16 %v7162
  %v7192 = vpack.c.b16 %v7181, %v7180
  %v7193 = vpack.c.b16 %v7183, %v7182
  %v7194 = vpack.c.b16 %v7185, %v7184
  %v7195 = vpack.c.b16 %v7187, %v7186
  %v7196 = vpack.c.b16 %v7189, %v7188
  %v7197 = vpack.c.b16 %v7191, %v7190
  %vm7204 = vcmask 785408
  %v7206 = vsel %vm7204, %v7163, 0
  %7208 = vmatpush.bf16.msra.mxu0 0
  %7209 = vmatpush.bf16.msra.mxu0 0
  %7210 = vmatpush.bf16.msra.mxu0 %v7197
  %7211 = vmatpush.bf16.msra.mxu0 %v7196
  %7212 = vmatpush.bf16.msra.mxu0 %v7195
  %7213 = vmatpush.bf16.msra.mxu0 %v7194
  %7214 = vmatpush.bf16.msra.mxu0 %v7193
  %7215 = vmatpush.bf16.msra.mxu0 %v7192
  %7216 = vmatmul.bf16.gmra.mxu0 %v7206
  %v7217 = vpop.f32.mrf.mxu0
  %v7218 = vadd.f32 %v7166, %v7217
  %v7219 = vpop.f32.mrf.mxu0
  %7220 = vdwg.mxu0
  %v7221 = vmul.f32 %v7218, 0.5
  %v7222 = vtanh.pop %v7221
  %v7223 = vadd.f32 %v7222, 1.0
  %v7224 = vmul.f32 %v7223, 0.5
  %7225 = vst [vmem:[%s18] sm:$0xff] %v7224
  // Predicated region
  $region74: #{encoder_decoder_forward.1} parent=0 // pred_check
    _
  $region75: #{encoder_decoder_forward.1} parent=0 // pred_check_branch
    %7227 = sbr.rel (0) target = $region77
  $region76: #{encoder_decoder_forward.1} parent=0 // pred_region
    _
  $region77: #{encoder_decoder_forward.1} parent=0 // pred_fallthru
    _
  // Predicated region
  $region78: #{encoder_decoder_forward.1} parent=0 // pred_check
    _
  $region79: #{encoder_decoder_forward.1} parent=0 // pred_check_branch
    %7229 = sbr.rel (0) target = $region81
  $region80: #{encoder_decoder_forward.1} parent=0 // pred_region
    _
  $region81: #{encoder_decoder_forward.1} parent=0 // pred_fallthru
    _

</llo_original>
